<compile_context>
chip_gen: v5e
topology: v5e:2x2
jax: 0.10.0
libtpu: 0.0.40
codegen_flags: <defaults>
</compile_context>

<pallas_src>
import math
import numpy as np

import jax
import jax.numpy as jnp
from jax import lax
from jax.experimental import pallas as pl
from jax.experimental.pallas import tpu as pltpu

SCALE_FACTORS = (1, 2, 4)
LN_EPS = 1e-5  # nn.TransformerEncoderLayer default layer_norm_eps


# ----------------------------------------------------------------------------
# Positional encoding (same math as the PyTorch PositionalEncoding buffer)
# ----------------------------------------------------------------------------
def positional_encoding(seq_len, d_model):
    # NOTE: assumes even d_model (true for the module's hidden_dim usage here).
    pos = np.arange(seq_len, dtype=np.float32)[:, None]
    div = np.exp(np.arange(0, d_model, 2, dtype=np.float32) * (-np.log(10000.0) / d_model))
    pe = np.zeros((seq_len, d_model), dtype=np.float32)
    pe[:, 0::2] = np.sin(pos * div)
    pe[:, 1::2] = np.cos(pos * div)
    return jnp.asarray(pe)


def _layer_norm(x, w, b, eps=LN_EPS):
    mu = jnp.mean(x, axis=-1, keepdims=True)
    xc = x - mu
    var = jnp.mean(xc * xc, axis=-1, keepdims=True)
    return xc * lax.rsqrt(var + eps) * w + b


# ----------------------------------------------------------------------------
# Pallas kernel: one scale branch per grid step, whole batch per step
# ----------------------------------------------------------------------------
def make_branch_kernel(num_layers, num_heads, B, S, D, IN):
    H = num_heads
    HD = D // H
    inv_sqrt = 1.0 / math.sqrt(HD)

    def kernel(lens_ref, x_ref, pe_ref, win_ref, bin_ref,
               qkvw_ref, qkvb_ref, ow_ref, ob_ref,
               n1w_ref, n1b_ref, f1w_ref, f1b_ref, f2w_ref, f2b_ref,
               n2w_ref, n2b_ref, out_ref):
        br = pl.program_id(0)
        valid_len = lens_ref[br]                                   # int32 scalar (SMEM)

        # ---- shared input Linear + positional encoding, on a (B*S, D) slab ----
        x = x_ref[0].reshape(B * S, IN)
        h = jnp.dot(x, win_ref[...], preferred_element_type=jnp.float32) + bin_ref[...]
        h = (h.reshape(B, S, D) + pe_ref[0][None]).reshape(B * S, D)

        # attention key mask: large negative bias on padded key positions
        key_ids = lax.broadcasted_iota(jnp.int32, (S, S), 1)
        mask_bias = jnp.where(key_ids < valid_len,
                              jnp.float32(0.0), jnp.float32(-1e30))      # (S, S)

        for l in range(num_layers):
            # ---- fused QKV projection: a single (D, 3D) matmul ----
            qkv = jnp.dot(h, qkvw_ref[0, l],
                          preferred_element_type=jnp.float32) + qkvb_ref[0, l]   # (B*S, 3D)

            # ---- per-head attention (tiny S x HD matmuls, batched over batch) ----
            ctx_heads = []
            for hh in range(H):
                qh = qkv[:, hh * HD:(hh + 1) * HD].reshape(B, S, HD)
                kh = qkv[:, D + hh * HD:D + (hh + 1) * HD].reshape(B, S, HD)
                vh = qkv[:, 2 * D + hh * HD:2 * D + (hh + 1) * HD].reshape(B, S, HD)
                s = jnp.einsum('bqe,bke->bqk', qh, kh,
                               preferred_element_type=jnp.float32) * inv_sqrt
                s = s + mask_bias[None]
                s = s - jnp.max(s, axis=-1, keepdims=True)
                p = jnp.exp(s)
                p = p * pl.reciprocal(jnp.sum(p, axis=-1, keepdims=True), approx=True)
                ctx_heads.append(jnp.einsum('bqk,bke->bqe', p, vh,
                                            preferred_element_type=jnp.float32))
            ctx = jnp.concatenate(ctx_heads, axis=-1).reshape(B * S, D)

            # ---- fused output projection + post-norm ----
            attn = jnp.dot(ctx, ow_ref[0, l],
                           preferred_element_type=jnp.float32) + ob_ref[0, l]
            h = _layer_norm(h + attn, n1w_ref[0, l], n1b_ref[0, l])

            # ---- feed-forward (ReLU) on the (B*S, D) slab ----
            f = jnp.dot(h, f1w_ref[0, l],
                        preferred_element_type=jnp.float32) + f1b_ref[0, l]
            f = jnp.maximum(f, 0.0)
            f = jnp.dot(f, f2w_ref[0, l],
                        preferred_element_type=jnp.float32) + f2b_ref[0, l]
            h = _layer_norm(h + f, n2w_ref[0, l], n2b_ref[0, l])

        # ---- masked mean pool over the valid sequence positions ----
        h3 = h.reshape(B, S, D)
        row_ids = lax.broadcasted_iota(jnp.int32, (S, D), 0)
        row_mask = (row_ids < valid_len).astype(jnp.float32)              # (S, D)
        pooled = jnp.sum(h3 * row_mask[None], axis=1) / valid_len.astype(jnp.float32)
        out_ref[0] = pooled                                               # (B, D)

    return kernel


def run_branches(lens, x_stacked, pe_stacked, params, num_layers, num_heads):
    NB, B, S, IN = x_stacked.shape
    D = params['w_in_t'].shape[1]
    kernel = make_branch_kernel(num_layers, num_heads, B, S, D, IN)

    def branch_spec(a):
        r = a.ndim
        return pl.BlockSpec((1,) + a.shape[1:],
                            lambda i, lens_ref, _r=r: (i,) + (0,) * (_r - 1))

    def shared_spec(a):
        r = a.ndim
        return pl.BlockSpec(a.shape, lambda i, lens_ref, _r=r: (0,) * _r)

    stacked_keys = ('qkvw', 'qkvb', 'ow', 'ob', 'n1w', 'n1b',
                    'f1w', 'f1b', 'f2w', 'f2b', 'n2w', 'n2b')
    stacked_w = [params[k] for k in stacked_keys]

    in_specs = [branch_spec(x_stacked), branch_spec(pe_stacked),
                shared_spec(params['w_in_t']), shared_spec(params['b_in'])] + \
               [branch_spec(w) for w in stacked_w]

    out = pl.pallas_call(
        kernel,
        out_shape=jax.ShapeDtypeStruct((NB, B, D), jnp.float32),
        grid_spec=pltpu.PrefetchScalarGridSpec(
            num_scalar_prefetch=1,
            grid=(NB,),
            in_specs=in_specs,
            out_specs=pl.BlockSpec((1, B, D), lambda i, lens_ref: (i, 0, 0)),
        ),
        compiler_params=pltpu.CompilerParams(
            dimension_semantics=("parallel",),
            vmem_limit_bytes=32 * 1024 * 1024),
    )(lens, x_stacked, pe_stacked, params['w_in_t'], params['b_in'], *stacked_w)
    return out                                                            # (NB, B, D)


# ----------------------------------------------------------------------------
# Pallas kernel: final ReLU + fc Linear on the pooled (NB, B, D) slab
# relu(concat_i pooled_i) @ W == sum_i relu(pooled_i) @ W_i
# ----------------------------------------------------------------------------
def head_kernel(c_ref, w_ref, b_ref, o_ref):
    nb = c_ref.shape[0]
    acc = jnp.dot(jnp.maximum(c_ref[0], 0.0), w_ref[0],
                  preferred_element_type=jnp.float32)
    for i in range(1, nb):
        acc = acc + jnp.dot(jnp.maximum(c_ref[i], 0.0), w_ref[i],
                            preferred_element_type=jnp.float32)
    o_ref[...] = acc + b_ref[...]


def run_head(pooled, fc_w_3, fc_b):
    B = pooled.shape[1]
    C = fc_w_3.shape[2]
    return pl.pallas_call(
        head_kernel,
        out_shape=jax.ShapeDtypeStruct((B, C), jnp.float32),
    )(pooled, fc_w_3, fc_b)


# ----------------------------------------------------------------------------
# Parameter init (deterministic, synthetic) — fused QKV / out-proj layouts,
# mirroring PyTorch's in_proj_weight / out_proj parameterization.
# ----------------------------------------------------------------------------
def init_params(key, input_dim, hidden_dim, num_heads, num_layers, num_classes, ff_dim):
    D, L, FF = hidden_dim, num_layers, ff_dim
    NB = len(SCALE_FACTORS)
    ks = jax.random.split(key, 12)

    def w(k, shape, scale=0.05):
        return scale * jax.random.normal(k, shape, jnp.float32)

    params = {
        'w_in_t': w(ks[0], (input_dim, D)),                   # shared input Linear (W^T)
        'b_in':   w(ks[1], (1, D)),
        'fc_w_t': w(ks[2], (D * NB, num_classes)),            # shared fc (W^T)
        'fc_b':   w(ks[3], (1, num_classes)),
        'qkvw': w(ks[4], (NB, L, D, 3 * D)),                  # fused in_proj (W^T)
        'qkvb': w(ks[5], (NB, L, 1, 3 * D)),
        'ow':   w(ks[6], (NB, L, D, D)),                      # out_proj (W^T)
        'ob':   w(ks[7], (NB, L, 1, D)),
        'n1w': jnp.ones((NB, L, 1, D), jnp.float32),
        'n1b': jnp.zeros((NB, L, 1, D), jnp.float32),
        'f1w': w(ks[8], (NB, L, D, FF)),
        'f1b': w(ks[9], (NB, L, 1, FF)),
        'f2w': w(ks[10], (NB, L, FF, D), scale=0.02),
        'f2b': w(ks[11], (NB, L, 1, D)),
        'n2w': jnp.ones((NB, L, 1, D), jnp.float32),
        'n2b': jnp.zeros((NB, L, 1, D), jnp.float32),
    }
    return params


# ----------------------------------------------------------------------------
# Full forward (Pallas) and pure-JAX reference
# ----------------------------------------------------------------------------
def multi_scale_transformer_forward(x, params, num_layers, num_heads):
    # TODO(synk): dropout (encoder layers and dropout_layer) is eval-mode identity.
    B, S, IN = x.shape
    D = params['w_in_t'].shape[1]
    NB = len(SCALE_FACTORS)

    lens, xs_list, pe_list = [], [], []
    for scale in SCALE_FACTORS:
        xs = x[:, ::scale, :]
        L_s = xs.shape[1]
        lens.append(L_s)
        xs_list.append(jnp.pad(xs, ((0, 0), (0, S - L_s), (0, 0))))
        pe_list.append(jnp.pad(positional_encoding(L_s, D), ((0, S - L_s), (0, 0))))
    x_stacked = jnp.stack(xs_list)                 # (NB, B, S, IN), zero padded
    pe_stacked = jnp.stack(pe_list)                # (NB, S, D),     zero padded
    lens_arr = jnp.asarray(lens, jnp.int32)        # (NB,) valid lengths (SMEM prefetch)

    pooled = run_branches(lens_arr, x_stacked, pe_stacked, params, num_layers, num_heads)
    fc_w_3 = params['fc_w_t'].reshape(NB, D, -1)   # per-branch slices of the fc weight
    return run_head(pooled, fc_w_3, params['fc_b'])


def reference_forward(x, params, num_layers, num_heads):
    D = params['w_in_t'].shape[1]
    H = num_heads
    HD = D // H
    outs = []
    for idx, scale in enumerate(SCALE_FACTORS):
        xs = x[:, ::scale, :]
        B, S, _ = xs.shape
        h = xs @ params['w_in_t'] + params['b_in']
        h = h + positional_encoding(S, D)[None]
        for l in range(num_layers):
            qkv = h @ params['qkvw'][idx, l] + params['qkvb'][idx, l]      # (B,S,3D)
            q = qkv[..., :D].reshape(B, S, H, HD)
            k = qkv[..., D:2 * D].reshape(B, S, H, HD)
            v = qkv[..., 2 * D:].reshape(B, S, H, HD)
            s = jnp.einsum('bqhe,bkhe->bhqk', q, k) / math.sqrt(HD)
            p = jax.nn.softmax(s, axis=-1)
            ctx = jnp.einsum('bhqk,bkhe->bqhe', p, v).reshape(B, S, D)
            attn = ctx @ params['ow'][idx, l] + params['ob'][idx, l]
            h = _layer_norm(h + attn, params['n1w'][idx, l], params['n1b'][idx, l])
            f = jnp.maximum(h @ params['f1w'][idx, l] + params['f1b'][idx, l], 0.0)
            f = f @ params['f2w'][idx, l] + params['f2b'][idx, l]
            h = _layer_norm(h + f, params['n2w'][idx, l], params['n2b'][idx, l])
        outs.append(h.mean(axis=1))
    c = jnp.concatenate(outs, axis=1)
    c = jnp.maximum(c, 0.0)
    return c @ params['fc_w_t'] + params['fc_b']


if __name__ == "__main__":
    B, S = 2, 16
    INPUT_DIM, HIDDEN_DIM = 4, 32
    NUM_HEADS, NUM_LAYERS, NUM_CLASSES = 4, 2, 5
    FF_DIM = 2048  # nn.TransformerEncoderLayer default dim_feedforward

    key = jax.random.PRNGKey(0)
    kx, kp = jax.random.split(key)
    x = jax.random.normal(kx, (B, S, INPUT_DIM), jnp.float32)
    params = init_params(kp, INPUT_DIM, HIDDEN_DIM, NUM_HEADS, NUM_LAYERS,
                         NUM_CLASSES, FF_DIM)

    out = jax.block_until_ready(
        multi_scale_transformer_forward(x, params, NUM_LAYERS, NUM_HEADS))
    ref = jax.block_until_ready(reference_forward(x, params, NUM_LAYERS, NUM_HEADS))

    # Tolerance chosen for f32 weights + approx-EUP reciprocal in the softmax
    # (~2^-12 relative); much tighter than the previous 2e-2.
    np.testing.assert_allclose(np.asarray(out), np.asarray(ref), rtol=5e-3, atol=5e-3)

    print("KERNEL_OK")
</pallas_src>

<mosaic_0001>
module attributes {stable_mosaic.version = 11 : i64} {
  func.func @kernel(%arg0: i32, %arg1: memref<3xi32, #tpu.memory_space<smem>>, %arg2: memref<1x2x16x4xf32, #tpu.memory_space<vmem>>, %arg3: memref<1x16x32xf32, #tpu.memory_space<vmem>>, %arg4: memref<4x32xf32, #tpu.memory_space<vmem>>, %arg5: memref<1x32xf32, #tpu.memory_space<vmem>>, %arg6: memref<1x2x32x96xf32, #tpu.memory_space<vmem>>, %arg7: memref<1x2x1x96xf32, #tpu.memory_space<vmem>>, %arg8: memref<1x2x32x32xf32, #tpu.memory_space<vmem>>, %arg9: memref<1x2x1x32xf32, #tpu.memory_space<vmem>>, %arg10: memref<1x2x1x32xf32, #tpu.memory_space<vmem>>, %arg11: memref<1x2x1x32xf32, #tpu.memory_space<vmem>>, %arg12: memref<1x2x32x2048xf32, #tpu.memory_space<vmem>>, %arg13: memref<1x2x1x2048xf32, #tpu.memory_space<vmem>>, %arg14: memref<1x2x2048x32xf32, #tpu.memory_space<vmem>>, %arg15: memref<1x2x1x32xf32, #tpu.memory_space<vmem>>, %arg16: memref<1x2x1x32xf32, #tpu.memory_space<vmem>>, %arg17: memref<1x2x1x32xf32, #tpu.memory_space<vmem>>, %arg18: memref<1x2x32xf32, #tpu.memory_space<vmem>>) attributes {dimension_semantics = [#tpu.dimension_semantics<parallel>], iteration_bounds = array<i64: 3>, scalar_prefetch = 1 : i64, scratch_operands = 0 : i64, tpu.core_type = #tpu.core_type<tc>, window_params = [{transform_indices = @transform_0, window_bounds = array<i64: 1, 2, 16, 4>}, {transform_indices = @transform_1, window_bounds = array<i64: 1, 16, 32>}, {pipeline_mode = #tpu.pipeline_mode<synchronous>, transform_indices = @transform_2, window_bounds = array<i64: 4, 32>}, {pipeline_mode = #tpu.pipeline_mode<synchronous>, transform_indices = @transform_3, window_bounds = array<i64: 1, 32>}, {transform_indices = @transform_4, window_bounds = array<i64: 1, 2, 32, 96>}, {transform_indices = @transform_5, window_bounds = array<i64: 1, 2, 1, 96>}, {transform_indices = @transform_6, window_bounds = array<i64: 1, 2, 32, 32>}, {transform_indices = @transform_7, window_bounds = array<i64: 1, 2, 1, 32>}, {transform_indices = @transform_8, window_bounds = array<i64: 1, 2, 1, 32>}, {transform_indices = @transform_9, window_bounds = array<i64: 1, 2, 1, 32>}, {transform_indices = @transform_10, window_bounds = array<i64: 1, 2, 32, 2048>}, {transform_indices = @transform_11, window_bounds = array<i64: 1, 2, 1, 2048>}, {transform_indices = @transform_12, window_bounds = array<i64: 1, 2, 2048, 32>}, {transform_indices = @transform_13, window_bounds = array<i64: 1, 2, 1, 32>}, {transform_indices = @transform_14, window_bounds = array<i64: 1, 2, 1, 32>}, {transform_indices = @transform_15, window_bounds = array<i64: 1, 2, 1, 32>}, {transform_indices = @transform_16, window_bounds = array<i64: 1, 2, 32>}]} {
    %0 = arith.index_cast %arg0 : i32 to index
    %1 = memref.load %arg1[%0] : memref<3xi32, #tpu.memory_space<smem>>
    %c0 = arith.constant 0 : index
    %c0_0 = arith.constant 0 : index
    %c0_1 = arith.constant 0 : index
    %c0_2 = arith.constant 0 : index
    %2 = vector.load %arg2[%c0, %c0_0, %c0_1, %c0_2] : memref<1x2x16x4xf32, #tpu.memory_space<vmem>>, vector<1x2x16x4xf32>
    %3 = vector.shape_cast %2 : vector<1x2x16x4xf32> to vector<2x16x4xf32>
    %4 = vector.shape_cast %3 : vector<2x16x4xf32> to vector<32x4xf32>
    %c0_3 = arith.constant 0 : index
    %c0_4 = arith.constant 0 : index
    %5 = vector.load %arg4[%c0_3, %c0_4] : memref<4x32xf32, #tpu.memory_space<vmem>>, vector<4x32xf32>
    %cst = arith.constant dense<0.000000e+00> : vector<32x32xf32>
    %6 = tpu.matmul %4, %5, %cst {dimension_numbers = #tpu.dot_dimension_numbers<[1], [0], [0], [1], [0, 0, 1, 1], [], []>} : vector<32x4xf32>, vector<4x32xf32>, vector<32x32xf32> -> vector<32x32xf32>
    %c0_5 = arith.constant 0 : index
    %c0_6 = arith.constant 0 : index
    %7 = vector.load %arg5[%c0_5, %c0_6] : memref<1x32xf32, #tpu.memory_space<vmem>>, vector<1x32xf32>
    %8 = vector.broadcast %7 : vector<1x32xf32> to vector<32x32xf32>
    %9 = arith.addf %6, %8 : vector<32x32xf32>
    %10 = vector.shape_cast %9 : vector<32x32xf32> to vector<2x16x32xf32>
    %c0_7 = arith.constant 0 : index
    %c0_8 = arith.constant 0 : index
    %c0_9 = arith.constant 0 : index
    %11 = vector.load %arg3[%c0_7, %c0_8, %c0_9] : memref<1x16x32xf32, #tpu.memory_space<vmem>>, vector<1x16x32xf32>
    %12 = vector.shape_cast %11 : vector<1x16x32xf32> to vector<16x32xf32>
    %13 = vector.shape_cast %12 : vector<16x32xf32> to vector<1x16x32xf32>
    %14 = vector.broadcast %13 : vector<1x16x32xf32> to vector<2x16x32xf32>
    %15 = arith.addf %10, %14 : vector<2x16x32xf32>
    %16 = vector.shape_cast %15 : vector<2x16x32xf32> to vector<32x32xf32>
    %17 = tpu.iota {dimensions = array<i32: 1>} : vector<16x16xi32>
    %18 = vector.broadcast %1 : i32 to vector<16x16xi32>
    %19 = arith.cmpi slt, %17, %18 : vector<16x16xi32>
    %cst_10 = arith.constant 0.000000e+00 : f32
    %cst_11 = arith.constant -1.000000e+30 : f32
    %20 = vector.broadcast %cst_10 : f32 to vector<16x16xf32>
    %21 = vector.broadcast %cst_11 : f32 to vector<16x16xf32>
    %22 = arith.select %19, %20, %21 : vector<16x16xi1>, vector<16x16xf32>
    %c0_12 = arith.constant 0 : index
    %c0_13 = arith.constant 0 : index
    %c0_14 = arith.constant 0 : index
    %c0_15 = arith.constant 0 : index
    %23 = vector.load %arg6[%c0_12, %c0_13, %c0_14, %c0_15] : memref<1x2x32x96xf32, #tpu.memory_space<vmem>>, vector<1x1x32x96xf32>
    %24 = vector.shape_cast %23 : vector<1x1x32x96xf32> to vector<32x96xf32>
    %cst_16 = arith.constant dense<0.000000e+00> : vector<32x96xf32>
    %25 = tpu.matmul %16, %24, %cst_16 {dimension_numbers = #tpu.dot_dimension_numbers<[1], [0], [0], [1], [0, 0, 1, 1], [], []>} : vector<32x32xf32>, vector<32x96xf32>, vector<32x96xf32> -> vector<32x96xf32>
    %c0_17 = arith.constant 0 : index
    %c0_18 = arith.constant 0 : index
    %c0_19 = arith.constant 0 : index
    %c0_20 = arith.constant 0 : index
    %26 = vector.load %arg7[%c0_17, %c0_18, %c0_19, %c0_20] : memref<1x2x1x96xf32, #tpu.memory_space<vmem>>, vector<1x1x1x96xf32>
    %27 = vector.shape_cast %26 : vector<1x1x1x96xf32> to vector<1x96xf32>
    %28 = vector.broadcast %27 : vector<1x96xf32> to vector<32x96xf32>
    %29 = arith.addf %25, %28 : vector<32x96xf32>
    %30 = vector.extract_strided_slice %29 {offsets = [0, 0], sizes = [32, 8], strides = [1, 1]} : vector<32x96xf32> to vector<32x8xf32>
    %31 = vector.shape_cast %30 : vector<32x8xf32> to vector<2x16x8xf32>
    %32 = vector.extract_strided_slice %29 {offsets = [0, 32], sizes = [32, 8], strides = [1, 1]} : vector<32x96xf32> to vector<32x8xf32>
    %33 = vector.shape_cast %32 : vector<32x8xf32> to vector<2x16x8xf32>
    %34 = vector.extract_strided_slice %29 {offsets = [0, 64], sizes = [32, 8], strides = [1, 1]} : vector<32x96xf32> to vector<32x8xf32>
    %35 = vector.shape_cast %34 : vector<32x8xf32> to vector<2x16x8xf32>
    "tpu.trace_start"() <{level = 10 : i32, message = "bqe,bke->bqk"}> : () -> ()
    %cst_21 = arith.constant dense<0.000000e+00> : vector<2x16x16xf32>
    %36 = tpu.matmul %31, %33, %cst_21 {dimension_numbers = #tpu.dot_dimension_numbers<[2], [2], [1], [1], [0, 0, 0, 1, 1, 1], [0], [0]>} : vector<2x16x8xf32>, vector<2x16x8xf32>, vector<2x16x16xf32> -> vector<2x16x16xf32>
    "tpu.trace_stop"() : () -> ()
    %cst_22 = arith.constant 0.353553385 : f32
    %37 = vector.broadcast %cst_22 : f32 to vector<2x16x16xf32>
    %38 = arith.mulf %36, %37 : vector<2x16x16xf32>
    %39 = vector.shape_cast %22 : vector<16x16xf32> to vector<1x16x16xf32>
    %40 = vector.broadcast %39 : vector<1x16x16xf32> to vector<2x16x16xf32>
    %41 = arith.addf %38, %40 : vector<2x16x16xf32>
    %cst_23 = arith.constant dense<0xFF800000> : vector<2x16xf32>
    %42 = vector.multi_reduction <maximumf>, %41, %cst_23 [2] : vector<2x16x16xf32> to vector<2x16xf32>
    %43 = vector.shape_cast %42 : vector<2x16xf32> to vector<2x16x1xf32>
    %44 = vector.broadcast %43 : vector<2x16x1xf32> to vector<2x16x16xf32>
    %45 = arith.subf %41, %44 : vector<2x16x16xf32>
    %46 = math.exp %45 : vector<2x16x16xf32>
    %cst_24 = arith.constant dense<0.000000e+00> : vector<2x16xf32>
    %47 = vector.multi_reduction <add>, %46, %cst_24 [2] : vector<2x16x16xf32> to vector<2x16xf32>
    %48 = vector.shape_cast %47 : vector<2x16xf32> to vector<2x16x1xf32>
    %49 = tpu.reciprocal %48 {approx = true} : vector<2x16x1xf32> -> vector<2x16x1xf32>
    %50 = vector.broadcast %49 : vector<2x16x1xf32> to vector<2x16x16xf32>
    %51 = arith.mulf %46, %50 : vector<2x16x16xf32>
    "tpu.trace_start"() <{level = 10 : i32, message = "bqk,bke->bqe"}> : () -> ()
    %cst_25 = arith.constant dense<0.000000e+00> : vector<2x16x8xf32>
    %52 = tpu.matmul %51, %35, %cst_25 {dimension_numbers = #tpu.dot_dimension_numbers<[2], [1], [1], [2], [0, 0, 0, 1, 1, 2], [0], [0]>} : vector<2x16x16xf32>, vector<2x16x8xf32>, vector<2x16x8xf32> -> vector<2x16x8xf32>
    "tpu.trace_stop"() : () -> ()
    %53 = vector.extract_strided_slice %29 {offsets = [0, 8], sizes = [32, 8], strides = [1, 1]} : vector<32x96xf32> to vector<32x8xf32>
    %54 = vector.shape_cast %53 : vector<32x8xf32> to vector<2x16x8xf32>
    %55 = vector.extract_strided_slice %29 {offsets = [0, 40], sizes = [32, 8], strides = [1, 1]} : vector<32x96xf32> to vector<32x8xf32>
    %56 = vector.shape_cast %55 : vector<32x8xf32> to vector<2x16x8xf32>
    %57 = vector.extract_strided_slice %29 {offsets = [0, 72], sizes = [32, 8], strides = [1, 1]} : vector<32x96xf32> to vector<32x8xf32>
    %58 = vector.shape_cast %57 : vector<32x8xf32> to vector<2x16x8xf32>
    "tpu.trace_start"() <{level = 10 : i32, message = "bqe,bke->bqk"}> : () -> ()
    %cst_26 = arith.constant dense<0.000000e+00> : vector<2x16x16xf32>
    %59 = tpu.matmul %54, %56, %cst_26 {dimension_numbers = #tpu.dot_dimension_numbers<[2], [2], [1], [1], [0, 0, 0, 1, 1, 1], [0], [0]>} : vector<2x16x8xf32>, vector<2x16x8xf32>, vector<2x16x16xf32> -> vector<2x16x16xf32>
    "tpu.trace_stop"() : () -> ()
    %cst_27 = arith.constant 0.353553385 : f32
    %60 = vector.broadcast %cst_27 : f32 to vector<2x16x16xf32>
    %61 = arith.mulf %59, %60 : vector<2x16x16xf32>
    %62 = vector.shape_cast %22 : vector<16x16xf32> to vector<1x16x16xf32>
    %63 = vector.broadcast %62 : vector<1x16x16xf32> to vector<2x16x16xf32>
    %64 = arith.addf %61, %63 : vector<2x16x16xf32>
    %cst_28 = arith.constant dense<0xFF800000> : vector<2x16xf32>
    %65 = vector.multi_reduction <maximumf>, %64, %cst_28 [2] : vector<2x16x16xf32> to vector<2x16xf32>
    %66 = vector.shape_cast %65 : vector<2x16xf32> to vector<2x16x1xf32>
    %67 = vector.broadcast %66 : vector<2x16x1xf32> to vector<2x16x16xf32>
    %68 = arith.subf %64, %67 : vector<2x16x16xf32>
    %69 = math.exp %68 : vector<2x16x16xf32>
    %cst_29 = arith.constant dense<0.000000e+00> : vector<2x16xf32>
    %70 = vector.multi_reduction <add>, %69, %cst_29 [2] : vector<2x16x16xf32> to vector<2x16xf32>
    %71 = vector.shape_cast %70 : vector<2x16xf32> to vector<2x16x1xf32>
    %72 = tpu.reciprocal %71 {approx = true} : vector<2x16x1xf32> -> vector<2x16x1xf32>
    %73 = vector.broadcast %72 : vector<2x16x1xf32> to vector<2x16x16xf32>
    %74 = arith.mulf %69, %73 : vector<2x16x16xf32>
    "tpu.trace_start"() <{level = 10 : i32, message = "bqk,bke->bqe"}> : () -> ()
    %cst_30 = arith.constant dense<0.000000e+00> : vector<2x16x8xf32>
    %75 = tpu.matmul %74, %58, %cst_30 {dimension_numbers = #tpu.dot_dimension_numbers<[2], [1], [1], [2], [0, 0, 0, 1, 1, 2], [0], [0]>} : vector<2x16x16xf32>, vector<2x16x8xf32>, vector<2x16x8xf32> -> vector<2x16x8xf32>
    "tpu.trace_stop"() : () -> ()
    %76 = vector.extract_strided_slice %29 {offsets = [0, 16], sizes = [32, 8], strides = [1, 1]} : vector<32x96xf32> to vector<32x8xf32>
    %77 = vector.shape_cast %76 : vector<32x8xf32> to vector<2x16x8xf32>
    %78 = vector.extract_strided_slice %29 {offsets = [0, 48], sizes = [32, 8], strides = [1, 1]} : vector<32x96xf32> to vector<32x8xf32>
    %79 = vector.shape_cast %78 : vector<32x8xf32> to vector<2x16x8xf32>
    %80 = vector.extract_strided_slice %29 {offsets = [0, 80], sizes = [32, 8], strides = [1, 1]} : vector<32x96xf32> to vector<32x8xf32>
    %81 = vector.shape_cast %80 : vector<32x8xf32> to vector<2x16x8xf32>
    "tpu.trace_start"() <{level = 10 : i32, message = "bqe,bke->bqk"}> : () -> ()
    %cst_31 = arith.constant dense<0.000000e+00> : vector<2x16x16xf32>
    %82 = tpu.matmul %77, %79, %cst_31 {dimension_numbers = #tpu.dot_dimension_numbers<[2], [2], [1], [1], [0, 0, 0, 1, 1, 1], [0], [0]>} : vector<2x16x8xf32>, vector<2x16x8xf32>, vector<2x16x16xf32> -> vector<2x16x16xf32>
    "tpu.trace_stop"() : () -> ()
    %cst_32 = arith.constant 0.353553385 : f32
    %83 = vector.broadcast %cst_32 : f32 to vector<2x16x16xf32>
    %84 = arith.mulf %82, %83 : vector<2x16x16xf32>
    %85 = vector.shape_cast %22 : vector<16x16xf32> to vector<1x16x16xf32>
    %86 = vector.broadcast %85 : vector<1x16x16xf32> to vector<2x16x16xf32>
    %87 = arith.addf %84, %86 : vector<2x16x16xf32>
    %cst_33 = arith.constant dense<0xFF800000> : vector<2x16xf32>
    %88 = vector.multi_reduction <maximumf>, %87, %cst_33 [2] : vector<2x16x16xf32> to vector<2x16xf32>
    %89 = vector.shape_cast %88 : vector<2x16xf32> to vector<2x16x1xf32>
    %90 = vector.broadcast %89 : vector<2x16x1xf32> to vector<2x16x16xf32>
    %91 = arith.subf %87, %90 : vector<2x16x16xf32>
    %92 = math.exp %91 : vector<2x16x16xf32>
    %cst_34 = arith.constant dense<0.000000e+00> : vector<2x16xf32>
    %93 = vector.multi_reduction <add>, %92, %cst_34 [2] : vector<2x16x16xf32> to vector<2x16xf32>
    %94 = vector.shape_cast %93 : vector<2x16xf32> to vector<2x16x1xf32>
    %95 = tpu.reciprocal %94 {approx = true} : vector<2x16x1xf32> -> vector<2x16x1xf32>
    %96 = vector.broadcast %95 : vector<2x16x1xf32> to vector<2x16x16xf32>
    %97 = arith.mulf %92, %96 : vector<2x16x16xf32>
    "tpu.trace_start"() <{level = 10 : i32, message = "bqk,bke->bqe"}> : () -> ()
    %cst_35 = arith.constant dense<0.000000e+00> : vector<2x16x8xf32>
    %98 = tpu.matmul %97, %81, %cst_35 {dimension_numbers = #tpu.dot_dimension_numbers<[2], [1], [1], [2], [0, 0, 0, 1, 1, 2], [0], [0]>} : vector<2x16x16xf32>, vector<2x16x8xf32>, vector<2x16x8xf32> -> vector<2x16x8xf32>
    "tpu.trace_stop"() : () -> ()
    %99 = vector.extract_strided_slice %29 {offsets = [0, 24], sizes = [32, 8], strides = [1, 1]} : vector<32x96xf32> to vector<32x8xf32>
    %100 = vector.shape_cast %99 : vector<32x8xf32> to vector<2x16x8xf32>
    %101 = vector.extract_strided_slice %29 {offsets = [0, 56], sizes = [32, 8], strides = [1, 1]} : vector<32x96xf32> to vector<32x8xf32>
    %102 = vector.shape_cast %101 : vector<32x8xf32> to vector<2x16x8xf32>
    %103 = vector.extract_strided_slice %29 {offsets = [0, 88], sizes = [32, 8], strides = [1, 1]} : vector<32x96xf32> to vector<32x8xf32>
    %104 = vector.shape_cast %103 : vector<32x8xf32> to vector<2x16x8xf32>
    "tpu.trace_start"() <{level = 10 : i32, message = "bqe,bke->bqk"}> : () -> ()
    %cst_36 = arith.constant dense<0.000000e+00> : vector<2x16x16xf32>
    %105 = tpu.matmul %100, %102, %cst_36 {dimension_numbers = #tpu.dot_dimension_numbers<[2], [2], [1], [1], [0, 0, 0, 1, 1, 1], [0], [0]>} : vector<2x16x8xf32>, vector<2x16x8xf32>, vector<2x16x16xf32> -> vector<2x16x16xf32>
    "tpu.trace_stop"() : () -> ()
    %cst_37 = arith.constant 0.353553385 : f32
    %106 = vector.broadcast %cst_37 : f32 to vector<2x16x16xf32>
    %107 = arith.mulf %105, %106 : vector<2x16x16xf32>
    %108 = vector.shape_cast %22 : vector<16x16xf32> to vector<1x16x16xf32>
    %109 = vector.broadcast %108 : vector<1x16x16xf32> to vector<2x16x16xf32>
    %110 = arith.addf %107, %109 : vector<2x16x16xf32>
    %cst_38 = arith.constant dense<0xFF800000> : vector<2x16xf32>
    %111 = vector.multi_reduction <maximumf>, %110, %cst_38 [2] : vector<2x16x16xf32> to vector<2x16xf32>
    %112 = vector.shape_cast %111 : vector<2x16xf32> to vector<2x16x1xf32>
    %113 = vector.broadcast %112 : vector<2x16x1xf32> to vector<2x16x16xf32>
    %114 = arith.subf %110, %113 : vector<2x16x16xf32>
    %115 = math.exp %114 : vector<2x16x16xf32>
    %cst_39 = arith.constant dense<0.000000e+00> : vector<2x16xf32>
    %116 = vector.multi_reduction <add>, %115, %cst_39 [2] : vector<2x16x16xf32> to vector<2x16xf32>
    %117 = vector.shape_cast %116 : vector<2x16xf32> to vector<2x16x1xf32>
    %118 = tpu.reciprocal %117 {approx = true} : vector<2x16x1xf32> -> vector<2x16x1xf32>
    %119 = vector.broadcast %118 : vector<2x16x1xf32> to vector<2x16x16xf32>
    %120 = arith.mulf %115, %119 : vector<2x16x16xf32>
    "tpu.trace_start"() <{level = 10 : i32, message = "bqk,bke->bqe"}> : () -> ()
    %cst_40 = arith.constant dense<0.000000e+00> : vector<2x16x8xf32>
    %121 = tpu.matmul %120, %104, %cst_40 {dimension_numbers = #tpu.dot_dimension_numbers<[2], [1], [1], [2], [0, 0, 0, 1, 1, 2], [0], [0]>} : vector<2x16x16xf32>, vector<2x16x8xf32>, vector<2x16x8xf32> -> vector<2x16x8xf32>
    "tpu.trace_stop"() : () -> ()
    %122 = tpu.concatenate %52, %75, %98, %121 in 2 : vector<2x16x8xf32>, vector<2x16x8xf32>, vector<2x16x8xf32>, vector<2x16x8xf32> -> vector<2x16x32xf32>
    %123 = vector.shape_cast %122 : vector<2x16x32xf32> to vector<32x32xf32>
    %c0_41 = arith.constant 0 : index
    %c0_42 = arith.constant 0 : index
    %c0_43 = arith.constant 0 : index
    %c0_44 = arith.constant 0 : index
    %124 = vector.load %arg8[%c0_41, %c0_42, %c0_43, %c0_44] : memref<1x2x32x32xf32, #tpu.memory_space<vmem>>, vector<1x1x32x32xf32>
    %125 = vector.shape_cast %124 : vector<1x1x32x32xf32> to vector<32x32xf32>
    %cst_45 = arith.constant dense<0.000000e+00> : vector<32x32xf32>
    %126 = tpu.matmul %123, %125, %cst_45 {dimension_numbers = #tpu.dot_dimension_numbers<[1], [0], [0], [1], [0, 0, 1, 1], [], []>} : vector<32x32xf32>, vector<32x32xf32>, vector<32x32xf32> -> vector<32x32xf32>
    %c0_46 = arith.constant 0 : index
    %c0_47 = arith.constant 0 : index
    %c0_48 = arith.constant 0 : index
    %c0_49 = arith.constant 0 : index
    %127 = vector.load %arg9[%c0_46, %c0_47, %c0_48, %c0_49] : memref<1x2x1x32xf32, #tpu.memory_space<vmem>>, vector<1x1x1x32xf32>
    %128 = vector.shape_cast %127 : vector<1x1x1x32xf32> to vector<1x32xf32>
    %129 = vector.broadcast %128 : vector<1x32xf32> to vector<32x32xf32>
    %130 = arith.addf %126, %129 : vector<32x32xf32>
    %131 = arith.addf %16, %130 : vector<32x32xf32>
    %c0_50 = arith.constant 0 : index
    %c0_51 = arith.constant 0 : index
    %c0_52 = arith.constant 0 : index
    %c0_53 = arith.constant 0 : index
    %132 = vector.load %arg10[%c0_50, %c0_51, %c0_52, %c0_53] : memref<1x2x1x32xf32, #tpu.memory_space<vmem>>, vector<1x1x1x32xf32>
    %133 = vector.shape_cast %132 : vector<1x1x1x32xf32> to vector<1x32xf32>
    %c0_54 = arith.constant 0 : index
    %c0_55 = arith.constant 0 : index
    %c0_56 = arith.constant 0 : index
    %c0_57 = arith.constant 0 : index
    %134 = vector.load %arg11[%c0_54, %c0_55, %c0_56, %c0_57] : memref<1x2x1x32xf32, #tpu.memory_space<vmem>>, vector<1x1x1x32xf32>
    %135 = vector.shape_cast %134 : vector<1x1x1x32xf32> to vector<1x32xf32>
    %cst_58 = arith.constant dense<0.000000e+00> : vector<32xf32>
    %136 = vector.multi_reduction <add>, %131, %cst_58 [1] : vector<32x32xf32> to vector<32xf32>
    %137 = vector.shape_cast %136 : vector<32xf32> to vector<32x1xf32>
    %cst_59 = arith.constant 3.200000e+01 : f32
    %138 = vector.broadcast %cst_59 : f32 to vector<32x1xf32>
    %139 = arith.divf %137, %138 : vector<32x1xf32>
    %140 = vector.broadcast %139 : vector<32x1xf32> to vector<32x32xf32>
    %141 = arith.subf %131, %140 : vector<32x32xf32>
    %142 = arith.mulf %141, %141 : vector<32x32xf32>
    %cst_60 = arith.constant dense<0.000000e+00> : vector<32xf32>
    %143 = vector.multi_reduction <add>, %142, %cst_60 [1] : vector<32x32xf32> to vector<32xf32>
    %144 = vector.shape_cast %143 : vector<32xf32> to vector<32x1xf32>
    %cst_61 = arith.constant 3.200000e+01 : f32
    %145 = vector.broadcast %cst_61 : f32 to vector<32x1xf32>
    %146 = arith.divf %144, %145 : vector<32x1xf32>
    %cst_62 = arith.constant 9.99999974E-6 : f32
    %147 = vector.broadcast %cst_62 : f32 to vector<32x1xf32>
    %148 = arith.addf %146, %147 : vector<32x1xf32>
    %149 = math.rsqrt %148 : vector<32x1xf32>
    %150 = vector.broadcast %149 : vector<32x1xf32> to vector<32x32xf32>
    %151 = arith.mulf %141, %150 : vector<32x32xf32>
    %152 = vector.broadcast %133 : vector<1x32xf32> to vector<32x32xf32>
    %153 = arith.mulf %151, %152 : vector<32x32xf32>
    %154 = vector.broadcast %135 : vector<1x32xf32> to vector<32x32xf32>
    %155 = arith.addf %153, %154 : vector<32x32xf32>
    %c0_63 = arith.constant 0 : index
    %c0_64 = arith.constant 0 : index
    %c0_65 = arith.constant 0 : index
    %c0_66 = arith.constant 0 : index
    %156 = vector.load %arg12[%c0_63, %c0_64, %c0_65, %c0_66] : memref<1x2x32x2048xf32, #tpu.memory_space<vmem>>, vector<1x1x32x2048xf32>
    %157 = vector.shape_cast %156 : vector<1x1x32x2048xf32> to vector<32x2048xf32>
    %cst_67 = arith.constant dense<0.000000e+00> : vector<32x2048xf32>
    %158 = tpu.matmul %155, %157, %cst_67 {dimension_numbers = #tpu.dot_dimension_numbers<[1], [0], [0], [1], [0, 0, 1, 1], [], []>} : vector<32x32xf32>, vector<32x2048xf32>, vector<32x2048xf32> -> vector<32x2048xf32>
    %c0_68 = arith.constant 0 : index
    %c0_69 = arith.constant 0 : index
    %c0_70 = arith.constant 0 : index
    %c0_71 = arith.constant 0 : index
    %159 = vector.load %arg13[%c0_68, %c0_69, %c0_70, %c0_71] : memref<1x2x1x2048xf32, #tpu.memory_space<vmem>>, vector<1x1x1x2048xf32>
    %160 = vector.shape_cast %159 : vector<1x1x1x2048xf32> to vector<1x2048xf32>
    %161 = vector.broadcast %160 : vector<1x2048xf32> to vector<32x2048xf32>
    %162 = arith.addf %158, %161 : vector<32x2048xf32>
    %cst_72 = arith.constant 0.000000e+00 : f32
    %163 = vector.broadcast %cst_72 : f32 to vector<32x2048xf32>
    %164 = arith.maximumf %162, %163 : vector<32x2048xf32>
    %c0_73 = arith.constant 0 : index
    %c0_74 = arith.constant 0 : index
    %c0_75 = arith.constant 0 : index
    %c0_76 = arith.constant 0 : index
    %165 = vector.load %arg14[%c0_73, %c0_74, %c0_75, %c0_76] : memref<1x2x2048x32xf32, #tpu.memory_space<vmem>>, vector<1x1x2048x32xf32>
    %166 = vector.shape_cast %165 : vector<1x1x2048x32xf32> to vector<2048x32xf32>
    %cst_77 = arith.constant dense<0.000000e+00> : vector<32x32xf32>
    %167 = tpu.matmul %164, %166, %cst_77 {dimension_numbers = #tpu.dot_dimension_numbers<[1], [0], [0], [1], [0, 0, 1, 1], [], []>} : vector<32x2048xf32>, vector<2048x32xf32>, vector<32x32xf32> -> vector<32x32xf32>
    %c0_78 = arith.constant 0 : index
    %c0_79 = arith.constant 0 : index
    %c0_80 = arith.constant 0 : index
    %c0_81 = arith.constant 0 : index
    %168 = vector.load %arg15[%c0_78, %c0_79, %c0_80, %c0_81] : memref<1x2x1x32xf32, #tpu.memory_space<vmem>>, vector<1x1x1x32xf32>
    %169 = vector.shape_cast %168 : vector<1x1x1x32xf32> to vector<1x32xf32>
    %170 = vector.broadcast %169 : vector<1x32xf32> to vector<32x32xf32>
    %171 = arith.addf %167, %170 : vector<32x32xf32>
    %172 = arith.addf %155, %171 : vector<32x32xf32>
    %c0_82 = arith.constant 0 : index
    %c0_83 = arith.constant 0 : index
    %c0_84 = arith.constant 0 : index
    %c0_85 = arith.constant 0 : index
    %173 = vector.load %arg16[%c0_82, %c0_83, %c0_84, %c0_85] : memref<1x2x1x32xf32, #tpu.memory_space<vmem>>, vector<1x1x1x32xf32>
    %174 = vector.shape_cast %173 : vector<1x1x1x32xf32> to vector<1x32xf32>
    %c0_86 = arith.constant 0 : index
    %c0_87 = arith.constant 0 : index
    %c0_88 = arith.constant 0 : index
    %c0_89 = arith.constant 0 : index
    %175 = vector.load %arg17[%c0_86, %c0_87, %c0_88, %c0_89] : memref<1x2x1x32xf32, #tpu.memory_space<vmem>>, vector<1x1x1x32xf32>
    %176 = vector.shape_cast %175 : vector<1x1x1x32xf32> to vector<1x32xf32>
    %cst_90 = arith.constant dense<0.000000e+00> : vector<32xf32>
    %177 = vector.multi_reduction <add>, %172, %cst_90 [1] : vector<32x32xf32> to vector<32xf32>
    %178 = vector.shape_cast %177 : vector<32xf32> to vector<32x1xf32>
    %cst_91 = arith.constant 3.200000e+01 : f32
    %179 = vector.broadcast %cst_91 : f32 to vector<32x1xf32>
    %180 = arith.divf %178, %179 : vector<32x1xf32>
    %181 = vector.broadcast %180 : vector<32x1xf32> to vector<32x32xf32>
    %182 = arith.subf %172, %181 : vector<32x32xf32>
    %183 = arith.mulf %182, %182 : vector<32x32xf32>
    %cst_92 = arith.constant dense<0.000000e+00> : vector<32xf32>
    %184 = vector.multi_reduction <add>, %183, %cst_92 [1] : vector<32x32xf32> to vector<32xf32>
    %185 = vector.shape_cast %184 : vector<32xf32> to vector<32x1xf32>
    %cst_93 = arith.constant 3.200000e+01 : f32
    %186 = vector.broadcast %cst_93 : f32 to vector<32x1xf32>
    %187 = arith.divf %185, %186 : vector<32x1xf32>
    %cst_94 = arith.constant 9.99999974E-6 : f32
    %188 = vector.broadcast %cst_94 : f32 to vector<32x1xf32>
    %189 = arith.addf %187, %188 : vector<32x1xf32>
    %190 = math.rsqrt %189 : vector<32x1xf32>
    %191 = vector.broadcast %190 : vector<32x1xf32> to vector<32x32xf32>
    %192 = arith.mulf %182, %191 : vector<32x32xf32>
    %193 = vector.broadcast %174 : vector<1x32xf32> to vector<32x32xf32>
    %194 = arith.mulf %192, %193 : vector<32x32xf32>
    %195 = vector.broadcast %176 : vector<1x32xf32> to vector<32x32xf32>
    %196 = arith.addf %194, %195 : vector<32x32xf32>
    %c0_95 = arith.constant 0 : index
    %c1 = arith.constant 1 : index
    %c0_96 = arith.constant 0 : index
    %c0_97 = arith.constant 0 : index
    %197 = vector.load %arg6[%c0_95, %c1, %c0_96, %c0_97] : memref<1x2x32x96xf32, #tpu.memory_space<vmem>>, vector<1x1x32x96xf32>
    %198 = vector.shape_cast %197 : vector<1x1x32x96xf32> to vector<32x96xf32>
    %cst_98 = arith.constant dense<0.000000e+00> : vector<32x96xf32>
    %199 = tpu.matmul %196, %198, %cst_98 {dimension_numbers = #tpu.dot_dimension_numbers<[1], [0], [0], [1], [0, 0, 1, 1], [], []>} : vector<32x32xf32>, vector<32x96xf32>, vector<32x96xf32> -> vector<32x96xf32>
    %c0_99 = arith.constant 0 : index
    %c1_100 = arith.constant 1 : index
    %c0_101 = arith.constant 0 : index
    %c0_102 = arith.constant 0 : index
    %200 = vector.load %arg7[%c0_99, %c1_100, %c0_101, %c0_102] : memref<1x2x1x96xf32, #tpu.memory_space<vmem>>, vector<1x1x1x96xf32>
    %201 = vector.shape_cast %200 : vector<1x1x1x96xf32> to vector<1x96xf32>
    %202 = vector.broadcast %201 : vector<1x96xf32> to vector<32x96xf32>
    %203 = arith.addf %199, %202 : vector<32x96xf32>
    %204 = vector.extract_strided_slice %203 {offsets = [0, 0], sizes = [32, 8], strides = [1, 1]} : vector<32x96xf32> to vector<32x8xf32>
    %205 = vector.shape_cast %204 : vector<32x8xf32> to vector<2x16x8xf32>
    %206 = vector.extract_strided_slice %203 {offsets = [0, 32], sizes = [32, 8], strides = [1, 1]} : vector<32x96xf32> to vector<32x8xf32>
    %207 = vector.shape_cast %206 : vector<32x8xf32> to vector<2x16x8xf32>
    %208 = vector.extract_strided_slice %203 {offsets = [0, 64], sizes = [32, 8], strides = [1, 1]} : vector<32x96xf32> to vector<32x8xf32>
    %209 = vector.shape_cast %208 : vector<32x8xf32> to vector<2x16x8xf32>
    "tpu.trace_start"() <{level = 10 : i32, message = "bqe,bke->bqk"}> : () -> ()
    %cst_103 = arith.constant dense<0.000000e+00> : vector<2x16x16xf32>
    %210 = tpu.matmul %205, %207, %cst_103 {dimension_numbers = #tpu.dot_dimension_numbers<[2], [2], [1], [1], [0, 0, 0, 1, 1, 1], [0], [0]>} : vector<2x16x8xf32>, vector<2x16x8xf32>, vector<2x16x16xf32> -> vector<2x16x16xf32>
    "tpu.trace_stop"() : () -> ()
    %cst_104 = arith.constant 0.353553385 : f32
    %211 = vector.broadcast %cst_104 : f32 to vector<2x16x16xf32>
    %212 = arith.mulf %210, %211 : vector<2x16x16xf32>
    %213 = vector.shape_cast %22 : vector<16x16xf32> to vector<1x16x16xf32>
    %214 = vector.broadcast %213 : vector<1x16x16xf32> to vector<2x16x16xf32>
    %215 = arith.addf %212, %214 : vector<2x16x16xf32>
    %cst_105 = arith.constant dense<0xFF800000> : vector<2x16xf32>
    %216 = vector.multi_reduction <maximumf>, %215, %cst_105 [2] : vector<2x16x16xf32> to vector<2x16xf32>
    %217 = vector.shape_cast %216 : vector<2x16xf32> to vector<2x16x1xf32>
    %218 = vector.broadcast %217 : vector<2x16x1xf32> to vector<2x16x16xf32>
    %219 = arith.subf %215, %218 : vector<2x16x16xf32>
    %220 = math.exp %219 : vector<2x16x16xf32>
    %cst_106 = arith.constant dense<0.000000e+00> : vector<2x16xf32>
    %221 = vector.multi_reduction <add>, %220, %cst_106 [2] : vector<2x16x16xf32> to vector<2x16xf32>
    %222 = vector.shape_cast %221 : vector<2x16xf32> to vector<2x16x1xf32>
    %223 = tpu.reciprocal %222 {approx = true} : vector<2x16x1xf32> -> vector<2x16x1xf32>
    %224 = vector.broadcast %223 : vector<2x16x1xf32> to vector<2x16x16xf32>
    %225 = arith.mulf %220, %224 : vector<2x16x16xf32>
    "tpu.trace_start"() <{level = 10 : i32, message = "bqk,bke->bqe"}> : () -> ()
    %cst_107 = arith.constant dense<0.000000e+00> : vector<2x16x8xf32>
    %226 = tpu.matmul %225, %209, %cst_107 {dimension_numbers = #tpu.dot_dimension_numbers<[2], [1], [1], [2], [0, 0, 0, 1, 1, 2], [0], [0]>} : vector<2x16x16xf32>, vector<2x16x8xf32>, vector<2x16x8xf32> -> vector<2x16x8xf32>
    "tpu.trace_stop"() : () -> ()
    %227 = vector.extract_strided_slice %203 {offsets = [0, 8], sizes = [32, 8], strides = [1, 1]} : vector<32x96xf32> to vector<32x8xf32>
    %228 = vector.shape_cast %227 : vector<32x8xf32> to vector<2x16x8xf32>
    %229 = vector.extract_strided_slice %203 {offsets = [0, 40], sizes = [32, 8], strides = [1, 1]} : vector<32x96xf32> to vector<32x8xf32>
    %230 = vector.shape_cast %229 : vector<32x8xf32> to vector<2x16x8xf32>
    %231 = vector.extract_strided_slice %203 {offsets = [0, 72], sizes = [32, 8], strides = [1, 1]} : vector<32x96xf32> to vector<32x8xf32>
    %232 = vector.shape_cast %231 : vector<32x8xf32> to vector<2x16x8xf32>
    "tpu.trace_start"() <{level = 10 : i32, message = "bqe,bke->bqk"}> : () -> ()
    %cst_108 = arith.constant dense<0.000000e+00> : vector<2x16x16xf32>
    %233 = tpu.matmul %228, %230, %cst_108 {dimension_numbers = #tpu.dot_dimension_numbers<[2], [2], [1], [1], [0, 0, 0, 1, 1, 1], [0], [0]>} : vector<2x16x8xf32>, vector<2x16x8xf32>, vector<2x16x16xf32> -> vector<2x16x16xf32>
    "tpu.trace_stop"() : () -> ()
    %cst_109 = arith.constant 0.353553385 : f32
    %234 = vector.broadcast %cst_109 : f32 to vector<2x16x16xf32>
    %235 = arith.mulf %233, %234 : vector<2x16x16xf32>
    %236 = vector.shape_cast %22 : vector<16x16xf32> to vector<1x16x16xf32>
    %237 = vector.broadcast %236 : vector<1x16x16xf32> to vector<2x16x16xf32>
    %238 = arith.addf %235, %237 : vector<2x16x16xf32>
    %cst_110 = arith.constant dense<0xFF800000> : vector<2x16xf32>
    %239 = vector.multi_reduction <maximumf>, %238, %cst_110 [2] : vector<2x16x16xf32> to vector<2x16xf32>
    %240 = vector.shape_cast %239 : vector<2x16xf32> to vector<2x16x1xf32>
    %241 = vector.broadcast %240 : vector<2x16x1xf32> to vector<2x16x16xf32>
    %242 = arith.subf %238, %241 : vector<2x16x16xf32>
    %243 = math.exp %242 : vector<2x16x16xf32>
    %cst_111 = arith.constant dense<0.000000e+00> : vector<2x16xf32>
    %244 = vector.multi_reduction <add>, %243, %cst_111 [2] : vector<2x16x16xf32> to vector<2x16xf32>
    %245 = vector.shape_cast %244 : vector<2x16xf32> to vector<2x16x1xf32>
    %246 = tpu.reciprocal %245 {approx = true} : vector<2x16x1xf32> -> vector<2x16x1xf32>
    %247 = vector.broadcast %246 : vector<2x16x1xf32> to vector<2x16x16xf32>
    %248 = arith.mulf %243, %247 : vector<2x16x16xf32>
    "tpu.trace_start"() <{level = 10 : i32, message = "bqk,bke->bqe"}> : () -> ()
    %cst_112 = arith.constant dense<0.000000e+00> : vector<2x16x8xf32>
    %249 = tpu.matmul %248, %232, %cst_112 {dimension_numbers = #tpu.dot_dimension_numbers<[2], [1], [1], [2], [0, 0, 0, 1, 1, 2], [0], [0]>} : vector<2x16x16xf32>, vector<2x16x8xf32>, vector<2x16x8xf32> -> vector<2x16x8xf32>
    "tpu.trace_stop"() : () -> ()
    %250 = vector.extract_strided_slice %203 {offsets = [0, 16], sizes = [32, 8], strides = [1, 1]} : vector<32x96xf32> to vector<32x8xf32>
    %251 = vector.shape_cast %250 : vector<32x8xf32> to vector<2x16x8xf32>
    %252 = vector.extract_strided_slice %203 {offsets = [0, 48], sizes = [32, 8], strides = [1, 1]} : vector<32x96xf32> to vector<32x8xf32>
    %253 = vector.shape_cast %252 : vector<32x8xf32> to vector<2x16x8xf32>
    %254 = vector.extract_strided_slice %203 {offsets = [0, 80], sizes = [32, 8], strides = [1, 1]} : vector<32x96xf32> to vector<32x8xf32>
    %255 = vector.shape_cast %254 : vector<32x8xf32> to vector<2x16x8xf32>
    "tpu.trace_start"() <{level = 10 : i32, message = "bqe,bke->bqk"}> : () -> ()
    %cst_113 = arith.constant dense<0.000000e+00> : vector<2x16x16xf32>
    %256 = tpu.matmul %251, %253, %cst_113 {dimension_numbers = #tpu.dot_dimension_numbers<[2], [2], [1], [1], [0, 0, 0, 1, 1, 1], [0], [0]>} : vector<2x16x8xf32>, vector<2x16x8xf32>, vector<2x16x16xf32> -> vector<2x16x16xf32>
    "tpu.trace_stop"() : () -> ()
    %cst_114 = arith.constant 0.353553385 : f32
    %257 = vector.broadcast %cst_114 : f32 to vector<2x16x16xf32>
    %258 = arith.mulf %256, %257 : vector<2x16x16xf32>
    %259 = vector.shape_cast %22 : vector<16x16xf32> to vector<1x16x16xf32>
    %260 = vector.broadcast %259 : vector<1x16x16xf32> to vector<2x16x16xf32>
    %261 = arith.addf %258, %260 : vector<2x16x16xf32>
    %cst_115 = arith.constant dense<0xFF800000> : vector<2x16xf32>
    %262 = vector.multi_reduction <maximumf>, %261, %cst_115 [2] : vector<2x16x16xf32> to vector<2x16xf32>
    %263 = vector.shape_cast %262 : vector<2x16xf32> to vector<2x16x1xf32>
    %264 = vector.broadcast %263 : vector<2x16x1xf32> to vector<2x16x16xf32>
    %265 = arith.subf %261, %264 : vector<2x16x16xf32>
    %266 = math.exp %265 : vector<2x16x16xf32>
    %cst_116 = arith.constant dense<0.000000e+00> : vector<2x16xf32>
    %267 = vector.multi_reduction <add>, %266, %cst_116 [2] : vector<2x16x16xf32> to vector<2x16xf32>
    %268 = vector.shape_cast %267 : vector<2x16xf32> to vector<2x16x1xf32>
    %269 = tpu.reciprocal %268 {approx = true} : vector<2x16x1xf32> -> vector<2x16x1xf32>
    %270 = vector.broadcast %269 : vector<2x16x1xf32> to vector<2x16x16xf32>
    %271 = arith.mulf %266, %270 : vector<2x16x16xf32>
    "tpu.trace_start"() <{level = 10 : i32, message = "bqk,bke->bqe"}> : () -> ()
    %cst_117 = arith.constant dense<0.000000e+00> : vector<2x16x8xf32>
    %272 = tpu.matmul %271, %255, %cst_117 {dimension_numbers = #tpu.dot_dimension_numbers<[2], [1], [1], [2], [0, 0, 0, 1, 1, 2], [0], [0]>} : vector<2x16x16xf32>, vector<2x16x8xf32>, vector<2x16x8xf32> -> vector<2x16x8xf32>
    "tpu.trace_stop"() : () -> ()
    %273 = vector.extract_strided_slice %203 {offsets = [0, 24], sizes = [32, 8], strides = [1, 1]} : vector<32x96xf32> to vector<32x8xf32>
    %274 = vector.shape_cast %273 : vector<32x8xf32> to vector<2x16x8xf32>
    %275 = vector.extract_strided_slice %203 {offsets = [0, 56], sizes = [32, 8], strides = [1, 1]} : vector<32x96xf32> to vector<32x8xf32>
    %276 = vector.shape_cast %275 : vector<32x8xf32> to vector<2x16x8xf32>
    %277 = vector.extract_strided_slice %203 {offsets = [0, 88], sizes = [32, 8], strides = [1, 1]} : vector<32x96xf32> to vector<32x8xf32>
    %278 = vector.shape_cast %277 : vector<32x8xf32> to vector<2x16x8xf32>
    "tpu.trace_start"() <{level = 10 : i32, message = "bqe,bke->bqk"}> : () -> ()
    %cst_118 = arith.constant dense<0.000000e+00> : vector<2x16x16xf32>
    %279 = tpu.matmul %274, %276, %cst_118 {dimension_numbers = #tpu.dot_dimension_numbers<[2], [2], [1], [1], [0, 0, 0, 1, 1, 1], [0], [0]>} : vector<2x16x8xf32>, vector<2x16x8xf32>, vector<2x16x16xf32> -> vector<2x16x16xf32>
    "tpu.trace_stop"() : () -> ()
    %cst_119 = arith.constant 0.353553385 : f32
    %280 = vector.broadcast %cst_119 : f32 to vector<2x16x16xf32>
    %281 = arith.mulf %279, %280 : vector<2x16x16xf32>
    %282 = vector.shape_cast %22 : vector<16x16xf32> to vector<1x16x16xf32>
    %283 = vector.broadcast %282 : vector<1x16x16xf32> to vector<2x16x16xf32>
    %284 = arith.addf %281, %283 : vector<2x16x16xf32>
    %cst_120 = arith.constant dense<0xFF800000> : vector<2x16xf32>
    %285 = vector.multi_reduction <maximumf>, %284, %cst_120 [2] : vector<2x16x16xf32> to vector<2x16xf32>
    %286 = vector.shape_cast %285 : vector<2x16xf32> to vector<2x16x1xf32>
    %287 = vector.broadcast %286 : vector<2x16x1xf32> to vector<2x16x16xf32>
    %288 = arith.subf %284, %287 : vector<2x16x16xf32>
    %289 = math.exp %288 : vector<2x16x16xf32>
    %cst_121 = arith.constant dense<0.000000e+00> : vector<2x16xf32>
    %290 = vector.multi_reduction <add>, %289, %cst_121 [2] : vector<2x16x16xf32> to vector<2x16xf32>
    %291 = vector.shape_cast %290 : vector<2x16xf32> to vector<2x16x1xf32>
    %292 = tpu.reciprocal %291 {approx = true} : vector<2x16x1xf32> -> vector<2x16x1xf32>
    %293 = vector.broadcast %292 : vector<2x16x1xf32> to vector<2x16x16xf32>
    %294 = arith.mulf %289, %293 : vector<2x16x16xf32>
    "tpu.trace_start"() <{level = 10 : i32, message = "bqk,bke->bqe"}> : () -> ()
    %cst_122 = arith.constant dense<0.000000e+00> : vector<2x16x8xf32>
    %295 = tpu.matmul %294, %278, %cst_122 {dimension_numbers = #tpu.dot_dimension_numbers<[2], [1], [1], [2], [0, 0, 0, 1, 1, 2], [0], [0]>} : vector<2x16x16xf32>, vector<2x16x8xf32>, vector<2x16x8xf32> -> vector<2x16x8xf32>
    "tpu.trace_stop"() : () -> ()
    %296 = tpu.concatenate %226, %249, %272, %295 in 2 : vector<2x16x8xf32>, vector<2x16x8xf32>, vector<2x16x8xf32>, vector<2x16x8xf32> -> vector<2x16x32xf32>
    %297 = vector.shape_cast %296 : vector<2x16x32xf32> to vector<32x32xf32>
    %c0_123 = arith.constant 0 : index
    %c1_124 = arith.constant 1 : index
    %c0_125 = arith.constant 0 : index
    %c0_126 = arith.constant 0 : index
    %298 = vector.load %arg8[%c0_123, %c1_124, %c0_125, %c0_126] : memref<1x2x32x32xf32, #tpu.memory_space<vmem>>, vector<1x1x32x32xf32>
    %299 = vector.shape_cast %298 : vector<1x1x32x32xf32> to vector<32x32xf32>
    %cst_127 = arith.constant dense<0.000000e+00> : vector<32x32xf32>
    %300 = tpu.matmul %297, %299, %cst_127 {dimension_numbers = #tpu.dot_dimension_numbers<[1], [0], [0], [1], [0, 0, 1, 1], [], []>} : vector<32x32xf32>, vector<32x32xf32>, vector<32x32xf32> -> vector<32x32xf32>
    %c0_128 = arith.constant 0 : index
    %c1_129 = arith.constant 1 : index
    %c0_130 = arith.constant 0 : index
    %c0_131 = arith.constant 0 : index
    %301 = vector.load %arg9[%c0_128, %c1_129, %c0_130, %c0_131] : memref<1x2x1x32xf32, #tpu.memory_space<vmem>>, vector<1x1x1x32xf32>
    %302 = vector.shape_cast %301 : vector<1x1x1x32xf32> to vector<1x32xf32>
    %303 = vector.broadcast %302 : vector<1x32xf32> to vector<32x32xf32>
    %304 = arith.addf %300, %303 : vector<32x32xf32>
    %305 = arith.addf %196, %304 : vector<32x32xf32>
    %c0_132 = arith.constant 0 : index
    %c1_133 = arith.constant 1 : index
    %c0_134 = arith.constant 0 : index
    %c0_135 = arith.constant 0 : index
    %306 = vector.load %arg10[%c0_132, %c1_133, %c0_134, %c0_135] : memref<1x2x1x32xf32, #tpu.memory_space<vmem>>, vector<1x1x1x32xf32>
    %307 = vector.shape_cast %306 : vector<1x1x1x32xf32> to vector<1x32xf32>
    %c0_136 = arith.constant 0 : index
    %c1_137 = arith.constant 1 : index
    %c0_138 = arith.constant 0 : index
    %c0_139 = arith.constant 0 : index
    %308 = vector.load %arg11[%c0_136, %c1_137, %c0_138, %c0_139] : memref<1x2x1x32xf32, #tpu.memory_space<vmem>>, vector<1x1x1x32xf32>
    %309 = vector.shape_cast %308 : vector<1x1x1x32xf32> to vector<1x32xf32>
    %cst_140 = arith.constant dense<0.000000e+00> : vector<32xf32>
    %310 = vector.multi_reduction <add>, %305, %cst_140 [1] : vector<32x32xf32> to vector<32xf32>
    %311 = vector.shape_cast %310 : vector<32xf32> to vector<32x1xf32>
    %cst_141 = arith.constant 3.200000e+01 : f32
    %312 = vector.broadcast %cst_141 : f32 to vector<32x1xf32>
    %313 = arith.divf %311, %312 : vector<32x1xf32>
    %314 = vector.broadcast %313 : vector<32x1xf32> to vector<32x32xf32>
    %315 = arith.subf %305, %314 : vector<32x32xf32>
    %316 = arith.mulf %315, %315 : vector<32x32xf32>
    %cst_142 = arith.constant dense<0.000000e+00> : vector<32xf32>
    %317 = vector.multi_reduction <add>, %316, %cst_142 [1] : vector<32x32xf32> to vector<32xf32>
    %318 = vector.shape_cast %317 : vector<32xf32> to vector<32x1xf32>
    %cst_143 = arith.constant 3.200000e+01 : f32
    %319 = vector.broadcast %cst_143 : f32 to vector<32x1xf32>
    %320 = arith.divf %318, %319 : vector<32x1xf32>
    %cst_144 = arith.constant 9.99999974E-6 : f32
    %321 = vector.broadcast %cst_144 : f32 to vector<32x1xf32>
    %322 = arith.addf %320, %321 : vector<32x1xf32>
    %323 = math.rsqrt %322 : vector<32x1xf32>
    %324 = vector.broadcast %323 : vector<32x1xf32> to vector<32x32xf32>
    %325 = arith.mulf %315, %324 : vector<32x32xf32>
    %326 = vector.broadcast %307 : vector<1x32xf32> to vector<32x32xf32>
    %327 = arith.mulf %325, %326 : vector<32x32xf32>
    %328 = vector.broadcast %309 : vector<1x32xf32> to vector<32x32xf32>
    %329 = arith.addf %327, %328 : vector<32x32xf32>
    %c0_145 = arith.constant 0 : index
    %c1_146 = arith.constant 1 : index
    %c0_147 = arith.constant 0 : index
    %c0_148 = arith.constant 0 : index
    %330 = vector.load %arg12[%c0_145, %c1_146, %c0_147, %c0_148] : memref<1x2x32x2048xf32, #tpu.memory_space<vmem>>, vector<1x1x32x2048xf32>
    %331 = vector.shape_cast %330 : vector<1x1x32x2048xf32> to vector<32x2048xf32>
    %cst_149 = arith.constant dense<0.000000e+00> : vector<32x2048xf32>
    %332 = tpu.matmul %329, %331, %cst_149 {dimension_numbers = #tpu.dot_dimension_numbers<[1], [0], [0], [1], [0, 0, 1, 1], [], []>} : vector<32x32xf32>, vector<32x2048xf32>, vector<32x2048xf32> -> vector<32x2048xf32>
    %c0_150 = arith.constant 0 : index
    %c1_151 = arith.constant 1 : index
    %c0_152 = arith.constant 0 : index
    %c0_153 = arith.constant 0 : index
    %333 = vector.load %arg13[%c0_150, %c1_151, %c0_152, %c0_153] : memref<1x2x1x2048xf32, #tpu.memory_space<vmem>>, vector<1x1x1x2048xf32>
    %334 = vector.shape_cast %333 : vector<1x1x1x2048xf32> to vector<1x2048xf32>
    %335 = vector.broadcast %334 : vector<1x2048xf32> to vector<32x2048xf32>
    %336 = arith.addf %332, %335 : vector<32x2048xf32>
    %cst_154 = arith.constant 0.000000e+00 : f32
    %337 = vector.broadcast %cst_154 : f32 to vector<32x2048xf32>
    %338 = arith.maximumf %336, %337 : vector<32x2048xf32>
    %c0_155 = arith.constant 0 : index
    %c1_156 = arith.constant 1 : index
    %c0_157 = arith.constant 0 : index
    %c0_158 = arith.constant 0 : index
    %339 = vector.load %arg14[%c0_155, %c1_156, %c0_157, %c0_158] : memref<1x2x2048x32xf32, #tpu.memory_space<vmem>>, vector<1x1x2048x32xf32>
    %340 = vector.shape_cast %339 : vector<1x1x2048x32xf32> to vector<2048x32xf32>
    %cst_159 = arith.constant dense<0.000000e+00> : vector<32x32xf32>
    %341 = tpu.matmul %338, %340, %cst_159 {dimension_numbers = #tpu.dot_dimension_numbers<[1], [0], [0], [1], [0, 0, 1, 1], [], []>} : vector<32x2048xf32>, vector<2048x32xf32>, vector<32x32xf32> -> vector<32x32xf32>
    %c0_160 = arith.constant 0 : index
    %c1_161 = arith.constant 1 : index
    %c0_162 = arith.constant 0 : index
    %c0_163 = arith.constant 0 : index
    %342 = vector.load %arg15[%c0_160, %c1_161, %c0_162, %c0_163] : memref<1x2x1x32xf32, #tpu.memory_space<vmem>>, vector<1x1x1x32xf32>
    %343 = vector.shape_cast %342 : vector<1x1x1x32xf32> to vector<1x32xf32>
    %344 = vector.broadcast %343 : vector<1x32xf32> to vector<32x32xf32>
    %345 = arith.addf %341, %344 : vector<32x32xf32>
    %346 = arith.addf %329, %345 : vector<32x32xf32>
    %c0_164 = arith.constant 0 : index
    %c1_165 = arith.constant 1 : index
    %c0_166 = arith.constant 0 : index
    %c0_167 = arith.constant 0 : index
    %347 = vector.load %arg16[%c0_164, %c1_165, %c0_166, %c0_167] : memref<1x2x1x32xf32, #tpu.memory_space<vmem>>, vector<1x1x1x32xf32>
    %348 = vector.shape_cast %347 : vector<1x1x1x32xf32> to vector<1x32xf32>
    %c0_168 = arith.constant 0 : index
    %c1_169 = arith.constant 1 : index
    %c0_170 = arith.constant 0 : index
    %c0_171 = arith.constant 0 : index
    %349 = vector.load %arg17[%c0_168, %c1_169, %c0_170, %c0_171] : memref<1x2x1x32xf32, #tpu.memory_space<vmem>>, vector<1x1x1x32xf32>
    %350 = vector.shape_cast %349 : vector<1x1x1x32xf32> to vector<1x32xf32>
    %cst_172 = arith.constant dense<0.000000e+00> : vector<32xf32>
    %351 = vector.multi_reduction <add>, %346, %cst_172 [1] : vector<32x32xf32> to vector<32xf32>
    %352 = vector.shape_cast %351 : vector<32xf32> to vector<32x1xf32>
    %cst_173 = arith.constant 3.200000e+01 : f32
    %353 = vector.broadcast %cst_173 : f32 to vector<32x1xf32>
    %354 = arith.divf %352, %353 : vector<32x1xf32>
    %355 = vector.broadcast %354 : vector<32x1xf32> to vector<32x32xf32>
    %356 = arith.subf %346, %355 : vector<32x32xf32>
    %357 = arith.mulf %356, %356 : vector<32x32xf32>
    %cst_174 = arith.constant dense<0.000000e+00> : vector<32xf32>
    %358 = vector.multi_reduction <add>, %357, %cst_174 [1] : vector<32x32xf32> to vector<32xf32>
    %359 = vector.shape_cast %358 : vector<32xf32> to vector<32x1xf32>
    %cst_175 = arith.constant 3.200000e+01 : f32
    %360 = vector.broadcast %cst_175 : f32 to vector<32x1xf32>
    %361 = arith.divf %359, %360 : vector<32x1xf32>
    %cst_176 = arith.constant 9.99999974E-6 : f32
    %362 = vector.broadcast %cst_176 : f32 to vector<32x1xf32>
    %363 = arith.addf %361, %362 : vector<32x1xf32>
    %364 = math.rsqrt %363 : vector<32x1xf32>
    %365 = vector.broadcast %364 : vector<32x1xf32> to vector<32x32xf32>
    %366 = arith.mulf %356, %365 : vector<32x32xf32>
    %367 = vector.broadcast %348 : vector<1x32xf32> to vector<32x32xf32>
    %368 = arith.mulf %366, %367 : vector<32x32xf32>
    %369 = vector.broadcast %350 : vector<1x32xf32> to vector<32x32xf32>
    %370 = arith.addf %368, %369 : vector<32x32xf32>
    %371 = vector.shape_cast %370 : vector<32x32xf32> to vector<2x16x32xf32>
    %372 = tpu.iota {dimensions = array<i32: 0>} : vector<16x32xi32>
    %373 = vector.broadcast %1 : i32 to vector<16x32xi32>
    %374 = arith.cmpi slt, %372, %373 : vector<16x32xi32>
    %375 = arith.extui %374 : vector<16x32xi1> to vector<16x32xi32>
    %376 = arith.sitofp %375 : vector<16x32xi32> to vector<16x32xf32>
    %377 = vector.shape_cast %376 : vector<16x32xf32> to vector<1x16x32xf32>
    %378 = vector.broadcast %377 : vector<1x16x32xf32> to vector<2x16x32xf32>
    %379 = arith.mulf %371, %378 : vector<2x16x32xf32>
    %cst_177 = arith.constant dense<0.000000e+00> : vector<2x32xf32>
    %380 = vector.multi_reduction <add>, %379, %cst_177 [1] : vector<2x16x32xf32> to vector<2x32xf32>
    %381 = arith.sitofp %1 : i32 to f32
    %382 = vector.broadcast %381 : f32 to vector<2x32xf32>
    %383 = arith.divf %380, %382 : vector<2x32xf32>
    %c0_178 = arith.constant 0 : index
    %c0_179 = arith.constant 0 : index
    %c0_180 = arith.constant 0 : index
    %384 = vector.load %arg18[%c0_178, %c0_179, %c0_180] : memref<1x2x32xf32, #tpu.memory_space<vmem>>, vector<1x2x32xf32>
    %385 = vector.shape_cast %384 : vector<1x2x32xf32> to vector<2x32xf32>
    %386 = vector.shape_cast %383 : vector<2x32xf32> to vector<1x2x32xf32>
    tpu.vector_store %arg18[%c0_178, %c0_179, %c0_180], %386 {strides = array<i32>} : memref<1x2x32xf32, #tpu.memory_space<vmem>>, vector<1x2x32xf32>,
    return
  }
  func.func @transform_0(%arg0: i32, %arg1: memref<3xi32, #tpu.memory_space<smem>>) -> (i32, i32, i32, i32) {
    %c0_i32 = arith.constant 0 : i32
    %c0_i32_0 = arith.constant 0 : i32
    %c0_i32_1 = arith.constant 0 : i32
    %c0_i32_2 = arith.constant 0 : i32
    return %arg0, %c0_i32, %c0_i32_0, %c0_i32_1 : i32, i32, i32, i32
  }
  func.func @transform_1(%arg0: i32, %arg1: memref<3xi32, #tpu.memory_space<smem>>) -> (i32, i32, i32) {
    %c0_i32 = arith.constant 0 : i32
    %c0_i32_0 = arith.constant 0 : i32
    %c0_i32_1 = arith.constant 0 : i32
    return %arg0, %c0_i32, %c0_i32_0 : i32, i32, i32
  }
  func.func @transform_2(%arg0: i32, %arg1: memref<3xi32, #tpu.memory_space<smem>>) -> (i32, i32) {
    %c0_i32 = arith.constant 0 : i32
    %c0_i32_0 = arith.constant 0 : i32
    %c0_i32_1 = arith.constant 0 : i32
    return %c0_i32, %c0_i32_0 : i32, i32
  }
  func.func @transform_3(%arg0: i32, %arg1: memref<3xi32, #tpu.memory_space<smem>>) -> (i32, i32) {
    %c0_i32 = arith.constant 0 : i32
    %c0_i32_0 = arith.constant 0 : i32
    %c0_i32_1 = arith.constant 0 : i32
    return %c0_i32, %c0_i32_0 : i32, i32
  }
  func.func @transform_4(%arg0: i32, %arg1: memref<3xi32, #tpu.memory_space<smem>>) -> (i32, i32, i32, i32) {
    %c0_i32 = arith.constant 0 : i32
    %c0_i32_0 = arith.constant 0 : i32
    %c0_i32_1 = arith.constant 0 : i32
    %c0_i32_2 = arith.constant 0 : i32
    return %arg0, %c0_i32, %c0_i32_0, %c0_i32_1 : i32, i32, i32, i32
  }
  func.func @transform_5(%arg0: i32, %arg1: memref<3xi32, #tpu.memory_space<smem>>) -> (i32, i32, i32, i32) {
    %c0_i32 = arith.constant 0 : i32
    %c0_i32_0 = arith.constant 0 : i32
    %c0_i32_1 = arith.constant 0 : i32
    %c0_i32_2 = arith.constant 0 : i32
    return %arg0, %c0_i32, %c0_i32_0, %c0_i32_1 : i32, i32, i32, i32
  }
  func.func @transform_6(%arg0: i32, %arg1: memref<3xi32, #tpu.memory_space<smem>>) -> (i32, i32, i32, i32) {
    %c0_i32 = arith.constant 0 : i32
    %c0_i32_0 = arith.constant 0 : i32
    %c0_i32_1 = arith.constant 0 : i32
    %c0_i32_2 = arith.constant 0 : i32
    return %arg0, %c0_i32, %c0_i32_0, %c0_i32_1 : i32, i32, i32, i32
  }
  func.func @transform_7(%arg0: i32, %arg1: memref<3xi32, #tpu.memory_space<smem>>) -> (i32, i32, i32, i32) {
    %c0_i32 = arith.constant 0 : i32
    %c0_i32_0 = arith.constant 0 : i32
    %c0_i32_1 = arith.constant 0 : i32
    %c0_i32_2 = arith.constant 0 : i32
    return %arg0, %c0_i32, %c0_i32_0, %c0_i32_1 : i32, i32, i32, i32
  }
  func.func @transform_8(%arg0: i32, %arg1: memref<3xi32, #tpu.memory_space<smem>>) -> (i32, i32, i32, i32) {
    %c0_i32 = arith.constant 0 : i32
    %c0_i32_0 = arith.constant 0 : i32
    %c0_i32_1 = arith.constant 0 : i32
    %c0_i32_2 = arith.constant 0 : i32
    return %arg0, %c0_i32, %c0_i32_0, %c0_i32_1 : i32, i32, i32, i32
  }
  func.func @transform_9(%arg0: i32, %arg1: memref<3xi32, #tpu.memory_space<smem>>) -> (i32, i32, i32, i32) {
    %c0_i32 = arith.constant 0 : i32
    %c0_i32_0 = arith.constant 0 : i32
    %c0_i32_1 = arith.constant 0 : i32
    %c0_i32_2 = arith.constant 0 : i32
    return %arg0, %c0_i32, %c0_i32_0, %c0_i32_1 : i32, i32, i32, i32
  }
  func.func @transform_10(%arg0: i32, %arg1: memref<3xi32, #tpu.memory_space<smem>>) -> (i32, i32, i32, i32) {
    %c0_i32 = arith.constant 0 : i32
    %c0_i32_0 = arith.constant 0 : i32
    %c0_i32_1 = arith.constant 0 : i32
    %c0_i32_2 = arith.constant 0 : i32
    return %arg0, %c0_i32, %c0_i32_0, %c0_i32_1 : i32, i32, i32, i32
  }
  func.func @transform_11(%arg0: i32, %arg1: memref<3xi32, #tpu.memory_space<smem>>) -> (i32, i32, i32, i32) {
    %c0_i32 = arith.constant 0 : i32
    %c0_i32_0 = arith.constant 0 : i32
    %c0_i32_1 = arith.constant 0 : i32
    %c0_i32_2 = arith.constant 0 : i32
    return %arg0, %c0_i32, %c0_i32_0, %c0_i32_1 : i32, i32, i32, i32
  }
  func.func @transform_12(%arg0: i32, %arg1: memref<3xi32, #tpu.memory_space<smem>>) -> (i32, i32, i32, i32) {
    %c0_i32 = arith.constant 0 : i32
    %c0_i32_0 = arith.constant 0 : i32
    %c0_i32_1 = arith.constant 0 : i32
    %c0_i32_2 = arith.constant 0 : i32
    return %arg0, %c0_i32, %c0_i32_0, %c0_i32_1 : i32, i32, i32, i32
  }
  func.func @transform_13(%arg0: i32, %arg1: memref<3xi32, #tpu.memory_space<smem>>) -> (i32, i32, i32, i32) {
    %c0_i32 = arith.constant 0 : i32
    %c0_i32_0 = arith.constant 0 : i32
    %c0_i32_1 = arith.constant 0 : i32
    %c0_i32_2 = arith.constant 0 : i32
    return %arg0, %c0_i32, %c0_i32_0, %c0_i32_1 : i32, i32, i32, i32
  }
  func.func @transform_14(%arg0: i32, %arg1: memref<3xi32, #tpu.memory_space<smem>>) -> (i32, i32, i32, i32) {
    %c0_i32 = arith.constant 0 : i32
    %c0_i32_0 = arith.constant 0 : i32
    %c0_i32_1 = arith.constant 0 : i32
    %c0_i32_2 = arith.constant 0 : i32
    return %arg0, %c0_i32, %c0_i32_0, %c0_i32_1 : i32, i32, i32, i32
  }
  func.func @transform_15(%arg0: i32, %arg1: memref<3xi32, #tpu.memory_space<smem>>) -> (i32, i32, i32, i32) {
    %c0_i32 = arith.constant 0 : i32
    %c0_i32_0 = arith.constant 0 : i32
    %c0_i32_1 = arith.constant 0 : i32
    %c0_i32_2 = arith.constant 0 : i32
    return %arg0, %c0_i32, %c0_i32_0, %c0_i32_1 : i32, i32, i32, i32
  }
  func.func @transform_16(%arg0: i32, %arg1: memref<3xi32, #tpu.memory_space<smem>>) -> (i32, i32, i32) {
    %c0_i32 = arith.constant 0 : i32
    %c0_i32_0 = arith.constant 0 : i32
    %c0_i32_1 = arith.constant 0 : i32
    return %arg0, %c0_i32, %c0_i32_0 : i32, i32, i32
  }
}

</mosaic_0001>

<llo_original>
// kernel: tpu_custom_call.1
$region0: #{tpu_custom_call.1}
  #allocation0 [shape = 'u32[]', space=smem, size = 0x4, offset = 0x4, fixed_abs, tag = 'smem constant byte address 0x4 - core index']
  #allocation1 [shape = 'u32[72,128]{1,0:T(1,128)}', space=vmem, size = 0x9000, scoped, tag = 'internal scratch']
  #allocation2 [shape = 's32[1]{0}', space=sflag, size = 0x4, scoped, tag = 'scoped memory for tpu_custom_call.1']
  #allocation3 [shape = 'u8[512]{0}', space=smem, size = 0x200, scoped, tag = 'prefetched SMEM operand 0']
  %s0 = inlined_call_operand.vmem [shape: s32[3], index: 0, kind: input, shape index: {}]
  %s1 = inlined_call_operand.vmem [shape: f32[3,2,16,4], index: 1, kind: input, shape index: {}]
  %s2 = inlined_call_operand.vmem [shape: f32[3,16,32], index: 2, kind: input, shape index: {}]
  %s3 = inlined_call_operand.vmem [shape: f32[4,32], index: 3, kind: input, shape index: {}]
  %s4 = inlined_call_operand.vmem [shape: f32[1,32], index: 4, kind: input, shape index: {}]
  %s5 = inlined_call_operand.vmem [shape: f32[3,2,32,96], index: 5, kind: input, shape index: {}]
  %s6 = inlined_call_operand.vmem [shape: f32[3,2,1,96], index: 6, kind: input, shape index: {}]
  %s7 = inlined_call_operand.vmem [shape: f32[3,2,32,32], index: 7, kind: input, shape index: {}]
  %s8 = inlined_call_operand.vmem [shape: f32[3,2,1,32], index: 8, kind: input, shape index: {}]
  %s9 = inlined_call_operand.vmem [shape: f32[3,2,1,32], index: 9, kind: input, shape index: {}]
  %s10 = inlined_call_operand.vmem [shape: f32[3,2,1,32], index: 10, kind: input, shape index: {}]
  %s11 = inlined_call_operand.vmem [shape: f32[3,2,32,2048], index: 11, kind: input, shape index: {}]
  %s12 = inlined_call_operand.vmem [shape: f32[3,2,1,2048], index: 12, kind: input, shape index: {}]
  %s13 = inlined_call_operand.vmem [shape: f32[3,2,2048,32], index: 13, kind: input, shape index: {}]
  %s14 = inlined_call_operand.vmem [shape: f32[3,2,1,32], index: 14, kind: input, shape index: {}]
  %s15 = inlined_call_operand.vmem [shape: f32[3,2,1,32], index: 15, kind: input, shape index: {}]
  %s16 = inlined_call_operand.vmem [shape: f32[3,2,1,32], index: 16, kind: input, shape index: {}]
  %s17 = inlined_call_operand.hbm [shape: f32[3,2,32], index: 17, kind: output, shape index: {}]
  %s18 = sld [smem:[#allocation0]]
  $region97: #{tpu_custom_call.1} parent=0
    _
  %s20 = ssub.s32 1, %s18
  %s21 = scalar_select 0, %s20, %s18
  %s23 = sshll.u32 %s0, 4
  %s24 = int_to_ptr.vmem [resolvable:$true] %s23
  %26 = dma.vmem_to_smem %s24, 16, [#allocation3], [#allocation2]
  %28 = dma.done [#allocation2], 16
  %29 = sfence
  $region1: #{tpu_custom_call.1} parent=0
    #allocation4 [shape = 'u8[2048]{0}', space=vmem, size = 0x800, scoped, tag = 'output window, operand 0']
    #allocation5 [shape = 's32[2]{0}', space=sflag, size = 0x8, scoped, tag = 'scoped memory for tpu_custom_call.1']
    %30 = vsyncpa [#allocation5], 0
    %s31 = scalar_lea.sflag [#allocation5], 1
    %32 = vsyncpa %s31, 0
    loop: start=0, step=1, limit=5
    $region2: #{tpu_custom_call.1} parent=1 // loop_pre_header
      _
    $region3: #{tpu_custom_call.1} parent=1 // loop_header
      %s34 = sphi 0, %s38
      %p35 = scmp.ge.s32.totalorder %s34, 5
      %s44 = sphi 0, %s46
      %s47 = sphi 0, %s44
      %s48 = sphi 0, %s47
      %s64 = sphi 0, %s48
      %s70 = sphi 0, %s72
      %s73 = sphi 0, %s70
      %s74 = sphi 0, %s73
      %s90 = sphi 0, %s74
      %s94 = sphi 0, %s94
      %s96 = sphi 0, %s94
      %s97 = sphi 0, %s96
      %s111 = sphi 0, %s97
      %s115 = sphi 0, %s115
      %s117 = sphi 0, %s115
      %s118 = sphi 0, %s117
      %s132 = sphi 0, %s118
      %s138 = sphi 0, %s140
      %s141 = sphi 0, %s138
      %s142 = sphi 0, %s141
      %s158 = sphi 0, %s142
      %s164 = sphi 0, %s166
      %s167 = sphi 0, %s164
      %s168 = sphi 0, %s167
      %s184 = sphi 0, %s168
      %s190 = sphi 0, %s192
      %s193 = sphi 0, %s190
      %s194 = sphi 0, %s193
      %s210 = sphi 0, %s194
      %s216 = sphi 0, %s218
      %s219 = sphi 0, %s216
      %s220 = sphi 0, %s219
      %s236 = sphi 0, %s220
      %s242 = sphi 0, %s244
      %s245 = sphi 0, %s242
      %s246 = sphi 0, %s245
      %s262 = sphi 0, %s246
      %s268 = sphi 0, %s270
      %s271 = sphi 0, %s268
      %s272 = sphi 0, %s271
      %s288 = sphi 0, %s272
      %s294 = sphi 0, %s296
      %s297 = sphi 0, %s294
      %s298 = sphi 0, %s297
      %s314 = sphi 0, %s298
      %s320 = sphi 0, %s322
      %s323 = sphi 0, %s320
      %s324 = sphi 0, %s323
      %s340 = sphi 0, %s324
      %s346 = sphi 0, %s348
      %s349 = sphi 0, %s346
      %s350 = sphi 0, %s349
      %s366 = sphi 0, %s350
      %s372 = sphi 0, %s374
      %s375 = sphi 0, %s372
      %s376 = sphi 0, %s375
      %s392 = sphi 0, %s376
      %s398 = sphi 0, %s400
      %s401 = sphi 0, %s398
      %s402 = sphi 0, %s401
      %s418 = sphi 0, %s402
      %s424 = sphi 0, %s426
      %s427 = sphi 0, %s424
      %s428 = sphi 0, %s427
      %s444 = sphi 0, %s428
      %s450 = sphi 0, %s452
      %s453 = sphi 0, %s450
      %s454 = sphi 0, %s453
      %s470 = sphi 0, %s454
    $region4: #{tpu_custom_call.1} parent=1 // loop_header_branch
      %37 = sbr.rel (%p35) target = $region8
    $region5: #{tpu_custom_call.1} parent=1 // loop_body
      %s39 = ssub.s32 %s34, 1
      %s40 = ssub.s32 %s34, 2
      %s41 = sadd.s32 %s34, 1
      %s42 = ssub.s32 %s34, %s41
      %p43 = scmp.eq.s32.totalorder %s42, 0
      %s45 = sadd.s32 %s44, 1
      %s46 = scalar_select %p43, %s44, %s45
      %p49 = pneg %p43
      %p50 = scmp.eq.s32.totalorder %s34, 2
      %p51 = por %p49, %p50
      %p52 = scmp.ne.s32.totalorder %s44, %s47
      %p53 = scmp.eq.s32.totalorder %s34, 0
      %p54 = por %p52, %p53
      %p55 = scmp.ne.s32.totalorder %s44, %s47
      %p56 = scmp.eq.s32.totalorder %s39, 2
      %p57 = por %p55, %p56
      %p58 = scmp.ne.s32.totalorder %s47, %s48
      %p59 = scmp.eq.s32.totalorder %s39, 0
      %p60 = por %p58, %p59
      %p61 = scmp.ne.s32.totalorder %s47, %s48
      %p62 = scmp.eq.s32.totalorder %s40, 2
      %p63 = por %p61, %p62
      %p65 = scmp.ne.s32.totalorder %s48, %s64
      %p66 = scmp.eq.s32.totalorder %s40, 0
      %p67 = por %p65, %p66
      %s68 = ssub.s32 %s34, %s41
      %p69 = scmp.eq.s32.totalorder %s68, 0
      %s71 = sadd.s32 %s70, 1
      %s72 = scalar_select %p69, %s70, %s71
      %p75 = pneg %p69
      %p76 = scmp.eq.s32.totalorder %s34, 2
      %p77 = por %p75, %p76
      %p78 = scmp.ne.s32.totalorder %s70, %s73
      %p79 = scmp.eq.s32.totalorder %s34, 0
      %p80 = por %p78, %p79
      %p81 = scmp.ne.s32.totalorder %s70, %s73
      %p82 = scmp.eq.s32.totalorder %s39, 2
      %p83 = por %p81, %p82
      %p84 = scmp.ne.s32.totalorder %s73, %s74
      %p85 = scmp.eq.s32.totalorder %s39, 0
      %p86 = por %p84, %p85
      %p87 = scmp.ne.s32.totalorder %s73, %s74
      %p88 = scmp.eq.s32.totalorder %s40, 2
      %p89 = por %p87, %p88
      %p91 = scmp.ne.s32.totalorder %s74, %s90
      %p92 = scmp.eq.s32.totalorder %s40, 0
      %p93 = por %p91, %p92
      %s95 = sadd.s32 %s94, 1
      %p98 = scmp.eq.s32.totalorder %s34, 2
      %p99 = scmp.ne.s32.totalorder %s94, %s96
      %p100 = scmp.eq.s32.totalorder %s34, 0
      %p101 = por %p99, %p100
      %p102 = scmp.ne.s32.totalorder %s94, %s96
      %p103 = scmp.eq.s32.totalorder %s39, 2
      %p104 = por %p102, %p103
      %p105 = scmp.ne.s32.totalorder %s96, %s97
      %p106 = scmp.eq.s32.totalorder %s39, 0
      %p107 = por %p105, %p106
      %p108 = scmp.ne.s32.totalorder %s96, %s97
      %p109 = scmp.eq.s32.totalorder %s40, 2
      %p110 = por %p108, %p109
      %p112 = scmp.ne.s32.totalorder %s97, %s111
      %p113 = scmp.eq.s32.totalorder %s40, 0
      %p114 = por %p112, %p113
      %s116 = sadd.s32 %s115, 1
      %p119 = scmp.eq.s32.totalorder %s34, 2
      %p120 = scmp.ne.s32.totalorder %s115, %s117
      %p121 = scmp.eq.s32.totalorder %s34, 0
      %p122 = por %p120, %p121
      %p123 = scmp.ne.s32.totalorder %s115, %s117
      %p124 = scmp.eq.s32.totalorder %s39, 2
      %p125 = por %p123, %p124
      %p126 = scmp.ne.s32.totalorder %s117, %s118
      %p127 = scmp.eq.s32.totalorder %s39, 0
      %p128 = por %p126, %p127
      %p129 = scmp.ne.s32.totalorder %s117, %s118
      %p130 = scmp.eq.s32.totalorder %s40, 2
      %p131 = por %p129, %p130
      %p133 = scmp.ne.s32.totalorder %s118, %s132
      %p134 = scmp.eq.s32.totalorder %s40, 0
      %p135 = por %p133, %p134
      %s136 = ssub.s32 %s34, %s41
      %p137 = scmp.eq.s32.totalorder %s136, 0
      %s139 = sadd.s32 %s138, 1
      %s140 = scalar_select %p137, %s138, %s139
      %p143 = pneg %p137
      %p144 = scmp.eq.s32.totalorder %s34, 2
      %p145 = por %p143, %p144
      %p146 = scmp.ne.s32.totalorder %s138, %s141
      %p147 = scmp.eq.s32.totalorder %s34, 0
      %p148 = por %p146, %p147
      %p149 = scmp.ne.s32.totalorder %s138, %s141
      %p150 = scmp.eq.s32.totalorder %s39, 2
      %p151 = por %p149, %p150
      %p152 = scmp.ne.s32.totalorder %s141, %s142
      %p153 = scmp.eq.s32.totalorder %s39, 0
      %p154 = por %p152, %p153
      %p155 = scmp.ne.s32.totalorder %s141, %s142
      %p156 = scmp.eq.s32.totalorder %s40, 2
      %p157 = por %p155, %p156
      %p159 = scmp.ne.s32.totalorder %s142, %s158
      %p160 = scmp.eq.s32.totalorder %s40, 0
      %p161 = por %p159, %p160
      %s162 = ssub.s32 %s34, %s41
      %p163 = scmp.eq.s32.totalorder %s162, 0
      %s165 = sadd.s32 %s164, 1
      %s166 = scalar_select %p163, %s164, %s165
      %p169 = pneg %p163
      %p170 = scmp.eq.s32.totalorder %s34, 2
      %p171 = por %p169, %p170
      %p172 = scmp.ne.s32.totalorder %s164, %s167
      %p173 = scmp.eq.s32.totalorder %s34, 0
      %p174 = por %p172, %p173
      %p175 = scmp.ne.s32.totalorder %s164, %s167
      %p176 = scmp.eq.s32.totalorder %s39, 2
      %p177 = por %p175, %p176
      %p178 = scmp.ne.s32.totalorder %s167, %s168
      %p179 = scmp.eq.s32.totalorder %s39, 0
      %p180 = por %p178, %p179
      %p181 = scmp.ne.s32.totalorder %s167, %s168
      %p182 = scmp.eq.s32.totalorder %s40, 2
      %p183 = por %p181, %p182
      %p185 = scmp.ne.s32.totalorder %s168, %s184
      %p186 = scmp.eq.s32.totalorder %s40, 0
      %p187 = por %p185, %p186
      %s188 = ssub.s32 %s34, %s41
      %p189 = scmp.eq.s32.totalorder %s188, 0
      %s191 = sadd.s32 %s190, 1
      %s192 = scalar_select %p189, %s190, %s191
      %p195 = pneg %p189
      %p196 = scmp.eq.s32.totalorder %s34, 2
      %p197 = por %p195, %p196
      %p198 = scmp.ne.s32.totalorder %s190, %s193
      %p199 = scmp.eq.s32.totalorder %s34, 0
      %p200 = por %p198, %p199
      %p201 = scmp.ne.s32.totalorder %s190, %s193
      %p202 = scmp.eq.s32.totalorder %s39, 2
      %p203 = por %p201, %p202
      %p204 = scmp.ne.s32.totalorder %s193, %s194
      %p205 = scmp.eq.s32.totalorder %s39, 0
      %p206 = por %p204, %p205
      %p207 = scmp.ne.s32.totalorder %s193, %s194
      %p208 = scmp.eq.s32.totalorder %s40, 2
      %p209 = por %p207, %p208
      %p211 = scmp.ne.s32.totalorder %s194, %s210
      %p212 = scmp.eq.s32.totalorder %s40, 0
      %p213 = por %p211, %p212
      %s214 = ssub.s32 %s34, %s41
      %p215 = scmp.eq.s32.totalorder %s214, 0
      %s217 = sadd.s32 %s216, 1
      %s218 = scalar_select %p215, %s216, %s217
      %p221 = pneg %p215
      %p222 = scmp.eq.s32.totalorder %s34, 2
      %p223 = por %p221, %p222
      %p224 = scmp.ne.s32.totalorder %s216, %s219
      %p225 = scmp.eq.s32.totalorder %s34, 0
      %p226 = por %p224, %p225
      %p227 = scmp.ne.s32.totalorder %s216, %s219
      %p228 = scmp.eq.s32.totalorder %s39, 2
      %p229 = por %p227, %p228
      %p230 = scmp.ne.s32.totalorder %s219, %s220
      %p231 = scmp.eq.s32.totalorder %s39, 0
      %p232 = por %p230, %p231
      %p233 = scmp.ne.s32.totalorder %s219, %s220
      %p234 = scmp.eq.s32.totalorder %s40, 2
      %p235 = por %p233, %p234
      %p237 = scmp.ne.s32.totalorder %s220, %s236
      %p238 = scmp.eq.s32.totalorder %s40, 0
      %p239 = por %p237, %p238
      %s240 = ssub.s32 %s34, %s41
      %p241 = scmp.eq.s32.totalorder %s240, 0
      %s243 = sadd.s32 %s242, 1
      %s244 = scalar_select %p241, %s242, %s243
      %p247 = pneg %p241
      %p248 = scmp.eq.s32.totalorder %s34, 2
      %p249 = por %p247, %p248
      %p250 = scmp.ne.s32.totalorder %s242, %s245
      %p251 = scmp.eq.s32.totalorder %s34, 0
      %p252 = por %p250, %p251
      %p253 = scmp.ne.s32.totalorder %s242, %s245
      %p254 = scmp.eq.s32.totalorder %s39, 2
      %p255 = por %p253, %p254
      %p256 = scmp.ne.s32.totalorder %s245, %s246
      %p257 = scmp.eq.s32.totalorder %s39, 0
      %p258 = por %p256, %p257
      %p259 = scmp.ne.s32.totalorder %s245, %s246
      %p260 = scmp.eq.s32.totalorder %s40, 2
      %p261 = por %p259, %p260
      %p263 = scmp.ne.s32.totalorder %s246, %s262
      %p264 = scmp.eq.s32.totalorder %s40, 0
      %p265 = por %p263, %p264
      %s266 = ssub.s32 %s34, %s41
      %p267 = scmp.eq.s32.totalorder %s266, 0
      %s269 = sadd.s32 %s268, 1
      %s270 = scalar_select %p267, %s268, %s269
      %p273 = pneg %p267
      %p274 = scmp.eq.s32.totalorder %s34, 2
      %p275 = por %p273, %p274
      %p276 = scmp.ne.s32.totalorder %s268, %s271
      %p277 = scmp.eq.s32.totalorder %s34, 0
      %p278 = por %p276, %p277
      %p279 = scmp.ne.s32.totalorder %s268, %s271
      %p280 = scmp.eq.s32.totalorder %s39, 2
      %p281 = por %p279, %p280
      %p282 = scmp.ne.s32.totalorder %s271, %s272
      %p283 = scmp.eq.s32.totalorder %s39, 0
      %p284 = por %p282, %p283
      %p285 = scmp.ne.s32.totalorder %s271, %s272
      %p286 = scmp.eq.s32.totalorder %s40, 2
      %p287 = por %p285, %p286
      %p289 = scmp.ne.s32.totalorder %s272, %s288
      %p290 = scmp.eq.s32.totalorder %s40, 0
      %p291 = por %p289, %p290
      %s292 = ssub.s32 %s34, %s41
      %p293 = scmp.eq.s32.totalorder %s292, 0
      %s295 = sadd.s32 %s294, 1
      %s296 = scalar_select %p293, %s294, %s295
      %p299 = pneg %p293
      %p300 = scmp.eq.s32.totalorder %s34, 2
      %p301 = por %p299, %p300
      %p302 = scmp.ne.s32.totalorder %s294, %s297
      %p303 = scmp.eq.s32.totalorder %s34, 0
      %p304 = por %p302, %p303
      %p305 = scmp.ne.s32.totalorder %s294, %s297
      %p306 = scmp.eq.s32.totalorder %s39, 2
      %p307 = por %p305, %p306
      %p308 = scmp.ne.s32.totalorder %s297, %s298
      %p309 = scmp.eq.s32.totalorder %s39, 0
      %p310 = por %p308, %p309
      %p311 = scmp.ne.s32.totalorder %s297, %s298
      %p312 = scmp.eq.s32.totalorder %s40, 2
      %p313 = por %p311, %p312
      %p315 = scmp.ne.s32.totalorder %s298, %s314
      %p316 = scmp.eq.s32.totalorder %s40, 0
      %p317 = por %p315, %p316
      %s318 = ssub.s32 %s34, %s41
      %p319 = scmp.eq.s32.totalorder %s318, 0
      %s321 = sadd.s32 %s320, 1
      %s322 = scalar_select %p319, %s320, %s321
      %p325 = pneg %p319
      %p326 = scmp.eq.s32.totalorder %s34, 2
      %p327 = por %p325, %p326
      %p328 = scmp.ne.s32.totalorder %s320, %s323
      %p329 = scmp.eq.s32.totalorder %s34, 0
      %p330 = por %p328, %p329
      %p331 = scmp.ne.s32.totalorder %s320, %s323
      %p332 = scmp.eq.s32.totalorder %s39, 2
      %p333 = por %p331, %p332
      %p334 = scmp.ne.s32.totalorder %s323, %s324
      %p335 = scmp.eq.s32.totalorder %s39, 0
      %p336 = por %p334, %p335
      %p337 = scmp.ne.s32.totalorder %s323, %s324
      %p338 = scmp.eq.s32.totalorder %s40, 2
      %p339 = por %p337, %p338
      %p341 = scmp.ne.s32.totalorder %s324, %s340
      %p342 = scmp.eq.s32.totalorder %s40, 0
      %p343 = por %p341, %p342
      %s344 = ssub.s32 %s34, %s41
      %p345 = scmp.eq.s32.totalorder %s344, 0
      %s347 = sadd.s32 %s346, 1
      %s348 = scalar_select %p345, %s346, %s347
      %p351 = pneg %p345
      %p352 = scmp.eq.s32.totalorder %s34, 2
      %p353 = por %p351, %p352
      %p354 = scmp.ne.s32.totalorder %s346, %s349
      %p355 = scmp.eq.s32.totalorder %s34, 0
      %p356 = por %p354, %p355
      %p357 = scmp.ne.s32.totalorder %s346, %s349
      %p358 = scmp.eq.s32.totalorder %s39, 2
      %p359 = por %p357, %p358
      %p360 = scmp.ne.s32.totalorder %s349, %s350
      %p361 = scmp.eq.s32.totalorder %s39, 0
      %p362 = por %p360, %p361
      %p363 = scmp.ne.s32.totalorder %s349, %s350
      %p364 = scmp.eq.s32.totalorder %s40, 2
      %p365 = por %p363, %p364
      %p367 = scmp.ne.s32.totalorder %s350, %s366
      %p368 = scmp.eq.s32.totalorder %s40, 0
      %p369 = por %p367, %p368
      %s370 = ssub.s32 %s34, %s41
      %p371 = scmp.eq.s32.totalorder %s370, 0
      %s373 = sadd.s32 %s372, 1
      %s374 = scalar_select %p371, %s372, %s373
      %p377 = pneg %p371
      %p378 = scmp.eq.s32.totalorder %s34, 2
      %p379 = por %p377, %p378
      %p380 = scmp.ne.s32.totalorder %s372, %s375
      %p381 = scmp.eq.s32.totalorder %s34, 0
      %p382 = por %p380, %p381
      %p383 = scmp.ne.s32.totalorder %s372, %s375
      %p384 = scmp.eq.s32.totalorder %s39, 2
      %p385 = por %p383, %p384
      %p386 = scmp.ne.s32.totalorder %s375, %s376
      %p387 = scmp.eq.s32.totalorder %s39, 0
      %p388 = por %p386, %p387
      %p389 = scmp.ne.s32.totalorder %s375, %s376
      %p390 = scmp.eq.s32.totalorder %s40, 2
      %p391 = por %p389, %p390
      %p393 = scmp.ne.s32.totalorder %s376, %s392
      %p394 = scmp.eq.s32.totalorder %s40, 0
      %p395 = por %p393, %p394
      %s396 = ssub.s32 %s34, %s41
      %p397 = scmp.eq.s32.totalorder %s396, 0
      %s399 = sadd.s32 %s398, 1
      %s400 = scalar_select %p397, %s398, %s399
      %p403 = pneg %p397
      %p404 = scmp.eq.s32.totalorder %s34, 2
      %p405 = por %p403, %p404
      %p406 = scmp.ne.s32.totalorder %s398, %s401
      %p407 = scmp.eq.s32.totalorder %s34, 0
      %p408 = por %p406, %p407
      %p409 = scmp.ne.s32.totalorder %s398, %s401
      %p410 = scmp.eq.s32.totalorder %s39, 2
      %p411 = por %p409, %p410
      %p412 = scmp.ne.s32.totalorder %s401, %s402
      %p413 = scmp.eq.s32.totalorder %s39, 0
      %p414 = por %p412, %p413
      %p415 = scmp.ne.s32.totalorder %s401, %s402
      %p416 = scmp.eq.s32.totalorder %s40, 2
      %p417 = por %p415, %p416
      %p419 = scmp.ne.s32.totalorder %s402, %s418
      %p420 = scmp.eq.s32.totalorder %s40, 0
      %p421 = por %p419, %p420
      %s422 = ssub.s32 %s34, %s41
      %p423 = scmp.eq.s32.totalorder %s422, 0
      %s425 = sadd.s32 %s424, 1
      %s426 = scalar_select %p423, %s424, %s425
      %p429 = pneg %p423
      %p430 = scmp.eq.s32.totalorder %s34, 2
      %p431 = por %p429, %p430
      %p432 = scmp.ne.s32.totalorder %s424, %s427
      %p433 = scmp.eq.s32.totalorder %s34, 0
      %p434 = por %p432, %p433
      %p435 = scmp.ne.s32.totalorder %s424, %s427
      %p436 = scmp.eq.s32.totalorder %s39, 2
      %p437 = por %p435, %p436
      %p438 = scmp.ne.s32.totalorder %s427, %s428
      %p439 = scmp.eq.s32.totalorder %s39, 0
      %p440 = por %p438, %p439
      %p441 = scmp.ne.s32.totalorder %s427, %s428
      %p442 = scmp.eq.s32.totalorder %s40, 2
      %p443 = por %p441, %p442
      %p445 = scmp.ne.s32.totalorder %s428, %s444
      %p446 = scmp.eq.s32.totalorder %s40, 0
      %p447 = por %p445, %p446
      %s448 = ssub.s32 %s34, %s41
      %p449 = scmp.eq.s32.totalorder %s448, 0
      %s451 = sadd.s32 %s450, 1
      %s452 = scalar_select %p449, %s450, %s451
      %p455 = pneg %p449
      %p456 = scmp.eq.s32.totalorder %s34, 2
      %p457 = por %p455, %p456
      %p458 = scmp.ne.s32.totalorder %s450, %s453
      %p459 = scmp.eq.s32.totalorder %s34, 0
      %p460 = por %p458, %p459
      %p461 = scmp.ne.s32.totalorder %s450, %s453
      %p462 = scmp.eq.s32.totalorder %s39, 2
      %p463 = por %p461, %p462
      %p464 = scmp.ne.s32.totalorder %s453, %s454
      %p465 = scmp.eq.s32.totalorder %s39, 0
      %p466 = por %p464, %p465
      %p467 = scmp.ne.s32.totalorder %s453, %s454
      %p468 = scmp.eq.s32.totalorder %s40, 2
      %p469 = por %p467, %p468
      %p471 = scmp.ne.s32.totalorder %s454, %s470
      %p472 = scmp.eq.s32.totalorder %s40, 0
      %p473 = por %p471, %p472
      %p474 = scmp.le.s32.totalorder 1, %s34
      %p475 = scmp.lt.s32.totalorder %s34, 4
      %p476 = pnand %p474, %p475
      %p477 = pneg %p476
      // Predicated region
      $region9: #{tpu_custom_call.1} parent=5 // pred_check
        _
      $region10: #{tpu_custom_call.1} parent=5 // pred_check_branch
        %479 = sbr.rel (%p476) target = $region12
      $region11: #{tpu_custom_call.1} parent=5 // pred_region
        %s480 = ssub.s32 %s34, 1
        // Predicated region
        $region13: #{tpu_custom_call.1} parent=11 // pred_check
          %p481 = pneg %p107
        $region14: #{tpu_custom_call.1} parent=11 // pred_check_branch
          %483 = sbr.rel (%p481) target = $region16
        $region15: #{tpu_custom_call.1} parent=11 // pred_region
          _
        $region16: #{tpu_custom_call.1} parent=11 // pred_fallthru
          _
        // Predicated region
        $region17: #{tpu_custom_call.1} parent=11 // pred_check
          %p484 = pneg %p128
        $region18: #{tpu_custom_call.1} parent=11 // pred_check_branch
          %486 = sbr.rel (%p484) target = $region20
        $region19: #{tpu_custom_call.1} parent=11 // pred_region
          _
        $region20: #{tpu_custom_call.1} parent=11 // pred_fallthru
          _
      $region12: #{tpu_custom_call.1} parent=5 // pred_fallthru
        _
      %p487 = scmp.lt.s32.totalorder %s34, 3
      // Predicated region
      $region21: #{tpu_custom_call.1} parent=5 // pred_check
        %p488 = pneg %p487
      $region22: #{tpu_custom_call.1} parent=5 // pred_check_branch
        %490 = sbr.rel (%p488) target = $region24
      $region23: #{tpu_custom_call.1} parent=5 // pred_region
        // Predicated region
        $region25: #{tpu_custom_call.1} parent=23 // pred_check
          %p491 = pneg %p54
        $region26: #{tpu_custom_call.1} parent=23 // pred_check_branch
          %493 = sbr.rel (%p491) target = $region28
        $region27: #{tpu_custom_call.1} parent=23 // pred_region
          %p494 = scmp.lt.s32.totalorder %s34, 2
          %s495 = scalar_select %p494, %s34, 2
          %s496 = smul.addr %s495, 4
          %s497 = smul.addr %s496, 8
          %s498 = scalar_lea.vmem %s1, %s497
        $region28: #{tpu_custom_call.1} parent=23 // pred_fallthru
          _
        // Predicated region
        $region29: #{tpu_custom_call.1} parent=23 // pred_check
          %p499 = pneg %p80
        $region30: #{tpu_custom_call.1} parent=23 // pred_check_branch
          %501 = sbr.rel (%p499) target = $region32
        $region31: #{tpu_custom_call.1} parent=23 // pred_region
          %p502 = scmp.lt.s32.totalorder %s34, 2
          %s503 = scalar_select %p502, %s34, 2
          %s504 = smul.addr %s503, 2
          %s505 = smul.addr %s504, 8
          %s506 = scalar_lea.vmem %s2, %s505
        $region32: #{tpu_custom_call.1} parent=23 // pred_fallthru
          _
        // Predicated region
        $region33: #{tpu_custom_call.1} parent=23 // pred_check
          %p507 = pneg %p148
        $region34: #{tpu_custom_call.1} parent=23 // pred_check_branch
          %509 = sbr.rel (%p507) target = $region36
        $region35: #{tpu_custom_call.1} parent=23 // pred_region
          %p510 = scmp.lt.s32.totalorder %s34, 2
          %s511 = scalar_select %p510, %s34, 2
          %s512 = smul.addr %s511, 8
          %s513 = smul.addr %s512, 8
          %s514 = scalar_lea.vmem %s5, %s513
        $region36: #{tpu_custom_call.1} parent=23 // pred_fallthru
          _
        // Predicated region
        $region37: #{tpu_custom_call.1} parent=23 // pred_check
          %p515 = pneg %p174
        $region38: #{tpu_custom_call.1} parent=23 // pred_check_branch
          %517 = sbr.rel (%p515) target = $region40
        $region39: #{tpu_custom_call.1} parent=23 // pred_region
          %p518 = scmp.lt.s32.totalorder %s34, 2
          %s519 = scalar_select %p518, %s34, 2
          %s520 = smul.addr %s519, 2
          %s521 = scalar_lea.vmem %s6, %s520
        $region40: #{tpu_custom_call.1} parent=23 // pred_fallthru
          _
        // Predicated region
        $region41: #{tpu_custom_call.1} parent=23 // pred_check
          %p522 = pneg %p200
        $region42: #{tpu_custom_call.1} parent=23 // pred_check_branch
          %524 = sbr.rel (%p522) target = $region44
        $region43: #{tpu_custom_call.1} parent=23 // pred_region
          %p525 = scmp.lt.s32.totalorder %s34, 2
          %s526 = scalar_select %p525, %s34, 2
          %s527 = smul.addr %s526, 8
          %s528 = smul.addr %s527, 8
          %s529 = scalar_lea.vmem %s7, %s528
        $region44: #{tpu_custom_call.1} parent=23 // pred_fallthru
          _
        // Predicated region
        $region45: #{tpu_custom_call.1} parent=23 // pred_check
          %p530 = pneg %p226
        $region46: #{tpu_custom_call.1} parent=23 // pred_check_branch
          %532 = sbr.rel (%p530) target = $region48
        $region47: #{tpu_custom_call.1} parent=23 // pred_region
          %p533 = scmp.lt.s32.totalorder %s34, 2
          %s534 = scalar_select %p533, %s34, 2
          %s535 = smul.addr %s534, 2
          %s536 = scalar_lea.vmem %s8, %s535
        $region48: #{tpu_custom_call.1} parent=23 // pred_fallthru
          _
        // Predicated region
        $region49: #{tpu_custom_call.1} parent=23 // pred_check
          %p537 = pneg %p252
        $region50: #{tpu_custom_call.1} parent=23 // pred_check_branch
          %539 = sbr.rel (%p537) target = $region52
        $region51: #{tpu_custom_call.1} parent=23 // pred_region
          %p540 = scmp.lt.s32.totalorder %s34, 2
          %s541 = scalar_select %p540, %s34, 2
          %s542 = smul.addr %s541, 2
          %s543 = scalar_lea.vmem %s9, %s542
        $region52: #{tpu_custom_call.1} parent=23 // pred_fallthru
          _
        // Predicated region
        $region53: #{tpu_custom_call.1} parent=23 // pred_check
          %p544 = pneg %p278
        $region54: #{tpu_custom_call.1} parent=23 // pred_check_branch
          %546 = sbr.rel (%p544) target = $region56
        $region55: #{tpu_custom_call.1} parent=23 // pred_region
          %p547 = scmp.lt.s32.totalorder %s34, 2
          %s548 = scalar_select %p547, %s34, 2
          %s549 = smul.addr %s548, 2
          %s550 = scalar_lea.vmem %s10, %s549
        $region56: #{tpu_custom_call.1} parent=23 // pred_fallthru
          _
        // Predicated region
        $region57: #{tpu_custom_call.1} parent=23 // pred_check
          %p551 = pneg %p304
        $region58: #{tpu_custom_call.1} parent=23 // pred_check_branch
          %553 = sbr.rel (%p551) target = $region60
        $region59: #{tpu_custom_call.1} parent=23 // pred_region
          %p554 = scmp.lt.s32.totalorder %s34, 2
          %s555 = scalar_select %p554, %s34, 2
          %s556 = smul.addr %s555, 128
          %s557 = smul.addr %s556, 8
          %s558 = scalar_lea.vmem %s11, %s557
        $region60: #{tpu_custom_call.1} parent=23 // pred_fallthru
          _
        // Predicated region
        $region61: #{tpu_custom_call.1} parent=23 // pred_check
          %p559 = pneg %p330
        $region62: #{tpu_custom_call.1} parent=23 // pred_check_branch
          %561 = sbr.rel (%p559) target = $region64
        $region63: #{tpu_custom_call.1} parent=23 // pred_region
          %p562 = scmp.lt.s32.totalorder %s34, 2
          %s563 = scalar_select %p562, %s34, 2
          %s564 = smul.addr %s563, 32
          %s565 = scalar_lea.vmem %s12, %s564
        $region64: #{tpu_custom_call.1} parent=23 // pred_fallthru
          _
        // Predicated region
        $region65: #{tpu_custom_call.1} parent=23 // pred_check
          %p566 = pneg %p356
        $region66: #{tpu_custom_call.1} parent=23 // pred_check_branch
          %568 = sbr.rel (%p566) target = $region68
        $region67: #{tpu_custom_call.1} parent=23 // pred_region
          %p569 = scmp.lt.s32.totalorder %s34, 2
          %s570 = scalar_select %p569, %s34, 2
          %s571 = smul.addr %s570, 512
          %s572 = smul.addr %s571, 8
          %s573 = scalar_lea.vmem %s13, %s572
        $region68: #{tpu_custom_call.1} parent=23 // pred_fallthru
          _
        // Predicated region
        $region69: #{tpu_custom_call.1} parent=23 // pred_check
          %p574 = pneg %p382
        $region70: #{tpu_custom_call.1} parent=23 // pred_check_branch
          %576 = sbr.rel (%p574) target = $region72
        $region71: #{tpu_custom_call.1} parent=23 // pred_region
          %p577 = scmp.lt.s32.totalorder %s34, 2
          %s578 = scalar_select %p577, %s34, 2
          %s579 = smul.addr %s578, 2
          %s580 = scalar_lea.vmem %s14, %s579
        $region72: #{tpu_custom_call.1} parent=23 // pred_fallthru
          _
        // Predicated region
        $region73: #{tpu_custom_call.1} parent=23 // pred_check
          %p581 = pneg %p408
        $region74: #{tpu_custom_call.1} parent=23 // pred_check_branch
          %583 = sbr.rel (%p581) target = $region76
        $region75: #{tpu_custom_call.1} parent=23 // pred_region
          %p584 = scmp.lt.s32.totalorder %s34, 2
          %s585 = scalar_select %p584, %s34, 2
          %s586 = smul.addr %s585, 2
          %s587 = scalar_lea.vmem %s15, %s586
        $region76: #{tpu_custom_call.1} parent=23 // pred_fallthru
          _
        // Predicated region
        $region77: #{tpu_custom_call.1} parent=23 // pred_check
          %p588 = pneg %p434
        $region78: #{tpu_custom_call.1} parent=23 // pred_check_branch
          %590 = sbr.rel (%p588) target = $region80
        $region79: #{tpu_custom_call.1} parent=23 // pred_region
          %p591 = scmp.lt.s32.totalorder %s34, 2
          %s592 = scalar_select %p591, %s34, 2
          %s593 = smul.addr %s592, 2
          %s594 = scalar_lea.vmem %s16, %s593
        $region80: #{tpu_custom_call.1} parent=23 // pred_fallthru
          _
      $region24: #{tpu_custom_call.1} parent=5 // pred_fallthru
        _
      %p595 = scmp.le.s32.totalorder 1, %s34
      %p596 = scmp.lt.s32.totalorder %s34, 4
      %p597 = pnand %p595, %p596
      %p598 = pneg %p597
      // Predicated region
      $region81: #{tpu_custom_call.1} parent=5 // pred_check
        _
      $region82: #{tpu_custom_call.1} parent=5 // pred_check_branch
        %600 = sbr.rel (%p597) target = $region84
      $region83: #{tpu_custom_call.1} parent=5 // pred_region
        %s601 = ssub.s32 %s34, 1
        %p602 = scmp.lt.s32.totalorder %s39, 2
        %s603 = scalar_select %p602, %s39, 2
        %s604 = smul.addr %s603, 4
        %s605 = smul.addr %s604, 8
        %s606 = scalar_lea.vmem %s1, %s605
        %p607 = pneg %p60
        %p608 = pneg %p57
        %p609 = scmp.lt.s32.totalorder %s39, 2
        %s610 = scalar_select %p609, %s39, 2
        %s611 = smul.addr %s610, 2
        %s612 = smul.addr %s611, 8
        %s613 = scalar_lea.vmem %s2, %s612
        %p614 = pneg %p86
        %p615 = pneg %p83
        %p616 = pneg %p107
        %p617 = pneg %p104
        %p618 = pneg %p128
        %p619 = pneg %p125
        %p620 = scmp.lt.s32.totalorder %s39, 2
        %s621 = scalar_select %p620, %s39, 2
        %s622 = smul.addr %s621, 8
        %s623 = smul.addr %s622, 8
        %s624 = scalar_lea.vmem %s5, %s623
        %p625 = pneg %p154
        %p626 = pneg %p151
        %p627 = scmp.lt.s32.totalorder %s39, 2
        %s628 = scalar_select %p627, %s39, 2
        %s629 = smul.addr %s628, 2
        %s630 = scalar_lea.vmem %s6, %s629
        %p631 = pneg %p180
        %p632 = pneg %p177
        %p633 = scmp.lt.s32.totalorder %s39, 2
        %s634 = scalar_select %p633, %s39, 2
        %s635 = smul.addr %s634, 8
        %s636 = smul.addr %s635, 8
        %s637 = scalar_lea.vmem %s7, %s636
        %p638 = pneg %p206
        %p639 = pneg %p203
        %p640 = scmp.lt.s32.totalorder %s39, 2
        %s641 = scalar_select %p640, %s39, 2
        %s642 = smul.addr %s641, 2
        %s643 = scalar_lea.vmem %s8, %s642
        %p644 = pneg %p232
        %p645 = pneg %p229
        %p646 = scmp.lt.s32.totalorder %s39, 2
        %s647 = scalar_select %p646, %s39, 2
        %s648 = smul.addr %s647, 2
        %s649 = scalar_lea.vmem %s9, %s648
        %p650 = pneg %p258
        %p651 = pneg %p255
        %p652 = scmp.lt.s32.totalorder %s39, 2
        %s653 = scalar_select %p652, %s39, 2
        %s654 = smul.addr %s653, 2
        %s655 = scalar_lea.vmem %s10, %s654
        %p656 = pneg %p284
        %p657 = pneg %p281
        %p658 = scmp.lt.s32.totalorder %s39, 2
        %s659 = scalar_select %p658, %s39, 2
        %s660 = smul.addr %s659, 128
        %s661 = smul.addr %s660, 8
        %s662 = scalar_lea.vmem %s11, %s661
        %p663 = pneg %p310
        %p664 = pneg %p307
        %p665 = scmp.lt.s32.totalorder %s39, 2
        %s666 = scalar_select %p665, %s39, 2
        %s667 = smul.addr %s666, 32
        %s668 = scalar_lea.vmem %s12, %s667
        %p669 = pneg %p336
        %p670 = pneg %p333
        %p671 = scmp.lt.s32.totalorder %s39, 2
        %s672 = scalar_select %p671, %s39, 2
        %s673 = smul.addr %s672, 512
        %s674 = smul.addr %s673, 8
        %s675 = scalar_lea.vmem %s13, %s674
        %p676 = pneg %p362
        %p677 = pneg %p359
        %p678 = scmp.lt.s32.totalorder %s39, 2
        %s679 = scalar_select %p678, %s39, 2
        %s680 = smul.addr %s679, 2
        %s681 = scalar_lea.vmem %s14, %s680
        %p682 = pneg %p388
        %p683 = pneg %p385
        %p684 = scmp.lt.s32.totalorder %s39, 2
        %s685 = scalar_select %p684, %s39, 2
        %s686 = smul.addr %s685, 2
        %s687 = scalar_lea.vmem %s15, %s686
        %p688 = pneg %p414
        %p689 = pneg %p411
        %p690 = scmp.lt.s32.totalorder %s39, 2
        %s691 = scalar_select %p690, %s39, 2
        %s692 = smul.addr %s691, 2
        %s693 = scalar_lea.vmem %s16, %s692
        %p694 = pneg %p440
        %p695 = pneg %p437
        %p696 = pneg %p466
        %p697 = pneg %p463
        %s698 = sand.u32 %s453, 1
        %s699 = scalar_lea.sflag [#allocation5], %s698
        %s700 = sand.u32 %s453, 1
        %s701 = smul.addr %s700, 2
        %s702 = scalar_lea.vmem [#allocation4], %s701
        %p703 = scmp.lt.s32.totalorder %s39, 2
        %s704 = scalar_select %p703, %s39, 2
        %s705 = smul.addr %s704, 4
        %s706 = smul.addr %s705, 8
        %s707 = scalar_lea.vmem %s1, %s706
        %p708 = scmp.lt.s32.totalorder %s39, 2
        %s709 = scalar_select %p708, %s39, 2
        %s710 = smul.addr %s709, 2
        %s711 = smul.addr %s710, 8
        %s712 = scalar_lea.vmem %s2, %s711
        %p713 = scmp.lt.s32.totalorder %s39, 2
        %s714 = scalar_select %p713, %s39, 2
        %s715 = smul.addr %s714, 8
        %s716 = smul.addr %s715, 8
        %s717 = scalar_lea.vmem %s5, %s716
        %p718 = scmp.lt.s32.totalorder %s39, 2
        %s719 = scalar_select %p718, %s39, 2
        %s720 = smul.addr %s719, 2
        %s721 = scalar_lea.vmem %s6, %s720
        %p722 = scmp.lt.s32.totalorder %s39, 2
        %s723 = scalar_select %p722, %s39, 2
        %s724 = smul.addr %s723, 8
        %s725 = smul.addr %s724, 8
        %s726 = scalar_lea.vmem %s7, %s725
        %p727 = scmp.lt.s32.totalorder %s39, 2
        %s728 = scalar_select %p727, %s39, 2
        %s729 = smul.addr %s728, 2
        %s730 = scalar_lea.vmem %s8, %s729
        %p731 = scmp.lt.s32.totalorder %s39, 2
        %s732 = scalar_select %p731, %s39, 2
        %s733 = smul.addr %s732, 2
        %s734 = scalar_lea.vmem %s9, %s733
        %p735 = scmp.lt.s32.totalorder %s39, 2
        %s736 = scalar_select %p735, %s39, 2
        %s737 = smul.addr %s736, 2
        %s738 = scalar_lea.vmem %s10, %s737
        %p739 = scmp.lt.s32.totalorder %s39, 2
        %s740 = scalar_select %p739, %s39, 2
        %s741 = smul.addr %s740, 128
        %s742 = smul.addr %s741, 8
        %s743 = scalar_lea.vmem %s11, %s742
        %p744 = scmp.lt.s32.totalorder %s39, 2
        %s745 = scalar_select %p744, %s39, 2
        %s746 = smul.addr %s745, 32
        %s747 = scalar_lea.vmem %s12, %s746
        %p748 = scmp.lt.s32.totalorder %s39, 2
        %s749 = scalar_select %p748, %s39, 2
        %s750 = smul.addr %s749, 512
        %s751 = smul.addr %s750, 8
        %s752 = scalar_lea.vmem %s13, %s751
        %p753 = scmp.lt.s32.totalorder %s39, 2
        %s754 = scalar_select %p753, %s39, 2
        %s755 = smul.addr %s754, 2
        %s756 = scalar_lea.vmem %s14, %s755
        %p757 = scmp.lt.s32.totalorder %s39, 2
        %s758 = scalar_select %p757, %s39, 2
        %s759 = smul.addr %s758, 2
        %s760 = scalar_lea.vmem %s15, %s759
        %p761 = scmp.lt.s32.totalorder %s39, 2
        %s762 = scalar_select %p761, %s39, 2
        %s763 = smul.addr %s762, 2
        %s764 = scalar_lea.vmem %s16, %s763
        %s765 = sld [smem:[#allocation3 + %s39]]
        %v766 = vld [vmem:[%s707] sm:$0xff]
        %v767 = vld [vmem:[%s707 + $0x8] sm:$0xff]
        %v768 = vld [vmem:[%s707 + $0x10] sm:$0xff]
        %v769 = vld [vmem:[%s707 + $0x18] sm:$0xff]
        %v770 = vld [vmem:[%s3] sm:$0xf]
        %v771 = vld [vmem:[%s4] sm:$0x1]
        %v773 = vperm.slane %v771, 0
        %vm775 = vcmask 31744
        %v777 = vsel %vm775, %v766, 0
        %v780 = vsel %vm775, %v767, 0
        %v783 = vsel %vm775, %v768, 0
        %v786 = vsel %vm775, %v769, 0
        %vm788 = vcmask 1043456
        %v790 = vsel %vm788, %v770, 0
        %792 = vmatpush.msra.mxu0 0.0
        %793 = vmatpush.msra.mxu0 0.0
        %794 = vmatpush.msra.mxu0 0.0
        %795 = vmatpush.msra.mxu0 0.0
        %796 = vmatpush.msra.mxu0 0.0
        %797 = vmatpush.msra.mxu0 0.0
        %798 = vmatpush.msra.mxu0 0.0
        %799 = vmatpush.msra.mxu0 0.0
        %800 = vmatpush.msra.mxu0 0.0
        %801 = vmatpush.msra.mxu0 0.0
        %802 = vmatpush.msra.mxu0 0.0
        %803 = vmatpush.msra.mxu0 0.0
        %804 = vmatpush.msra.mxu0 0.0
        %805 = vmatpush.msra.mxu0 0.0
        %806 = vmatpush.msra.mxu0 0.0
        %807 = vmatpush.msra.mxu0 %v790
        %808 = vmatmul.f32.gmra.mxu0 %v777
        %v809 = vpop.f32.mrf.mxu0
        %v810 = vadd.f32 %v773, %v809
        %811 = vmatmul.f32.gmra.mxu0 %v780
        %v812 = vpop.f32.mrf.mxu0
        %v813 = vadd.f32 %v773, %v812
        %814 = vmatmul.f32.gmra.mxu0 %v783
        %v815 = vpop.f32.mrf.mxu0
        %v816 = vadd.f32 %v773, %v815
        %817 = vmatmul.f32.gmra.mxu0 %v786
        %v818 = vpop.f32.mrf.mxu0
        %v819 = vadd.f32 %v773, %v818
        %820 = vdwg.mxu0
        %v821 = vld [vmem:[%s712] sm:$0xff]
        %v822 = vld [vmem:[%s712 + $0x8] sm:$0xff]
        %v823 = vadd.f32 %v810, %v821
        %v824 = vadd.f32 %v813, %v822
        %v825 = vadd.f32 %v816, %v821
        %v826 = vadd.f32 %v819, %v822
        %v827 = vlaneseq
        %v828 = vand.u32 %v827, 127
        %v829 = vstv %s765
        %vm830 = vcmp.lt.s32.totalorder %v828, %v829
        %v831 = vsel %vm830, 0.0, -1e+30
        %v832 = vld [vmem:[%s717] sm:$0xff]
        %v833 = vld [vmem:[%s717 + $0x8] sm:$0xff]
        %v834 = vld [vmem:[%s717 + $0x10] sm:$0xff]
        %v835 = vld [vmem:[%s717 + $0x18] sm:$0xff]
        %v836 = vld [vmem:[%s721] sm:$0x1]
        %v838 = vperm.slane %v836, 0
        %vm840 = vcmask 261120
        %v842 = vsel %vm840, %v823, 0
        %v845 = vsel %vm840, %v824, 0
        %v848 = vsel %vm840, %v825, 0
        %v851 = vsel %vm840, %v826, 0
        %853 = vmatpush.msra.mxu0 0.0
        %854 = vmatpush.msra.mxu0 0.0
        %855 = vmatpush.msra.mxu0 0.0
        %856 = vmatpush.msra.mxu0 0.0
        %857 = vmatpush.msra.mxu0 0.0
        %858 = vmatpush.msra.mxu0 0.0
        %859 = vmatpush.msra.mxu0 0.0
        %860 = vmatpush.msra.mxu0 0.0
        %861 = vmatpush.msra.mxu0 0.0
        %862 = vmatpush.msra.mxu0 0.0
        %863 = vmatpush.msra.mxu0 0.0
        %864 = vmatpush.msra.mxu0 0.0
        %865 = vmatpush.msra.mxu0 %v835
        %866 = vmatpush.msra.mxu0 %v834
        %867 = vmatpush.msra.mxu0 %v833
        %868 = vmatpush.msra.mxu0 %v832
        %869 = vmatmul.f32.gmra.mxu0 %v842
        %v870 = vpop.f32.mrf.mxu0
        %v871 = vadd.f32 %v838, %v870
        %872 = vmatmul.f32.gmra.mxu0 %v845
        %v873 = vpop.f32.mrf.mxu0
        %v874 = vadd.f32 %v838, %v873
        %875 = vmatmul.f32.gmra.mxu0 %v848
        %v876 = vpop.f32.mrf.mxu0
        %v877 = vadd.f32 %v838, %v876
        %878 = vmatmul.f32.gmra.mxu0 %v851
        %v879 = vpop.f32.mrf.mxu0
        %v880 = vadd.f32 %v838, %v879
        %881 = vdwg.mxu0
        %884 = vrot.lane.b32.xlu0 %v871, 96
        %v885 = vpop.permute.xlu0 %884
        %886 = vrot.lane.b32.xlu0 %v874, 96
        %v887 = vpop.permute.xlu0 %886
        %vm888 = vcmask 64512
        %v889 = vsel %vm888, %v871, 0
        %v891 = vsel %vm888, %v874, 0
        %v893 = vsel %vm888, %v885, 0
        %v895 = vsel %vm888, %v887, 0
        %897 = vmatpush.xpose.msra.mxu0 0.0
        %898 = vmatpush.xpose.msra.mxu0 0.0
        %899 = vmatpush.xpose.msra.mxu0 0.0
        %900 = vmatpush.xpose.msra.mxu0 0.0
        %901 = vmatpush.xpose.msra.mxu0 0.0
        %902 = vmatpush.xpose.msra.mxu0 0.0
        %903 = vmatpush.xpose.msra.mxu0 0.0
        %904 = vmatpush.xpose.msra.mxu0 0.0
        %905 = vmatpush.xpose.msra.mxu0 0.0
        %906 = vmatpush.xpose.msra.mxu0 0.0
        %907 = vmatpush.xpose.msra.mxu0 0.0
        %908 = vmatpush.xpose.msra.mxu0 0.0
        %909 = vmatpush.xpose.msra.mxu0 0.0
        %910 = vmatpush.xpose.msra.mxu0 0.0
        %911 = vmatpush.xpose.msra.mxu0 %v895
        %912 = vmatpush.xpose.msra.mxu0 %v893
        %913 = vmatmul.f32.gmra.mxu0 %v889
        %v914 = vpop.f32.mrf.mxu0
        %v915 = vadd.f32 0.0, %v914
        %916 = vmatmul.f32.gmra.mxu0 %v891
        %v917 = vpop.f32.mrf.mxu0
        %v918 = vadd.f32 0.0, %v917
        %919 = vdwg.mxu0
        %922 = vrot.lane.b32.xlu0 %v877, 96
        %v923 = vpop.permute.xlu0 %922
        %924 = vrot.lane.b32.xlu0 %v880, 96
        %v925 = vpop.permute.xlu0 %924
        %v926 = vsel %vm888, %v877, 0
        %v928 = vsel %vm888, %v880, 0
        %v930 = vsel %vm888, %v923, 0
        %v932 = vsel %vm888, %v925, 0
        %934 = vmatpush.xpose.msra.mxu0 0.0
        %935 = vmatpush.xpose.msra.mxu0 0.0
        %936 = vmatpush.xpose.msra.mxu0 0.0
        %937 = vmatpush.xpose.msra.mxu0 0.0
        %938 = vmatpush.xpose.msra.mxu0 0.0
        %939 = vmatpush.xpose.msra.mxu0 0.0
        %940 = vmatpush.xpose.msra.mxu0 0.0
        %941 = vmatpush.xpose.msra.mxu0 0.0
        %942 = vmatpush.xpose.msra.mxu0 0.0
        %943 = vmatpush.xpose.msra.mxu0 0.0
        %944 = vmatpush.xpose.msra.mxu0 0.0
        %945 = vmatpush.xpose.msra.mxu0 0.0
        %946 = vmatpush.xpose.msra.mxu0 0.0
        %947 = vmatpush.xpose.msra.mxu0 0.0
        %948 = vmatpush.xpose.msra.mxu0 %v932
        %949 = vmatpush.xpose.msra.mxu0 %v930
        %950 = vmatmul.f32.gmra.mxu0 %v926
        %v951 = vpop.f32.mrf.mxu0
        %v952 = vadd.f32 0.0, %v951
        %953 = vmatmul.f32.gmra.mxu0 %v928
        %v954 = vpop.f32.mrf.mxu0
        %v955 = vadd.f32 0.0, %v954
        %956 = vdwg.mxu0
        %v957 = vmul.f32 %v915, 0.35355338
        %v958 = vmul.f32 %v918, 0.35355338
        %v959 = vmul.f32 %v952, 0.35355338
        %v960 = vmul.f32 %v955, 0.35355338
        %v961 = vadd.f32 %v957, %v831
        %v962 = vadd.f32 %v958, %v831
        %v963 = vadd.f32 %v959, %v831
        %v964 = vadd.f32 %v960, %v831
        %vm965 = vcmask 130048
        %v966 = vsel %vm965, %v961, -inf
        %967 = vmax.xlane.f32.xlu0 %v966
        %v968 = vpop.xlane.xlu0 %967
        %v969 = vsel %vm965, %v962, -inf
        %970 = vmax.xlane.f32.xlu0 %v969
        %v971 = vpop.xlane.xlu0 %970
        %v972 = vsel %vm965, %v963, -inf
        %973 = vmax.xlane.f32.xlu0 %v972
        %v974 = vpop.xlane.xlu0 %973
        %v975 = vsel %vm965, %v964, -inf
        %976 = vmax.xlane.f32.xlu0 %v975
        %v977 = vpop.xlane.xlu0 %976
        %v978 = vsub.f32 %v961, %v968
        %v979 = vsub.f32 %v962, %v971
        %v980 = vsub.f32 %v963, %v974
        %v981 = vsub.f32 %v964, %v977
        %v982 = vmul.f32 %v978, 1.442695
        %v983 = vpow.pop %v982
        %v984 = vmul.f32 %v979, 1.442695
        %v985 = vpow.pop %v984
        %v986 = vmul.f32 %v980, 1.442695
        %v987 = vpow.pop %v986
        %v988 = vmul.f32 %v981, 1.442695
        %v989 = vpow.pop %v988
        %v990 = vsel %vm965, %v983, 0.0
        %991 = vadd.xlane.f32.xlu0 %v990
        %v992 = vpop.xlane.xlu0 %991
        %v993 = vsel %vm965, %v985, 0.0
        %994 = vadd.xlane.f32.xlu0 %v993
        %v995 = vpop.xlane.xlu0 %994
        %v996 = vsel %vm965, %v987, 0.0
        %997 = vadd.xlane.f32.xlu0 %v996
        %v998 = vpop.xlane.xlu0 %997
        %v999 = vsel %vm965, %v989, 0.0
        %1000 = vadd.xlane.f32.xlu0 %v999
        %v1001 = vpop.xlane.xlu0 %1000
        %v1002 = vrcp.pop %v992
        %v1003 = vrcp.pop %v995
        %v1004 = vrcp.pop %v998
        %v1005 = vrcp.pop %v1001
        %v1006 = vmul.f32 %v983, %v1002
        %v1007 = vmul.f32 %v985, %v1003
        %v1008 = vmul.f32 %v987, %v1004
        %v1009 = vmul.f32 %v989, %v1005
        %1010 = vrot.lane.b32.xlu0 %v871, 64
        %v1011 = vpop.permute.xlu0 %1010
        %1012 = vrot.lane.b32.xlu0 %v874, 64
        %v1013 = vpop.permute.xlu0 %1012
        %v1017 = vsel %vm965, %v1006, 0
        %v1020 = vsel %vm965, %v1007, 0
        %1022 = vmatpush.msra.mxu0 0.0
        %1023 = vmatpush.msra.mxu0 0.0
        %1024 = vmatpush.msra.mxu0 0.0
        %1025 = vmatpush.msra.mxu0 0.0
        %1026 = vmatpush.msra.mxu0 0.0
        %1027 = vmatpush.msra.mxu0 0.0
        %1028 = vmatpush.msra.mxu0 0.0
        %1029 = vmatpush.msra.mxu0 0.0
        %1030 = vmatpush.msra.mxu0 0.0
        %1031 = vmatpush.msra.mxu0 0.0
        %1032 = vmatpush.msra.mxu0 0.0
        %1033 = vmatpush.msra.mxu0 0.0
        %1034 = vmatpush.msra.mxu0 0.0
        %1035 = vmatpush.msra.mxu0 0.0
        %1036 = vmatpush.msra.mxu0 %v1013
        %1037 = vmatpush.msra.mxu0 %v1011
        %1038 = vmatmul.f32.gmra.mxu0 %v1017
        %v1039 = vpop.f32.mrf.mxu0
        %v1040 = vadd.f32 0.0, %v1039
        %1041 = vmatmul.f32.gmra.mxu0 %v1020
        %v1042 = vpop.f32.mrf.mxu0
        %v1043 = vadd.f32 0.0, %v1042
        %1044 = vdwg.mxu0
        %1045 = vrot.lane.b32.xlu0 %v877, 64
        %v1046 = vpop.permute.xlu0 %1045
        %1047 = vrot.lane.b32.xlu0 %v880, 64
        %v1048 = vpop.permute.xlu0 %1047
        %v1052 = vsel %vm965, %v1008, 0
        %v1055 = vsel %vm965, %v1009, 0
        %1057 = vmatpush.msra.mxu0 0.0
        %1058 = vmatpush.msra.mxu0 0.0
        %1059 = vmatpush.msra.mxu0 0.0
        %1060 = vmatpush.msra.mxu0 0.0
        %1061 = vmatpush.msra.mxu0 0.0
        %1062 = vmatpush.msra.mxu0 0.0
        %1063 = vmatpush.msra.mxu0 0.0
        %1064 = vmatpush.msra.mxu0 0.0
        %1065 = vmatpush.msra.mxu0 0.0
        %1066 = vmatpush.msra.mxu0 0.0
        %1067 = vmatpush.msra.mxu0 0.0
        %1068 = vmatpush.msra.mxu0 0.0
        %1069 = vmatpush.msra.mxu0 0.0
        %1070 = vmatpush.msra.mxu0 0.0
        %1071 = vmatpush.msra.mxu0 %v1048
        %1072 = vmatpush.msra.mxu0 %v1046
        %1073 = vmatmul.f32.gmra.mxu0 %v1052
        %v1074 = vpop.f32.mrf.mxu0
        %v1075 = vadd.f32 0.0, %v1074
        %1076 = vmatmul.f32.gmra.mxu0 %v1055
        %v1077 = vpop.f32.mrf.mxu0
        %v1078 = vadd.f32 0.0, %v1077
        %1079 = vdwg.mxu0
        %1080 = vrot.lane.b32.xlu0 %v871, 120
        %v1081 = vpop.permute.xlu0 %1080
        %1082 = vrot.lane.b32.xlu0 %v874, 120
        %v1083 = vpop.permute.xlu0 %1082
        %1084 = vrot.lane.b32.xlu0 %v871, 88
        %v1085 = vpop.permute.xlu0 %1084
        %1086 = vrot.lane.b32.xlu0 %v874, 88
        %v1087 = vpop.permute.xlu0 %1086
        %v1088 = vsel %vm888, %v1081, 0
        %v1090 = vsel %vm888, %v1083, 0
        %v1092 = vsel %vm888, %v1085, 0
        %v1094 = vsel %vm888, %v1087, 0
        %1096 = vmatpush.xpose.msra.mxu0 0.0
        %1097 = vmatpush.xpose.msra.mxu0 0.0
        %1098 = vmatpush.xpose.msra.mxu0 0.0
        %1099 = vmatpush.xpose.msra.mxu0 0.0
        %1100 = vmatpush.xpose.msra.mxu0 0.0
        %1101 = vmatpush.xpose.msra.mxu0 0.0
        %1102 = vmatpush.xpose.msra.mxu0 0.0
        %1103 = vmatpush.xpose.msra.mxu0 0.0
        %1104 = vmatpush.xpose.msra.mxu0 0.0
        %1105 = vmatpush.xpose.msra.mxu0 0.0
        %1106 = vmatpush.xpose.msra.mxu0 0.0
        %1107 = vmatpush.xpose.msra.mxu0 0.0
        %1108 = vmatpush.xpose.msra.mxu0 0.0
        %1109 = vmatpush.xpose.msra.mxu0 0.0
        %1110 = vmatpush.xpose.msra.mxu0 %v1094
        %1111 = vmatpush.xpose.msra.mxu0 %v1092
        %1112 = vmatmul.f32.gmra.mxu0 %v1088
        %v1113 = vpop.f32.mrf.mxu0
        %v1114 = vadd.f32 0.0, %v1113
        %1115 = vmatmul.f32.gmra.mxu0 %v1090
        %v1116 = vpop.f32.mrf.mxu0
        %v1117 = vadd.f32 0.0, %v1116
        %1118 = vdwg.mxu0
        %1119 = vrot.lane.b32.xlu0 %v877, 120
        %v1120 = vpop.permute.xlu0 %1119
        %1121 = vrot.lane.b32.xlu0 %v880, 120
        %v1122 = vpop.permute.xlu0 %1121
        %1123 = vrot.lane.b32.xlu0 %v877, 88
        %v1124 = vpop.permute.xlu0 %1123
        %1125 = vrot.lane.b32.xlu0 %v880, 88
        %v1126 = vpop.permute.xlu0 %1125
        %v1127 = vsel %vm888, %v1120, 0
        %v1129 = vsel %vm888, %v1122, 0
        %v1131 = vsel %vm888, %v1124, 0
        %v1133 = vsel %vm888, %v1126, 0
        %1135 = vmatpush.xpose.msra.mxu0 0.0
        %1136 = vmatpush.xpose.msra.mxu0 0.0
        %1137 = vmatpush.xpose.msra.mxu0 0.0
        %1138 = vmatpush.xpose.msra.mxu0 0.0
        %1139 = vmatpush.xpose.msra.mxu0 0.0
        %1140 = vmatpush.xpose.msra.mxu0 0.0
        %1141 = vmatpush.xpose.msra.mxu0 0.0
        %1142 = vmatpush.xpose.msra.mxu0 0.0
        %1143 = vmatpush.xpose.msra.mxu0 0.0
        %1144 = vmatpush.xpose.msra.mxu0 0.0
        %1145 = vmatpush.xpose.msra.mxu0 0.0
        %1146 = vmatpush.xpose.msra.mxu0 0.0
        %1147 = vmatpush.xpose.msra.mxu0 0.0
        %1148 = vmatpush.xpose.msra.mxu0 0.0
        %1149 = vmatpush.xpose.msra.mxu0 %v1133
        %1150 = vmatpush.xpose.msra.mxu0 %v1131
        %1151 = vmatmul.f32.gmra.mxu0 %v1127
        %v1152 = vpop.f32.mrf.mxu0
        %v1153 = vadd.f32 0.0, %v1152
        %1154 = vmatmul.f32.gmra.mxu0 %v1129
        %v1155 = vpop.f32.mrf.mxu0
        %v1156 = vadd.f32 0.0, %v1155
        %1157 = vdwg.mxu0
        %v1158 = vmul.f32 %v1114, 0.35355338
        %v1159 = vmul.f32 %v1117, 0.35355338
        %v1160 = vmul.f32 %v1153, 0.35355338
        %v1161 = vmul.f32 %v1156, 0.35355338
        %v1162 = vadd.f32 %v1158, %v831
        %v1163 = vadd.f32 %v1159, %v831
        %v1164 = vadd.f32 %v1160, %v831
        %v1165 = vadd.f32 %v1161, %v831
        %v1166 = vsel %vm965, %v1162, -inf
        %1167 = vmax.xlane.f32.xlu0 %v1166
        %v1168 = vpop.xlane.xlu0 %1167
        %v1169 = vsel %vm965, %v1163, -inf
        %1170 = vmax.xlane.f32.xlu0 %v1169
        %v1171 = vpop.xlane.xlu0 %1170
        %v1172 = vsel %vm965, %v1164, -inf
        %1173 = vmax.xlane.f32.xlu0 %v1172
        %v1174 = vpop.xlane.xlu0 %1173
        %v1175 = vsel %vm965, %v1165, -inf
        %1176 = vmax.xlane.f32.xlu0 %v1175
        %v1177 = vpop.xlane.xlu0 %1176
        %v1178 = vsub.f32 %v1162, %v1168
        %v1179 = vsub.f32 %v1163, %v1171
        %v1180 = vsub.f32 %v1164, %v1174
        %v1181 = vsub.f32 %v1165, %v1177
        %v1182 = vmul.f32 %v1178, 1.442695
        %v1183 = vpow.pop %v1182
        %v1184 = vmul.f32 %v1179, 1.442695
        %v1185 = vpow.pop %v1184
        %v1186 = vmul.f32 %v1180, 1.442695
        %v1187 = vpow.pop %v1186
        %v1188 = vmul.f32 %v1181, 1.442695
        %v1189 = vpow.pop %v1188
        %v1190 = vsel %vm965, %v1183, 0.0
        %1191 = vadd.xlane.f32.xlu0 %v1190
        %v1192 = vpop.xlane.xlu0 %1191
        %v1193 = vsel %vm965, %v1185, 0.0
        %1194 = vadd.xlane.f32.xlu0 %v1193
        %v1195 = vpop.xlane.xlu0 %1194
        %v1196 = vsel %vm965, %v1187, 0.0
        %1197 = vadd.xlane.f32.xlu0 %v1196
        %v1198 = vpop.xlane.xlu0 %1197
        %v1199 = vsel %vm965, %v1189, 0.0
        %1200 = vadd.xlane.f32.xlu0 %v1199
        %v1201 = vpop.xlane.xlu0 %1200
        %v1202 = vrcp.pop %v1192
        %v1203 = vrcp.pop %v1195
        %v1204 = vrcp.pop %v1198
        %v1205 = vrcp.pop %v1201
        %v1206 = vmul.f32 %v1183, %v1202
        %v1207 = vmul.f32 %v1185, %v1203
        %v1208 = vmul.f32 %v1187, %v1204
        %v1209 = vmul.f32 %v1189, %v1205
        %1210 = vrot.lane.b32.xlu0 %v871, 56
        %v1211 = vpop.permute.xlu0 %1210
        %1212 = vrot.lane.b32.xlu0 %v874, 56
        %v1213 = vpop.permute.xlu0 %1212
        %v1217 = vsel %vm965, %v1206, 0
        %v1220 = vsel %vm965, %v1207, 0
        %1222 = vmatpush.msra.mxu0 0.0
        %1223 = vmatpush.msra.mxu0 0.0
        %1224 = vmatpush.msra.mxu0 0.0
        %1225 = vmatpush.msra.mxu0 0.0
        %1226 = vmatpush.msra.mxu0 0.0
        %1227 = vmatpush.msra.mxu0 0.0
        %1228 = vmatpush.msra.mxu0 0.0
        %1229 = vmatpush.msra.mxu0 0.0
        %1230 = vmatpush.msra.mxu0 0.0
        %1231 = vmatpush.msra.mxu0 0.0
        %1232 = vmatpush.msra.mxu0 0.0
        %1233 = vmatpush.msra.mxu0 0.0
        %1234 = vmatpush.msra.mxu0 0.0
        %1235 = vmatpush.msra.mxu0 0.0
        %1236 = vmatpush.msra.mxu0 %v1213
        %1237 = vmatpush.msra.mxu0 %v1211
        %1238 = vmatmul.f32.gmra.mxu0 %v1217
        %v1239 = vpop.f32.mrf.mxu0
        %v1240 = vadd.f32 0.0, %v1239
        %1241 = vmatmul.f32.gmra.mxu0 %v1220
        %v1242 = vpop.f32.mrf.mxu0
        %v1243 = vadd.f32 0.0, %v1242
        %1244 = vdwg.mxu0
        %1245 = vrot.lane.b32.xlu0 %v877, 56
        %v1246 = vpop.permute.xlu0 %1245
        %1247 = vrot.lane.b32.xlu0 %v880, 56
        %v1248 = vpop.permute.xlu0 %1247
        %v1252 = vsel %vm965, %v1208, 0
        %v1255 = vsel %vm965, %v1209, 0
        %1257 = vmatpush.msra.mxu0 0.0
        %1258 = vmatpush.msra.mxu0 0.0
        %1259 = vmatpush.msra.mxu0 0.0
        %1260 = vmatpush.msra.mxu0 0.0
        %1261 = vmatpush.msra.mxu0 0.0
        %1262 = vmatpush.msra.mxu0 0.0
        %1263 = vmatpush.msra.mxu0 0.0
        %1264 = vmatpush.msra.mxu0 0.0
        %1265 = vmatpush.msra.mxu0 0.0
        %1266 = vmatpush.msra.mxu0 0.0
        %1267 = vmatpush.msra.mxu0 0.0
        %1268 = vmatpush.msra.mxu0 0.0
        %1269 = vmatpush.msra.mxu0 0.0
        %1270 = vmatpush.msra.mxu0 0.0
        %1271 = vmatpush.msra.mxu0 %v1248
        %1272 = vmatpush.msra.mxu0 %v1246
        %1273 = vmatmul.f32.gmra.mxu0 %v1252
        %v1274 = vpop.f32.mrf.mxu0
        %v1275 = vadd.f32 0.0, %v1274
        %1276 = vmatmul.f32.gmra.mxu0 %v1255
        %v1277 = vpop.f32.mrf.mxu0
        %v1278 = vadd.f32 0.0, %v1277
        %1279 = vdwg.mxu0
        %1280 = vrot.lane.b32.xlu0 %v871, 112
        %v1281 = vpop.permute.xlu0 %1280
        %1282 = vrot.lane.b32.xlu0 %v874, 112
        %v1283 = vpop.permute.xlu0 %1282
        %1284 = vrot.lane.b32.xlu0 %v871, 80
        %v1285 = vpop.permute.xlu0 %1284
        %1286 = vrot.lane.b32.xlu0 %v874, 80
        %v1287 = vpop.permute.xlu0 %1286
        %v1288 = vsel %vm888, %v1281, 0
        %v1290 = vsel %vm888, %v1283, 0
        %v1292 = vsel %vm888, %v1285, 0
        %v1294 = vsel %vm888, %v1287, 0
        %1296 = vmatpush.xpose.msra.mxu0 0.0
        %1297 = vmatpush.xpose.msra.mxu0 0.0
        %1298 = vmatpush.xpose.msra.mxu0 0.0
        %1299 = vmatpush.xpose.msra.mxu0 0.0
        %1300 = vmatpush.xpose.msra.mxu0 0.0
        %1301 = vmatpush.xpose.msra.mxu0 0.0
        %1302 = vmatpush.xpose.msra.mxu0 0.0
        %1303 = vmatpush.xpose.msra.mxu0 0.0
        %1304 = vmatpush.xpose.msra.mxu0 0.0
        %1305 = vmatpush.xpose.msra.mxu0 0.0
        %1306 = vmatpush.xpose.msra.mxu0 0.0
        %1307 = vmatpush.xpose.msra.mxu0 0.0
        %1308 = vmatpush.xpose.msra.mxu0 0.0
        %1309 = vmatpush.xpose.msra.mxu0 0.0
        %1310 = vmatpush.xpose.msra.mxu0 %v1294
        %1311 = vmatpush.xpose.msra.mxu0 %v1292
        %1312 = vmatmul.f32.gmra.mxu0 %v1288
        %v1313 = vpop.f32.mrf.mxu0
        %v1314 = vadd.f32 0.0, %v1313
        %1315 = vmatmul.f32.gmra.mxu0 %v1290
        %v1316 = vpop.f32.mrf.mxu0
        %v1317 = vadd.f32 0.0, %v1316
        %1318 = vdwg.mxu0
        %1319 = vrot.lane.b32.xlu0 %v877, 112
        %v1320 = vpop.permute.xlu0 %1319
        %1321 = vrot.lane.b32.xlu0 %v880, 112
        %v1322 = vpop.permute.xlu0 %1321
        %1323 = vrot.lane.b32.xlu0 %v877, 80
        %v1324 = vpop.permute.xlu0 %1323
        %1325 = vrot.lane.b32.xlu0 %v880, 80
        %v1326 = vpop.permute.xlu0 %1325
        %v1327 = vsel %vm888, %v1320, 0
        %v1329 = vsel %vm888, %v1322, 0
        %v1331 = vsel %vm888, %v1324, 0
        %v1333 = vsel %vm888, %v1326, 0
        %1335 = vmatpush.xpose.msra.mxu0 0.0
        %1336 = vmatpush.xpose.msra.mxu0 0.0
        %1337 = vmatpush.xpose.msra.mxu0 0.0
        %1338 = vmatpush.xpose.msra.mxu0 0.0
        %1339 = vmatpush.xpose.msra.mxu0 0.0
        %1340 = vmatpush.xpose.msra.mxu0 0.0
        %1341 = vmatpush.xpose.msra.mxu0 0.0
        %1342 = vmatpush.xpose.msra.mxu0 0.0
        %1343 = vmatpush.xpose.msra.mxu0 0.0
        %1344 = vmatpush.xpose.msra.mxu0 0.0
        %1345 = vmatpush.xpose.msra.mxu0 0.0
        %1346 = vmatpush.xpose.msra.mxu0 0.0
        %1347 = vmatpush.xpose.msra.mxu0 0.0
        %1348 = vmatpush.xpose.msra.mxu0 0.0
        %1349 = vmatpush.xpose.msra.mxu0 %v1333
        %1350 = vmatpush.xpose.msra.mxu0 %v1331
        %1351 = vmatmul.f32.gmra.mxu0 %v1327
        %v1352 = vpop.f32.mrf.mxu0
        %v1353 = vadd.f32 0.0, %v1352
        %1354 = vmatmul.f32.gmra.mxu0 %v1329
        %v1355 = vpop.f32.mrf.mxu0
        %v1356 = vadd.f32 0.0, %v1355
        %1357 = vdwg.mxu0
        %v1358 = vmul.f32 %v1314, 0.35355338
        %v1359 = vmul.f32 %v1317, 0.35355338
        %v1360 = vmul.f32 %v1353, 0.35355338
        %v1361 = vmul.f32 %v1356, 0.35355338
        %v1362 = vadd.f32 %v1358, %v831
        %v1363 = vadd.f32 %v1359, %v831
        %v1364 = vadd.f32 %v1360, %v831
        %v1365 = vadd.f32 %v1361, %v831
        %v1366 = vsel %vm965, %v1362, -inf
        %1367 = vmax.xlane.f32.xlu0 %v1366
        %v1368 = vpop.xlane.xlu0 %1367
        %v1369 = vsel %vm965, %v1363, -inf
        %1370 = vmax.xlane.f32.xlu0 %v1369
        %v1371 = vpop.xlane.xlu0 %1370
        %v1372 = vsel %vm965, %v1364, -inf
        %1373 = vmax.xlane.f32.xlu0 %v1372
        %v1374 = vpop.xlane.xlu0 %1373
        %v1375 = vsel %vm965, %v1365, -inf
        %1376 = vmax.xlane.f32.xlu0 %v1375
        %v1377 = vpop.xlane.xlu0 %1376
        %v1378 = vsub.f32 %v1362, %v1368
        %v1379 = vsub.f32 %v1363, %v1371
        %v1380 = vsub.f32 %v1364, %v1374
        %v1381 = vsub.f32 %v1365, %v1377
        %v1382 = vmul.f32 %v1378, 1.442695
        %v1383 = vpow.pop %v1382
        %v1384 = vmul.f32 %v1379, 1.442695
        %v1385 = vpow.pop %v1384
        %v1386 = vmul.f32 %v1380, 1.442695
        %v1387 = vpow.pop %v1386
        %v1388 = vmul.f32 %v1381, 1.442695
        %v1389 = vpow.pop %v1388
        %v1390 = vsel %vm965, %v1383, 0.0
        %1391 = vadd.xlane.f32.xlu0 %v1390
        %v1392 = vpop.xlane.xlu0 %1391
        %v1393 = vsel %vm965, %v1385, 0.0
        %1394 = vadd.xlane.f32.xlu0 %v1393
        %v1395 = vpop.xlane.xlu0 %1394
        %v1396 = vsel %vm965, %v1387, 0.0
        %1397 = vadd.xlane.f32.xlu0 %v1396
        %v1398 = vpop.xlane.xlu0 %1397
        %v1399 = vsel %vm965, %v1389, 0.0
        %1400 = vadd.xlane.f32.xlu0 %v1399
        %v1401 = vpop.xlane.xlu0 %1400
        %v1402 = vrcp.pop %v1392
        %v1403 = vrcp.pop %v1395
        %v1404 = vrcp.pop %v1398
        %v1405 = vrcp.pop %v1401
        %v1406 = vmul.f32 %v1383, %v1402
        %v1407 = vmul.f32 %v1385, %v1403
        %v1408 = vmul.f32 %v1387, %v1404
        %v1409 = vmul.f32 %v1389, %v1405
        %1410 = vrot.lane.b32.xlu0 %v871, 48
        %v1411 = vpop.permute.xlu0 %1410
        %1412 = vrot.lane.b32.xlu0 %v874, 48
        %v1413 = vpop.permute.xlu0 %1412
        %v1417 = vsel %vm965, %v1406, 0
        %v1420 = vsel %vm965, %v1407, 0
        %1422 = vmatpush.msra.mxu0 0.0
        %1423 = vmatpush.msra.mxu0 0.0
        %1424 = vmatpush.msra.mxu0 0.0
        %1425 = vmatpush.msra.mxu0 0.0
        %1426 = vmatpush.msra.mxu0 0.0
        %1427 = vmatpush.msra.mxu0 0.0
        %1428 = vmatpush.msra.mxu0 0.0
        %1429 = vmatpush.msra.mxu0 0.0
        %1430 = vmatpush.msra.mxu0 0.0
        %1431 = vmatpush.msra.mxu0 0.0
        %1432 = vmatpush.msra.mxu0 0.0
        %1433 = vmatpush.msra.mxu0 0.0
        %1434 = vmatpush.msra.mxu0 0.0
        %1435 = vmatpush.msra.mxu0 0.0
        %1436 = vmatpush.msra.mxu0 %v1413
        %1437 = vmatpush.msra.mxu0 %v1411
        %1438 = vmatmul.f32.gmra.mxu0 %v1417
        %v1439 = vpop.f32.mrf.mxu0
        %v1440 = vadd.f32 0.0, %v1439
        %1441 = vmatmul.f32.gmra.mxu0 %v1420
        %v1442 = vpop.f32.mrf.mxu0
        %v1443 = vadd.f32 0.0, %v1442
        %1444 = vdwg.mxu0
        %1445 = vrot.lane.b32.xlu0 %v877, 48
        %v1446 = vpop.permute.xlu0 %1445
        %1447 = vrot.lane.b32.xlu0 %v880, 48
        %v1448 = vpop.permute.xlu0 %1447
        %v1452 = vsel %vm965, %v1408, 0
        %v1455 = vsel %vm965, %v1409, 0
        %1457 = vmatpush.msra.mxu0 0.0
        %1458 = vmatpush.msra.mxu0 0.0
        %1459 = vmatpush.msra.mxu0 0.0
        %1460 = vmatpush.msra.mxu0 0.0
        %1461 = vmatpush.msra.mxu0 0.0
        %1462 = vmatpush.msra.mxu0 0.0
        %1463 = vmatpush.msra.mxu0 0.0
        %1464 = vmatpush.msra.mxu0 0.0
        %1465 = vmatpush.msra.mxu0 0.0
        %1466 = vmatpush.msra.mxu0 0.0
        %1467 = vmatpush.msra.mxu0 0.0
        %1468 = vmatpush.msra.mxu0 0.0
        %1469 = vmatpush.msra.mxu0 0.0
        %1470 = vmatpush.msra.mxu0 0.0
        %1471 = vmatpush.msra.mxu0 %v1448
        %1472 = vmatpush.msra.mxu0 %v1446
        %1473 = vmatmul.f32.gmra.mxu0 %v1452
        %v1474 = vpop.f32.mrf.mxu0
        %v1475 = vadd.f32 0.0, %v1474
        %1476 = vmatmul.f32.gmra.mxu0 %v1455
        %v1477 = vpop.f32.mrf.mxu0
        %v1478 = vadd.f32 0.0, %v1477
        %1479 = vdwg.mxu0
        %1480 = vrot.lane.b32.xlu0 %v871, 104
        %v1481 = vpop.permute.xlu0 %1480
        %1482 = vrot.lane.b32.xlu0 %v874, 104
        %v1483 = vpop.permute.xlu0 %1482
        %1484 = vrot.lane.b32.xlu0 %v871, 72
        %v1485 = vpop.permute.xlu0 %1484
        %1486 = vrot.lane.b32.xlu0 %v874, 72
        %v1487 = vpop.permute.xlu0 %1486
        %v1488 = vsel %vm888, %v1481, 0
        %v1490 = vsel %vm888, %v1483, 0
        %v1492 = vsel %vm888, %v1485, 0
        %v1494 = vsel %vm888, %v1487, 0
        %1496 = vmatpush.xpose.msra.mxu0 0.0
        %1497 = vmatpush.xpose.msra.mxu0 0.0
        %1498 = vmatpush.xpose.msra.mxu0 0.0
        %1499 = vmatpush.xpose.msra.mxu0 0.0
        %1500 = vmatpush.xpose.msra.mxu0 0.0
        %1501 = vmatpush.xpose.msra.mxu0 0.0
        %1502 = vmatpush.xpose.msra.mxu0 0.0
        %1503 = vmatpush.xpose.msra.mxu0 0.0
        %1504 = vmatpush.xpose.msra.mxu0 0.0
        %1505 = vmatpush.xpose.msra.mxu0 0.0
        %1506 = vmatpush.xpose.msra.mxu0 0.0
        %1507 = vmatpush.xpose.msra.mxu0 0.0
        %1508 = vmatpush.xpose.msra.mxu0 0.0
        %1509 = vmatpush.xpose.msra.mxu0 0.0
        %1510 = vmatpush.xpose.msra.mxu0 %v1494
        %1511 = vmatpush.xpose.msra.mxu0 %v1492
        %1512 = vmatmul.f32.gmra.mxu0 %v1488
        %v1513 = vpop.f32.mrf.mxu0
        %v1514 = vadd.f32 0.0, %v1513
        %1515 = vmatmul.f32.gmra.mxu0 %v1490
        %v1516 = vpop.f32.mrf.mxu0
        %v1517 = vadd.f32 0.0, %v1516
        %1518 = vdwg.mxu0
        %1519 = vrot.lane.b32.xlu0 %v877, 104
        %v1520 = vpop.permute.xlu0 %1519
        %1521 = vrot.lane.b32.xlu0 %v880, 104
        %v1522 = vpop.permute.xlu0 %1521
        %1523 = vrot.lane.b32.xlu0 %v877, 72
        %v1524 = vpop.permute.xlu0 %1523
        %1525 = vrot.lane.b32.xlu0 %v880, 72
        %v1526 = vpop.permute.xlu0 %1525
        %v1527 = vsel %vm888, %v1520, 0
        %v1529 = vsel %vm888, %v1522, 0
        %v1531 = vsel %vm888, %v1524, 0
        %v1533 = vsel %vm888, %v1526, 0
        %1535 = vmatpush.xpose.msra.mxu0 0.0
        %1536 = vmatpush.xpose.msra.mxu0 0.0
        %1537 = vmatpush.xpose.msra.mxu0 0.0
        %1538 = vmatpush.xpose.msra.mxu0 0.0
        %1539 = vmatpush.xpose.msra.mxu0 0.0
        %1540 = vmatpush.xpose.msra.mxu0 0.0
        %1541 = vmatpush.xpose.msra.mxu0 0.0
        %1542 = vmatpush.xpose.msra.mxu0 0.0
        %1543 = vmatpush.xpose.msra.mxu0 0.0
        %1544 = vmatpush.xpose.msra.mxu0 0.0
        %1545 = vmatpush.xpose.msra.mxu0 0.0
        %1546 = vmatpush.xpose.msra.mxu0 0.0
        %1547 = vmatpush.xpose.msra.mxu0 0.0
        %1548 = vmatpush.xpose.msra.mxu0 0.0
        %1549 = vmatpush.xpose.msra.mxu0 %v1533
        %1550 = vmatpush.xpose.msra.mxu0 %v1531
        %1551 = vmatmul.f32.gmra.mxu0 %v1527
        %v1552 = vpop.f32.mrf.mxu0
        %v1553 = vadd.f32 0.0, %v1552
        %1554 = vmatmul.f32.gmra.mxu0 %v1529
        %v1555 = vpop.f32.mrf.mxu0
        %v1556 = vadd.f32 0.0, %v1555
        %1557 = vdwg.mxu0
        %v1558 = vmul.f32 %v1514, 0.35355338
        %v1559 = vmul.f32 %v1517, 0.35355338
        %v1560 = vmul.f32 %v1553, 0.35355338
        %v1561 = vmul.f32 %v1556, 0.35355338
        %v1562 = vadd.f32 %v1558, %v831
        %v1563 = vadd.f32 %v1559, %v831
        %v1564 = vadd.f32 %v1560, %v831
        %v1565 = vadd.f32 %v1561, %v831
        %v1566 = vsel %vm965, %v1562, -inf
        %1567 = vmax.xlane.f32.xlu0 %v1566
        %v1568 = vpop.xlane.xlu0 %1567
        %v1569 = vsel %vm965, %v1563, -inf
        %1570 = vmax.xlane.f32.xlu0 %v1569
        %v1571 = vpop.xlane.xlu0 %1570
        %v1572 = vsel %vm965, %v1564, -inf
        %1573 = vmax.xlane.f32.xlu0 %v1572
        %v1574 = vpop.xlane.xlu0 %1573
        %v1575 = vsel %vm965, %v1565, -inf
        %1576 = vmax.xlane.f32.xlu0 %v1575
        %v1577 = vpop.xlane.xlu0 %1576
        %v1578 = vsub.f32 %v1562, %v1568
        %v1579 = vsub.f32 %v1563, %v1571
        %v1580 = vsub.f32 %v1564, %v1574
        %v1581 = vsub.f32 %v1565, %v1577
        %v1582 = vmul.f32 %v1578, 1.442695
        %v1583 = vpow.pop %v1582
        %v1584 = vmul.f32 %v1579, 1.442695
        %v1585 = vpow.pop %v1584
        %v1586 = vmul.f32 %v1580, 1.442695
        %v1587 = vpow.pop %v1586
        %v1588 = vmul.f32 %v1581, 1.442695
        %v1589 = vpow.pop %v1588
        %v1590 = vsel %vm965, %v1583, 0.0
        %1591 = vadd.xlane.f32.xlu0 %v1590
        %v1592 = vpop.xlane.xlu0 %1591
        %v1593 = vsel %vm965, %v1585, 0.0
        %1594 = vadd.xlane.f32.xlu0 %v1593
        %v1595 = vpop.xlane.xlu0 %1594
        %v1596 = vsel %vm965, %v1587, 0.0
        %1597 = vadd.xlane.f32.xlu0 %v1596
        %v1598 = vpop.xlane.xlu0 %1597
        %v1599 = vsel %vm965, %v1589, 0.0
        %1600 = vadd.xlane.f32.xlu0 %v1599
        %v1601 = vpop.xlane.xlu0 %1600
        %v1602 = vrcp.pop %v1592
        %v1603 = vrcp.pop %v1595
        %v1604 = vrcp.pop %v1598
        %v1605 = vrcp.pop %v1601
        %v1606 = vmul.f32 %v1583, %v1602
        %v1607 = vmul.f32 %v1585, %v1603
        %v1608 = vmul.f32 %v1587, %v1604
        %v1609 = vmul.f32 %v1589, %v1605
        %1610 = vrot.lane.b32.xlu0 %v871, 40
        %v1611 = vpop.permute.xlu0 %1610
        %1612 = vrot.lane.b32.xlu0 %v874, 40
        %v1613 = vpop.permute.xlu0 %1612
        %v1617 = vsel %vm965, %v1606, 0
        %v1620 = vsel %vm965, %v1607, 0
        %1622 = vmatpush.msra.mxu0 0.0
        %1623 = vmatpush.msra.mxu0 0.0
        %1624 = vmatpush.msra.mxu0 0.0
        %1625 = vmatpush.msra.mxu0 0.0
        %1626 = vmatpush.msra.mxu0 0.0
        %1627 = vmatpush.msra.mxu0 0.0
        %1628 = vmatpush.msra.mxu0 0.0
        %1629 = vmatpush.msra.mxu0 0.0
        %1630 = vmatpush.msra.mxu0 0.0
        %1631 = vmatpush.msra.mxu0 0.0
        %1632 = vmatpush.msra.mxu0 0.0
        %1633 = vmatpush.msra.mxu0 0.0
        %1634 = vmatpush.msra.mxu0 0.0
        %1635 = vmatpush.msra.mxu0 0.0
        %1636 = vmatpush.msra.mxu0 %v1613
        %1637 = vmatpush.msra.mxu0 %v1611
        %1638 = vmatmul.f32.gmra.mxu0 %v1617
        %v1639 = vpop.f32.mrf.mxu0
        %v1640 = vadd.f32 0.0, %v1639
        %1641 = vmatmul.f32.gmra.mxu0 %v1620
        %v1642 = vpop.f32.mrf.mxu0
        %v1643 = vadd.f32 0.0, %v1642
        %1644 = vdwg.mxu0
        %1645 = vrot.lane.b32.xlu0 %v877, 40
        %v1646 = vpop.permute.xlu0 %1645
        %1647 = vrot.lane.b32.xlu0 %v880, 40
        %v1648 = vpop.permute.xlu0 %1647
        %v1652 = vsel %vm965, %v1608, 0
        %v1655 = vsel %vm965, %v1609, 0
        %1657 = vmatpush.msra.mxu0 0.0
        %1658 = vmatpush.msra.mxu0 0.0
        %1659 = vmatpush.msra.mxu0 0.0
        %1660 = vmatpush.msra.mxu0 0.0
        %1661 = vmatpush.msra.mxu0 0.0
        %1662 = vmatpush.msra.mxu0 0.0
        %1663 = vmatpush.msra.mxu0 0.0
        %1664 = vmatpush.msra.mxu0 0.0
        %1665 = vmatpush.msra.mxu0 0.0
        %1666 = vmatpush.msra.mxu0 0.0
        %1667 = vmatpush.msra.mxu0 0.0
        %1668 = vmatpush.msra.mxu0 0.0
        %1669 = vmatpush.msra.mxu0 0.0
        %1670 = vmatpush.msra.mxu0 0.0
        %1671 = vmatpush.msra.mxu0 %v1648
        %1672 = vmatpush.msra.mxu0 %v1646
        %1673 = vmatmul.f32.gmra.mxu0 %v1652
        %v1674 = vpop.f32.mrf.mxu0
        %v1675 = vadd.f32 0.0, %v1674
        %1676 = vmatmul.f32.gmra.mxu0 %v1655
        %v1677 = vpop.f32.mrf.mxu0
        %v1678 = vadd.f32 0.0, %v1677
        %1679 = vdwg.mxu0
        %1684 = vrot.lane.b32.xlu0 %v1240, 8
        %v1685 = vpop.permute.xlu0 %1684
        %1686 = vrot.lane.b32.xlu0 %v1243, 8
        %v1687 = vpop.permute.xlu0 %1686
        %1688 = vrot.lane.b32.xlu0 %v1275, 8
        %v1689 = vpop.permute.xlu0 %1688
        %1690 = vrot.lane.b32.xlu0 %v1278, 8
        %v1691 = vpop.permute.xlu0 %1690
        %1700 = vrot.lane.b32.xlu0 %v1440, 16
        %v1701 = vpop.permute.xlu0 %1700
        %1702 = vrot.lane.b32.xlu0 %v1443, 16
        %v1703 = vpop.permute.xlu0 %1702
        %1704 = vrot.lane.b32.xlu0 %v1475, 16
        %v1705 = vpop.permute.xlu0 %1704
        %1706 = vrot.lane.b32.xlu0 %v1478, 16
        %v1707 = vpop.permute.xlu0 %1706
        %1716 = vrot.lane.b32.xlu0 %v1640, 24
        %v1717 = vpop.permute.xlu0 %1716
        %1718 = vrot.lane.b32.xlu0 %v1643, 24
        %v1719 = vpop.permute.xlu0 %1718
        %1720 = vrot.lane.b32.xlu0 %v1675, 24
        %v1721 = vpop.permute.xlu0 %1720
        %1722 = vrot.lane.b32.xlu0 %v1678, 24
        %v1723 = vpop.permute.xlu0 %1722
        %v1728 = vsel %vm888, %v1040, %v1685
        %v1729 = vsel %vm888, %v1043, %v1687
        %v1730 = vsel %vm888, %v1075, %v1689
        %v1731 = vsel %vm888, %v1078, %v1691
        %v1732 = vsel %vm965, %v1728, %v1701
        %v1733 = vsel %vm965, %v1729, %v1703
        %v1734 = vsel %vm965, %v1730, %v1705
        %v1735 = vsel %vm965, %v1731, %v1707
        %vm1736 = vcmask 195584
        %v1737 = vsel %vm1736, %v1732, %v1717
        %v1738 = vsel %vm1736, %v1733, %v1719
        %v1739 = vsel %vm1736, %v1734, %v1721
        %v1740 = vsel %vm1736, %v1735, %v1723
        %v1741 = vld [vmem:[%s726] sm:$0xff]
        %v1742 = vld [vmem:[%s726 + $0x8] sm:$0xff]
        %v1743 = vld [vmem:[%s726 + $0x10] sm:$0xff]
        %v1744 = vld [vmem:[%s726 + $0x18] sm:$0xff]
        %v1745 = vld [vmem:[%s730] sm:$0x1]
        %v1747 = vperm.slane %v1745, 0
        %v1750 = vsel %vm840, %v1737, 0
        %v1753 = vsel %vm840, %v1738, 0
        %v1756 = vsel %vm840, %v1739, 0
        %v1759 = vsel %vm840, %v1740, 0
        %1761 = vmatpush.msra.mxu0 0.0
        %1762 = vmatpush.msra.mxu0 0.0
        %1763 = vmatpush.msra.mxu0 0.0
        %1764 = vmatpush.msra.mxu0 0.0
        %1765 = vmatpush.msra.mxu0 0.0
        %1766 = vmatpush.msra.mxu0 0.0
        %1767 = vmatpush.msra.mxu0 0.0
        %1768 = vmatpush.msra.mxu0 0.0
        %1769 = vmatpush.msra.mxu0 0.0
        %1770 = vmatpush.msra.mxu0 0.0
        %1771 = vmatpush.msra.mxu0 0.0
        %1772 = vmatpush.msra.mxu0 0.0
        %1773 = vmatpush.msra.mxu0 %v1744
        %1774 = vmatpush.msra.mxu0 %v1743
        %1775 = vmatpush.msra.mxu0 %v1742
        %1776 = vmatpush.msra.mxu0 %v1741
        %1777 = vmatmul.f32.gmra.mxu0 %v1750
        %v1778 = vpop.f32.mrf.mxu0
        %v1779 = vadd.f32 %v1747, %v1778
        %1780 = vmatmul.f32.gmra.mxu0 %v1753
        %v1781 = vpop.f32.mrf.mxu0
        %v1782 = vadd.f32 %v1747, %v1781
        %1783 = vmatmul.f32.gmra.mxu0 %v1756
        %v1784 = vpop.f32.mrf.mxu0
        %v1785 = vadd.f32 %v1747, %v1784
        %1786 = vmatmul.f32.gmra.mxu0 %v1759
        %v1787 = vpop.f32.mrf.mxu0
        %v1788 = vadd.f32 %v1747, %v1787
        %1789 = vdwg.mxu0
        %v1790 = vadd.f32 %v823, %v1779
        %v1791 = vadd.f32 %v824, %v1782
        %v1792 = vadd.f32 %v825, %v1785
        %v1793 = vadd.f32 %v826, %v1788
        %v1794 = vld [vmem:[%s734] sm:$0x1]
        %v1795 = vld [vmem:[%s738] sm:$0x1]
        %v1796 = vsel %vm840, %v1790, 0.0
        %1797 = vadd.xlane.f32.xlu0 %v1796
        %v1798 = vpop.xlane.xlu0 %1797
        %v1799 = vsel %vm840, %v1791, 0.0
        %1800 = vadd.xlane.f32.xlu0 %v1799
        %v1801 = vpop.xlane.xlu0 %1800
        %v1802 = vsel %vm840, %v1792, 0.0
        %1803 = vadd.xlane.f32.xlu0 %v1802
        %v1804 = vpop.xlane.xlu0 %1803
        %v1805 = vsel %vm840, %v1793, 0.0
        %1806 = vadd.xlane.f32.xlu0 %v1805
        %v1807 = vpop.xlane.xlu0 %1806
        %v1808 = vrcp.pop 32.0
        %v1809 = vmul.f32 32.0, %v1808
        %v1810 = vsub.f32 1.0, %v1809
        %v1811 = vmul.f32 %v1808, %v1810
        %v1812 = vadd.f32 %v1808, %v1811
        %vm1813 = vweird.f32 %v1808
        %v1814 = vsel %vm1813, %v1808, %v1812
        %v1815 = vmul.f32 %v1798, %v1814
        %v1816 = vmul.f32 %v1801, %v1814
        %v1817 = vmul.f32 %v1804, %v1814
        %v1818 = vmul.f32 %v1807, %v1814
        %v1819 = vsub.f32 %v1790, %v1815
        %v1820 = vsub.f32 %v1791, %v1816
        %v1821 = vsub.f32 %v1792, %v1817
        %v1822 = vsub.f32 %v1793, %v1818
        %v1823 = vmul.f32 %v1819, %v1819
        %v1824 = vmul.f32 %v1820, %v1820
        %v1825 = vmul.f32 %v1821, %v1821
        %v1826 = vmul.f32 %v1822, %v1822
        %v1827 = vsel %vm840, %v1823, 0.0
        %1828 = vadd.xlane.f32.xlu0 %v1827
        %v1829 = vpop.xlane.xlu0 %1828
        %v1830 = vsel %vm840, %v1824, 0.0
        %1831 = vadd.xlane.f32.xlu0 %v1830
        %v1832 = vpop.xlane.xlu0 %1831
        %v1833 = vsel %vm840, %v1825, 0.0
        %1834 = vadd.xlane.f32.xlu0 %v1833
        %v1835 = vpop.xlane.xlu0 %1834
        %v1836 = vsel %vm840, %v1826, 0.0
        %1837 = vadd.xlane.f32.xlu0 %v1836
        %v1838 = vpop.xlane.xlu0 %1837
        %v1839 = vmul.f32 %v1829, %v1814
        %v1840 = vmul.f32 %v1832, %v1814
        %v1841 = vmul.f32 %v1835, %v1814
        %v1842 = vmul.f32 %v1838, %v1814
        %v1843 = vadd.f32 %v1839, 1e-05
        %v1844 = vadd.f32 %v1840, 1e-05
        %v1845 = vadd.f32 %v1841, 1e-05
        %v1846 = vadd.f32 %v1842, 1e-05
        %v1847 = vrsqrt.pop %v1843
        %v1848 = vmul.f32 %v1847, %v1843
        %v1849 = vmul.f32 %v1848, %v1847
        %v1850 = vmul.f32 0.5, %v1849
        %v1851 = vsub.f32 1.5, %v1850
        %v1852 = vmul.f32 %v1847, %v1851
        %vm1853 = vweird.f32 %v1843
        %vm1854 = vweird.f32 %v1847
        %vm1855 = vmor %vm1853, %vm1854
        %v1856 = vsel %vm1855, %v1847, %v1852
        %v1857 = vrsqrt.pop %v1844
        %v1858 = vmul.f32 %v1857, %v1844
        %v1859 = vmul.f32 %v1858, %v1857
        %v1860 = vmul.f32 0.5, %v1859
        %v1861 = vsub.f32 1.5, %v1860
        %v1862 = vmul.f32 %v1857, %v1861
        %vm1863 = vweird.f32 %v1844
        %vm1864 = vweird.f32 %v1857
        %vm1865 = vmor %vm1863, %vm1864
        %v1866 = vsel %vm1865, %v1857, %v1862
        %v1867 = vrsqrt.pop %v1845
        %v1868 = vmul.f32 %v1867, %v1845
        %v1869 = vmul.f32 %v1868, %v1867
        %v1870 = vmul.f32 0.5, %v1869
        %v1871 = vsub.f32 1.5, %v1870
        %v1872 = vmul.f32 %v1867, %v1871
        %vm1873 = vweird.f32 %v1845
        %vm1874 = vweird.f32 %v1867
        %vm1875 = vmor %vm1873, %vm1874
        %v1876 = vsel %vm1875, %v1867, %v1872
        %v1877 = vrsqrt.pop %v1846
        %v1878 = vmul.f32 %v1877, %v1846
        %v1879 = vmul.f32 %v1878, %v1877
        %v1880 = vmul.f32 0.5, %v1879
        %v1881 = vsub.f32 1.5, %v1880
        %v1882 = vmul.f32 %v1877, %v1881
        %vm1883 = vweird.f32 %v1846
        %vm1884 = vweird.f32 %v1877
        %vm1885 = vmor %vm1883, %vm1884
        %v1886 = vsel %vm1885, %v1877, %v1882
        %v1887 = vmul.f32 %v1819, %v1856
        %v1888 = vmul.f32 %v1820, %v1866
        %v1889 = vmul.f32 %v1821, %v1876
        %v1890 = vmul.f32 %v1822, %v1886
        %v1892 = vperm.slane %v1794, 0
        %v1894 = vmul.f32 %v1887, %v1892
        %v1895 = vmul.f32 %v1888, %v1892
        %v1896 = vmul.f32 %v1889, %v1892
        %v1897 = vmul.f32 %v1890, %v1892
        %v1899 = vperm.slane %v1795, 0
        %v1901 = vadd.f32 %v1894, %v1899
        %v1902 = vadd.f32 %v1895, %v1899
        %v1903 = vadd.f32 %v1896, %v1899
        %v1904 = vadd.f32 %v1897, %v1899
        %v1905 = vld [vmem:[%s743] sm:$0xff]
        %v1906 = vld [vmem:[%s743 + $0x8] sm:$0xff]
        %v1907 = vld [vmem:[%s743 + $0x10] sm:$0xff]
        %v1908 = vld [vmem:[%s743 + $0x18] sm:$0xff]
        %v1909 = vld [vmem:[%s743 + $0x20] sm:$0xff]
        %v1910 = vld [vmem:[%s743 + $0x28] sm:$0xff]
        %v1911 = vld [vmem:[%s743 + $0x30] sm:$0xff]
        %v1912 = vld [vmem:[%s743 + $0x38] sm:$0xff]
        %v1913 = vld [vmem:[%s743 + $0x40] sm:$0xff]
        %v1914 = vld [vmem:[%s743 + $0x48] sm:$0xff]
        %v1915 = vld [vmem:[%s743 + $0x50] sm:$0xff]
        %v1916 = vld [vmem:[%s743 + $0x58] sm:$0xff]
        %v1917 = vld [vmem:[%s743 + $0x60] sm:$0xff]
        %v1918 = vld [vmem:[%s743 + $0x68] sm:$0xff]
        %v1919 = vld [vmem:[%s743 + $0x70] sm:$0xff]
        %v1920 = vld [vmem:[%s743 + $0x78] sm:$0xff]
        %v1921 = vld [vmem:[%s743 + $0x80] sm:$0xff]
        %v1922 = vld [vmem:[%s743 + $0x88] sm:$0xff]
        %v1923 = vld [vmem:[%s743 + $0x90] sm:$0xff]
        %v1924 = vld [vmem:[%s743 + $0x98] sm:$0xff]
        %v1925 = vld [vmem:[%s743 + $0xa0] sm:$0xff]
        %v1926 = vld [vmem:[%s743 + $0xa8] sm:$0xff]
        %v1927 = vld [vmem:[%s743 + $0xb0] sm:$0xff]
        %v1928 = vld [vmem:[%s743 + $0xb8] sm:$0xff]
        %v1929 = vld [vmem:[%s743 + $0xc0] sm:$0xff]
        %v1930 = vld [vmem:[%s743 + $0xc8] sm:$0xff]
        %v1931 = vld [vmem:[%s743 + $0xd0] sm:$0xff]
        %v1932 = vld [vmem:[%s743 + $0xd8] sm:$0xff]
        %v1933 = vld [vmem:[%s743 + $0xe0] sm:$0xff]
        %v1934 = vld [vmem:[%s743 + $0xe8] sm:$0xff]
        %v1935 = vld [vmem:[%s743 + $0xf0] sm:$0xff]
        %v1936 = vld [vmem:[%s743 + $0xf8] sm:$0xff]
        %v1937 = vld [vmem:[%s743 + $0x100] sm:$0xff]
        %v1938 = vld [vmem:[%s743 + $0x108] sm:$0xff]
        %v1939 = vld [vmem:[%s743 + $0x110] sm:$0xff]
        %v1940 = vld [vmem:[%s743 + $0x118] sm:$0xff]
        %v1941 = vld [vmem:[%s743 + $0x120] sm:$0xff]
        %v1942 = vld [vmem:[%s743 + $0x128] sm:$0xff]
        %v1943 = vld [vmem:[%s743 + $0x130] sm:$0xff]
        %v1944 = vld [vmem:[%s743 + $0x138] sm:$0xff]
        %v1945 = vld [vmem:[%s743 + $0x140] sm:$0xff]
        %v1946 = vld [vmem:[%s743 + $0x148] sm:$0xff]
        %v1947 = vld [vmem:[%s743 + $0x150] sm:$0xff]
        %v1948 = vld [vmem:[%s743 + $0x158] sm:$0xff]
        %v1949 = vld [vmem:[%s743 + $0x160] sm:$0xff]
        %v1950 = vld [vmem:[%s743 + $0x168] sm:$0xff]
        %v1951 = vld [vmem:[%s743 + $0x170] sm:$0xff]
        %v1952 = vld [vmem:[%s743 + $0x178] sm:$0xff]
        %v1953 = vld [vmem:[%s743 + $0x180] sm:$0xff]
        %v1954 = vld [vmem:[%s743 + $0x188] sm:$0xff]
        %v1955 = vld [vmem:[%s743 + $0x190] sm:$0xff]
        %v1956 = vld [vmem:[%s743 + $0x198] sm:$0xff]
        %v1957 = vld [vmem:[%s743 + $0x1a0] sm:$0xff]
        %v1958 = vld [vmem:[%s743 + $0x1a8] sm:$0xff]
        %v1959 = vld [vmem:[%s743 + $0x1b0] sm:$0xff]
        %v1960 = vld [vmem:[%s743 + $0x1b8] sm:$0xff]
        %v1961 = vld [vmem:[%s743 + $0x1c0] sm:$0xff]
        %v1962 = vld [vmem:[%s743 + $0x1c8] sm:$0xff]
        %v1963 = vld [vmem:[%s743 + $0x1d0] sm:$0xff]
        %v1964 = vld [vmem:[%s743 + $0x1d8] sm:$0xff]
        %v1965 = vld [vmem:[%s743 + $0x1e0] sm:$0xff]
        %v1966 = vld [vmem:[%s743 + $0x1e8] sm:$0xff]
        %v1967 = vld [vmem:[%s743 + $0x1f0] sm:$0xff]
        %v1968 = vld [vmem:[%s743 + $0x1f8] sm:$0xff]
        %v1969 = vld [vmem:[%s747] sm:$0xff]
        %v1970 = vld [vmem:[%s747 + $0x8] sm:$0xff]
        %v1973 = vperm.slane %v1969, 0
        %v1974 = vperm.slane %v1969, 1
        %v1975 = vperm.slane %v1969, 2
        %v1976 = vperm.slane %v1969, 3
        %v1977 = vperm.slane %v1969, 4
        %v1978 = vperm.slane %v1969, 5
        %v1979 = vperm.slane %v1969, 6
        %v1980 = vperm.slane %v1969, 7
        %v1981 = vperm.slane %v1970, 0
        %v1982 = vperm.slane %v1970, 1
        %v1983 = vperm.slane %v1970, 2
        %v1984 = vperm.slane %v1970, 3
        %v1985 = vperm.slane %v1970, 4
        %v1986 = vperm.slane %v1970, 5
        %v1987 = vperm.slane %v1970, 6
        %v1988 = vperm.slane %v1970, 7
        %v2006 = vsel %vm840, %v1901, 0
        %v2009 = vsel %vm840, %v1902, 0
        %v2012 = vsel %vm840, %v1903, 0
        %v2015 = vsel %vm840, %v1904, 0
        %2017 = vmatpush.msra.mxu0 0.0
        %2018 = vmatpush.msra.mxu0 0.0
        %2019 = vmatpush.msra.mxu0 0.0
        %2020 = vmatpush.msra.mxu0 0.0
        %2021 = vmatpush.msra.mxu0 0.0
        %2022 = vmatpush.msra.mxu0 0.0
        %2023 = vmatpush.msra.mxu0 0.0
        %2024 = vmatpush.msra.mxu0 0.0
        %2025 = vmatpush.msra.mxu0 0.0
        %2026 = vmatpush.msra.mxu0 0.0
        %2027 = vmatpush.msra.mxu0 0.0
        %2028 = vmatpush.msra.mxu0 0.0
        %2029 = vmatpush.msra.mxu0 %v1953
        %2030 = vmatpush.msra.mxu0 %v1937
        %2031 = vmatpush.msra.mxu0 %v1921
        %2032 = vmatpush.msra.mxu0 %v1905
        %2033 = vmatmul.f32.gmra.mxu0 %v2006
        %v2034 = vpop.f32.mrf.mxu0
        %v2035 = vadd.f32 %v1973, %v2034
        %2036 = vmatmul.f32.gmra.mxu0 %v2009
        %v2037 = vpop.f32.mrf.mxu0
        %v2038 = vadd.f32 %v1973, %v2037
        %2039 = vmatmul.f32.gmra.mxu0 %v2012
        %v2040 = vpop.f32.mrf.mxu0
        %v2041 = vadd.f32 %v1973, %v2040
        %2042 = vmatmul.f32.gmra.mxu0 %v2015
        %v2043 = vpop.f32.mrf.mxu0
        %v2044 = vadd.f32 %v1973, %v2043
        %2045 = vdwg.mxu0
        %2046 = vmatpush.msra.mxu0 0.0
        %2047 = vmatpush.msra.mxu0 0.0
        %2048 = vmatpush.msra.mxu0 0.0
        %2049 = vmatpush.msra.mxu0 0.0
        %2050 = vmatpush.msra.mxu0 0.0
        %2051 = vmatpush.msra.mxu0 0.0
        %2052 = vmatpush.msra.mxu0 0.0
        %2053 = vmatpush.msra.mxu0 0.0
        %2054 = vmatpush.msra.mxu0 0.0
        %2055 = vmatpush.msra.mxu0 0.0
        %2056 = vmatpush.msra.mxu0 0.0
        %2057 = vmatpush.msra.mxu0 0.0
        %2058 = vmatpush.msra.mxu0 %v1954
        %2059 = vmatpush.msra.mxu0 %v1938
        %2060 = vmatpush.msra.mxu0 %v1922
        %2061 = vmatpush.msra.mxu0 %v1906
        %2062 = vmatmul.f32.gmra.mxu0 %v2006
        %v2063 = vpop.f32.mrf.mxu0
        %v2064 = vadd.f32 %v1974, %v2063
        %2065 = vmatmul.f32.gmra.mxu0 %v2009
        %v2066 = vpop.f32.mrf.mxu0
        %v2067 = vadd.f32 %v1974, %v2066
        %2068 = vmatmul.f32.gmra.mxu0 %v2012
        %v2069 = vpop.f32.mrf.mxu0
        %v2070 = vadd.f32 %v1974, %v2069
        %2071 = vmatmul.f32.gmra.mxu0 %v2015
        %v2072 = vpop.f32.mrf.mxu0
        %v2073 = vadd.f32 %v1974, %v2072
        %2074 = vdwg.mxu0
        %2075 = vmatpush.msra.mxu0 0.0
        %2076 = vmatpush.msra.mxu0 0.0
        %2077 = vmatpush.msra.mxu0 0.0
        %2078 = vmatpush.msra.mxu0 0.0
        %2079 = vmatpush.msra.mxu0 0.0
        %2080 = vmatpush.msra.mxu0 0.0
        %2081 = vmatpush.msra.mxu0 0.0
        %2082 = vmatpush.msra.mxu0 0.0
        %2083 = vmatpush.msra.mxu0 0.0
        %2084 = vmatpush.msra.mxu0 0.0
        %2085 = vmatpush.msra.mxu0 0.0
        %2086 = vmatpush.msra.mxu0 0.0
        %2087 = vmatpush.msra.mxu0 %v1955
        %2088 = vmatpush.msra.mxu0 %v1939
        %2089 = vmatpush.msra.mxu0 %v1923
        %2090 = vmatpush.msra.mxu0 %v1907
        %2091 = vmatmul.f32.gmra.mxu0 %v2006
        %v2092 = vpop.f32.mrf.mxu0
        %v2093 = vadd.f32 %v1975, %v2092
        %2094 = vmatmul.f32.gmra.mxu0 %v2009
        %v2095 = vpop.f32.mrf.mxu0
        %v2096 = vadd.f32 %v1975, %v2095
        %2097 = vmatmul.f32.gmra.mxu0 %v2012
        %v2098 = vpop.f32.mrf.mxu0
        %v2099 = vadd.f32 %v1975, %v2098
        %2100 = vmatmul.f32.gmra.mxu0 %v2015
        %v2101 = vpop.f32.mrf.mxu0
        %v2102 = vadd.f32 %v1975, %v2101
        %2103 = vdwg.mxu0
        %2104 = vmatpush.msra.mxu0 0.0
        %2105 = vmatpush.msra.mxu0 0.0
        %2106 = vmatpush.msra.mxu0 0.0
        %2107 = vmatpush.msra.mxu0 0.0
        %2108 = vmatpush.msra.mxu0 0.0
        %2109 = vmatpush.msra.mxu0 0.0
        %2110 = vmatpush.msra.mxu0 0.0
        %2111 = vmatpush.msra.mxu0 0.0
        %2112 = vmatpush.msra.mxu0 0.0
        %2113 = vmatpush.msra.mxu0 0.0
        %2114 = vmatpush.msra.mxu0 0.0
        %2115 = vmatpush.msra.mxu0 0.0
        %2116 = vmatpush.msra.mxu0 %v1956
        %2117 = vmatpush.msra.mxu0 %v1940
        %2118 = vmatpush.msra.mxu0 %v1924
        %2119 = vmatpush.msra.mxu0 %v1908
        %2120 = vmatmul.f32.gmra.mxu0 %v2006
        %v2121 = vpop.f32.mrf.mxu0
        %v2122 = vadd.f32 %v1976, %v2121
        %2123 = vmatmul.f32.gmra.mxu0 %v2009
        %v2124 = vpop.f32.mrf.mxu0
        %v2125 = vadd.f32 %v1976, %v2124
        %2126 = vmatmul.f32.gmra.mxu0 %v2012
        %v2127 = vpop.f32.mrf.mxu0
        %v2128 = vadd.f32 %v1976, %v2127
        %2129 = vmatmul.f32.gmra.mxu0 %v2015
        %v2130 = vpop.f32.mrf.mxu0
        %v2131 = vadd.f32 %v1976, %v2130
        %2132 = vdwg.mxu0
        %2133 = vmatpush.msra.mxu0 0.0
        %2134 = vmatpush.msra.mxu0 0.0
        %2135 = vmatpush.msra.mxu0 0.0
        %2136 = vmatpush.msra.mxu0 0.0
        %2137 = vmatpush.msra.mxu0 0.0
        %2138 = vmatpush.msra.mxu0 0.0
        %2139 = vmatpush.msra.mxu0 0.0
        %2140 = vmatpush.msra.mxu0 0.0
        %2141 = vmatpush.msra.mxu0 0.0
        %2142 = vmatpush.msra.mxu0 0.0
        %2143 = vmatpush.msra.mxu0 0.0
        %2144 = vmatpush.msra.mxu0 0.0
        %2145 = vmatpush.msra.mxu0 %v1957
        %2146 = vmatpush.msra.mxu0 %v1941
        %2147 = vmatpush.msra.mxu0 %v1925
        %2148 = vmatpush.msra.mxu0 %v1909
        %2149 = vmatmul.f32.gmra.mxu0 %v2006
        %v2150 = vpop.f32.mrf.mxu0
        %v2151 = vadd.f32 %v1977, %v2150
        %2152 = vmatmul.f32.gmra.mxu0 %v2009
        %v2153 = vpop.f32.mrf.mxu0
        %v2154 = vadd.f32 %v1977, %v2153
        %2155 = vmatmul.f32.gmra.mxu0 %v2012
        %v2156 = vpop.f32.mrf.mxu0
        %v2157 = vadd.f32 %v1977, %v2156
        %2158 = vmatmul.f32.gmra.mxu0 %v2015
        %v2159 = vpop.f32.mrf.mxu0
        %v2160 = vadd.f32 %v1977, %v2159
        %2161 = vdwg.mxu0
        %2162 = vmatpush.msra.mxu0 0.0
        %2163 = vmatpush.msra.mxu0 0.0
        %2164 = vmatpush.msra.mxu0 0.0
        %2165 = vmatpush.msra.mxu0 0.0
        %2166 = vmatpush.msra.mxu0 0.0
        %2167 = vmatpush.msra.mxu0 0.0
        %2168 = vmatpush.msra.mxu0 0.0
        %2169 = vmatpush.msra.mxu0 0.0
        %2170 = vmatpush.msra.mxu0 0.0
        %2171 = vmatpush.msra.mxu0 0.0
        %2172 = vmatpush.msra.mxu0 0.0
        %2173 = vmatpush.msra.mxu0 0.0
        %2174 = vmatpush.msra.mxu0 %v1958
        %2175 = vmatpush.msra.mxu0 %v1942
        %2176 = vmatpush.msra.mxu0 %v1926
        %2177 = vmatpush.msra.mxu0 %v1910
        %2178 = vmatmul.f32.gmra.mxu0 %v2006
        %v2179 = vpop.f32.mrf.mxu0
        %v2180 = vadd.f32 %v1978, %v2179
        %2181 = vmatmul.f32.gmra.mxu0 %v2009
        %v2182 = vpop.f32.mrf.mxu0
        %v2183 = vadd.f32 %v1978, %v2182
        %2184 = vmatmul.f32.gmra.mxu0 %v2012
        %v2185 = vpop.f32.mrf.mxu0
        %v2186 = vadd.f32 %v1978, %v2185
        %2187 = vmatmul.f32.gmra.mxu0 %v2015
        %v2188 = vpop.f32.mrf.mxu0
        %v2189 = vadd.f32 %v1978, %v2188
        %2190 = vdwg.mxu0
        %2191 = vmatpush.msra.mxu0 0.0
        %2192 = vmatpush.msra.mxu0 0.0
        %2193 = vmatpush.msra.mxu0 0.0
        %2194 = vmatpush.msra.mxu0 0.0
        %2195 = vmatpush.msra.mxu0 0.0
        %2196 = vmatpush.msra.mxu0 0.0
        %2197 = vmatpush.msra.mxu0 0.0
        %2198 = vmatpush.msra.mxu0 0.0
        %2199 = vmatpush.msra.mxu0 0.0
        %2200 = vmatpush.msra.mxu0 0.0
        %2201 = vmatpush.msra.mxu0 0.0
        %2202 = vmatpush.msra.mxu0 0.0
        %2203 = vmatpush.msra.mxu0 %v1959
        %2204 = vmatpush.msra.mxu0 %v1943
        %2205 = vmatpush.msra.mxu0 %v1927
        %2206 = vmatpush.msra.mxu0 %v1911
        %2207 = vmatmul.f32.gmra.mxu0 %v2006
        %v2208 = vpop.f32.mrf.mxu0
        %v2209 = vadd.f32 %v1979, %v2208
        %2210 = vmatmul.f32.gmra.mxu0 %v2009
        %v2211 = vpop.f32.mrf.mxu0
        %v2212 = vadd.f32 %v1979, %v2211
        %2213 = vmatmul.f32.gmra.mxu0 %v2012
        %v2214 = vpop.f32.mrf.mxu0
        %v2215 = vadd.f32 %v1979, %v2214
        %2216 = vmatmul.f32.gmra.mxu0 %v2015
        %v2217 = vpop.f32.mrf.mxu0
        %v2218 = vadd.f32 %v1979, %v2217
        %2219 = vdwg.mxu0
        %2220 = vmatpush.msra.mxu0 0.0
        %2221 = vmatpush.msra.mxu0 0.0
        %2222 = vmatpush.msra.mxu0 0.0
        %2223 = vmatpush.msra.mxu0 0.0
        %2224 = vmatpush.msra.mxu0 0.0
        %2225 = vmatpush.msra.mxu0 0.0
        %2226 = vmatpush.msra.mxu0 0.0
        %2227 = vmatpush.msra.mxu0 0.0
        %2228 = vmatpush.msra.mxu0 0.0
        %2229 = vmatpush.msra.mxu0 0.0
        %2230 = vmatpush.msra.mxu0 0.0
        %2231 = vmatpush.msra.mxu0 0.0
        %2232 = vmatpush.msra.mxu0 %v1960
        %2233 = vmatpush.msra.mxu0 %v1944
        %2234 = vmatpush.msra.mxu0 %v1928
        %2235 = vmatpush.msra.mxu0 %v1912
        %2236 = vmatmul.f32.gmra.mxu0 %v2006
        %v2237 = vpop.f32.mrf.mxu0
        %v2238 = vadd.f32 %v1980, %v2237
        %2239 = vmatmul.f32.gmra.mxu0 %v2009
        %v2240 = vpop.f32.mrf.mxu0
        %v2241 = vadd.f32 %v1980, %v2240
        %2242 = vmatmul.f32.gmra.mxu0 %v2012
        %v2243 = vpop.f32.mrf.mxu0
        %v2244 = vadd.f32 %v1980, %v2243
        %2245 = vmatmul.f32.gmra.mxu0 %v2015
        %v2246 = vpop.f32.mrf.mxu0
        %v2247 = vadd.f32 %v1980, %v2246
        %2248 = vdwg.mxu0
        %2249 = vmatpush.msra.mxu0 0.0
        %2250 = vmatpush.msra.mxu0 0.0
        %2251 = vmatpush.msra.mxu0 0.0
        %2252 = vmatpush.msra.mxu0 0.0
        %2253 = vmatpush.msra.mxu0 0.0
        %2254 = vmatpush.msra.mxu0 0.0
        %2255 = vmatpush.msra.mxu0 0.0
        %2256 = vmatpush.msra.mxu0 0.0
        %2257 = vmatpush.msra.mxu0 0.0
        %2258 = vmatpush.msra.mxu0 0.0
        %2259 = vmatpush.msra.mxu0 0.0
        %2260 = vmatpush.msra.mxu0 0.0
        %2261 = vmatpush.msra.mxu0 %v1961
        %2262 = vmatpush.msra.mxu0 %v1945
        %2263 = vmatpush.msra.mxu0 %v1929
        %2264 = vmatpush.msra.mxu0 %v1913
        %2265 = vmatmul.f32.gmra.mxu0 %v2006
        %v2266 = vpop.f32.mrf.mxu0
        %v2267 = vadd.f32 %v1981, %v2266
        %2268 = vmatmul.f32.gmra.mxu0 %v2009
        %v2269 = vpop.f32.mrf.mxu0
        %v2270 = vadd.f32 %v1981, %v2269
        %2271 = vmatmul.f32.gmra.mxu0 %v2012
        %v2272 = vpop.f32.mrf.mxu0
        %v2273 = vadd.f32 %v1981, %v2272
        %2274 = vmatmul.f32.gmra.mxu0 %v2015
        %v2275 = vpop.f32.mrf.mxu0
        %v2276 = vadd.f32 %v1981, %v2275
        %2277 = vdwg.mxu0
        %2278 = vmatpush.msra.mxu0 0.0
        %2279 = vmatpush.msra.mxu0 0.0
        %2280 = vmatpush.msra.mxu0 0.0
        %2281 = vmatpush.msra.mxu0 0.0
        %2282 = vmatpush.msra.mxu0 0.0
        %2283 = vmatpush.msra.mxu0 0.0
        %2284 = vmatpush.msra.mxu0 0.0
        %2285 = vmatpush.msra.mxu0 0.0
        %2286 = vmatpush.msra.mxu0 0.0
        %2287 = vmatpush.msra.mxu0 0.0
        %2288 = vmatpush.msra.mxu0 0.0
        %2289 = vmatpush.msra.mxu0 0.0
        %2290 = vmatpush.msra.mxu0 %v1962
        %2291 = vmatpush.msra.mxu0 %v1946
        %2292 = vmatpush.msra.mxu0 %v1930
        %2293 = vmatpush.msra.mxu0 %v1914
        %2294 = vmatmul.f32.gmra.mxu0 %v2006
        %v2295 = vpop.f32.mrf.mxu0
        %v2296 = vadd.f32 %v1982, %v2295
        %2297 = vmatmul.f32.gmra.mxu0 %v2009
        %v2298 = vpop.f32.mrf.mxu0
        %v2299 = vadd.f32 %v1982, %v2298
        %2300 = vmatmul.f32.gmra.mxu0 %v2012
        %v2301 = vpop.f32.mrf.mxu0
        %v2302 = vadd.f32 %v1982, %v2301
        %2303 = vmatmul.f32.gmra.mxu0 %v2015
        %v2304 = vpop.f32.mrf.mxu0
        %v2305 = vadd.f32 %v1982, %v2304
        %2306 = vdwg.mxu0
        %2307 = vmatpush.msra.mxu0 0.0
        %2308 = vmatpush.msra.mxu0 0.0
        %2309 = vmatpush.msra.mxu0 0.0
        %2310 = vmatpush.msra.mxu0 0.0
        %2311 = vmatpush.msra.mxu0 0.0
        %2312 = vmatpush.msra.mxu0 0.0
        %2313 = vmatpush.msra.mxu0 0.0
        %2314 = vmatpush.msra.mxu0 0.0
        %2315 = vmatpush.msra.mxu0 0.0
        %2316 = vmatpush.msra.mxu0 0.0
        %2317 = vmatpush.msra.mxu0 0.0
        %2318 = vmatpush.msra.mxu0 0.0
        %2319 = vmatpush.msra.mxu0 %v1963
        %2320 = vmatpush.msra.mxu0 %v1947
        %2321 = vmatpush.msra.mxu0 %v1931
        %2322 = vmatpush.msra.mxu0 %v1915
        %2323 = vmatmul.f32.gmra.mxu0 %v2006
        %v2324 = vpop.f32.mrf.mxu0
        %v2325 = vadd.f32 %v1983, %v2324
        %2326 = vmatmul.f32.gmra.mxu0 %v2009
        %v2327 = vpop.f32.mrf.mxu0
        %v2328 = vadd.f32 %v1983, %v2327
        %2329 = vmatmul.f32.gmra.mxu0 %v2012
        %v2330 = vpop.f32.mrf.mxu0
        %v2331 = vadd.f32 %v1983, %v2330
        %2332 = vmatmul.f32.gmra.mxu0 %v2015
        %v2333 = vpop.f32.mrf.mxu0
        %v2334 = vadd.f32 %v1983, %v2333
        %2335 = vdwg.mxu0
        %2336 = vmatpush.msra.mxu0 0.0
        %2337 = vmatpush.msra.mxu0 0.0
        %2338 = vmatpush.msra.mxu0 0.0
        %2339 = vmatpush.msra.mxu0 0.0
        %2340 = vmatpush.msra.mxu0 0.0
        %2341 = vmatpush.msra.mxu0 0.0
        %2342 = vmatpush.msra.mxu0 0.0
        %2343 = vmatpush.msra.mxu0 0.0
        %2344 = vmatpush.msra.mxu0 0.0
        %2345 = vmatpush.msra.mxu0 0.0
        %2346 = vmatpush.msra.mxu0 0.0
        %2347 = vmatpush.msra.mxu0 0.0
        %2348 = vmatpush.msra.mxu0 %v1964
        %2349 = vmatpush.msra.mxu0 %v1948
        %2350 = vmatpush.msra.mxu0 %v1932
        %2351 = vmatpush.msra.mxu0 %v1916
        %2352 = vmatmul.f32.gmra.mxu0 %v2006
        %v2353 = vpop.f32.mrf.mxu0
        %v2354 = vadd.f32 %v1984, %v2353
        %2355 = vmatmul.f32.gmra.mxu0 %v2009
        %v2356 = vpop.f32.mrf.mxu0
        %v2357 = vadd.f32 %v1984, %v2356
        %2358 = vmatmul.f32.gmra.mxu0 %v2012
        %v2359 = vpop.f32.mrf.mxu0
        %v2360 = vadd.f32 %v1984, %v2359
        %2361 = vmatmul.f32.gmra.mxu0 %v2015
        %v2362 = vpop.f32.mrf.mxu0
        %v2363 = vadd.f32 %v1984, %v2362
        %2364 = vdwg.mxu0
        %2365 = vmatpush.msra.mxu0 0.0
        %2366 = vmatpush.msra.mxu0 0.0
        %2367 = vmatpush.msra.mxu0 0.0
        %2368 = vmatpush.msra.mxu0 0.0
        %2369 = vmatpush.msra.mxu0 0.0
        %2370 = vmatpush.msra.mxu0 0.0
        %2371 = vmatpush.msra.mxu0 0.0
        %2372 = vmatpush.msra.mxu0 0.0
        %2373 = vmatpush.msra.mxu0 0.0
        %2374 = vmatpush.msra.mxu0 0.0
        %2375 = vmatpush.msra.mxu0 0.0
        %2376 = vmatpush.msra.mxu0 0.0
        %2377 = vmatpush.msra.mxu0 %v1965
        %2378 = vmatpush.msra.mxu0 %v1949
        %2379 = vmatpush.msra.mxu0 %v1933
        %2380 = vmatpush.msra.mxu0 %v1917
        %2381 = vmatmul.f32.gmra.mxu0 %v2006
        %v2382 = vpop.f32.mrf.mxu0
        %v2383 = vadd.f32 %v1985, %v2382
        %2384 = vmatmul.f32.gmra.mxu0 %v2009
        %v2385 = vpop.f32.mrf.mxu0
        %v2386 = vadd.f32 %v1985, %v2385
        %2387 = vmatmul.f32.gmra.mxu0 %v2012
        %v2388 = vpop.f32.mrf.mxu0
        %v2389 = vadd.f32 %v1985, %v2388
        %2390 = vmatmul.f32.gmra.mxu0 %v2015
        %v2391 = vpop.f32.mrf.mxu0
        %v2392 = vadd.f32 %v1985, %v2391
        %2393 = vdwg.mxu0
        %2394 = vmatpush.msra.mxu0 0.0
        %2395 = vmatpush.msra.mxu0 0.0
        %2396 = vmatpush.msra.mxu0 0.0
        %2397 = vmatpush.msra.mxu0 0.0
        %2398 = vmatpush.msra.mxu0 0.0
        %2399 = vmatpush.msra.mxu0 0.0
        %2400 = vmatpush.msra.mxu0 0.0
        %2401 = vmatpush.msra.mxu0 0.0
        %2402 = vmatpush.msra.mxu0 0.0
        %2403 = vmatpush.msra.mxu0 0.0
        %2404 = vmatpush.msra.mxu0 0.0
        %2405 = vmatpush.msra.mxu0 0.0
        %2406 = vmatpush.msra.mxu0 %v1966
        %2407 = vmatpush.msra.mxu0 %v1950
        %2408 = vmatpush.msra.mxu0 %v1934
        %2409 = vmatpush.msra.mxu0 %v1918
        %2410 = vmatmul.f32.gmra.mxu0 %v2006
        %v2411 = vpop.f32.mrf.mxu0
        %v2412 = vadd.f32 %v1986, %v2411
        %2413 = vmatmul.f32.gmra.mxu0 %v2009
        %v2414 = vpop.f32.mrf.mxu0
        %v2415 = vadd.f32 %v1986, %v2414
        %2416 = vmatmul.f32.gmra.mxu0 %v2012
        %v2417 = vpop.f32.mrf.mxu0
        %v2418 = vadd.f32 %v1986, %v2417
        %2419 = vmatmul.f32.gmra.mxu0 %v2015
        %v2420 = vpop.f32.mrf.mxu0
        %v2421 = vadd.f32 %v1986, %v2420
        %2422 = vdwg.mxu0
        %2423 = vmatpush.msra.mxu0 0.0
        %2424 = vmatpush.msra.mxu0 0.0
        %2425 = vmatpush.msra.mxu0 0.0
        %2426 = vmatpush.msra.mxu0 0.0
        %2427 = vmatpush.msra.mxu0 0.0
        %2428 = vmatpush.msra.mxu0 0.0
        %2429 = vmatpush.msra.mxu0 0.0
        %2430 = vmatpush.msra.mxu0 0.0
        %2431 = vmatpush.msra.mxu0 0.0
        %2432 = vmatpush.msra.mxu0 0.0
        %2433 = vmatpush.msra.mxu0 0.0
        %2434 = vmatpush.msra.mxu0 0.0
        %2435 = vmatpush.msra.mxu0 %v1967
        %2436 = vmatpush.msra.mxu0 %v1951
        %2437 = vmatpush.msra.mxu0 %v1935
        %2438 = vmatpush.msra.mxu0 %v1919
        %2439 = vmatmul.f32.gmra.mxu0 %v2006
        %v2440 = vpop.f32.mrf.mxu0
        %v2441 = vadd.f32 %v1987, %v2440
        %2442 = vmatmul.f32.gmra.mxu0 %v2009
        %v2443 = vpop.f32.mrf.mxu0
        %v2444 = vadd.f32 %v1987, %v2443
        %2445 = vmatmul.f32.gmra.mxu0 %v2012
        %v2446 = vpop.f32.mrf.mxu0
        %v2447 = vadd.f32 %v1987, %v2446
        %2448 = vmatmul.f32.gmra.mxu0 %v2015
        %v2449 = vpop.f32.mrf.mxu0
        %v2450 = vadd.f32 %v1987, %v2449
        %2451 = vdwg.mxu0
        %2452 = vmatpush.msra.mxu0 0.0
        %2453 = vmatpush.msra.mxu0 0.0
        %2454 = vmatpush.msra.mxu0 0.0
        %2455 = vmatpush.msra.mxu0 0.0
        %2456 = vmatpush.msra.mxu0 0.0
        %2457 = vmatpush.msra.mxu0 0.0
        %2458 = vmatpush.msra.mxu0 0.0
        %2459 = vmatpush.msra.mxu0 0.0
        %2460 = vmatpush.msra.mxu0 0.0
        %2461 = vmatpush.msra.mxu0 0.0
        %2462 = vmatpush.msra.mxu0 0.0
        %2463 = vmatpush.msra.mxu0 0.0
        %2464 = vmatpush.msra.mxu0 %v1968
        %2465 = vmatpush.msra.mxu0 %v1952
        %2466 = vmatpush.msra.mxu0 %v1936
        %2467 = vmatpush.msra.mxu0 %v1920
        %2468 = vmatmul.f32.gmra.mxu0 %v2006
        %v2469 = vpop.f32.mrf.mxu0
        %v2470 = vadd.f32 %v1988, %v2469
        %2471 = vmatmul.f32.gmra.mxu0 %v2009
        %v2472 = vpop.f32.mrf.mxu0
        %v2473 = vadd.f32 %v1988, %v2472
        %2474 = vmatmul.f32.gmra.mxu0 %v2012
        %v2475 = vpop.f32.mrf.mxu0
        %v2476 = vadd.f32 %v1988, %v2475
        %2477 = vmatmul.f32.gmra.mxu0 %v2015
        %v2478 = vpop.f32.mrf.mxu0
        %v2479 = vadd.f32 %v1988, %v2478
        %2480 = vdwg.mxu0
        %v2481 = vmax.f32 %v2035, 0.0
        %v2482 = vmax.f32 %v2064, 0.0
        %v2483 = vmax.f32 %v2093, 0.0
        %v2484 = vmax.f32 %v2122, 0.0
        %v2485 = vmax.f32 %v2151, 0.0
        %v2486 = vmax.f32 %v2180, 0.0
        %v2487 = vmax.f32 %v2209, 0.0
        %v2488 = vmax.f32 %v2238, 0.0
        %v2489 = vmax.f32 %v2267, 0.0
        %v2490 = vmax.f32 %v2296, 0.0
        %v2491 = vmax.f32 %v2325, 0.0
        %v2492 = vmax.f32 %v2354, 0.0
        %v2493 = vmax.f32 %v2383, 0.0
        %v2494 = vmax.f32 %v2412, 0.0
        %v2495 = vmax.f32 %v2441, 0.0
        %v2496 = vmax.f32 %v2470, 0.0
        %v2497 = vmax.f32 %v2038, 0.0
        %v2498 = vmax.f32 %v2067, 0.0
        %v2499 = vmax.f32 %v2096, 0.0
        %v2500 = vmax.f32 %v2125, 0.0
        %v2501 = vmax.f32 %v2154, 0.0
        %v2502 = vmax.f32 %v2183, 0.0
        %v2503 = vmax.f32 %v2212, 0.0
        %v2504 = vmax.f32 %v2241, 0.0
        %v2505 = vmax.f32 %v2270, 0.0
        %v2506 = vmax.f32 %v2299, 0.0
        %v2507 = vmax.f32 %v2328, 0.0
        %v2508 = vmax.f32 %v2357, 0.0
        %v2509 = vmax.f32 %v2386, 0.0
        %v2510 = vmax.f32 %v2415, 0.0
        %v2511 = vmax.f32 %v2444, 0.0
        %v2512 = vmax.f32 %v2473, 0.0
        %v2513 = vmax.f32 %v2041, 0.0
        %v2514 = vmax.f32 %v2070, 0.0
        %v2515 = vmax.f32 %v2099, 0.0
        %v2516 = vmax.f32 %v2128, 0.0
        %v2517 = vmax.f32 %v2157, 0.0
        %v2518 = vmax.f32 %v2186, 0.0
        %v2519 = vmax.f32 %v2215, 0.0
        %v2520 = vmax.f32 %v2244, 0.0
        %v2521 = vmax.f32 %v2273, 0.0
        %v2522 = vmax.f32 %v2302, 0.0
        %v2523 = vmax.f32 %v2331, 0.0
        %v2524 = vmax.f32 %v2360, 0.0
        %v2525 = vmax.f32 %v2389, 0.0
        %v2526 = vmax.f32 %v2418, 0.0
        %v2527 = vmax.f32 %v2447, 0.0
        %v2528 = vmax.f32 %v2476, 0.0
        %v2529 = vmax.f32 %v2044, 0.0
        %v2530 = vmax.f32 %v2073, 0.0
        %v2531 = vmax.f32 %v2102, 0.0
        %v2532 = vmax.f32 %v2131, 0.0
        %v2533 = vmax.f32 %v2160, 0.0
        %v2534 = vmax.f32 %v2189, 0.0
        %v2535 = vmax.f32 %v2218, 0.0
        %v2536 = vmax.f32 %v2247, 0.0
        %v2537 = vmax.f32 %v2276, 0.0
        %v2538 = vmax.f32 %v2305, 0.0
        %v2539 = vmax.f32 %v2334, 0.0
        %v2540 = vmax.f32 %v2363, 0.0
        %v2541 = vmax.f32 %v2392, 0.0
        %v2542 = vmax.f32 %v2421, 0.0
        %v2543 = vmax.f32 %v2450, 0.0
        %v2544 = vmax.f32 %v2479, 0.0
        %v2545 = vld [vmem:[%s752] sm:$0xff]
        %v2546 = vld [vmem:[%s752 + $0x8] sm:$0xff]
        %v2547 = vld [vmem:[%s752 + $0x10] sm:$0xff]
        %v2548 = vld [vmem:[%s752 + $0x18] sm:$0xff]
        %v2549 = vld [vmem:[%s752 + $0x20] sm:$0xff]
        %v2550 = vld [vmem:[%s752 + $0x28] sm:$0xff]
        %v2551 = vld [vmem:[%s752 + $0x30] sm:$0xff]
        %v2552 = vld [vmem:[%s752 + $0x38] sm:$0xff]
        %v2553 = vld [vmem:[%s752 + $0x40] sm:$0xff]
        %v2554 = vld [vmem:[%s752 + $0x48] sm:$0xff]
        %v2555 = vld [vmem:[%s752 + $0x50] sm:$0xff]
        %v2556 = vld [vmem:[%s752 + $0x58] sm:$0xff]
        %v2557 = vld [vmem:[%s752 + $0x60] sm:$0xff]
        %v2558 = vld [vmem:[%s752 + $0x68] sm:$0xff]
        %v2559 = vld [vmem:[%s752 + $0x70] sm:$0xff]
        %v2560 = vld [vmem:[%s752 + $0x78] sm:$0xff]
        %v2561 = vld [vmem:[%s752 + $0x80] sm:$0xff]
        %v2562 = vld [vmem:[%s752 + $0x88] sm:$0xff]
        %v2563 = vld [vmem:[%s752 + $0x90] sm:$0xff]
        %v2564 = vld [vmem:[%s752 + $0x98] sm:$0xff]
        %v2565 = vld [vmem:[%s752 + $0xa0] sm:$0xff]
        %v2566 = vld [vmem:[%s752 + $0xa8] sm:$0xff]
        %v2567 = vld [vmem:[%s752 + $0xb0] sm:$0xff]
        %v2568 = vld [vmem:[%s752 + $0xb8] sm:$0xff]
        %v2569 = vld [vmem:[%s752 + $0xc0] sm:$0xff]
        %v2570 = vld [vmem:[%s752 + $0xc8] sm:$0xff]
        %v2571 = vld [vmem:[%s752 + $0xd0] sm:$0xff]
        %v2572 = vld [vmem:[%s752 + $0xd8] sm:$0xff]
        %v2573 = vld [vmem:[%s752 + $0xe0] sm:$0xff]
        %v2574 = vld [vmem:[%s752 + $0xe8] sm:$0xff]
        %v2575 = vld [vmem:[%s752 + $0xf0] sm:$0xff]
        %v2576 = vld [vmem:[%s752 + $0xf8] sm:$0xff]
        %v2577 = vld [vmem:[%s752 + $0x100] sm:$0xff]
        %v2578 = vld [vmem:[%s752 + $0x108] sm:$0xff]
        %v2579 = vld [vmem:[%s752 + $0x110] sm:$0xff]
        %v2580 = vld [vmem:[%s752 + $0x118] sm:$0xff]
        %v2581 = vld [vmem:[%s752 + $0x120] sm:$0xff]
        %v2582 = vld [vmem:[%s752 + $0x128] sm:$0xff]
        %v2583 = vld [vmem:[%s752 + $0x130] sm:$0xff]
        %v2584 = vld [vmem:[%s752 + $0x138] sm:$0xff]
        %v2585 = vld [vmem:[%s752 + $0x140] sm:$0xff]
        %v2586 = vld [vmem:[%s752 + $0x148] sm:$0xff]
        %v2587 = vld [vmem:[%s752 + $0x150] sm:$0xff]
        %v2588 = vld [vmem:[%s752 + $0x158] sm:$0xff]
        %v2589 = vld [vmem:[%s752 + $0x160] sm:$0xff]
        %v2590 = vld [vmem:[%s752 + $0x168] sm:$0xff]
        %v2591 = vld [vmem:[%s752 + $0x170] sm:$0xff]
        %v2592 = vld [vmem:[%s752 + $0x178] sm:$0xff]
        %v2593 = vld [vmem:[%s752 + $0x180] sm:$0xff]
        %v2594 = vld [vmem:[%s752 + $0x188] sm:$0xff]
        %v2595 = vld [vmem:[%s752 + $0x190] sm:$0xff]
        %v2596 = vld [vmem:[%s752 + $0x198] sm:$0xff]
        %v2597 = vld [vmem:[%s752 + $0x1a0] sm:$0xff]
        %v2598 = vld [vmem:[%s752 + $0x1a8] sm:$0xff]
        %v2599 = vld [vmem:[%s752 + $0x1b0] sm:$0xff]
        %v2600 = vld [vmem:[%s752 + $0x1b8] sm:$0xff]
        %v2601 = vld [vmem:[%s752 + $0x1c0] sm:$0xff]
        %v2602 = vld [vmem:[%s752 + $0x1c8] sm:$0xff]
        %v2603 = vld [vmem:[%s752 + $0x1d0] sm:$0xff]
        %v2604 = vld [vmem:[%s752 + $0x1d8] sm:$0xff]
        %v2605 = vld [vmem:[%s752 + $0x1e0] sm:$0xff]
        %v2606 = vld [vmem:[%s752 + $0x1e8] sm:$0xff]
        %v2607 = vld [vmem:[%s752 + $0x1f0] sm:$0xff]
        %v2608 = vld [vmem:[%s752 + $0x1f8] sm:$0xff]
        %v2609 = vld [vmem:[%s752 + $0x200] sm:$0xff]
        %v2610 = vld [vmem:[%s752 + $0x208] sm:$0xff]
        %v2611 = vld [vmem:[%s752 + $0x210] sm:$0xff]
        %v2612 = vld [vmem:[%s752 + $0x218] sm:$0xff]
        %v2613 = vld [vmem:[%s752 + $0x220] sm:$0xff]
        %v2614 = vld [vmem:[%s752 + $0x228] sm:$0xff]
        %v2615 = vld [vmem:[%s752 + $0x230] sm:$0xff]
        %v2616 = vld [vmem:[%s752 + $0x238] sm:$0xff]
        %v2617 = vld [vmem:[%s752 + $0x240] sm:$0xff]
        %v2618 = vld [vmem:[%s752 + $0x248] sm:$0xff]
        %v2619 = vld [vmem:[%s752 + $0x250] sm:$0xff]
        %v2620 = vld [vmem:[%s752 + $0x258] sm:$0xff]
        %v2621 = vld [vmem:[%s752 + $0x260] sm:$0xff]
        %v2622 = vld [vmem:[%s752 + $0x268] sm:$0xff]
        %v2623 = vld [vmem:[%s752 + $0x270] sm:$0xff]
        %v2624 = vld [vmem:[%s752 + $0x278] sm:$0xff]
        %v2625 = vld [vmem:[%s752 + $0x280] sm:$0xff]
        %v2626 = vld [vmem:[%s752 + $0x288] sm:$0xff]
        %v2627 = vld [vmem:[%s752 + $0x290] sm:$0xff]
        %v2628 = vld [vmem:[%s752 + $0x298] sm:$0xff]
        %v2629 = vld [vmem:[%s752 + $0x2a0] sm:$0xff]
        %v2630 = vld [vmem:[%s752 + $0x2a8] sm:$0xff]
        %v2631 = vld [vmem:[%s752 + $0x2b0] sm:$0xff]
        %v2632 = vld [vmem:[%s752 + $0x2b8] sm:$0xff]
        %v2633 = vld [vmem:[%s752 + $0x2c0] sm:$0xff]
        %v2634 = vld [vmem:[%s752 + $0x2c8] sm:$0xff]
        %v2635 = vld [vmem:[%s752 + $0x2d0] sm:$0xff]
        %v2636 = vld [vmem:[%s752 + $0x2d8] sm:$0xff]
        %v2637 = vld [vmem:[%s752 + $0x2e0] sm:$0xff]
        %v2638 = vld [vmem:[%s752 + $0x2e8] sm:$0xff]
        %v2639 = vld [vmem:[%s752 + $0x2f0] sm:$0xff]
        %v2640 = vld [vmem:[%s752 + $0x2f8] sm:$0xff]
        %v2641 = vld [vmem:[%s752 + $0x300] sm:$0xff]
        %v2642 = vld [vmem:[%s752 + $0x308] sm:$0xff]
        %v2643 = vld [vmem:[%s752 + $0x310] sm:$0xff]
        %v2644 = vld [vmem:[%s752 + $0x318] sm:$0xff]
        %v2645 = vld [vmem:[%s752 + $0x320] sm:$0xff]
        %v2646 = vld [vmem:[%s752 + $0x328] sm:$0xff]
        %v2647 = vld [vmem:[%s752 + $0x330] sm:$0xff]
        %v2648 = vld [vmem:[%s752 + $0x338] sm:$0xff]
        %v2649 = vld [vmem:[%s752 + $0x340] sm:$0xff]
        %v2650 = vld [vmem:[%s752 + $0x348] sm:$0xff]
        %v2651 = vld [vmem:[%s752 + $0x350] sm:$0xff]
        %v2652 = vld [vmem:[%s752 + $0x358] sm:$0xff]
        %v2653 = vld [vmem:[%s752 + $0x360] sm:$0xff]
        %v2654 = vld [vmem:[%s752 + $0x368] sm:$0xff]
        %v2655 = vld [vmem:[%s752 + $0x370] sm:$0xff]
        %v2656 = vld [vmem:[%s752 + $0x378] sm:$0xff]
        %v2657 = vld [vmem:[%s752 + $0x380] sm:$0xff]
        %v2658 = vld [vmem:[%s752 + $0x388] sm:$0xff]
        %v2659 = vld [vmem:[%s752 + $0x390] sm:$0xff]
        %v2660 = vld [vmem:[%s752 + $0x398] sm:$0xff]
        %v2661 = vld [vmem:[%s752 + $0x3a0] sm:$0xff]
        %v2662 = vld [vmem:[%s752 + $0x3a8] sm:$0xff]
        %v2663 = vld [vmem:[%s752 + $0x3b0] sm:$0xff]
        %v2664 = vld [vmem:[%s752 + $0x3b8] sm:$0xff]
        %v2665 = vld [vmem:[%s752 + $0x3c0] sm:$0xff]
        %v2666 = vld [vmem:[%s752 + $0x3c8] sm:$0xff]
        %v2667 = vld [vmem:[%s752 + $0x3d0] sm:$0xff]
        %v2668 = vld [vmem:[%s752 + $0x3d8] sm:$0xff]
        %v2669 = vld [vmem:[%s752 + $0x3e0] sm:$0xff]
        %v2670 = vld [vmem:[%s752 + $0x3e8] sm:$0xff]
        %v2671 = vld [vmem:[%s752 + $0x3f0] sm:$0xff]
        %v2672 = vld [vmem:[%s752 + $0x3f8] sm:$0xff]
        %v2673 = vld [vmem:[%s752 + $0x400] sm:$0xff]
        %v2674 = vld [vmem:[%s752 + $0x408] sm:$0xff]
        %v2675 = vld [vmem:[%s752 + $0x410] sm:$0xff]
        %v2676 = vld [vmem:[%s752 + $0x418] sm:$0xff]
        %v2677 = vld [vmem:[%s752 + $0x420] sm:$0xff]
        %v2678 = vld [vmem:[%s752 + $0x428] sm:$0xff]
        %v2679 = vld [vmem:[%s752 + $0x430] sm:$0xff]
        %v2680 = vld [vmem:[%s752 + $0x438] sm:$0xff]
        %v2681 = vld [vmem:[%s752 + $0x440] sm:$0xff]
        %v2682 = vld [vmem:[%s752 + $0x448] sm:$0xff]
        %v2683 = vld [vmem:[%s752 + $0x450] sm:$0xff]
        %v2684 = vld [vmem:[%s752 + $0x458] sm:$0xff]
        %v2685 = vld [vmem:[%s752 + $0x460] sm:$0xff]
        %v2686 = vld [vmem:[%s752 + $0x468] sm:$0xff]
        %v2687 = vld [vmem:[%s752 + $0x470] sm:$0xff]
        %v2688 = vld [vmem:[%s752 + $0x478] sm:$0xff]
        %v2689 = vld [vmem:[%s752 + $0x480] sm:$0xff]
        %v2690 = vld [vmem:[%s752 + $0x488] sm:$0xff]
        %v2691 = vld [vmem:[%s752 + $0x490] sm:$0xff]
        %v2692 = vld [vmem:[%s752 + $0x498] sm:$0xff]
        %v2693 = vld [vmem:[%s752 + $0x4a0] sm:$0xff]
        %v2694 = vld [vmem:[%s752 + $0x4a8] sm:$0xff]
        %v2695 = vld [vmem:[%s752 + $0x4b0] sm:$0xff]
        %v2696 = vld [vmem:[%s752 + $0x4b8] sm:$0xff]
        %v2697 = vld [vmem:[%s752 + $0x4c0] sm:$0xff]
        %v2698 = vld [vmem:[%s752 + $0x4c8] sm:$0xff]
        %v2699 = vld [vmem:[%s752 + $0x4d0] sm:$0xff]
        %v2700 = vld [vmem:[%s752 + $0x4d8] sm:$0xff]
        %v2701 = vld [vmem:[%s752 + $0x4e0] sm:$0xff]
        %v2702 = vld [vmem:[%s752 + $0x4e8] sm:$0xff]
        %v2703 = vld [vmem:[%s752 + $0x4f0] sm:$0xff]
        %v2704 = vld [vmem:[%s752 + $0x4f8] sm:$0xff]
        %v2705 = vld [vmem:[%s752 + $0x500] sm:$0xff]
        %v2706 = vld [vmem:[%s752 + $0x508] sm:$0xff]
        %v2707 = vld [vmem:[%s752 + $0x510] sm:$0xff]
        %v2708 = vld [vmem:[%s752 + $0x518] sm:$0xff]
        %v2709 = vld [vmem:[%s752 + $0x520] sm:$0xff]
        %v2710 = vld [vmem:[%s752 + $0x528] sm:$0xff]
        %v2711 = vld [vmem:[%s752 + $0x530] sm:$0xff]
        %v2712 = vld [vmem:[%s752 + $0x538] sm:$0xff]
        %v2713 = vld [vmem:[%s752 + $0x540] sm:$0xff]
        %v2714 = vld [vmem:[%s752 + $0x548] sm:$0xff]
        %v2715 = vld [vmem:[%s752 + $0x550] sm:$0xff]
        %v2716 = vld [vmem:[%s752 + $0x558] sm:$0xff]
        %v2717 = vld [vmem:[%s752 + $0x560] sm:$0xff]
        %v2718 = vld [vmem:[%s752 + $0x568] sm:$0xff]
        %v2719 = vld [vmem:[%s752 + $0x570] sm:$0xff]
        %v2720 = vld [vmem:[%s752 + $0x578] sm:$0xff]
        %v2721 = vld [vmem:[%s752 + $0x580] sm:$0xff]
        %v2722 = vld [vmem:[%s752 + $0x588] sm:$0xff]
        %v2723 = vld [vmem:[%s752 + $0x590] sm:$0xff]
        %v2724 = vld [vmem:[%s752 + $0x598] sm:$0xff]
        %v2725 = vld [vmem:[%s752 + $0x5a0] sm:$0xff]
        %v2726 = vld [vmem:[%s752 + $0x5a8] sm:$0xff]
        %v2727 = vld [vmem:[%s752 + $0x5b0] sm:$0xff]
        %v2728 = vld [vmem:[%s752 + $0x5b8] sm:$0xff]
        %v2729 = vld [vmem:[%s752 + $0x5c0] sm:$0xff]
        %v2730 = vld [vmem:[%s752 + $0x5c8] sm:$0xff]
        %v2731 = vld [vmem:[%s752 + $0x5d0] sm:$0xff]
        %v2732 = vld [vmem:[%s752 + $0x5d8] sm:$0xff]
        %v2733 = vld [vmem:[%s752 + $0x5e0] sm:$0xff]
        %v2734 = vld [vmem:[%s752 + $0x5e8] sm:$0xff]
        %v2735 = vld [vmem:[%s752 + $0x5f0] sm:$0xff]
        %v2736 = vld [vmem:[%s752 + $0x5f8] sm:$0xff]
        %v2737 = vld [vmem:[%s752 + $0x600] sm:$0xff]
        %v2738 = vld [vmem:[%s752 + $0x608] sm:$0xff]
        %v2739 = vld [vmem:[%s752 + $0x610] sm:$0xff]
        %v2740 = vld [vmem:[%s752 + $0x618] sm:$0xff]
        %v2741 = vld [vmem:[%s752 + $0x620] sm:$0xff]
        %v2742 = vld [vmem:[%s752 + $0x628] sm:$0xff]
        %v2743 = vld [vmem:[%s752 + $0x630] sm:$0xff]
        %v2744 = vld [vmem:[%s752 + $0x638] sm:$0xff]
        %v2745 = vld [vmem:[%s752 + $0x640] sm:$0xff]
        %v2746 = vld [vmem:[%s752 + $0x648] sm:$0xff]
        %v2747 = vld [vmem:[%s752 + $0x650] sm:$0xff]
        %v2748 = vld [vmem:[%s752 + $0x658] sm:$0xff]
        %v2749 = vld [vmem:[%s752 + $0x660] sm:$0xff]
        %v2750 = vld [vmem:[%s752 + $0x668] sm:$0xff]
        %v2751 = vld [vmem:[%s752 + $0x670] sm:$0xff]
        %v2752 = vld [vmem:[%s752 + $0x678] sm:$0xff]
        %v2753 = vld [vmem:[%s752 + $0x680] sm:$0xff]
        %v2754 = vld [vmem:[%s752 + $0x688] sm:$0xff]
        %v2755 = vld [vmem:[%s752 + $0x690] sm:$0xff]
        %v2756 = vld [vmem:[%s752 + $0x698] sm:$0xff]
        %v2757 = vld [vmem:[%s752 + $0x6a0] sm:$0xff]
        %v2758 = vld [vmem:[%s752 + $0x6a8] sm:$0xff]
        %v2759 = vld [vmem:[%s752 + $0x6b0] sm:$0xff]
        %v2760 = vld [vmem:[%s752 + $0x6b8] sm:$0xff]
        %v2761 = vld [vmem:[%s752 + $0x6c0] sm:$0xff]
        %v2762 = vld [vmem:[%s752 + $0x6c8] sm:$0xff]
        %v2763 = vld [vmem:[%s752 + $0x6d0] sm:$0xff]
        %v2764 = vld [vmem:[%s752 + $0x6d8] sm:$0xff]
        %v2765 = vld [vmem:[%s752 + $0x6e0] sm:$0xff]
        %v2766 = vld [vmem:[%s752 + $0x6e8] sm:$0xff]
        %v2767 = vld [vmem:[%s752 + $0x6f0] sm:$0xff]
        %v2768 = vld [vmem:[%s752 + $0x6f8] sm:$0xff]
        %v2769 = vld [vmem:[%s752 + $0x700] sm:$0xff]
        %v2770 = vld [vmem:[%s752 + $0x708] sm:$0xff]
        %v2771 = vld [vmem:[%s752 + $0x710] sm:$0xff]
        %v2772 = vld [vmem:[%s752 + $0x718] sm:$0xff]
        %v2773 = vld [vmem:[%s752 + $0x720] sm:$0xff]
        %v2774 = vld [vmem:[%s752 + $0x728] sm:$0xff]
        %v2775 = vld [vmem:[%s752 + $0x730] sm:$0xff]
        %v2776 = vld [vmem:[%s752 + $0x738] sm:$0xff]
        %v2777 = vld [vmem:[%s752 + $0x740] sm:$0xff]
        %v2778 = vld [vmem:[%s752 + $0x748] sm:$0xff]
        %v2779 = vld [vmem:[%s752 + $0x750] sm:$0xff]
        %v2780 = vld [vmem:[%s752 + $0x758] sm:$0xff]
        %v2781 = vld [vmem:[%s752 + $0x760] sm:$0xff]
        %v2782 = vld [vmem:[%s752 + $0x768] sm:$0xff]
        %v2783 = vld [vmem:[%s752 + $0x770] sm:$0xff]
        %v2784 = vld [vmem:[%s752 + $0x778] sm:$0xff]
        %v2785 = vld [vmem:[%s752 + $0x780] sm:$0xff]
        %v2786 = vld [vmem:[%s752 + $0x788] sm:$0xff]
        %v2787 = vld [vmem:[%s752 + $0x790] sm:$0xff]
        %v2788 = vld [vmem:[%s752 + $0x798] sm:$0xff]
        %v2789 = vld [vmem:[%s752 + $0x7a0] sm:$0xff]
        %v2790 = vld [vmem:[%s752 + $0x7a8] sm:$0xff]
        %v2791 = vld [vmem:[%s752 + $0x7b0] sm:$0xff]
        %v2792 = vld [vmem:[%s752 + $0x7b8] sm:$0xff]
        %v2793 = vld [vmem:[%s752 + $0x7c0] sm:$0xff]
        %v2794 = vld [vmem:[%s752 + $0x7c8] sm:$0xff]
        %v2795 = vld [vmem:[%s752 + $0x7d0] sm:$0xff]
        %v2796 = vld [vmem:[%s752 + $0x7d8] sm:$0xff]
        %v2797 = vld [vmem:[%s752 + $0x7e0] sm:$0xff]
        %v2798 = vld [vmem:[%s752 + $0x7e8] sm:$0xff]
        %v2799 = vld [vmem:[%s752 + $0x7f0] sm:$0xff]
        %v2800 = vld [vmem:[%s752 + $0x7f8] sm:$0xff]
        %v2801 = vld [vmem:[%s756] sm:$0x1]
        %v2803 = vperm.slane %v2801, 0
        %2805 = vmatpush.msra.mxu0 %v2560
        %2806 = vmatpush.msra.mxu0 %v2559
        %2807 = vmatpush.msra.mxu0 %v2558
        %2808 = vmatpush.msra.mxu0 %v2557
        %2809 = vmatpush.msra.mxu0 %v2556
        %2810 = vmatpush.msra.mxu0 %v2555
        %2811 = vmatpush.msra.mxu0 %v2554
        %2812 = vmatpush.msra.mxu0 %v2553
        %2813 = vmatpush.msra.mxu0 %v2552
        %2814 = vmatpush.msra.mxu0 %v2551
        %2815 = vmatpush.msra.mxu0 %v2550
        %2816 = vmatpush.msra.mxu0 %v2549
        %2817 = vmatpush.msra.mxu0 %v2548
        %2818 = vmatpush.msra.mxu0 %v2547
        %2819 = vmatpush.msra.mxu0 %v2546
        %2820 = vmatpush.msra.mxu0 %v2545
        %2821 = vmatmul.f32.gmra.mxu0 %v2481
        %v2822 = vpop.f32.mrf.mxu0
        %v2823 = vadd.f32 %v2803, %v2822
        %2824 = vmatmul.f32.gmra.mxu0 %v2497
        %v2825 = vpop.f32.mrf.mxu0
        %v2826 = vadd.f32 %v2803, %v2825
        %2827 = vmatmul.f32.gmra.mxu0 %v2513
        %v2828 = vpop.f32.mrf.mxu0
        %v2829 = vadd.f32 %v2803, %v2828
        %2830 = vmatmul.f32.gmra.mxu0 %v2529
        %v2831 = vpop.f32.mrf.mxu0
        %v2832 = vadd.f32 %v2803, %v2831
        %2833 = vdwg.mxu0
        %2834 = vmatpush.msra.mxu0 %v2576
        %2835 = vmatpush.msra.mxu0 %v2575
        %2836 = vmatpush.msra.mxu0 %v2574
        %2837 = vmatpush.msra.mxu0 %v2573
        %2838 = vmatpush.msra.mxu0 %v2572
        %2839 = vmatpush.msra.mxu0 %v2571
        %2840 = vmatpush.msra.mxu0 %v2570
        %2841 = vmatpush.msra.mxu0 %v2569
        %2842 = vmatpush.msra.mxu0 %v2568
        %2843 = vmatpush.msra.mxu0 %v2567
        %2844 = vmatpush.msra.mxu0 %v2566
        %2845 = vmatpush.msra.mxu0 %v2565
        %2846 = vmatpush.msra.mxu0 %v2564
        %2847 = vmatpush.msra.mxu0 %v2563
        %2848 = vmatpush.msra.mxu0 %v2562
        %2849 = vmatpush.msra.mxu0 %v2561
        %2850 = vmatmul.f32.gmra.mxu0 %v2482
        %v2851 = vpop.f32.mrf.mxu0
        %v2852 = vadd.f32 %v2823, %v2851
        %2853 = vmatmul.f32.gmra.mxu0 %v2498
        %v2854 = vpop.f32.mrf.mxu0
        %v2855 = vadd.f32 %v2826, %v2854
        %2856 = vmatmul.f32.gmra.mxu0 %v2514
        %v2857 = vpop.f32.mrf.mxu0
        %v2858 = vadd.f32 %v2829, %v2857
        %2859 = vmatmul.f32.gmra.mxu0 %v2530
        %v2860 = vpop.f32.mrf.mxu0
        %v2861 = vadd.f32 %v2832, %v2860
        %2862 = vdwg.mxu0
        %2863 = vmatpush.msra.mxu0 %v2592
        %2864 = vmatpush.msra.mxu0 %v2591
        %2865 = vmatpush.msra.mxu0 %v2590
        %2866 = vmatpush.msra.mxu0 %v2589
        %2867 = vmatpush.msra.mxu0 %v2588
        %2868 = vmatpush.msra.mxu0 %v2587
        %2869 = vmatpush.msra.mxu0 %v2586
        %2870 = vmatpush.msra.mxu0 %v2585
        %2871 = vmatpush.msra.mxu0 %v2584
        %2872 = vmatpush.msra.mxu0 %v2583
        %2873 = vmatpush.msra.mxu0 %v2582
        %2874 = vmatpush.msra.mxu0 %v2581
        %2875 = vmatpush.msra.mxu0 %v2580
        %2876 = vmatpush.msra.mxu0 %v2579
        %2877 = vmatpush.msra.mxu0 %v2578
        %2878 = vmatpush.msra.mxu0 %v2577
        %2879 = vmatmul.f32.gmra.mxu0 %v2483
        %v2880 = vpop.f32.mrf.mxu0
        %v2881 = vadd.f32 %v2852, %v2880
        %2882 = vmatmul.f32.gmra.mxu0 %v2499
        %v2883 = vpop.f32.mrf.mxu0
        %v2884 = vadd.f32 %v2855, %v2883
        %2885 = vmatmul.f32.gmra.mxu0 %v2515
        %v2886 = vpop.f32.mrf.mxu0
        %v2887 = vadd.f32 %v2858, %v2886
        %2888 = vmatmul.f32.gmra.mxu0 %v2531
        %v2889 = vpop.f32.mrf.mxu0
        %v2890 = vadd.f32 %v2861, %v2889
        %2891 = vdwg.mxu0
        %2892 = vmatpush.msra.mxu0 %v2608
        %2893 = vmatpush.msra.mxu0 %v2607
        %2894 = vmatpush.msra.mxu0 %v2606
        %2895 = vmatpush.msra.mxu0 %v2605
        %2896 = vmatpush.msra.mxu0 %v2604
        %2897 = vmatpush.msra.mxu0 %v2603
        %2898 = vmatpush.msra.mxu0 %v2602
        %2899 = vmatpush.msra.mxu0 %v2601
        %2900 = vmatpush.msra.mxu0 %v2600
        %2901 = vmatpush.msra.mxu0 %v2599
        %2902 = vmatpush.msra.mxu0 %v2598
        %2903 = vmatpush.msra.mxu0 %v2597
        %2904 = vmatpush.msra.mxu0 %v2596
        %2905 = vmatpush.msra.mxu0 %v2595
        %2906 = vmatpush.msra.mxu0 %v2594
        %2907 = vmatpush.msra.mxu0 %v2593
        %2908 = vmatmul.f32.gmra.mxu0 %v2484
        %v2909 = vpop.f32.mrf.mxu0
        %v2910 = vadd.f32 %v2881, %v2909
        %2911 = vmatmul.f32.gmra.mxu0 %v2500
        %v2912 = vpop.f32.mrf.mxu0
        %v2913 = vadd.f32 %v2884, %v2912
        %2914 = vmatmul.f32.gmra.mxu0 %v2516
        %v2915 = vpop.f32.mrf.mxu0
        %v2916 = vadd.f32 %v2887, %v2915
        %2917 = vmatmul.f32.gmra.mxu0 %v2532
        %v2918 = vpop.f32.mrf.mxu0
        %v2919 = vadd.f32 %v2890, %v2918
        %2920 = vdwg.mxu0
        %2921 = vmatpush.msra.mxu0 %v2624
        %2922 = vmatpush.msra.mxu0 %v2623
        %2923 = vmatpush.msra.mxu0 %v2622
        %2924 = vmatpush.msra.mxu0 %v2621
        %2925 = vmatpush.msra.mxu0 %v2620
        %2926 = vmatpush.msra.mxu0 %v2619
        %2927 = vmatpush.msra.mxu0 %v2618
        %2928 = vmatpush.msra.mxu0 %v2617
        %2929 = vmatpush.msra.mxu0 %v2616
        %2930 = vmatpush.msra.mxu0 %v2615
        %2931 = vmatpush.msra.mxu0 %v2614
        %2932 = vmatpush.msra.mxu0 %v2613
        %2933 = vmatpush.msra.mxu0 %v2612
        %2934 = vmatpush.msra.mxu0 %v2611
        %2935 = vmatpush.msra.mxu0 %v2610
        %2936 = vmatpush.msra.mxu0 %v2609
        %2937 = vmatmul.f32.gmra.mxu0 %v2485
        %v2938 = vpop.f32.mrf.mxu0
        %v2939 = vadd.f32 %v2910, %v2938
        %2940 = vmatmul.f32.gmra.mxu0 %v2501
        %v2941 = vpop.f32.mrf.mxu0
        %v2942 = vadd.f32 %v2913, %v2941
        %2943 = vmatmul.f32.gmra.mxu0 %v2517
        %v2944 = vpop.f32.mrf.mxu0
        %v2945 = vadd.f32 %v2916, %v2944
        %2946 = vmatmul.f32.gmra.mxu0 %v2533
        %v2947 = vpop.f32.mrf.mxu0
        %v2948 = vadd.f32 %v2919, %v2947
        %2949 = vdwg.mxu0
        %2950 = vmatpush.msra.mxu0 %v2640
        %2951 = vmatpush.msra.mxu0 %v2639
        %2952 = vmatpush.msra.mxu0 %v2638
        %2953 = vmatpush.msra.mxu0 %v2637
        %2954 = vmatpush.msra.mxu0 %v2636
        %2955 = vmatpush.msra.mxu0 %v2635
        %2956 = vmatpush.msra.mxu0 %v2634
        %2957 = vmatpush.msra.mxu0 %v2633
        %2958 = vmatpush.msra.mxu0 %v2632
        %2959 = vmatpush.msra.mxu0 %v2631
        %2960 = vmatpush.msra.mxu0 %v2630
        %2961 = vmatpush.msra.mxu0 %v2629
        %2962 = vmatpush.msra.mxu0 %v2628
        %2963 = vmatpush.msra.mxu0 %v2627
        %2964 = vmatpush.msra.mxu0 %v2626
        %2965 = vmatpush.msra.mxu0 %v2625
        %2966 = vmatmul.f32.gmra.mxu0 %v2486
        %v2967 = vpop.f32.mrf.mxu0
        %v2968 = vadd.f32 %v2939, %v2967
        %2969 = vmatmul.f32.gmra.mxu0 %v2502
        %v2970 = vpop.f32.mrf.mxu0
        %v2971 = vadd.f32 %v2942, %v2970
        %2972 = vmatmul.f32.gmra.mxu0 %v2518
        %v2973 = vpop.f32.mrf.mxu0
        %v2974 = vadd.f32 %v2945, %v2973
        %2975 = vmatmul.f32.gmra.mxu0 %v2534
        %v2976 = vpop.f32.mrf.mxu0
        %v2977 = vadd.f32 %v2948, %v2976
        %2978 = vdwg.mxu0
        %2979 = vmatpush.msra.mxu0 %v2656
        %2980 = vmatpush.msra.mxu0 %v2655
        %2981 = vmatpush.msra.mxu0 %v2654
        %2982 = vmatpush.msra.mxu0 %v2653
        %2983 = vmatpush.msra.mxu0 %v2652
        %2984 = vmatpush.msra.mxu0 %v2651
        %2985 = vmatpush.msra.mxu0 %v2650
        %2986 = vmatpush.msra.mxu0 %v2649
        %2987 = vmatpush.msra.mxu0 %v2648
        %2988 = vmatpush.msra.mxu0 %v2647
        %2989 = vmatpush.msra.mxu0 %v2646
        %2990 = vmatpush.msra.mxu0 %v2645
        %2991 = vmatpush.msra.mxu0 %v2644
        %2992 = vmatpush.msra.mxu0 %v2643
        %2993 = vmatpush.msra.mxu0 %v2642
        %2994 = vmatpush.msra.mxu0 %v2641
        %2995 = vmatmul.f32.gmra.mxu0 %v2487
        %v2996 = vpop.f32.mrf.mxu0
        %v2997 = vadd.f32 %v2968, %v2996
        %2998 = vmatmul.f32.gmra.mxu0 %v2503
        %v2999 = vpop.f32.mrf.mxu0
        %v3000 = vadd.f32 %v2971, %v2999
        %3001 = vmatmul.f32.gmra.mxu0 %v2519
        %v3002 = vpop.f32.mrf.mxu0
        %v3003 = vadd.f32 %v2974, %v3002
        %3004 = vmatmul.f32.gmra.mxu0 %v2535
        %v3005 = vpop.f32.mrf.mxu0
        %v3006 = vadd.f32 %v2977, %v3005
        %3007 = vdwg.mxu0
        %3008 = vmatpush.msra.mxu0 %v2672
        %3009 = vmatpush.msra.mxu0 %v2671
        %3010 = vmatpush.msra.mxu0 %v2670
        %3011 = vmatpush.msra.mxu0 %v2669
        %3012 = vmatpush.msra.mxu0 %v2668
        %3013 = vmatpush.msra.mxu0 %v2667
        %3014 = vmatpush.msra.mxu0 %v2666
        %3015 = vmatpush.msra.mxu0 %v2665
        %3016 = vmatpush.msra.mxu0 %v2664
        %3017 = vmatpush.msra.mxu0 %v2663
        %3018 = vmatpush.msra.mxu0 %v2662
        %3019 = vmatpush.msra.mxu0 %v2661
        %3020 = vmatpush.msra.mxu0 %v2660
        %3021 = vmatpush.msra.mxu0 %v2659
        %3022 = vmatpush.msra.mxu0 %v2658
        %3023 = vmatpush.msra.mxu0 %v2657
        %3024 = vmatmul.f32.gmra.mxu0 %v2488
        %v3025 = vpop.f32.mrf.mxu0
        %v3026 = vadd.f32 %v2997, %v3025
        %3027 = vmatmul.f32.gmra.mxu0 %v2504
        %v3028 = vpop.f32.mrf.mxu0
        %v3029 = vadd.f32 %v3000, %v3028
        %3030 = vmatmul.f32.gmra.mxu0 %v2520
        %v3031 = vpop.f32.mrf.mxu0
        %v3032 = vadd.f32 %v3003, %v3031
        %3033 = vmatmul.f32.gmra.mxu0 %v2536
        %v3034 = vpop.f32.mrf.mxu0
        %v3035 = vadd.f32 %v3006, %v3034
        %3036 = vdwg.mxu0
        %3037 = vmatpush.msra.mxu0 %v2688
        %3038 = vmatpush.msra.mxu0 %v2687
        %3039 = vmatpush.msra.mxu0 %v2686
        %3040 = vmatpush.msra.mxu0 %v2685
        %3041 = vmatpush.msra.mxu0 %v2684
        %3042 = vmatpush.msra.mxu0 %v2683
        %3043 = vmatpush.msra.mxu0 %v2682
        %3044 = vmatpush.msra.mxu0 %v2681
        %3045 = vmatpush.msra.mxu0 %v2680
        %3046 = vmatpush.msra.mxu0 %v2679
        %3047 = vmatpush.msra.mxu0 %v2678
        %3048 = vmatpush.msra.mxu0 %v2677
        %3049 = vmatpush.msra.mxu0 %v2676
        %3050 = vmatpush.msra.mxu0 %v2675
        %3051 = vmatpush.msra.mxu0 %v2674
        %3052 = vmatpush.msra.mxu0 %v2673
        %3053 = vmatmul.f32.gmra.mxu0 %v2489
        %v3054 = vpop.f32.mrf.mxu0
        %v3055 = vadd.f32 %v3026, %v3054
        %3056 = vmatmul.f32.gmra.mxu0 %v2505
        %v3057 = vpop.f32.mrf.mxu0
        %v3058 = vadd.f32 %v3029, %v3057
        %3059 = vmatmul.f32.gmra.mxu0 %v2521
        %v3060 = vpop.f32.mrf.mxu0
        %v3061 = vadd.f32 %v3032, %v3060
        %3062 = vmatmul.f32.gmra.mxu0 %v2537
        %v3063 = vpop.f32.mrf.mxu0
        %v3064 = vadd.f32 %v3035, %v3063
        %3065 = vdwg.mxu0
        %3066 = vmatpush.msra.mxu0 %v2704
        %3067 = vmatpush.msra.mxu0 %v2703
        %3068 = vmatpush.msra.mxu0 %v2702
        %3069 = vmatpush.msra.mxu0 %v2701
        %3070 = vmatpush.msra.mxu0 %v2700
        %3071 = vmatpush.msra.mxu0 %v2699
        %3072 = vmatpush.msra.mxu0 %v2698
        %3073 = vmatpush.msra.mxu0 %v2697
        %3074 = vmatpush.msra.mxu0 %v2696
        %3075 = vmatpush.msra.mxu0 %v2695
        %3076 = vmatpush.msra.mxu0 %v2694
        %3077 = vmatpush.msra.mxu0 %v2693
        %3078 = vmatpush.msra.mxu0 %v2692
        %3079 = vmatpush.msra.mxu0 %v2691
        %3080 = vmatpush.msra.mxu0 %v2690
        %3081 = vmatpush.msra.mxu0 %v2689
        %3082 = vmatmul.f32.gmra.mxu0 %v2490
        %v3083 = vpop.f32.mrf.mxu0
        %v3084 = vadd.f32 %v3055, %v3083
        %3085 = vmatmul.f32.gmra.mxu0 %v2506
        %v3086 = vpop.f32.mrf.mxu0
        %v3087 = vadd.f32 %v3058, %v3086
        %3088 = vmatmul.f32.gmra.mxu0 %v2522
        %v3089 = vpop.f32.mrf.mxu0
        %v3090 = vadd.f32 %v3061, %v3089
        %3091 = vmatmul.f32.gmra.mxu0 %v2538
        %v3092 = vpop.f32.mrf.mxu0
        %v3093 = vadd.f32 %v3064, %v3092
        %3094 = vdwg.mxu0
        %3095 = vmatpush.msra.mxu0 %v2720
        %3096 = vmatpush.msra.mxu0 %v2719
        %3097 = vmatpush.msra.mxu0 %v2718
        %3098 = vmatpush.msra.mxu0 %v2717
        %3099 = vmatpush.msra.mxu0 %v2716
        %3100 = vmatpush.msra.mxu0 %v2715
        %3101 = vmatpush.msra.mxu0 %v2714
        %3102 = vmatpush.msra.mxu0 %v2713
        %3103 = vmatpush.msra.mxu0 %v2712
        %3104 = vmatpush.msra.mxu0 %v2711
        %3105 = vmatpush.msra.mxu0 %v2710
        %3106 = vmatpush.msra.mxu0 %v2709
        %3107 = vmatpush.msra.mxu0 %v2708
        %3108 = vmatpush.msra.mxu0 %v2707
        %3109 = vmatpush.msra.mxu0 %v2706
        %3110 = vmatpush.msra.mxu0 %v2705
        %3111 = vmatmul.f32.gmra.mxu0 %v2491
        %v3112 = vpop.f32.mrf.mxu0
        %v3113 = vadd.f32 %v3084, %v3112
        %3114 = vmatmul.f32.gmra.mxu0 %v2507
        %v3115 = vpop.f32.mrf.mxu0
        %v3116 = vadd.f32 %v3087, %v3115
        %3117 = vmatmul.f32.gmra.mxu0 %v2523
        %v3118 = vpop.f32.mrf.mxu0
        %v3119 = vadd.f32 %v3090, %v3118
        %3120 = vmatmul.f32.gmra.mxu0 %v2539
        %v3121 = vpop.f32.mrf.mxu0
        %v3122 = vadd.f32 %v3093, %v3121
        %3123 = vdwg.mxu0
        %3124 = vmatpush.msra.mxu0 %v2736
        %3125 = vmatpush.msra.mxu0 %v2735
        %3126 = vmatpush.msra.mxu0 %v2734
        %3127 = vmatpush.msra.mxu0 %v2733
        %3128 = vmatpush.msra.mxu0 %v2732
        %3129 = vmatpush.msra.mxu0 %v2731
        %3130 = vmatpush.msra.mxu0 %v2730
        %3131 = vmatpush.msra.mxu0 %v2729
        %3132 = vmatpush.msra.mxu0 %v2728
        %3133 = vmatpush.msra.mxu0 %v2727
        %3134 = vmatpush.msra.mxu0 %v2726
        %3135 = vmatpush.msra.mxu0 %v2725
        %3136 = vmatpush.msra.mxu0 %v2724
        %3137 = vmatpush.msra.mxu0 %v2723
        %3138 = vmatpush.msra.mxu0 %v2722
        %3139 = vmatpush.msra.mxu0 %v2721
        %3140 = vmatmul.f32.gmra.mxu0 %v2492
        %v3141 = vpop.f32.mrf.mxu0
        %v3142 = vadd.f32 %v3113, %v3141
        %3143 = vmatmul.f32.gmra.mxu0 %v2508
        %v3144 = vpop.f32.mrf.mxu0
        %v3145 = vadd.f32 %v3116, %v3144
        %3146 = vmatmul.f32.gmra.mxu0 %v2524
        %v3147 = vpop.f32.mrf.mxu0
        %v3148 = vadd.f32 %v3119, %v3147
        %3149 = vmatmul.f32.gmra.mxu0 %v2540
        %v3150 = vpop.f32.mrf.mxu0
        %v3151 = vadd.f32 %v3122, %v3150
        %3152 = vdwg.mxu0
        %3153 = vmatpush.msra.mxu0 %v2752
        %3154 = vmatpush.msra.mxu0 %v2751
        %3155 = vmatpush.msra.mxu0 %v2750
        %3156 = vmatpush.msra.mxu0 %v2749
        %3157 = vmatpush.msra.mxu0 %v2748
        %3158 = vmatpush.msra.mxu0 %v2747
        %3159 = vmatpush.msra.mxu0 %v2746
        %3160 = vmatpush.msra.mxu0 %v2745
        %3161 = vmatpush.msra.mxu0 %v2744
        %3162 = vmatpush.msra.mxu0 %v2743
        %3163 = vmatpush.msra.mxu0 %v2742
        %3164 = vmatpush.msra.mxu0 %v2741
        %3165 = vmatpush.msra.mxu0 %v2740
        %3166 = vmatpush.msra.mxu0 %v2739
        %3167 = vmatpush.msra.mxu0 %v2738
        %3168 = vmatpush.msra.mxu0 %v2737
        %3169 = vmatmul.f32.gmra.mxu0 %v2493
        %v3170 = vpop.f32.mrf.mxu0
        %v3171 = vadd.f32 %v3142, %v3170
        %3172 = vmatmul.f32.gmra.mxu0 %v2509
        %v3173 = vpop.f32.mrf.mxu0
        %v3174 = vadd.f32 %v3145, %v3173
        %3175 = vmatmul.f32.gmra.mxu0 %v2525
        %v3176 = vpop.f32.mrf.mxu0
        %v3177 = vadd.f32 %v3148, %v3176
        %3178 = vmatmul.f32.gmra.mxu0 %v2541
        %v3179 = vpop.f32.mrf.mxu0
        %v3180 = vadd.f32 %v3151, %v3179
        %3181 = vdwg.mxu0
        %3182 = vmatpush.msra.mxu0 %v2768
        %3183 = vmatpush.msra.mxu0 %v2767
        %3184 = vmatpush.msra.mxu0 %v2766
        %3185 = vmatpush.msra.mxu0 %v2765
        %3186 = vmatpush.msra.mxu0 %v2764
        %3187 = vmatpush.msra.mxu0 %v2763
        %3188 = vmatpush.msra.mxu0 %v2762
        %3189 = vmatpush.msra.mxu0 %v2761
        %3190 = vmatpush.msra.mxu0 %v2760
        %3191 = vmatpush.msra.mxu0 %v2759
        %3192 = vmatpush.msra.mxu0 %v2758
        %3193 = vmatpush.msra.mxu0 %v2757
        %3194 = vmatpush.msra.mxu0 %v2756
        %3195 = vmatpush.msra.mxu0 %v2755
        %3196 = vmatpush.msra.mxu0 %v2754
        %3197 = vmatpush.msra.mxu0 %v2753
        %3198 = vmatmul.f32.gmra.mxu0 %v2494
        %v3199 = vpop.f32.mrf.mxu0
        %v3200 = vadd.f32 %v3171, %v3199
        %3201 = vmatmul.f32.gmra.mxu0 %v2510
        %v3202 = vpop.f32.mrf.mxu0
        %v3203 = vadd.f32 %v3174, %v3202
        %3204 = vmatmul.f32.gmra.mxu0 %v2526
        %v3205 = vpop.f32.mrf.mxu0
        %v3206 = vadd.f32 %v3177, %v3205
        %3207 = vmatmul.f32.gmra.mxu0 %v2542
        %v3208 = vpop.f32.mrf.mxu0
        %v3209 = vadd.f32 %v3180, %v3208
        %3210 = vdwg.mxu0
        %3211 = vmatpush.msra.mxu0 %v2784
        %3212 = vmatpush.msra.mxu0 %v2783
        %3213 = vmatpush.msra.mxu0 %v2782
        %3214 = vmatpush.msra.mxu0 %v2781
        %3215 = vmatpush.msra.mxu0 %v2780
        %3216 = vmatpush.msra.mxu0 %v2779
        %3217 = vmatpush.msra.mxu0 %v2778
        %3218 = vmatpush.msra.mxu0 %v2777
        %3219 = vmatpush.msra.mxu0 %v2776
        %3220 = vmatpush.msra.mxu0 %v2775
        %3221 = vmatpush.msra.mxu0 %v2774
        %3222 = vmatpush.msra.mxu0 %v2773
        %3223 = vmatpush.msra.mxu0 %v2772
        %3224 = vmatpush.msra.mxu0 %v2771
        %3225 = vmatpush.msra.mxu0 %v2770
        %3226 = vmatpush.msra.mxu0 %v2769
        %3227 = vmatmul.f32.gmra.mxu0 %v2495
        %v3228 = vpop.f32.mrf.mxu0
        %v3229 = vadd.f32 %v3200, %v3228
        %3230 = vmatmul.f32.gmra.mxu0 %v2511
        %v3231 = vpop.f32.mrf.mxu0
        %v3232 = vadd.f32 %v3203, %v3231
        %3233 = vmatmul.f32.gmra.mxu0 %v2527
        %v3234 = vpop.f32.mrf.mxu0
        %v3235 = vadd.f32 %v3206, %v3234
        %3236 = vmatmul.f32.gmra.mxu0 %v2543
        %v3237 = vpop.f32.mrf.mxu0
        %v3238 = vadd.f32 %v3209, %v3237
        %3239 = vdwg.mxu0
        %3240 = vmatpush.msra.mxu0 %v2800
        %3241 = vmatpush.msra.mxu0 %v2799
        %3242 = vmatpush.msra.mxu0 %v2798
        %3243 = vmatpush.msra.mxu0 %v2797
        %3244 = vmatpush.msra.mxu0 %v2796
        %3245 = vmatpush.msra.mxu0 %v2795
        %3246 = vmatpush.msra.mxu0 %v2794
        %3247 = vmatpush.msra.mxu0 %v2793
        %3248 = vmatpush.msra.mxu0 %v2792
        %3249 = vmatpush.msra.mxu0 %v2791
        %3250 = vmatpush.msra.mxu0 %v2790
        %3251 = vmatpush.msra.mxu0 %v2789
        %3252 = vmatpush.msra.mxu0 %v2788
        %3253 = vmatpush.msra.mxu0 %v2787
        %3254 = vmatpush.msra.mxu0 %v2786
        %3255 = vmatpush.msra.mxu0 %v2785
        %3256 = vmatmul.f32.gmra.mxu0 %v2496
        %v3257 = vpop.f32.mrf.mxu0
        %v3258 = vadd.f32 %v3229, %v3257
        %3259 = vmatmul.f32.gmra.mxu0 %v2512
        %v3260 = vpop.f32.mrf.mxu0
        %v3261 = vadd.f32 %v3232, %v3260
        %3262 = vmatmul.f32.gmra.mxu0 %v2528
        %v3263 = vpop.f32.mrf.mxu0
        %v3264 = vadd.f32 %v3235, %v3263
        %3265 = vmatmul.f32.gmra.mxu0 %v2544
        %v3266 = vpop.f32.mrf.mxu0
        %v3267 = vadd.f32 %v3238, %v3266
        %3268 = vdwg.mxu0
        %v3269 = vadd.f32 %v1901, %v3258
        %v3270 = vadd.f32 %v1902, %v3261
        %v3271 = vadd.f32 %v1903, %v3264
        %v3272 = vadd.f32 %v1904, %v3267
        %v3273 = vld [vmem:[%s760] sm:$0x1]
        %v3274 = vld [vmem:[%s764] sm:$0x1]
        %v3275 = vsel %vm840, %v3269, 0.0
        %3276 = vadd.xlane.f32.xlu0 %v3275
        %v3277 = vpop.xlane.xlu0 %3276
        %v3278 = vsel %vm840, %v3270, 0.0
        %3279 = vadd.xlane.f32.xlu0 %v3278
        %v3280 = vpop.xlane.xlu0 %3279
        %v3281 = vsel %vm840, %v3271, 0.0
        %3282 = vadd.xlane.f32.xlu0 %v3281
        %v3283 = vpop.xlane.xlu0 %3282
        %v3284 = vsel %vm840, %v3272, 0.0
        %3285 = vadd.xlane.f32.xlu0 %v3284
        %v3286 = vpop.xlane.xlu0 %3285
        %v3287 = vmul.f32 %v3277, %v1814
        %v3288 = vmul.f32 %v3280, %v1814
        %v3289 = vmul.f32 %v3283, %v1814
        %v3290 = vmul.f32 %v3286, %v1814
        %v3291 = vsub.f32 %v3269, %v3287
        %v3292 = vsub.f32 %v3270, %v3288
        %v3293 = vsub.f32 %v3271, %v3289
        %v3294 = vsub.f32 %v3272, %v3290
        %v3295 = vmul.f32 %v3291, %v3291
        %v3296 = vmul.f32 %v3292, %v3292
        %v3297 = vmul.f32 %v3293, %v3293
        %v3298 = vmul.f32 %v3294, %v3294
        %v3299 = vsel %vm840, %v3295, 0.0
        %3300 = vadd.xlane.f32.xlu0 %v3299
        %v3301 = vpop.xlane.xlu0 %3300
        %v3302 = vsel %vm840, %v3296, 0.0
        %3303 = vadd.xlane.f32.xlu0 %v3302
        %v3304 = vpop.xlane.xlu0 %3303
        %v3305 = vsel %vm840, %v3297, 0.0
        %3306 = vadd.xlane.f32.xlu0 %v3305
        %v3307 = vpop.xlane.xlu0 %3306
        %v3308 = vsel %vm840, %v3298, 0.0
        %3309 = vadd.xlane.f32.xlu0 %v3308
        %v3310 = vpop.xlane.xlu0 %3309
        %v3311 = vmul.f32 %v3301, %v1814
        %v3312 = vmul.f32 %v3304, %v1814
        %v3313 = vmul.f32 %v3307, %v1814
        %v3314 = vmul.f32 %v3310, %v1814
        %v3315 = vadd.f32 %v3311, 1e-05
        %v3316 = vadd.f32 %v3312, 1e-05
        %v3317 = vadd.f32 %v3313, 1e-05
        %v3318 = vadd.f32 %v3314, 1e-05
        %v3319 = vrsqrt.pop %v3315
        %v3320 = vmul.f32 %v3319, %v3315
        %v3321 = vmul.f32 %v3320, %v3319
        %v3322 = vmul.f32 0.5, %v3321
        %v3323 = vsub.f32 1.5, %v3322
        %v3324 = vmul.f32 %v3319, %v3323
        %vm3325 = vweird.f32 %v3315
        %vm3326 = vweird.f32 %v3319
        %vm3327 = vmor %vm3325, %vm3326
        %v3328 = vsel %vm3327, %v3319, %v3324
        %v3329 = vrsqrt.pop %v3316
        %v3330 = vmul.f32 %v3329, %v3316
        %v3331 = vmul.f32 %v3330, %v3329
        %v3332 = vmul.f32 0.5, %v3331
        %v3333 = vsub.f32 1.5, %v3332
        %v3334 = vmul.f32 %v3329, %v3333
        %vm3335 = vweird.f32 %v3316
        %vm3336 = vweird.f32 %v3329
        %vm3337 = vmor %vm3335, %vm3336
        %v3338 = vsel %vm3337, %v3329, %v3334
        %v3339 = vrsqrt.pop %v3317
        %v3340 = vmul.f32 %v3339, %v3317
        %v3341 = vmul.f32 %v3340, %v3339
        %v3342 = vmul.f32 0.5, %v3341
        %v3343 = vsub.f32 1.5, %v3342
        %v3344 = vmul.f32 %v3339, %v3343
        %vm3345 = vweird.f32 %v3317
        %vm3346 = vweird.f32 %v3339
        %vm3347 = vmor %vm3345, %vm3346
        %v3348 = vsel %vm3347, %v3339, %v3344
        %v3349 = vrsqrt.pop %v3318
        %v3350 = vmul.f32 %v3349, %v3318
        %v3351 = vmul.f32 %v3350, %v3349
        %v3352 = vmul.f32 0.5, %v3351
        %v3353 = vsub.f32 1.5, %v3352
        %v3354 = vmul.f32 %v3349, %v3353
        %vm3355 = vweird.f32 %v3318
        %vm3356 = vweird.f32 %v3349
        %vm3357 = vmor %vm3355, %vm3356
        %v3358 = vsel %vm3357, %v3349, %v3354
        %v3359 = vmul.f32 %v3291, %v3328
        %v3360 = vmul.f32 %v3292, %v3338
        %v3361 = vmul.f32 %v3293, %v3348
        %v3362 = vmul.f32 %v3294, %v3358
        %v3364 = vperm.slane %v3273, 0
        %v3366 = vmul.f32 %v3359, %v3364
        %v3367 = vmul.f32 %v3360, %v3364
        %v3368 = vmul.f32 %v3361, %v3364
        %v3369 = vmul.f32 %v3362, %v3364
        %v3371 = vperm.slane %v3274, 0
        %v3373 = vadd.f32 %v3366, %v3371
        %v3374 = vadd.f32 %v3367, %v3371
        %v3375 = vadd.f32 %v3368, %v3371
        %v3376 = vadd.f32 %v3369, %v3371
        %s3377 = scalar_lea.vmem %s717, 32
        %v3378 = vld [vmem:[%s3377] sm:$0xff]
        %v3379 = vld [vmem:[%s3377 + $0x8] sm:$0xff]
        %v3380 = vld [vmem:[%s3377 + $0x10] sm:$0xff]
        %v3381 = vld [vmem:[%s3377 + $0x18] sm:$0xff]
        %s3382 = scalar_lea.vmem %s721, 1
        %v3383 = vld [vmem:[%s3382] sm:$0x1]
        %v3385 = vperm.slane %v3383, 0
        %v3388 = vsel %vm840, %v3373, 0
        %v3391 = vsel %vm840, %v3374, 0
        %v3394 = vsel %vm840, %v3375, 0
        %v3397 = vsel %vm840, %v3376, 0
        %3399 = vmatpush.msra.mxu0 0.0
        %3400 = vmatpush.msra.mxu0 0.0
        %3401 = vmatpush.msra.mxu0 0.0
        %3402 = vmatpush.msra.mxu0 0.0
        %3403 = vmatpush.msra.mxu0 0.0
        %3404 = vmatpush.msra.mxu0 0.0
        %3405 = vmatpush.msra.mxu0 0.0
        %3406 = vmatpush.msra.mxu0 0.0
        %3407 = vmatpush.msra.mxu0 0.0
        %3408 = vmatpush.msra.mxu0 0.0
        %3409 = vmatpush.msra.mxu0 0.0
        %3410 = vmatpush.msra.mxu0 0.0
        %3411 = vmatpush.msra.mxu0 %v3381
        %3412 = vmatpush.msra.mxu0 %v3380
        %3413 = vmatpush.msra.mxu0 %v3379
        %3414 = vmatpush.msra.mxu0 %v3378
        %3415 = vmatmul.f32.gmra.mxu0 %v3388
        %v3416 = vpop.f32.mrf.mxu0
        %v3417 = vadd.f32 %v3385, %v3416
        %3418 = vmatmul.f32.gmra.mxu0 %v3391
        %v3419 = vpop.f32.mrf.mxu0
        %v3420 = vadd.f32 %v3385, %v3419
        %3421 = vmatmul.f32.gmra.mxu0 %v3394
        %v3422 = vpop.f32.mrf.mxu0
        %v3423 = vadd.f32 %v3385, %v3422
        %3424 = vmatmul.f32.gmra.mxu0 %v3397
        %v3425 = vpop.f32.mrf.mxu0
        %v3426 = vadd.f32 %v3385, %v3425
        %3427 = vdwg.mxu0
        %3430 = vrot.lane.b32.xlu0 %v3417, 96
        %v3431 = vpop.permute.xlu0 %3430
        %3432 = vrot.lane.b32.xlu0 %v3420, 96
        %v3433 = vpop.permute.xlu0 %3432
        %v3434 = vsel %vm888, %v3417, 0
        %v3436 = vsel %vm888, %v3420, 0
        %v3438 = vsel %vm888, %v3431, 0
        %v3440 = vsel %vm888, %v3433, 0
        %3442 = vmatpush.xpose.msra.mxu0 0.0
        %3443 = vmatpush.xpose.msra.mxu0 0.0
        %3444 = vmatpush.xpose.msra.mxu0 0.0
        %3445 = vmatpush.xpose.msra.mxu0 0.0
        %3446 = vmatpush.xpose.msra.mxu0 0.0
        %3447 = vmatpush.xpose.msra.mxu0 0.0
        %3448 = vmatpush.xpose.msra.mxu0 0.0
        %3449 = vmatpush.xpose.msra.mxu0 0.0
        %3450 = vmatpush.xpose.msra.mxu0 0.0
        %3451 = vmatpush.xpose.msra.mxu0 0.0
        %3452 = vmatpush.xpose.msra.mxu0 0.0
        %3453 = vmatpush.xpose.msra.mxu0 0.0
        %3454 = vmatpush.xpose.msra.mxu0 0.0
        %3455 = vmatpush.xpose.msra.mxu0 0.0
        %3456 = vmatpush.xpose.msra.mxu0 %v3440
        %3457 = vmatpush.xpose.msra.mxu0 %v3438
        %3458 = vmatmul.f32.gmra.mxu0 %v3434
        %v3459 = vpop.f32.mrf.mxu0
        %v3460 = vadd.f32 0.0, %v3459
        %3461 = vmatmul.f32.gmra.mxu0 %v3436
        %v3462 = vpop.f32.mrf.mxu0
        %v3463 = vadd.f32 0.0, %v3462
        %3464 = vdwg.mxu0
        %3467 = vrot.lane.b32.xlu0 %v3423, 96
        %v3468 = vpop.permute.xlu0 %3467
        %3469 = vrot.lane.b32.xlu0 %v3426, 96
        %v3470 = vpop.permute.xlu0 %3469
        %v3471 = vsel %vm888, %v3423, 0
        %v3473 = vsel %vm888, %v3426, 0
        %v3475 = vsel %vm888, %v3468, 0
        %v3477 = vsel %vm888, %v3470, 0
        %3479 = vmatpush.xpose.msra.mxu0 0.0
        %3480 = vmatpush.xpose.msra.mxu0 0.0
        %3481 = vmatpush.xpose.msra.mxu0 0.0
        %3482 = vmatpush.xpose.msra.mxu0 0.0
        %3483 = vmatpush.xpose.msra.mxu0 0.0
        %3484 = vmatpush.xpose.msra.mxu0 0.0
        %3485 = vmatpush.xpose.msra.mxu0 0.0
        %3486 = vmatpush.xpose.msra.mxu0 0.0
        %3487 = vmatpush.xpose.msra.mxu0 0.0
        %3488 = vmatpush.xpose.msra.mxu0 0.0
        %3489 = vmatpush.xpose.msra.mxu0 0.0
        %3490 = vmatpush.xpose.msra.mxu0 0.0
        %3491 = vmatpush.xpose.msra.mxu0 0.0
        %3492 = vmatpush.xpose.msra.mxu0 0.0
        %3493 = vmatpush.xpose.msra.mxu0 %v3477
        %3494 = vmatpush.xpose.msra.mxu0 %v3475
        %3495 = vmatmul.f32.gmra.mxu0 %v3471
        %v3496 = vpop.f32.mrf.mxu0
        %v3497 = vadd.f32 0.0, %v3496
        %3498 = vmatmul.f32.gmra.mxu0 %v3473
        %v3499 = vpop.f32.mrf.mxu0
        %v3500 = vadd.f32 0.0, %v3499
        %3501 = vdwg.mxu0
        %v3502 = vmul.f32 %v3460, 0.35355338
        %v3503 = vmul.f32 %v3463, 0.35355338
        %v3504 = vmul.f32 %v3497, 0.35355338
        %v3505 = vmul.f32 %v3500, 0.35355338
        %v3506 = vadd.f32 %v3502, %v831
        %v3507 = vadd.f32 %v3503, %v831
        %v3508 = vadd.f32 %v3504, %v831
        %v3509 = vadd.f32 %v3505, %v831
        %v3510 = vsel %vm965, %v3506, -inf
        %3511 = vmax.xlane.f32.xlu0 %v3510
        %v3512 = vpop.xlane.xlu0 %3511
        %v3513 = vsel %vm965, %v3507, -inf
        %3514 = vmax.xlane.f32.xlu0 %v3513
        %v3515 = vpop.xlane.xlu0 %3514
        %v3516 = vsel %vm965, %v3508, -inf
        %3517 = vmax.xlane.f32.xlu0 %v3516
        %v3518 = vpop.xlane.xlu0 %3517
        %v3519 = vsel %vm965, %v3509, -inf
        %3520 = vmax.xlane.f32.xlu0 %v3519
        %v3521 = vpop.xlane.xlu0 %3520
        %v3522 = vsub.f32 %v3506, %v3512
        %v3523 = vsub.f32 %v3507, %v3515
        %v3524 = vsub.f32 %v3508, %v3518
        %v3525 = vsub.f32 %v3509, %v3521
        %v3526 = vmul.f32 %v3522, 1.442695
        %v3527 = vpow.pop %v3526
        %v3528 = vmul.f32 %v3523, 1.442695
        %v3529 = vpow.pop %v3528
        %v3530 = vmul.f32 %v3524, 1.442695
        %v3531 = vpow.pop %v3530
        %v3532 = vmul.f32 %v3525, 1.442695
        %v3533 = vpow.pop %v3532
        %v3534 = vsel %vm965, %v3527, 0.0
        %3535 = vadd.xlane.f32.xlu0 %v3534
        %v3536 = vpop.xlane.xlu0 %3535
        %v3537 = vsel %vm965, %v3529, 0.0
        %3538 = vadd.xlane.f32.xlu0 %v3537
        %v3539 = vpop.xlane.xlu0 %3538
        %v3540 = vsel %vm965, %v3531, 0.0
        %3541 = vadd.xlane.f32.xlu0 %v3540
        %v3542 = vpop.xlane.xlu0 %3541
        %v3543 = vsel %vm965, %v3533, 0.0
        %3544 = vadd.xlane.f32.xlu0 %v3543
        %v3545 = vpop.xlane.xlu0 %3544
        %v3546 = vrcp.pop %v3536
        %v3547 = vrcp.pop %v3539
        %v3548 = vrcp.pop %v3542
        %v3549 = vrcp.pop %v3545
        %v3550 = vmul.f32 %v3527, %v3546
        %v3551 = vmul.f32 %v3529, %v3547
        %v3552 = vmul.f32 %v3531, %v3548
        %v3553 = vmul.f32 %v3533, %v3549
        %3554 = vrot.lane.b32.xlu0 %v3417, 64
        %v3555 = vpop.permute.xlu0 %3554
        %3556 = vrot.lane.b32.xlu0 %v3420, 64
        %v3557 = vpop.permute.xlu0 %3556
        %v3561 = vsel %vm965, %v3550, 0
        %v3564 = vsel %vm965, %v3551, 0
        %3566 = vmatpush.msra.mxu0 0.0
        %3567 = vmatpush.msra.mxu0 0.0
        %3568 = vmatpush.msra.mxu0 0.0
        %3569 = vmatpush.msra.mxu0 0.0
        %3570 = vmatpush.msra.mxu0 0.0
        %3571 = vmatpush.msra.mxu0 0.0
        %3572 = vmatpush.msra.mxu0 0.0
        %3573 = vmatpush.msra.mxu0 0.0
        %3574 = vmatpush.msra.mxu0 0.0
        %3575 = vmatpush.msra.mxu0 0.0
        %3576 = vmatpush.msra.mxu0 0.0
        %3577 = vmatpush.msra.mxu0 0.0
        %3578 = vmatpush.msra.mxu0 0.0
        %3579 = vmatpush.msra.mxu0 0.0
        %3580 = vmatpush.msra.mxu0 %v3557
        %3581 = vmatpush.msra.mxu0 %v3555
        %3582 = vmatmul.f32.gmra.mxu0 %v3561
        %v3583 = vpop.f32.mrf.mxu0
        %v3584 = vadd.f32 0.0, %v3583
        %3585 = vmatmul.f32.gmra.mxu0 %v3564
        %v3586 = vpop.f32.mrf.mxu0
        %v3587 = vadd.f32 0.0, %v3586
        %3588 = vdwg.mxu0
        %3589 = vrot.lane.b32.xlu0 %v3423, 64
        %v3590 = vpop.permute.xlu0 %3589
        %3591 = vrot.lane.b32.xlu0 %v3426, 64
        %v3592 = vpop.permute.xlu0 %3591
        %v3596 = vsel %vm965, %v3552, 0
        %v3599 = vsel %vm965, %v3553, 0
        %3601 = vmatpush.msra.mxu0 0.0
        %3602 = vmatpush.msra.mxu0 0.0
        %3603 = vmatpush.msra.mxu0 0.0
        %3604 = vmatpush.msra.mxu0 0.0
        %3605 = vmatpush.msra.mxu0 0.0
        %3606 = vmatpush.msra.mxu0 0.0
        %3607 = vmatpush.msra.mxu0 0.0
        %3608 = vmatpush.msra.mxu0 0.0
        %3609 = vmatpush.msra.mxu0 0.0
        %3610 = vmatpush.msra.mxu0 0.0
        %3611 = vmatpush.msra.mxu0 0.0
        %3612 = vmatpush.msra.mxu0 0.0
        %3613 = vmatpush.msra.mxu0 0.0
        %3614 = vmatpush.msra.mxu0 0.0
        %3615 = vmatpush.msra.mxu0 %v3592
        %3616 = vmatpush.msra.mxu0 %v3590
        %3617 = vmatmul.f32.gmra.mxu0 %v3596
        %v3618 = vpop.f32.mrf.mxu0
        %v3619 = vadd.f32 0.0, %v3618
        %3620 = vmatmul.f32.gmra.mxu0 %v3599
        %v3621 = vpop.f32.mrf.mxu0
        %v3622 = vadd.f32 0.0, %v3621
        %3623 = vdwg.mxu0
        %3624 = vrot.lane.b32.xlu0 %v3417, 120
        %v3625 = vpop.permute.xlu0 %3624
        %3626 = vrot.lane.b32.xlu0 %v3420, 120
        %v3627 = vpop.permute.xlu0 %3626
        %3628 = vrot.lane.b32.xlu0 %v3417, 88
        %v3629 = vpop.permute.xlu0 %3628
        %3630 = vrot.lane.b32.xlu0 %v3420, 88
        %v3631 = vpop.permute.xlu0 %3630
        %v3632 = vsel %vm888, %v3625, 0
        %v3634 = vsel %vm888, %v3627, 0
        %v3636 = vsel %vm888, %v3629, 0
        %v3638 = vsel %vm888, %v3631, 0
        %3640 = vmatpush.xpose.msra.mxu0 0.0
        %3641 = vmatpush.xpose.msra.mxu0 0.0
        %3642 = vmatpush.xpose.msra.mxu0 0.0
        %3643 = vmatpush.xpose.msra.mxu0 0.0
        %3644 = vmatpush.xpose.msra.mxu0 0.0
        %3645 = vmatpush.xpose.msra.mxu0 0.0
        %3646 = vmatpush.xpose.msra.mxu0 0.0
        %3647 = vmatpush.xpose.msra.mxu0 0.0
        %3648 = vmatpush.xpose.msra.mxu0 0.0
        %3649 = vmatpush.xpose.msra.mxu0 0.0
        %3650 = vmatpush.xpose.msra.mxu0 0.0
        %3651 = vmatpush.xpose.msra.mxu0 0.0
        %3652 = vmatpush.xpose.msra.mxu0 0.0
        %3653 = vmatpush.xpose.msra.mxu0 0.0
        %3654 = vmatpush.xpose.msra.mxu0 %v3638
        %3655 = vmatpush.xpose.msra.mxu0 %v3636
        %3656 = vmatmul.f32.gmra.mxu0 %v3632
        %v3657 = vpop.f32.mrf.mxu0
        %v3658 = vadd.f32 0.0, %v3657
        %3659 = vmatmul.f32.gmra.mxu0 %v3634
        %v3660 = vpop.f32.mrf.mxu0
        %v3661 = vadd.f32 0.0, %v3660
        %3662 = vdwg.mxu0
        %3663 = vrot.lane.b32.xlu0 %v3423, 120
        %v3664 = vpop.permute.xlu0 %3663
        %3665 = vrot.lane.b32.xlu0 %v3426, 120
        %v3666 = vpop.permute.xlu0 %3665
        %3667 = vrot.lane.b32.xlu0 %v3423, 88
        %v3668 = vpop.permute.xlu0 %3667
        %3669 = vrot.lane.b32.xlu0 %v3426, 88
        %v3670 = vpop.permute.xlu0 %3669
        %v3671 = vsel %vm888, %v3664, 0
        %v3673 = vsel %vm888, %v3666, 0
        %v3675 = vsel %vm888, %v3668, 0
        %v3677 = vsel %vm888, %v3670, 0
        %3679 = vmatpush.xpose.msra.mxu0 0.0
        %3680 = vmatpush.xpose.msra.mxu0 0.0
        %3681 = vmatpush.xpose.msra.mxu0 0.0
        %3682 = vmatpush.xpose.msra.mxu0 0.0
        %3683 = vmatpush.xpose.msra.mxu0 0.0
        %3684 = vmatpush.xpose.msra.mxu0 0.0
        %3685 = vmatpush.xpose.msra.mxu0 0.0
        %3686 = vmatpush.xpose.msra.mxu0 0.0
        %3687 = vmatpush.xpose.msra.mxu0 0.0
        %3688 = vmatpush.xpose.msra.mxu0 0.0
        %3689 = vmatpush.xpose.msra.mxu0 0.0
        %3690 = vmatpush.xpose.msra.mxu0 0.0
        %3691 = vmatpush.xpose.msra.mxu0 0.0
        %3692 = vmatpush.xpose.msra.mxu0 0.0
        %3693 = vmatpush.xpose.msra.mxu0 %v3677
        %3694 = vmatpush.xpose.msra.mxu0 %v3675
        %3695 = vmatmul.f32.gmra.mxu0 %v3671
        %v3696 = vpop.f32.mrf.mxu0
        %v3697 = vadd.f32 0.0, %v3696
        %3698 = vmatmul.f32.gmra.mxu0 %v3673
        %v3699 = vpop.f32.mrf.mxu0
        %v3700 = vadd.f32 0.0, %v3699
        %3701 = vdwg.mxu0
        %v3702 = vmul.f32 %v3658, 0.35355338
        %v3703 = vmul.f32 %v3661, 0.35355338
        %v3704 = vmul.f32 %v3697, 0.35355338
        %v3705 = vmul.f32 %v3700, 0.35355338
        %v3706 = vadd.f32 %v3702, %v831
        %v3707 = vadd.f32 %v3703, %v831
        %v3708 = vadd.f32 %v3704, %v831
        %v3709 = vadd.f32 %v3705, %v831
        %v3710 = vsel %vm965, %v3706, -inf
        %3711 = vmax.xlane.f32.xlu0 %v3710
        %v3712 = vpop.xlane.xlu0 %3711
        %v3713 = vsel %vm965, %v3707, -inf
        %3714 = vmax.xlane.f32.xlu0 %v3713
        %v3715 = vpop.xlane.xlu0 %3714
        %v3716 = vsel %vm965, %v3708, -inf
        %3717 = vmax.xlane.f32.xlu0 %v3716
        %v3718 = vpop.xlane.xlu0 %3717
        %v3719 = vsel %vm965, %v3709, -inf
        %3720 = vmax.xlane.f32.xlu0 %v3719
        %v3721 = vpop.xlane.xlu0 %3720
        %v3722 = vsub.f32 %v3706, %v3712
        %v3723 = vsub.f32 %v3707, %v3715
        %v3724 = vsub.f32 %v3708, %v3718
        %v3725 = vsub.f32 %v3709, %v3721
        %v3726 = vmul.f32 %v3722, 1.442695
        %v3727 = vpow.pop %v3726
        %v3728 = vmul.f32 %v3723, 1.442695
        %v3729 = vpow.pop %v3728
        %v3730 = vmul.f32 %v3724, 1.442695
        %v3731 = vpow.pop %v3730
        %v3732 = vmul.f32 %v3725, 1.442695
        %v3733 = vpow.pop %v3732
        %v3734 = vsel %vm965, %v3727, 0.0
        %3735 = vadd.xlane.f32.xlu0 %v3734
        %v3736 = vpop.xlane.xlu0 %3735
        %v3737 = vsel %vm965, %v3729, 0.0
        %3738 = vadd.xlane.f32.xlu0 %v3737
        %v3739 = vpop.xlane.xlu0 %3738
        %v3740 = vsel %vm965, %v3731, 0.0
        %3741 = vadd.xlane.f32.xlu0 %v3740
        %v3742 = vpop.xlane.xlu0 %3741
        %v3743 = vsel %vm965, %v3733, 0.0
        %3744 = vadd.xlane.f32.xlu0 %v3743
        %v3745 = vpop.xlane.xlu0 %3744
        %v3746 = vrcp.pop %v3736
        %v3747 = vrcp.pop %v3739
        %v3748 = vrcp.pop %v3742
        %v3749 = vrcp.pop %v3745
        %v3750 = vmul.f32 %v3727, %v3746
        %v3751 = vmul.f32 %v3729, %v3747
        %v3752 = vmul.f32 %v3731, %v3748
        %v3753 = vmul.f32 %v3733, %v3749
        %3754 = vrot.lane.b32.xlu0 %v3417, 56
        %v3755 = vpop.permute.xlu0 %3754
        %3756 = vrot.lane.b32.xlu0 %v3420, 56
        %v3757 = vpop.permute.xlu0 %3756
        %v3761 = vsel %vm965, %v3750, 0
        %v3764 = vsel %vm965, %v3751, 0
        %3766 = vmatpush.msra.mxu0 0.0
        %3767 = vmatpush.msra.mxu0 0.0
        %3768 = vmatpush.msra.mxu0 0.0
        %3769 = vmatpush.msra.mxu0 0.0
        %3770 = vmatpush.msra.mxu0 0.0
        %3771 = vmatpush.msra.mxu0 0.0
        %3772 = vmatpush.msra.mxu0 0.0
        %3773 = vmatpush.msra.mxu0 0.0
        %3774 = vmatpush.msra.mxu0 0.0
        %3775 = vmatpush.msra.mxu0 0.0
        %3776 = vmatpush.msra.mxu0 0.0
        %3777 = vmatpush.msra.mxu0 0.0
        %3778 = vmatpush.msra.mxu0 0.0
        %3779 = vmatpush.msra.mxu0 0.0
        %3780 = vmatpush.msra.mxu0 %v3757
        %3781 = vmatpush.msra.mxu0 %v3755
        %3782 = vmatmul.f32.gmra.mxu0 %v3761
        %v3783 = vpop.f32.mrf.mxu0
        %v3784 = vadd.f32 0.0, %v3783
        %3785 = vmatmul.f32.gmra.mxu0 %v3764
        %v3786 = vpop.f32.mrf.mxu0
        %v3787 = vadd.f32 0.0, %v3786
        %3788 = vdwg.mxu0
        %3789 = vrot.lane.b32.xlu0 %v3423, 56
        %v3790 = vpop.permute.xlu0 %3789
        %3791 = vrot.lane.b32.xlu0 %v3426, 56
        %v3792 = vpop.permute.xlu0 %3791
        %v3796 = vsel %vm965, %v3752, 0
        %v3799 = vsel %vm965, %v3753, 0
        %3801 = vmatpush.msra.mxu0 0.0
        %3802 = vmatpush.msra.mxu0 0.0
        %3803 = vmatpush.msra.mxu0 0.0
        %3804 = vmatpush.msra.mxu0 0.0
        %3805 = vmatpush.msra.mxu0 0.0
        %3806 = vmatpush.msra.mxu0 0.0
        %3807 = vmatpush.msra.mxu0 0.0
        %3808 = vmatpush.msra.mxu0 0.0
        %3809 = vmatpush.msra.mxu0 0.0
        %3810 = vmatpush.msra.mxu0 0.0
        %3811 = vmatpush.msra.mxu0 0.0
        %3812 = vmatpush.msra.mxu0 0.0
        %3813 = vmatpush.msra.mxu0 0.0
        %3814 = vmatpush.msra.mxu0 0.0
        %3815 = vmatpush.msra.mxu0 %v3792
        %3816 = vmatpush.msra.mxu0 %v3790
        %3817 = vmatmul.f32.gmra.mxu0 %v3796
        %v3818 = vpop.f32.mrf.mxu0
        %v3819 = vadd.f32 0.0, %v3818
        %3820 = vmatmul.f32.gmra.mxu0 %v3799
        %v3821 = vpop.f32.mrf.mxu0
        %v3822 = vadd.f32 0.0, %v3821
        %3823 = vdwg.mxu0
        %3824 = vrot.lane.b32.xlu0 %v3417, 112
        %v3825 = vpop.permute.xlu0 %3824
        %3826 = vrot.lane.b32.xlu0 %v3420, 112
        %v3827 = vpop.permute.xlu0 %3826
        %3828 = vrot.lane.b32.xlu0 %v3417, 80
        %v3829 = vpop.permute.xlu0 %3828
        %3830 = vrot.lane.b32.xlu0 %v3420, 80
        %v3831 = vpop.permute.xlu0 %3830
        %v3832 = vsel %vm888, %v3825, 0
        %v3834 = vsel %vm888, %v3827, 0
        %v3836 = vsel %vm888, %v3829, 0
        %v3838 = vsel %vm888, %v3831, 0
        %3840 = vmatpush.xpose.msra.mxu0 0.0
        %3841 = vmatpush.xpose.msra.mxu0 0.0
        %3842 = vmatpush.xpose.msra.mxu0 0.0
        %3843 = vmatpush.xpose.msra.mxu0 0.0
        %3844 = vmatpush.xpose.msra.mxu0 0.0
        %3845 = vmatpush.xpose.msra.mxu0 0.0
        %3846 = vmatpush.xpose.msra.mxu0 0.0
        %3847 = vmatpush.xpose.msra.mxu0 0.0
        %3848 = vmatpush.xpose.msra.mxu0 0.0
        %3849 = vmatpush.xpose.msra.mxu0 0.0
        %3850 = vmatpush.xpose.msra.mxu0 0.0
        %3851 = vmatpush.xpose.msra.mxu0 0.0
        %3852 = vmatpush.xpose.msra.mxu0 0.0
        %3853 = vmatpush.xpose.msra.mxu0 0.0
        %3854 = vmatpush.xpose.msra.mxu0 %v3838
        %3855 = vmatpush.xpose.msra.mxu0 %v3836
        %3856 = vmatmul.f32.gmra.mxu0 %v3832
        %v3857 = vpop.f32.mrf.mxu0
        %v3858 = vadd.f32 0.0, %v3857
        %3859 = vmatmul.f32.gmra.mxu0 %v3834
        %v3860 = vpop.f32.mrf.mxu0
        %v3861 = vadd.f32 0.0, %v3860
        %3862 = vdwg.mxu0
        %3863 = vrot.lane.b32.xlu0 %v3423, 112
        %v3864 = vpop.permute.xlu0 %3863
        %3865 = vrot.lane.b32.xlu0 %v3426, 112
        %v3866 = vpop.permute.xlu0 %3865
        %3867 = vrot.lane.b32.xlu0 %v3423, 80
        %v3868 = vpop.permute.xlu0 %3867
        %3869 = vrot.lane.b32.xlu0 %v3426, 80
        %v3870 = vpop.permute.xlu0 %3869
        %v3871 = vsel %vm888, %v3864, 0
        %v3873 = vsel %vm888, %v3866, 0
        %v3875 = vsel %vm888, %v3868, 0
        %v3877 = vsel %vm888, %v3870, 0
        %3879 = vmatpush.xpose.msra.mxu0 0.0
        %3880 = vmatpush.xpose.msra.mxu0 0.0
        %3881 = vmatpush.xpose.msra.mxu0 0.0
        %3882 = vmatpush.xpose.msra.mxu0 0.0
        %3883 = vmatpush.xpose.msra.mxu0 0.0
        %3884 = vmatpush.xpose.msra.mxu0 0.0
        %3885 = vmatpush.xpose.msra.mxu0 0.0
        %3886 = vmatpush.xpose.msra.mxu0 0.0
        %3887 = vmatpush.xpose.msra.mxu0 0.0
        %3888 = vmatpush.xpose.msra.mxu0 0.0
        %3889 = vmatpush.xpose.msra.mxu0 0.0
        %3890 = vmatpush.xpose.msra.mxu0 0.0
        %3891 = vmatpush.xpose.msra.mxu0 0.0
        %3892 = vmatpush.xpose.msra.mxu0 0.0
        %3893 = vmatpush.xpose.msra.mxu0 %v3877
        %3894 = vmatpush.xpose.msra.mxu0 %v3875
        %3895 = vmatmul.f32.gmra.mxu0 %v3871
        %v3896 = vpop.f32.mrf.mxu0
        %v3897 = vadd.f32 0.0, %v3896
        %3898 = vmatmul.f32.gmra.mxu0 %v3873
        %v3899 = vpop.f32.mrf.mxu0
        %v3900 = vadd.f32 0.0, %v3899
        %3901 = vdwg.mxu0
        %v3902 = vmul.f32 %v3858, 0.35355338
        %v3903 = vmul.f32 %v3861, 0.35355338
        %v3904 = vmul.f32 %v3897, 0.35355338
        %v3905 = vmul.f32 %v3900, 0.35355338
        %v3906 = vadd.f32 %v3902, %v831
        %v3907 = vadd.f32 %v3903, %v831
        %v3908 = vadd.f32 %v3904, %v831
        %v3909 = vadd.f32 %v3905, %v831
        %v3910 = vsel %vm965, %v3906, -inf
        %3911 = vmax.xlane.f32.xlu0 %v3910
        %v3912 = vpop.xlane.xlu0 %3911
        %v3913 = vsel %vm965, %v3907, -inf
        %3914 = vmax.xlane.f32.xlu0 %v3913
        %v3915 = vpop.xlane.xlu0 %3914
        %v3916 = vsel %vm965, %v3908, -inf
        %3917 = vmax.xlane.f32.xlu0 %v3916
        %v3918 = vpop.xlane.xlu0 %3917
        %v3919 = vsel %vm965, %v3909, -inf
        %3920 = vmax.xlane.f32.xlu0 %v3919
        %v3921 = vpop.xlane.xlu0 %3920
        %v3922 = vsub.f32 %v3906, %v3912
        %v3923 = vsub.f32 %v3907, %v3915
        %v3924 = vsub.f32 %v3908, %v3918
        %v3925 = vsub.f32 %v3909, %v3921
        %v3926 = vmul.f32 %v3922, 1.442695
        %v3927 = vpow.pop %v3926
        %v3928 = vmul.f32 %v3923, 1.442695
        %v3929 = vpow.pop %v3928
        %v3930 = vmul.f32 %v3924, 1.442695
        %v3931 = vpow.pop %v3930
        %v3932 = vmul.f32 %v3925, 1.442695
        %v3933 = vpow.pop %v3932
        %v3934 = vsel %vm965, %v3927, 0.0
        %3935 = vadd.xlane.f32.xlu0 %v3934
        %v3936 = vpop.xlane.xlu0 %3935
        %v3937 = vsel %vm965, %v3929, 0.0
        %3938 = vadd.xlane.f32.xlu0 %v3937
        %v3939 = vpop.xlane.xlu0 %3938
        %v3940 = vsel %vm965, %v3931, 0.0
        %3941 = vadd.xlane.f32.xlu0 %v3940
        %v3942 = vpop.xlane.xlu0 %3941
        %v3943 = vsel %vm965, %v3933, 0.0
        %3944 = vadd.xlane.f32.xlu0 %v3943
        %v3945 = vpop.xlane.xlu0 %3944
        %v3946 = vrcp.pop %v3936
        %v3947 = vrcp.pop %v3939
        %v3948 = vrcp.pop %v3942
        %v3949 = vrcp.pop %v3945
        %v3950 = vmul.f32 %v3927, %v3946
        %v3951 = vmul.f32 %v3929, %v3947
        %v3952 = vmul.f32 %v3931, %v3948
        %v3953 = vmul.f32 %v3933, %v3949
        %3954 = vrot.lane.b32.xlu0 %v3417, 48
        %v3955 = vpop.permute.xlu0 %3954
        %3956 = vrot.lane.b32.xlu0 %v3420, 48
        %v3957 = vpop.permute.xlu0 %3956
        %v3961 = vsel %vm965, %v3950, 0
        %v3964 = vsel %vm965, %v3951, 0
        %3966 = vmatpush.msra.mxu0 0.0
        %3967 = vmatpush.msra.mxu0 0.0
        %3968 = vmatpush.msra.mxu0 0.0
        %3969 = vmatpush.msra.mxu0 0.0
        %3970 = vmatpush.msra.mxu0 0.0
        %3971 = vmatpush.msra.mxu0 0.0
        %3972 = vmatpush.msra.mxu0 0.0
        %3973 = vmatpush.msra.mxu0 0.0
        %3974 = vmatpush.msra.mxu0 0.0
        %3975 = vmatpush.msra.mxu0 0.0
        %3976 = vmatpush.msra.mxu0 0.0
        %3977 = vmatpush.msra.mxu0 0.0
        %3978 = vmatpush.msra.mxu0 0.0
        %3979 = vmatpush.msra.mxu0 0.0
        %3980 = vmatpush.msra.mxu0 %v3957
        %3981 = vmatpush.msra.mxu0 %v3955
        %3982 = vmatmul.f32.gmra.mxu0 %v3961
        %v3983 = vpop.f32.mrf.mxu0
        %v3984 = vadd.f32 0.0, %v3983
        %3985 = vmatmul.f32.gmra.mxu0 %v3964
        %v3986 = vpop.f32.mrf.mxu0
        %v3987 = vadd.f32 0.0, %v3986
        %3988 = vdwg.mxu0
        %3989 = vrot.lane.b32.xlu0 %v3423, 48
        %v3990 = vpop.permute.xlu0 %3989
        %3991 = vrot.lane.b32.xlu0 %v3426, 48
        %v3992 = vpop.permute.xlu0 %3991
        %v3996 = vsel %vm965, %v3952, 0
        %v3999 = vsel %vm965, %v3953, 0
        %4001 = vmatpush.msra.mxu0 0.0
        %4002 = vmatpush.msra.mxu0 0.0
        %4003 = vmatpush.msra.mxu0 0.0
        %4004 = vmatpush.msra.mxu0 0.0
        %4005 = vmatpush.msra.mxu0 0.0
        %4006 = vmatpush.msra.mxu0 0.0
        %4007 = vmatpush.msra.mxu0 0.0
        %4008 = vmatpush.msra.mxu0 0.0
        %4009 = vmatpush.msra.mxu0 0.0
        %4010 = vmatpush.msra.mxu0 0.0
        %4011 = vmatpush.msra.mxu0 0.0
        %4012 = vmatpush.msra.mxu0 0.0
        %4013 = vmatpush.msra.mxu0 0.0
        %4014 = vmatpush.msra.mxu0 0.0
        %4015 = vmatpush.msra.mxu0 %v3992
        %4016 = vmatpush.msra.mxu0 %v3990
        %4017 = vmatmul.f32.gmra.mxu0 %v3996
        %v4018 = vpop.f32.mrf.mxu0
        %v4019 = vadd.f32 0.0, %v4018
        %4020 = vmatmul.f32.gmra.mxu0 %v3999
        %v4021 = vpop.f32.mrf.mxu0
        %v4022 = vadd.f32 0.0, %v4021
        %4023 = vdwg.mxu0
        %4024 = vrot.lane.b32.xlu0 %v3417, 104
        %v4025 = vpop.permute.xlu0 %4024
        %4026 = vrot.lane.b32.xlu0 %v3420, 104
        %v4027 = vpop.permute.xlu0 %4026
        %4028 = vrot.lane.b32.xlu0 %v3417, 72
        %v4029 = vpop.permute.xlu0 %4028
        %4030 = vrot.lane.b32.xlu0 %v3420, 72
        %v4031 = vpop.permute.xlu0 %4030
        %v4032 = vsel %vm888, %v4025, 0
        %v4034 = vsel %vm888, %v4027, 0
        %v4036 = vsel %vm888, %v4029, 0
        %v4038 = vsel %vm888, %v4031, 0
        %4040 = vmatpush.xpose.msra.mxu0 0.0
        %4041 = vmatpush.xpose.msra.mxu0 0.0
        %4042 = vmatpush.xpose.msra.mxu0 0.0
        %4043 = vmatpush.xpose.msra.mxu0 0.0
        %4044 = vmatpush.xpose.msra.mxu0 0.0
        %4045 = vmatpush.xpose.msra.mxu0 0.0
        %4046 = vmatpush.xpose.msra.mxu0 0.0
        %4047 = vmatpush.xpose.msra.mxu0 0.0
        %4048 = vmatpush.xpose.msra.mxu0 0.0
        %4049 = vmatpush.xpose.msra.mxu0 0.0
        %4050 = vmatpush.xpose.msra.mxu0 0.0
        %4051 = vmatpush.xpose.msra.mxu0 0.0
        %4052 = vmatpush.xpose.msra.mxu0 0.0
        %4053 = vmatpush.xpose.msra.mxu0 0.0
        %4054 = vmatpush.xpose.msra.mxu0 %v4038
        %4055 = vmatpush.xpose.msra.mxu0 %v4036
        %4056 = vmatmul.f32.gmra.mxu0 %v4032
        %v4057 = vpop.f32.mrf.mxu0
        %v4058 = vadd.f32 0.0, %v4057
        %4059 = vmatmul.f32.gmra.mxu0 %v4034
        %v4060 = vpop.f32.mrf.mxu0
        %v4061 = vadd.f32 0.0, %v4060
        %4062 = vdwg.mxu0
        %4063 = vrot.lane.b32.xlu0 %v3423, 104
        %v4064 = vpop.permute.xlu0 %4063
        %4065 = vrot.lane.b32.xlu0 %v3426, 104
        %v4066 = vpop.permute.xlu0 %4065
        %4067 = vrot.lane.b32.xlu0 %v3423, 72
        %v4068 = vpop.permute.xlu0 %4067
        %4069 = vrot.lane.b32.xlu0 %v3426, 72
        %v4070 = vpop.permute.xlu0 %4069
        %v4071 = vsel %vm888, %v4064, 0
        %v4073 = vsel %vm888, %v4066, 0
        %v4075 = vsel %vm888, %v4068, 0
        %v4077 = vsel %vm888, %v4070, 0
        %4079 = vmatpush.xpose.msra.mxu0 0.0
        %4080 = vmatpush.xpose.msra.mxu0 0.0
        %4081 = vmatpush.xpose.msra.mxu0 0.0
        %4082 = vmatpush.xpose.msra.mxu0 0.0
        %4083 = vmatpush.xpose.msra.mxu0 0.0
        %4084 = vmatpush.xpose.msra.mxu0 0.0
        %4085 = vmatpush.xpose.msra.mxu0 0.0
        %4086 = vmatpush.xpose.msra.mxu0 0.0
        %4087 = vmatpush.xpose.msra.mxu0 0.0
        %4088 = vmatpush.xpose.msra.mxu0 0.0
        %4089 = vmatpush.xpose.msra.mxu0 0.0
        %4090 = vmatpush.xpose.msra.mxu0 0.0
        %4091 = vmatpush.xpose.msra.mxu0 0.0
        %4092 = vmatpush.xpose.msra.mxu0 0.0
        %4093 = vmatpush.xpose.msra.mxu0 %v4077
        %4094 = vmatpush.xpose.msra.mxu0 %v4075
        %4095 = vmatmul.f32.gmra.mxu0 %v4071
        %v4096 = vpop.f32.mrf.mxu0
        %v4097 = vadd.f32 0.0, %v4096
        %4098 = vmatmul.f32.gmra.mxu0 %v4073
        %v4099 = vpop.f32.mrf.mxu0
        %v4100 = vadd.f32 0.0, %v4099
        %4101 = vdwg.mxu0
        %v4102 = vmul.f32 %v4058, 0.35355338
        %v4103 = vmul.f32 %v4061, 0.35355338
        %v4104 = vmul.f32 %v4097, 0.35355338
        %v4105 = vmul.f32 %v4100, 0.35355338
        %v4106 = vadd.f32 %v4102, %v831
        %v4107 = vadd.f32 %v4103, %v831
        %v4108 = vadd.f32 %v4104, %v831
        %v4109 = vadd.f32 %v4105, %v831
        %v4110 = vsel %vm965, %v4106, -inf
        %4111 = vmax.xlane.f32.xlu0 %v4110
        %v4112 = vpop.xlane.xlu0 %4111
        %v4113 = vsel %vm965, %v4107, -inf
        %4114 = vmax.xlane.f32.xlu0 %v4113
        %v4115 = vpop.xlane.xlu0 %4114
        %v4116 = vsel %vm965, %v4108, -inf
        %4117 = vmax.xlane.f32.xlu0 %v4116
        %v4118 = vpop.xlane.xlu0 %4117
        %v4119 = vsel %vm965, %v4109, -inf
        %4120 = vmax.xlane.f32.xlu0 %v4119
        %v4121 = vpop.xlane.xlu0 %4120
        %v4122 = vsub.f32 %v4106, %v4112
        %v4123 = vsub.f32 %v4107, %v4115
        %v4124 = vsub.f32 %v4108, %v4118
        %v4125 = vsub.f32 %v4109, %v4121
        %v4126 = vmul.f32 %v4122, 1.442695
        %v4127 = vpow.pop %v4126
        %v4128 = vmul.f32 %v4123, 1.442695
        %v4129 = vpow.pop %v4128
        %v4130 = vmul.f32 %v4124, 1.442695
        %v4131 = vpow.pop %v4130
        %v4132 = vmul.f32 %v4125, 1.442695
        %v4133 = vpow.pop %v4132
        %v4134 = vsel %vm965, %v4127, 0.0
        %4135 = vadd.xlane.f32.xlu0 %v4134
        %v4136 = vpop.xlane.xlu0 %4135
        %v4137 = vsel %vm965, %v4129, 0.0
        %4138 = vadd.xlane.f32.xlu0 %v4137
        %v4139 = vpop.xlane.xlu0 %4138
        %v4140 = vsel %vm965, %v4131, 0.0
        %4141 = vadd.xlane.f32.xlu0 %v4140
        %v4142 = vpop.xlane.xlu0 %4141
        %v4143 = vsel %vm965, %v4133, 0.0
        %4144 = vadd.xlane.f32.xlu0 %v4143
        %v4145 = vpop.xlane.xlu0 %4144
        %v4146 = vrcp.pop %v4136
        %v4147 = vrcp.pop %v4139
        %v4148 = vrcp.pop %v4142
        %v4149 = vrcp.pop %v4145
        %v4150 = vmul.f32 %v4127, %v4146
        %v4151 = vmul.f32 %v4129, %v4147
        %v4152 = vmul.f32 %v4131, %v4148
        %v4153 = vmul.f32 %v4133, %v4149
        %4154 = vrot.lane.b32.xlu0 %v3417, 40
        %v4155 = vpop.permute.xlu0 %4154
        %4156 = vrot.lane.b32.xlu0 %v3420, 40
        %v4157 = vpop.permute.xlu0 %4156
        %v4161 = vsel %vm965, %v4150, 0
        %v4164 = vsel %vm965, %v4151, 0
        %4166 = vmatpush.msra.mxu0 0.0
        %4167 = vmatpush.msra.mxu0 0.0
        %4168 = vmatpush.msra.mxu0 0.0
        %4169 = vmatpush.msra.mxu0 0.0
        %4170 = vmatpush.msra.mxu0 0.0
        %4171 = vmatpush.msra.mxu0 0.0
        %4172 = vmatpush.msra.mxu0 0.0
        %4173 = vmatpush.msra.mxu0 0.0
        %4174 = vmatpush.msra.mxu0 0.0
        %4175 = vmatpush.msra.mxu0 0.0
        %4176 = vmatpush.msra.mxu0 0.0
        %4177 = vmatpush.msra.mxu0 0.0
        %4178 = vmatpush.msra.mxu0 0.0
        %4179 = vmatpush.msra.mxu0 0.0
        %4180 = vmatpush.msra.mxu0 %v4157
        %4181 = vmatpush.msra.mxu0 %v4155
        %4182 = vmatmul.f32.gmra.mxu0 %v4161
        %v4183 = vpop.f32.mrf.mxu0
        %v4184 = vadd.f32 0.0, %v4183
        %4185 = vmatmul.f32.gmra.mxu0 %v4164
        %v4186 = vpop.f32.mrf.mxu0
        %v4187 = vadd.f32 0.0, %v4186
        %4188 = vdwg.mxu0
        %4189 = vrot.lane.b32.xlu0 %v3423, 40
        %v4190 = vpop.permute.xlu0 %4189
        %4191 = vrot.lane.b32.xlu0 %v3426, 40
        %v4192 = vpop.permute.xlu0 %4191
        %v4196 = vsel %vm965, %v4152, 0
        %v4199 = vsel %vm965, %v4153, 0
        %4201 = vmatpush.msra.mxu0 0.0
        %4202 = vmatpush.msra.mxu0 0.0
        %4203 = vmatpush.msra.mxu0 0.0
        %4204 = vmatpush.msra.mxu0 0.0
        %4205 = vmatpush.msra.mxu0 0.0
        %4206 = vmatpush.msra.mxu0 0.0
        %4207 = vmatpush.msra.mxu0 0.0
        %4208 = vmatpush.msra.mxu0 0.0
        %4209 = vmatpush.msra.mxu0 0.0
        %4210 = vmatpush.msra.mxu0 0.0
        %4211 = vmatpush.msra.mxu0 0.0
        %4212 = vmatpush.msra.mxu0 0.0
        %4213 = vmatpush.msra.mxu0 0.0
        %4214 = vmatpush.msra.mxu0 0.0
        %4215 = vmatpush.msra.mxu0 %v4192
        %4216 = vmatpush.msra.mxu0 %v4190
        %4217 = vmatmul.f32.gmra.mxu0 %v4196
        %v4218 = vpop.f32.mrf.mxu0
        %v4219 = vadd.f32 0.0, %v4218
        %4220 = vmatmul.f32.gmra.mxu0 %v4199
        %v4221 = vpop.f32.mrf.mxu0
        %v4222 = vadd.f32 0.0, %v4221
        %4223 = vdwg.mxu0
        %4228 = vrot.lane.b32.xlu0 %v3784, 8
        %v4229 = vpop.permute.xlu0 %4228
        %4230 = vrot.lane.b32.xlu0 %v3787, 8
        %v4231 = vpop.permute.xlu0 %4230
        %4232 = vrot.lane.b32.xlu0 %v3819, 8
        %v4233 = vpop.permute.xlu0 %4232
        %4234 = vrot.lane.b32.xlu0 %v3822, 8
        %v4235 = vpop.permute.xlu0 %4234
        %4244 = vrot.lane.b32.xlu0 %v3984, 16
        %v4245 = vpop.permute.xlu0 %4244
        %4246 = vrot.lane.b32.xlu0 %v3987, 16
        %v4247 = vpop.permute.xlu0 %4246
        %4248 = vrot.lane.b32.xlu0 %v4019, 16
        %v4249 = vpop.permute.xlu0 %4248
        %4250 = vrot.lane.b32.xlu0 %v4022, 16
        %v4251 = vpop.permute.xlu0 %4250
        %4260 = vrot.lane.b32.xlu0 %v4184, 24
        %v4261 = vpop.permute.xlu0 %4260
        %4262 = vrot.lane.b32.xlu0 %v4187, 24
        %v4263 = vpop.permute.xlu0 %4262
        %4264 = vrot.lane.b32.xlu0 %v4219, 24
        %v4265 = vpop.permute.xlu0 %4264
        %4266 = vrot.lane.b32.xlu0 %v4222, 24
        %v4267 = vpop.permute.xlu0 %4266
        %v4272 = vsel %vm888, %v3584, %v4229
        %v4273 = vsel %vm888, %v3587, %v4231
        %v4274 = vsel %vm888, %v3619, %v4233
        %v4275 = vsel %vm888, %v3622, %v4235
        %v4276 = vsel %vm965, %v4272, %v4245
        %v4277 = vsel %vm965, %v4273, %v4247
        %v4278 = vsel %vm965, %v4274, %v4249
        %v4279 = vsel %vm965, %v4275, %v4251
        %v4280 = vsel %vm1736, %v4276, %v4261
        %v4281 = vsel %vm1736, %v4277, %v4263
        %v4282 = vsel %vm1736, %v4278, %v4265
        %v4283 = vsel %vm1736, %v4279, %v4267
        %s4284 = scalar_lea.vmem %s726, 32
        %v4285 = vld [vmem:[%s4284] sm:$0xff]
        %v4286 = vld [vmem:[%s4284 + $0x8] sm:$0xff]
        %v4287 = vld [vmem:[%s4284 + $0x10] sm:$0xff]
        %v4288 = vld [vmem:[%s4284 + $0x18] sm:$0xff]
        %s4289 = scalar_lea.vmem %s730, 1
        %v4290 = vld [vmem:[%s4289] sm:$0x1]
        %v4292 = vperm.slane %v4290, 0
        %v4295 = vsel %vm840, %v4280, 0
        %v4298 = vsel %vm840, %v4281, 0
        %v4301 = vsel %vm840, %v4282, 0
        %v4304 = vsel %vm840, %v4283, 0
        %4306 = vmatpush.msra.mxu0 0.0
        %4307 = vmatpush.msra.mxu0 0.0
        %4308 = vmatpush.msra.mxu0 0.0
        %4309 = vmatpush.msra.mxu0 0.0
        %4310 = vmatpush.msra.mxu0 0.0
        %4311 = vmatpush.msra.mxu0 0.0
        %4312 = vmatpush.msra.mxu0 0.0
        %4313 = vmatpush.msra.mxu0 0.0
        %4314 = vmatpush.msra.mxu0 0.0
        %4315 = vmatpush.msra.mxu0 0.0
        %4316 = vmatpush.msra.mxu0 0.0
        %4317 = vmatpush.msra.mxu0 0.0
        %4318 = vmatpush.msra.mxu0 %v4288
        %4319 = vmatpush.msra.mxu0 %v4287
        %4320 = vmatpush.msra.mxu0 %v4286
        %4321 = vmatpush.msra.mxu0 %v4285
        %4322 = vmatmul.f32.gmra.mxu0 %v4295
        %v4323 = vpop.f32.mrf.mxu0
        %v4324 = vadd.f32 %v4292, %v4323
        %4325 = vmatmul.f32.gmra.mxu0 %v4298
        %v4326 = vpop.f32.mrf.mxu0
        %v4327 = vadd.f32 %v4292, %v4326
        %4328 = vmatmul.f32.gmra.mxu0 %v4301
        %v4329 = vpop.f32.mrf.mxu0
        %v4330 = vadd.f32 %v4292, %v4329
        %4331 = vmatmul.f32.gmra.mxu0 %v4304
        %v4332 = vpop.f32.mrf.mxu0
        %v4333 = vadd.f32 %v4292, %v4332
        %4334 = vdwg.mxu0
        %v4335 = vadd.f32 %v3373, %v4324
        %v4336 = vadd.f32 %v3374, %v4327
        %v4337 = vadd.f32 %v3375, %v4330
        %v4338 = vadd.f32 %v3376, %v4333
        %s4339 = scalar_lea.vmem %s734, 1
        %v4340 = vld [vmem:[%s4339] sm:$0x1]
        %s4341 = scalar_lea.vmem %s738, 1
        %v4342 = vld [vmem:[%s4341] sm:$0x1]
        %v4343 = vsel %vm840, %v4335, 0.0
        %4344 = vadd.xlane.f32.xlu0 %v4343
        %v4345 = vpop.xlane.xlu0 %4344
        %v4346 = vsel %vm840, %v4336, 0.0
        %4347 = vadd.xlane.f32.xlu0 %v4346
        %v4348 = vpop.xlane.xlu0 %4347
        %v4349 = vsel %vm840, %v4337, 0.0
        %4350 = vadd.xlane.f32.xlu0 %v4349
        %v4351 = vpop.xlane.xlu0 %4350
        %v4352 = vsel %vm840, %v4338, 0.0
        %4353 = vadd.xlane.f32.xlu0 %v4352
        %v4354 = vpop.xlane.xlu0 %4353
        %v4355 = vmul.f32 %v4345, %v1814
        %v4356 = vmul.f32 %v4348, %v1814
        %v4357 = vmul.f32 %v4351, %v1814
        %v4358 = vmul.f32 %v4354, %v1814
        %v4359 = vsub.f32 %v4335, %v4355
        %v4360 = vsub.f32 %v4336, %v4356
        %v4361 = vsub.f32 %v4337, %v4357
        %v4362 = vsub.f32 %v4338, %v4358
        %v4363 = vmul.f32 %v4359, %v4359
        %v4364 = vmul.f32 %v4360, %v4360
        %v4365 = vmul.f32 %v4361, %v4361
        %v4366 = vmul.f32 %v4362, %v4362
        %v4367 = vsel %vm840, %v4363, 0.0
        %4368 = vadd.xlane.f32.xlu0 %v4367
        %v4369 = vpop.xlane.xlu0 %4368
        %v4370 = vsel %vm840, %v4364, 0.0
        %4371 = vadd.xlane.f32.xlu0 %v4370
        %v4372 = vpop.xlane.xlu0 %4371
        %v4373 = vsel %vm840, %v4365, 0.0
        %4374 = vadd.xlane.f32.xlu0 %v4373
        %v4375 = vpop.xlane.xlu0 %4374
        %v4376 = vsel %vm840, %v4366, 0.0
        %4377 = vadd.xlane.f32.xlu0 %v4376
        %v4378 = vpop.xlane.xlu0 %4377
        %v4379 = vmul.f32 %v4369, %v1814
        %v4380 = vmul.f32 %v4372, %v1814
        %v4381 = vmul.f32 %v4375, %v1814
        %v4382 = vmul.f32 %v4378, %v1814
        %v4383 = vadd.f32 %v4379, 1e-05
        %v4384 = vadd.f32 %v4380, 1e-05
        %v4385 = vadd.f32 %v4381, 1e-05
        %v4386 = vadd.f32 %v4382, 1e-05
        %v4387 = vrsqrt.pop %v4383
        %v4388 = vmul.f32 %v4387, %v4383
        %v4389 = vmul.f32 %v4388, %v4387
        %v4390 = vmul.f32 0.5, %v4389
        %v4391 = vsub.f32 1.5, %v4390
        %v4392 = vmul.f32 %v4387, %v4391
        %vm4393 = vweird.f32 %v4383
        %vm4394 = vweird.f32 %v4387
        %vm4395 = vmor %vm4393, %vm4394
        %v4396 = vsel %vm4395, %v4387, %v4392
        %v4397 = vrsqrt.pop %v4384
        %v4398 = vmul.f32 %v4397, %v4384
        %v4399 = vmul.f32 %v4398, %v4397
        %v4400 = vmul.f32 0.5, %v4399
        %v4401 = vsub.f32 1.5, %v4400
        %v4402 = vmul.f32 %v4397, %v4401
        %vm4403 = vweird.f32 %v4384
        %vm4404 = vweird.f32 %v4397
        %vm4405 = vmor %vm4403, %vm4404
        %v4406 = vsel %vm4405, %v4397, %v4402
        %v4407 = vrsqrt.pop %v4385
        %v4408 = vmul.f32 %v4407, %v4385
        %v4409 = vmul.f32 %v4408, %v4407
        %v4410 = vmul.f32 0.5, %v4409
        %v4411 = vsub.f32 1.5, %v4410
        %v4412 = vmul.f32 %v4407, %v4411
        %vm4413 = vweird.f32 %v4385
        %vm4414 = vweird.f32 %v4407
        %vm4415 = vmor %vm4413, %vm4414
        %v4416 = vsel %vm4415, %v4407, %v4412
        %v4417 = vrsqrt.pop %v4386
        %v4418 = vmul.f32 %v4417, %v4386
        %v4419 = vmul.f32 %v4418, %v4417
        %v4420 = vmul.f32 0.5, %v4419
        %v4421 = vsub.f32 1.5, %v4420
        %v4422 = vmul.f32 %v4417, %v4421
        %vm4423 = vweird.f32 %v4386
        %vm4424 = vweird.f32 %v4417
        %vm4425 = vmor %vm4423, %vm4424
        %v4426 = vsel %vm4425, %v4417, %v4422
        %v4427 = vmul.f32 %v4359, %v4396
        %v4428 = vmul.f32 %v4360, %v4406
        %v4429 = vmul.f32 %v4361, %v4416
        %v4430 = vmul.f32 %v4362, %v4426
        %v4432 = vperm.slane %v4340, 0
        %v4434 = vmul.f32 %v4427, %v4432
        %v4435 = vmul.f32 %v4428, %v4432
        %v4436 = vmul.f32 %v4429, %v4432
        %v4437 = vmul.f32 %v4430, %v4432
        %v4439 = vperm.slane %v4342, 0
        %v4441 = vadd.f32 %v4434, %v4439
        %v4442 = vadd.f32 %v4435, %v4439
        %v4443 = vadd.f32 %v4436, %v4439
        %v4444 = vadd.f32 %v4437, %v4439
        %s4445 = scalar_lea.vmem %s743, 512
        %v4446 = vld [vmem:[%s4445] sm:$0xff]
        %v4447 = vld [vmem:[%s4445 + $0x8] sm:$0xff]
        %v4448 = vld [vmem:[%s4445 + $0x10] sm:$0xff]
        %v4449 = vld [vmem:[%s4445 + $0x18] sm:$0xff]
        %v4450 = vld [vmem:[%s4445 + $0x20] sm:$0xff]
        %v4451 = vld [vmem:[%s4445 + $0x28] sm:$0xff]
        %v4452 = vld [vmem:[%s4445 + $0x30] sm:$0xff]
        %v4453 = vld [vmem:[%s4445 + $0x38] sm:$0xff]
        %v4454 = vld [vmem:[%s4445 + $0x40] sm:$0xff]
        %v4455 = vld [vmem:[%s4445 + $0x48] sm:$0xff]
        %v4456 = vld [vmem:[%s4445 + $0x50] sm:$0xff]
        %v4457 = vld [vmem:[%s4445 + $0x58] sm:$0xff]
        %v4458 = vld [vmem:[%s4445 + $0x60] sm:$0xff]
        %v4459 = vld [vmem:[%s4445 + $0x68] sm:$0xff]
        %v4460 = vld [vmem:[%s4445 + $0x70] sm:$0xff]
        %v4461 = vld [vmem:[%s4445 + $0x78] sm:$0xff]
        %v4462 = vld [vmem:[%s4445 + $0x80] sm:$0xff]
        %v4463 = vld [vmem:[%s4445 + $0x88] sm:$0xff]
        %v4464 = vld [vmem:[%s4445 + $0x90] sm:$0xff]
        %v4465 = vld [vmem:[%s4445 + $0x98] sm:$0xff]
        %v4466 = vld [vmem:[%s4445 + $0xa0] sm:$0xff]
        %v4467 = vld [vmem:[%s4445 + $0xa8] sm:$0xff]
        %v4468 = vld [vmem:[%s4445 + $0xb0] sm:$0xff]
        %v4469 = vld [vmem:[%s4445 + $0xb8] sm:$0xff]
        %v4470 = vld [vmem:[%s4445 + $0xc0] sm:$0xff]
        %v4471 = vld [vmem:[%s4445 + $0xc8] sm:$0xff]
        %v4472 = vld [vmem:[%s4445 + $0xd0] sm:$0xff]
        %v4473 = vld [vmem:[%s4445 + $0xd8] sm:$0xff]
        %v4474 = vld [vmem:[%s4445 + $0xe0] sm:$0xff]
        %v4475 = vld [vmem:[%s4445 + $0xe8] sm:$0xff]
        %v4476 = vld [vmem:[%s4445 + $0xf0] sm:$0xff]
        %v4477 = vld [vmem:[%s4445 + $0xf8] sm:$0xff]
        %v4478 = vld [vmem:[%s4445 + $0x100] sm:$0xff]
        %v4479 = vld [vmem:[%s4445 + $0x108] sm:$0xff]
        %v4480 = vld [vmem:[%s4445 + $0x110] sm:$0xff]
        %v4481 = vld [vmem:[%s4445 + $0x118] sm:$0xff]
        %v4482 = vld [vmem:[%s4445 + $0x120] sm:$0xff]
        %v4483 = vld [vmem:[%s4445 + $0x128] sm:$0xff]
        %v4484 = vld [vmem:[%s4445 + $0x130] sm:$0xff]
        %v4485 = vld [vmem:[%s4445 + $0x138] sm:$0xff]
        %v4486 = vld [vmem:[%s4445 + $0x140] sm:$0xff]
        %v4487 = vld [vmem:[%s4445 + $0x148] sm:$0xff]
        %v4488 = vld [vmem:[%s4445 + $0x150] sm:$0xff]
        %v4489 = vld [vmem:[%s4445 + $0x158] sm:$0xff]
        %v4490 = vld [vmem:[%s4445 + $0x160] sm:$0xff]
        %v4491 = vld [vmem:[%s4445 + $0x168] sm:$0xff]
        %v4492 = vld [vmem:[%s4445 + $0x170] sm:$0xff]
        %v4493 = vld [vmem:[%s4445 + $0x178] sm:$0xff]
        %v4494 = vld [vmem:[%s4445 + $0x180] sm:$0xff]
        %v4495 = vld [vmem:[%s4445 + $0x188] sm:$0xff]
        %v4496 = vld [vmem:[%s4445 + $0x190] sm:$0xff]
        %v4497 = vld [vmem:[%s4445 + $0x198] sm:$0xff]
        %v4498 = vld [vmem:[%s4445 + $0x1a0] sm:$0xff]
        %v4499 = vld [vmem:[%s4445 + $0x1a8] sm:$0xff]
        %v4500 = vld [vmem:[%s4445 + $0x1b0] sm:$0xff]
        %v4501 = vld [vmem:[%s4445 + $0x1b8] sm:$0xff]
        %v4502 = vld [vmem:[%s4445 + $0x1c0] sm:$0xff]
        %v4503 = vld [vmem:[%s4445 + $0x1c8] sm:$0xff]
        %v4504 = vld [vmem:[%s4445 + $0x1d0] sm:$0xff]
        %v4505 = vld [vmem:[%s4445 + $0x1d8] sm:$0xff]
        %v4506 = vld [vmem:[%s4445 + $0x1e0] sm:$0xff]
        %v4507 = vld [vmem:[%s4445 + $0x1e8] sm:$0xff]
        %v4508 = vld [vmem:[%s4445 + $0x1f0] sm:$0xff]
        %v4509 = vld [vmem:[%s4445 + $0x1f8] sm:$0xff]
        %s4510 = scalar_lea.vmem %s747, 16
        %v4511 = vld [vmem:[%s4510] sm:$0xff]
        %v4512 = vld [vmem:[%s4510 + $0x8] sm:$0xff]
        %v4515 = vperm.slane %v4511, 0
        %v4516 = vperm.slane %v4511, 1
        %v4517 = vperm.slane %v4511, 2
        %v4518 = vperm.slane %v4511, 3
        %v4519 = vperm.slane %v4511, 4
        %v4520 = vperm.slane %v4511, 5
        %v4521 = vperm.slane %v4511, 6
        %v4522 = vperm.slane %v4511, 7
        %v4523 = vperm.slane %v4512, 0
        %v4524 = vperm.slane %v4512, 1
        %v4525 = vperm.slane %v4512, 2
        %v4526 = vperm.slane %v4512, 3
        %v4527 = vperm.slane %v4512, 4
        %v4528 = vperm.slane %v4512, 5
        %v4529 = vperm.slane %v4512, 6
        %v4530 = vperm.slane %v4512, 7
        %v4548 = vsel %vm840, %v4441, 0
        %v4551 = vsel %vm840, %v4442, 0
        %v4554 = vsel %vm840, %v4443, 0
        %v4557 = vsel %vm840, %v4444, 0
        %4559 = vmatpush.msra.mxu0 0.0
        %4560 = vmatpush.msra.mxu0 0.0
        %4561 = vmatpush.msra.mxu0 0.0
        %4562 = vmatpush.msra.mxu0 0.0
        %4563 = vmatpush.msra.mxu0 0.0
        %4564 = vmatpush.msra.mxu0 0.0
        %4565 = vmatpush.msra.mxu0 0.0
        %4566 = vmatpush.msra.mxu0 0.0
        %4567 = vmatpush.msra.mxu0 0.0
        %4568 = vmatpush.msra.mxu0 0.0
        %4569 = vmatpush.msra.mxu0 0.0
        %4570 = vmatpush.msra.mxu0 0.0
        %4571 = vmatpush.msra.mxu0 %v4494
        %4572 = vmatpush.msra.mxu0 %v4478
        %4573 = vmatpush.msra.mxu0 %v4462
        %4574 = vmatpush.msra.mxu0 %v4446
        %4575 = vmatmul.f32.gmra.mxu0 %v4548
        %v4576 = vpop.f32.mrf.mxu0
        %v4577 = vadd.f32 %v4515, %v4576
        %4578 = vmatmul.f32.gmra.mxu0 %v4551
        %v4579 = vpop.f32.mrf.mxu0
        %v4580 = vadd.f32 %v4515, %v4579
        %4581 = vmatmul.f32.gmra.mxu0 %v4554
        %v4582 = vpop.f32.mrf.mxu0
        %v4583 = vadd.f32 %v4515, %v4582
        %4584 = vmatmul.f32.gmra.mxu0 %v4557
        %v4585 = vpop.f32.mrf.mxu0
        %v4586 = vadd.f32 %v4515, %v4585
        %4587 = vdwg.mxu0
        %4588 = vmatpush.msra.mxu0 0.0
        %4589 = vmatpush.msra.mxu0 0.0
        %4590 = vmatpush.msra.mxu0 0.0
        %4591 = vmatpush.msra.mxu0 0.0
        %4592 = vmatpush.msra.mxu0 0.0
        %4593 = vmatpush.msra.mxu0 0.0
        %4594 = vmatpush.msra.mxu0 0.0
        %4595 = vmatpush.msra.mxu0 0.0
        %4596 = vmatpush.msra.mxu0 0.0
        %4597 = vmatpush.msra.mxu0 0.0
        %4598 = vmatpush.msra.mxu0 0.0
        %4599 = vmatpush.msra.mxu0 0.0
        %4600 = vmatpush.msra.mxu0 %v4495
        %4601 = vmatpush.msra.mxu0 %v4479
        %4602 = vmatpush.msra.mxu0 %v4463
        %4603 = vmatpush.msra.mxu0 %v4447
        %4604 = vmatmul.f32.gmra.mxu0 %v4548
        %v4605 = vpop.f32.mrf.mxu0
        %v4606 = vadd.f32 %v4516, %v4605
        %4607 = vmatmul.f32.gmra.mxu0 %v4551
        %v4608 = vpop.f32.mrf.mxu0
        %v4609 = vadd.f32 %v4516, %v4608
        %4610 = vmatmul.f32.gmra.mxu0 %v4554
        %v4611 = vpop.f32.mrf.mxu0
        %v4612 = vadd.f32 %v4516, %v4611
        %4613 = vmatmul.f32.gmra.mxu0 %v4557
        %v4614 = vpop.f32.mrf.mxu0
        %v4615 = vadd.f32 %v4516, %v4614
        %4616 = vdwg.mxu0
        %4617 = vmatpush.msra.mxu0 0.0
        %4618 = vmatpush.msra.mxu0 0.0
        %4619 = vmatpush.msra.mxu0 0.0
        %4620 = vmatpush.msra.mxu0 0.0
        %4621 = vmatpush.msra.mxu0 0.0
        %4622 = vmatpush.msra.mxu0 0.0
        %4623 = vmatpush.msra.mxu0 0.0
        %4624 = vmatpush.msra.mxu0 0.0
        %4625 = vmatpush.msra.mxu0 0.0
        %4626 = vmatpush.msra.mxu0 0.0
        %4627 = vmatpush.msra.mxu0 0.0
        %4628 = vmatpush.msra.mxu0 0.0
        %4629 = vmatpush.msra.mxu0 %v4496
        %4630 = vmatpush.msra.mxu0 %v4480
        %4631 = vmatpush.msra.mxu0 %v4464
        %4632 = vmatpush.msra.mxu0 %v4448
        %4633 = vmatmul.f32.gmra.mxu0 %v4548
        %v4634 = vpop.f32.mrf.mxu0
        %v4635 = vadd.f32 %v4517, %v4634
        %4636 = vmatmul.f32.gmra.mxu0 %v4551
        %v4637 = vpop.f32.mrf.mxu0
        %v4638 = vadd.f32 %v4517, %v4637
        %4639 = vmatmul.f32.gmra.mxu0 %v4554
        %v4640 = vpop.f32.mrf.mxu0
        %v4641 = vadd.f32 %v4517, %v4640
        %4642 = vmatmul.f32.gmra.mxu0 %v4557
        %v4643 = vpop.f32.mrf.mxu0
        %v4644 = vadd.f32 %v4517, %v4643
        %4645 = vdwg.mxu0
        %4646 = vmatpush.msra.mxu0 0.0
        %4647 = vmatpush.msra.mxu0 0.0
        %4648 = vmatpush.msra.mxu0 0.0
        %4649 = vmatpush.msra.mxu0 0.0
        %4650 = vmatpush.msra.mxu0 0.0
        %4651 = vmatpush.msra.mxu0 0.0
        %4652 = vmatpush.msra.mxu0 0.0
        %4653 = vmatpush.msra.mxu0 0.0
        %4654 = vmatpush.msra.mxu0 0.0
        %4655 = vmatpush.msra.mxu0 0.0
        %4656 = vmatpush.msra.mxu0 0.0
        %4657 = vmatpush.msra.mxu0 0.0
        %4658 = vmatpush.msra.mxu0 %v4497
        %4659 = vmatpush.msra.mxu0 %v4481
        %4660 = vmatpush.msra.mxu0 %v4465
        %4661 = vmatpush.msra.mxu0 %v4449
        %4662 = vmatmul.f32.gmra.mxu0 %v4548
        %v4663 = vpop.f32.mrf.mxu0
        %v4664 = vadd.f32 %v4518, %v4663
        %4665 = vmatmul.f32.gmra.mxu0 %v4551
        %v4666 = vpop.f32.mrf.mxu0
        %v4667 = vadd.f32 %v4518, %v4666
        %4668 = vmatmul.f32.gmra.mxu0 %v4554
        %v4669 = vpop.f32.mrf.mxu0
        %v4670 = vadd.f32 %v4518, %v4669
        %4671 = vmatmul.f32.gmra.mxu0 %v4557
        %v4672 = vpop.f32.mrf.mxu0
        %v4673 = vadd.f32 %v4518, %v4672
        %4674 = vdwg.mxu0
        %4675 = vmatpush.msra.mxu0 0.0
        %4676 = vmatpush.msra.mxu0 0.0
        %4677 = vmatpush.msra.mxu0 0.0
        %4678 = vmatpush.msra.mxu0 0.0
        %4679 = vmatpush.msra.mxu0 0.0
        %4680 = vmatpush.msra.mxu0 0.0
        %4681 = vmatpush.msra.mxu0 0.0
        %4682 = vmatpush.msra.mxu0 0.0
        %4683 = vmatpush.msra.mxu0 0.0
        %4684 = vmatpush.msra.mxu0 0.0
        %4685 = vmatpush.msra.mxu0 0.0
        %4686 = vmatpush.msra.mxu0 0.0
        %4687 = vmatpush.msra.mxu0 %v4498
        %4688 = vmatpush.msra.mxu0 %v4482
        %4689 = vmatpush.msra.mxu0 %v4466
        %4690 = vmatpush.msra.mxu0 %v4450
        %4691 = vmatmul.f32.gmra.mxu0 %v4548
        %v4692 = vpop.f32.mrf.mxu0
        %v4693 = vadd.f32 %v4519, %v4692
        %4694 = vmatmul.f32.gmra.mxu0 %v4551
        %v4695 = vpop.f32.mrf.mxu0
        %v4696 = vadd.f32 %v4519, %v4695
        %4697 = vmatmul.f32.gmra.mxu0 %v4554
        %v4698 = vpop.f32.mrf.mxu0
        %v4699 = vadd.f32 %v4519, %v4698
        %4700 = vmatmul.f32.gmra.mxu0 %v4557
        %v4701 = vpop.f32.mrf.mxu0
        %v4702 = vadd.f32 %v4519, %v4701
        %4703 = vdwg.mxu0
        %4704 = vmatpush.msra.mxu0 0.0
        %4705 = vmatpush.msra.mxu0 0.0
        %4706 = vmatpush.msra.mxu0 0.0
        %4707 = vmatpush.msra.mxu0 0.0
        %4708 = vmatpush.msra.mxu0 0.0
        %4709 = vmatpush.msra.mxu0 0.0
        %4710 = vmatpush.msra.mxu0 0.0
        %4711 = vmatpush.msra.mxu0 0.0
        %4712 = vmatpush.msra.mxu0 0.0
        %4713 = vmatpush.msra.mxu0 0.0
        %4714 = vmatpush.msra.mxu0 0.0
        %4715 = vmatpush.msra.mxu0 0.0
        %4716 = vmatpush.msra.mxu0 %v4499
        %4717 = vmatpush.msra.mxu0 %v4483
        %4718 = vmatpush.msra.mxu0 %v4467
        %4719 = vmatpush.msra.mxu0 %v4451
        %4720 = vmatmul.f32.gmra.mxu0 %v4548
        %v4721 = vpop.f32.mrf.mxu0
        %v4722 = vadd.f32 %v4520, %v4721
        %4723 = vmatmul.f32.gmra.mxu0 %v4551
        %v4724 = vpop.f32.mrf.mxu0
        %v4725 = vadd.f32 %v4520, %v4724
        %4726 = vmatmul.f32.gmra.mxu0 %v4554
        %v4727 = vpop.f32.mrf.mxu0
        %v4728 = vadd.f32 %v4520, %v4727
        %4729 = vmatmul.f32.gmra.mxu0 %v4557
        %v4730 = vpop.f32.mrf.mxu0
        %v4731 = vadd.f32 %v4520, %v4730
        %4732 = vdwg.mxu0
        %4733 = vmatpush.msra.mxu0 0.0
        %4734 = vmatpush.msra.mxu0 0.0
        %4735 = vmatpush.msra.mxu0 0.0
        %4736 = vmatpush.msra.mxu0 0.0
        %4737 = vmatpush.msra.mxu0 0.0
        %4738 = vmatpush.msra.mxu0 0.0
        %4739 = vmatpush.msra.mxu0 0.0
        %4740 = vmatpush.msra.mxu0 0.0
        %4741 = vmatpush.msra.mxu0 0.0
        %4742 = vmatpush.msra.mxu0 0.0
        %4743 = vmatpush.msra.mxu0 0.0
        %4744 = vmatpush.msra.mxu0 0.0
        %4745 = vmatpush.msra.mxu0 %v4500
        %4746 = vmatpush.msra.mxu0 %v4484
        %4747 = vmatpush.msra.mxu0 %v4468
        %4748 = vmatpush.msra.mxu0 %v4452
        %4749 = vmatmul.f32.gmra.mxu0 %v4548
        %v4750 = vpop.f32.mrf.mxu0
        %v4751 = vadd.f32 %v4521, %v4750
        %4752 = vmatmul.f32.gmra.mxu0 %v4551
        %v4753 = vpop.f32.mrf.mxu0
        %v4754 = vadd.f32 %v4521, %v4753
        %4755 = vmatmul.f32.gmra.mxu0 %v4554
        %v4756 = vpop.f32.mrf.mxu0
        %v4757 = vadd.f32 %v4521, %v4756
        %4758 = vmatmul.f32.gmra.mxu0 %v4557
        %v4759 = vpop.f32.mrf.mxu0
        %v4760 = vadd.f32 %v4521, %v4759
        %4761 = vdwg.mxu0
        %4762 = vmatpush.msra.mxu0 0.0
        %4763 = vmatpush.msra.mxu0 0.0
        %4764 = vmatpush.msra.mxu0 0.0
        %4765 = vmatpush.msra.mxu0 0.0
        %4766 = vmatpush.msra.mxu0 0.0
        %4767 = vmatpush.msra.mxu0 0.0
        %4768 = vmatpush.msra.mxu0 0.0
        %4769 = vmatpush.msra.mxu0 0.0
        %4770 = vmatpush.msra.mxu0 0.0
        %4771 = vmatpush.msra.mxu0 0.0
        %4772 = vmatpush.msra.mxu0 0.0
        %4773 = vmatpush.msra.mxu0 0.0
        %4774 = vmatpush.msra.mxu0 %v4501
        %4775 = vmatpush.msra.mxu0 %v4485
        %4776 = vmatpush.msra.mxu0 %v4469
        %4777 = vmatpush.msra.mxu0 %v4453
        %4778 = vmatmul.f32.gmra.mxu0 %v4548
        %v4779 = vpop.f32.mrf.mxu0
        %v4780 = vadd.f32 %v4522, %v4779
        %4781 = vmatmul.f32.gmra.mxu0 %v4551
        %v4782 = vpop.f32.mrf.mxu0
        %v4783 = vadd.f32 %v4522, %v4782
        %4784 = vmatmul.f32.gmra.mxu0 %v4554
        %v4785 = vpop.f32.mrf.mxu0
        %v4786 = vadd.f32 %v4522, %v4785
        %4787 = vmatmul.f32.gmra.mxu0 %v4557
        %v4788 = vpop.f32.mrf.mxu0
        %v4789 = vadd.f32 %v4522, %v4788
        %4790 = vdwg.mxu0
        %4791 = vmatpush.msra.mxu0 0.0
        %4792 = vmatpush.msra.mxu0 0.0
        %4793 = vmatpush.msra.mxu0 0.0
        %4794 = vmatpush.msra.mxu0 0.0
        %4795 = vmatpush.msra.mxu0 0.0
        %4796 = vmatpush.msra.mxu0 0.0
        %4797 = vmatpush.msra.mxu0 0.0
        %4798 = vmatpush.msra.mxu0 0.0
        %4799 = vmatpush.msra.mxu0 0.0
        %4800 = vmatpush.msra.mxu0 0.0
        %4801 = vmatpush.msra.mxu0 0.0
        %4802 = vmatpush.msra.mxu0 0.0
        %4803 = vmatpush.msra.mxu0 %v4502
        %4804 = vmatpush.msra.mxu0 %v4486
        %4805 = vmatpush.msra.mxu0 %v4470
        %4806 = vmatpush.msra.mxu0 %v4454
        %4807 = vmatmul.f32.gmra.mxu0 %v4548
        %v4808 = vpop.f32.mrf.mxu0
        %v4809 = vadd.f32 %v4523, %v4808
        %4810 = vmatmul.f32.gmra.mxu0 %v4551
        %v4811 = vpop.f32.mrf.mxu0
        %v4812 = vadd.f32 %v4523, %v4811
        %4813 = vmatmul.f32.gmra.mxu0 %v4554
        %v4814 = vpop.f32.mrf.mxu0
        %v4815 = vadd.f32 %v4523, %v4814
        %4816 = vmatmul.f32.gmra.mxu0 %v4557
        %v4817 = vpop.f32.mrf.mxu0
        %v4818 = vadd.f32 %v4523, %v4817
        %4819 = vdwg.mxu0
        %4820 = vmatpush.msra.mxu0 0.0
        %4821 = vmatpush.msra.mxu0 0.0
        %4822 = vmatpush.msra.mxu0 0.0
        %4823 = vmatpush.msra.mxu0 0.0
        %4824 = vmatpush.msra.mxu0 0.0
        %4825 = vmatpush.msra.mxu0 0.0
        %4826 = vmatpush.msra.mxu0 0.0
        %4827 = vmatpush.msra.mxu0 0.0
        %4828 = vmatpush.msra.mxu0 0.0
        %4829 = vmatpush.msra.mxu0 0.0
        %4830 = vmatpush.msra.mxu0 0.0
        %4831 = vmatpush.msra.mxu0 0.0
        %4832 = vmatpush.msra.mxu0 %v4503
        %4833 = vmatpush.msra.mxu0 %v4487
        %4834 = vmatpush.msra.mxu0 %v4471
        %4835 = vmatpush.msra.mxu0 %v4455
        %4836 = vmatmul.f32.gmra.mxu0 %v4548
        %v4837 = vpop.f32.mrf.mxu0
        %v4838 = vadd.f32 %v4524, %v4837
        %4839 = vmatmul.f32.gmra.mxu0 %v4551
        %v4840 = vpop.f32.mrf.mxu0
        %v4841 = vadd.f32 %v4524, %v4840
        %4842 = vmatmul.f32.gmra.mxu0 %v4554
        %v4843 = vpop.f32.mrf.mxu0
        %v4844 = vadd.f32 %v4524, %v4843
        %4845 = vmatmul.f32.gmra.mxu0 %v4557
        %v4846 = vpop.f32.mrf.mxu0
        %v4847 = vadd.f32 %v4524, %v4846
        %4848 = vdwg.mxu0
        %4849 = vmatpush.msra.mxu0 0.0
        %4850 = vmatpush.msra.mxu0 0.0
        %4851 = vmatpush.msra.mxu0 0.0
        %4852 = vmatpush.msra.mxu0 0.0
        %4853 = vmatpush.msra.mxu0 0.0
        %4854 = vmatpush.msra.mxu0 0.0
        %4855 = vmatpush.msra.mxu0 0.0
        %4856 = vmatpush.msra.mxu0 0.0
        %4857 = vmatpush.msra.mxu0 0.0
        %4858 = vmatpush.msra.mxu0 0.0
        %4859 = vmatpush.msra.mxu0 0.0
        %4860 = vmatpush.msra.mxu0 0.0
        %4861 = vmatpush.msra.mxu0 %v4504
        %4862 = vmatpush.msra.mxu0 %v4488
        %4863 = vmatpush.msra.mxu0 %v4472
        %4864 = vmatpush.msra.mxu0 %v4456
        %4865 = vmatmul.f32.gmra.mxu0 %v4548
        %v4866 = vpop.f32.mrf.mxu0
        %v4867 = vadd.f32 %v4525, %v4866
        %4868 = vmatmul.f32.gmra.mxu0 %v4551
        %v4869 = vpop.f32.mrf.mxu0
        %v4870 = vadd.f32 %v4525, %v4869
        %4871 = vmatmul.f32.gmra.mxu0 %v4554
        %v4872 = vpop.f32.mrf.mxu0
        %v4873 = vadd.f32 %v4525, %v4872
        %4874 = vmatmul.f32.gmra.mxu0 %v4557
        %v4875 = vpop.f32.mrf.mxu0
        %v4876 = vadd.f32 %v4525, %v4875
        %4877 = vdwg.mxu0
        %4878 = vmatpush.msra.mxu0 0.0
        %4879 = vmatpush.msra.mxu0 0.0
        %4880 = vmatpush.msra.mxu0 0.0
        %4881 = vmatpush.msra.mxu0 0.0
        %4882 = vmatpush.msra.mxu0 0.0
        %4883 = vmatpush.msra.mxu0 0.0
        %4884 = vmatpush.msra.mxu0 0.0
        %4885 = vmatpush.msra.mxu0 0.0
        %4886 = vmatpush.msra.mxu0 0.0
        %4887 = vmatpush.msra.mxu0 0.0
        %4888 = vmatpush.msra.mxu0 0.0
        %4889 = vmatpush.msra.mxu0 0.0
        %4890 = vmatpush.msra.mxu0 %v4505
        %4891 = vmatpush.msra.mxu0 %v4489
        %4892 = vmatpush.msra.mxu0 %v4473
        %4893 = vmatpush.msra.mxu0 %v4457
        %4894 = vmatmul.f32.gmra.mxu0 %v4548
        %v4895 = vpop.f32.mrf.mxu0
        %v4896 = vadd.f32 %v4526, %v4895
        %4897 = vmatmul.f32.gmra.mxu0 %v4551
        %v4898 = vpop.f32.mrf.mxu0
        %v4899 = vadd.f32 %v4526, %v4898
        %4900 = vmatmul.f32.gmra.mxu0 %v4554
        %v4901 = vpop.f32.mrf.mxu0
        %v4902 = vadd.f32 %v4526, %v4901
        %4903 = vmatmul.f32.gmra.mxu0 %v4557
        %v4904 = vpop.f32.mrf.mxu0
        %v4905 = vadd.f32 %v4526, %v4904
        %4906 = vdwg.mxu0
        %4907 = vmatpush.msra.mxu0 0.0
        %4908 = vmatpush.msra.mxu0 0.0
        %4909 = vmatpush.msra.mxu0 0.0
        %4910 = vmatpush.msra.mxu0 0.0
        %4911 = vmatpush.msra.mxu0 0.0
        %4912 = vmatpush.msra.mxu0 0.0
        %4913 = vmatpush.msra.mxu0 0.0
        %4914 = vmatpush.msra.mxu0 0.0
        %4915 = vmatpush.msra.mxu0 0.0
        %4916 = vmatpush.msra.mxu0 0.0
        %4917 = vmatpush.msra.mxu0 0.0
        %4918 = vmatpush.msra.mxu0 0.0
        %4919 = vmatpush.msra.mxu0 %v4506
        %4920 = vmatpush.msra.mxu0 %v4490
        %4921 = vmatpush.msra.mxu0 %v4474
        %4922 = vmatpush.msra.mxu0 %v4458
        %4923 = vmatmul.f32.gmra.mxu0 %v4548
        %v4924 = vpop.f32.mrf.mxu0
        %v4925 = vadd.f32 %v4527, %v4924
        %4926 = vmatmul.f32.gmra.mxu0 %v4551
        %v4927 = vpop.f32.mrf.mxu0
        %v4928 = vadd.f32 %v4527, %v4927
        %4929 = vmatmul.f32.gmra.mxu0 %v4554
        %v4930 = vpop.f32.mrf.mxu0
        %v4931 = vadd.f32 %v4527, %v4930
        %4932 = vmatmul.f32.gmra.mxu0 %v4557
        %v4933 = vpop.f32.mrf.mxu0
        %v4934 = vadd.f32 %v4527, %v4933
        %4935 = vdwg.mxu0
        %4936 = vmatpush.msra.mxu0 0.0
        %4937 = vmatpush.msra.mxu0 0.0
        %4938 = vmatpush.msra.mxu0 0.0
        %4939 = vmatpush.msra.mxu0 0.0
        %4940 = vmatpush.msra.mxu0 0.0
        %4941 = vmatpush.msra.mxu0 0.0
        %4942 = vmatpush.msra.mxu0 0.0
        %4943 = vmatpush.msra.mxu0 0.0
        %4944 = vmatpush.msra.mxu0 0.0
        %4945 = vmatpush.msra.mxu0 0.0
        %4946 = vmatpush.msra.mxu0 0.0
        %4947 = vmatpush.msra.mxu0 0.0
        %4948 = vmatpush.msra.mxu0 %v4507
        %4949 = vmatpush.msra.mxu0 %v4491
        %4950 = vmatpush.msra.mxu0 %v4475
        %4951 = vmatpush.msra.mxu0 %v4459
        %4952 = vmatmul.f32.gmra.mxu0 %v4548
        %v4953 = vpop.f32.mrf.mxu0
        %v4954 = vadd.f32 %v4528, %v4953
        %4955 = vmatmul.f32.gmra.mxu0 %v4551
        %v4956 = vpop.f32.mrf.mxu0
        %v4957 = vadd.f32 %v4528, %v4956
        %4958 = vmatmul.f32.gmra.mxu0 %v4554
        %v4959 = vpop.f32.mrf.mxu0
        %v4960 = vadd.f32 %v4528, %v4959
        %4961 = vmatmul.f32.gmra.mxu0 %v4557
        %v4962 = vpop.f32.mrf.mxu0
        %v4963 = vadd.f32 %v4528, %v4962
        %4964 = vdwg.mxu0
        %4965 = vmatpush.msra.mxu0 0.0
        %4966 = vmatpush.msra.mxu0 0.0
        %4967 = vmatpush.msra.mxu0 0.0
        %4968 = vmatpush.msra.mxu0 0.0
        %4969 = vmatpush.msra.mxu0 0.0
        %4970 = vmatpush.msra.mxu0 0.0
        %4971 = vmatpush.msra.mxu0 0.0
        %4972 = vmatpush.msra.mxu0 0.0
        %4973 = vmatpush.msra.mxu0 0.0
        %4974 = vmatpush.msra.mxu0 0.0
        %4975 = vmatpush.msra.mxu0 0.0
        %4976 = vmatpush.msra.mxu0 0.0
        %4977 = vmatpush.msra.mxu0 %v4508
        %4978 = vmatpush.msra.mxu0 %v4492
        %4979 = vmatpush.msra.mxu0 %v4476
        %4980 = vmatpush.msra.mxu0 %v4460
        %4981 = vmatmul.f32.gmra.mxu0 %v4548
        %v4982 = vpop.f32.mrf.mxu0
        %v4983 = vadd.f32 %v4529, %v4982
        %4984 = vmatmul.f32.gmra.mxu0 %v4551
        %v4985 = vpop.f32.mrf.mxu0
        %v4986 = vadd.f32 %v4529, %v4985
        %4987 = vmatmul.f32.gmra.mxu0 %v4554
        %v4988 = vpop.f32.mrf.mxu0
        %v4989 = vadd.f32 %v4529, %v4988
        %4990 = vmatmul.f32.gmra.mxu0 %v4557
        %v4991 = vpop.f32.mrf.mxu0
        %v4992 = vadd.f32 %v4529, %v4991
        %4993 = vdwg.mxu0
        %4994 = vmatpush.msra.mxu0 0.0
        %4995 = vmatpush.msra.mxu0 0.0
        %4996 = vmatpush.msra.mxu0 0.0
        %4997 = vmatpush.msra.mxu0 0.0
        %4998 = vmatpush.msra.mxu0 0.0
        %4999 = vmatpush.msra.mxu0 0.0
        %5000 = vmatpush.msra.mxu0 0.0
        %5001 = vmatpush.msra.mxu0 0.0
        %5002 = vmatpush.msra.mxu0 0.0
        %5003 = vmatpush.msra.mxu0 0.0
        %5004 = vmatpush.msra.mxu0 0.0
        %5005 = vmatpush.msra.mxu0 0.0
        %5006 = vmatpush.msra.mxu0 %v4509
        %5007 = vmatpush.msra.mxu0 %v4493
        %5008 = vmatpush.msra.mxu0 %v4477
        %5009 = vmatpush.msra.mxu0 %v4461
        %5010 = vmatmul.f32.gmra.mxu0 %v4548
        %v5011 = vpop.f32.mrf.mxu0
        %v5012 = vadd.f32 %v4530, %v5011
        %5013 = vmatmul.f32.gmra.mxu0 %v4551
        %v5014 = vpop.f32.mrf.mxu0
        %v5015 = vadd.f32 %v4530, %v5014
        %5016 = vmatmul.f32.gmra.mxu0 %v4554
        %v5017 = vpop.f32.mrf.mxu0
        %v5018 = vadd.f32 %v4530, %v5017
        %5019 = vmatmul.f32.gmra.mxu0 %v4557
        %v5020 = vpop.f32.mrf.mxu0
        %v5021 = vadd.f32 %v4530, %v5020
        %5022 = vdwg.mxu0
        %v5023 = vmax.f32 %v4577, 0.0
        %v5024 = vmax.f32 %v4606, 0.0
        %v5025 = vmax.f32 %v4635, 0.0
        %v5026 = vmax.f32 %v4664, 0.0
        %v5027 = vmax.f32 %v4693, 0.0
        %v5028 = vmax.f32 %v4722, 0.0
        %v5029 = vmax.f32 %v4751, 0.0
        %v5030 = vmax.f32 %v4780, 0.0
        %v5031 = vmax.f32 %v4809, 0.0
        %v5032 = vmax.f32 %v4838, 0.0
        %v5033 = vmax.f32 %v4867, 0.0
        %v5034 = vmax.f32 %v4896, 0.0
        %v5035 = vmax.f32 %v4925, 0.0
        %v5036 = vmax.f32 %v4954, 0.0
        %v5037 = vmax.f32 %v4983, 0.0
        %v5038 = vmax.f32 %v5012, 0.0
        %v5039 = vmax.f32 %v4580, 0.0
        %v5040 = vmax.f32 %v4609, 0.0
        %v5041 = vmax.f32 %v4638, 0.0
        %v5042 = vmax.f32 %v4667, 0.0
        %v5043 = vmax.f32 %v4696, 0.0
        %v5044 = vmax.f32 %v4725, 0.0
        %v5045 = vmax.f32 %v4754, 0.0
        %v5046 = vmax.f32 %v4783, 0.0
        %v5047 = vmax.f32 %v4812, 0.0
        %v5048 = vmax.f32 %v4841, 0.0
        %v5049 = vmax.f32 %v4870, 0.0
        %v5050 = vmax.f32 %v4899, 0.0
        %v5051 = vmax.f32 %v4928, 0.0
        %v5052 = vmax.f32 %v4957, 0.0
        %v5053 = vmax.f32 %v4986, 0.0
        %v5054 = vmax.f32 %v5015, 0.0
        %v5055 = vmax.f32 %v4583, 0.0
        %v5056 = vmax.f32 %v4612, 0.0
        %v5057 = vmax.f32 %v4641, 0.0
        %v5058 = vmax.f32 %v4670, 0.0
        %v5059 = vmax.f32 %v4699, 0.0
        %v5060 = vmax.f32 %v4728, 0.0
        %v5061 = vmax.f32 %v4757, 0.0
        %v5062 = vmax.f32 %v4786, 0.0
        %v5063 = vmax.f32 %v4815, 0.0
        %v5064 = vmax.f32 %v4844, 0.0
        %v5065 = vmax.f32 %v4873, 0.0
        %v5066 = vmax.f32 %v4902, 0.0
        %v5067 = vmax.f32 %v4931, 0.0
        %v5068 = vmax.f32 %v4960, 0.0
        %v5069 = vmax.f32 %v4989, 0.0
        %v5070 = vmax.f32 %v5018, 0.0
        %v5071 = vmax.f32 %v4586, 0.0
        %v5072 = vmax.f32 %v4615, 0.0
        %v5073 = vmax.f32 %v4644, 0.0
        %v5074 = vmax.f32 %v4673, 0.0
        %v5075 = vmax.f32 %v4702, 0.0
        %v5076 = vmax.f32 %v4731, 0.0
        %v5077 = vmax.f32 %v4760, 0.0
        %v5078 = vmax.f32 %v4789, 0.0
        %v5079 = vmax.f32 %v4818, 0.0
        %v5080 = vmax.f32 %v4847, 0.0
        %v5081 = vmax.f32 %v4876, 0.0
        %v5082 = vmax.f32 %v4905, 0.0
        %v5083 = vmax.f32 %v4934, 0.0
        %v5084 = vmax.f32 %v4963, 0.0
        %v5085 = vmax.f32 %v4992, 0.0
        %v5086 = vmax.f32 %v5021, 0.0
        %s5087 = scalar_lea.vmem %s752, 2048
        %v5088 = vld [vmem:[%s5087] sm:$0xff]
        %v5089 = vld [vmem:[%s5087 + $0x8] sm:$0xff]
        %v5090 = vld [vmem:[%s5087 + $0x10] sm:$0xff]
        %v5091 = vld [vmem:[%s5087 + $0x18] sm:$0xff]
        %v5092 = vld [vmem:[%s5087 + $0x20] sm:$0xff]
        %v5093 = vld [vmem:[%s5087 + $0x28] sm:$0xff]
        %v5094 = vld [vmem:[%s5087 + $0x30] sm:$0xff]
        %v5095 = vld [vmem:[%s5087 + $0x38] sm:$0xff]
        %v5096 = vld [vmem:[%s5087 + $0x40] sm:$0xff]
        %v5097 = vld [vmem:[%s5087 + $0x48] sm:$0xff]
        %v5098 = vld [vmem:[%s5087 + $0x50] sm:$0xff]
        %v5099 = vld [vmem:[%s5087 + $0x58] sm:$0xff]
        %v5100 = vld [vmem:[%s5087 + $0x60] sm:$0xff]
        %v5101 = vld [vmem:[%s5087 + $0x68] sm:$0xff]
        %v5102 = vld [vmem:[%s5087 + $0x70] sm:$0xff]
        %v5103 = vld [vmem:[%s5087 + $0x78] sm:$0xff]
        %v5104 = vld [vmem:[%s5087 + $0x80] sm:$0xff]
        %v5105 = vld [vmem:[%s5087 + $0x88] sm:$0xff]
        %v5106 = vld [vmem:[%s5087 + $0x90] sm:$0xff]
        %v5107 = vld [vmem:[%s5087 + $0x98] sm:$0xff]
        %v5108 = vld [vmem:[%s5087 + $0xa0] sm:$0xff]
        %v5109 = vld [vmem:[%s5087 + $0xa8] sm:$0xff]
        %v5110 = vld [vmem:[%s5087 + $0xb0] sm:$0xff]
        %v5111 = vld [vmem:[%s5087 + $0xb8] sm:$0xff]
        %v5112 = vld [vmem:[%s5087 + $0xc0] sm:$0xff]
        %v5113 = vld [vmem:[%s5087 + $0xc8] sm:$0xff]
        %v5114 = vld [vmem:[%s5087 + $0xd0] sm:$0xff]
        %v5115 = vld [vmem:[%s5087 + $0xd8] sm:$0xff]
        %v5116 = vld [vmem:[%s5087 + $0xe0] sm:$0xff]
        %v5117 = vld [vmem:[%s5087 + $0xe8] sm:$0xff]
        %v5118 = vld [vmem:[%s5087 + $0xf0] sm:$0xff]
        %v5119 = vld [vmem:[%s5087 + $0xf8] sm:$0xff]
        %v5120 = vld [vmem:[%s5087 + $0x100] sm:$0xff]
        %v5121 = vld [vmem:[%s5087 + $0x108] sm:$0xff]
        %v5122 = vld [vmem:[%s5087 + $0x110] sm:$0xff]
        %v5123 = vld [vmem:[%s5087 + $0x118] sm:$0xff]
        %v5124 = vld [vmem:[%s5087 + $0x120] sm:$0xff]
        %v5125 = vld [vmem:[%s5087 + $0x128] sm:$0xff]
        %v5126 = vld [vmem:[%s5087 + $0x130] sm:$0xff]
        %v5127 = vld [vmem:[%s5087 + $0x138] sm:$0xff]
        %v5128 = vld [vmem:[%s5087 + $0x140] sm:$0xff]
        %v5129 = vld [vmem:[%s5087 + $0x148] sm:$0xff]
        %v5130 = vld [vmem:[%s5087 + $0x150] sm:$0xff]
        %v5131 = vld [vmem:[%s5087 + $0x158] sm:$0xff]
        %v5132 = vld [vmem:[%s5087 + $0x160] sm:$0xff]
        %v5133 = vld [vmem:[%s5087 + $0x168] sm:$0xff]
        %v5134 = vld [vmem:[%s5087 + $0x170] sm:$0xff]
        %v5135 = vld [vmem:[%s5087 + $0x178] sm:$0xff]
        %v5136 = vld [vmem:[%s5087 + $0x180] sm:$0xff]
        %v5137 = vld [vmem:[%s5087 + $0x188] sm:$0xff]
        %v5138 = vld [vmem:[%s5087 + $0x190] sm:$0xff]
        %v5139 = vld [vmem:[%s5087 + $0x198] sm:$0xff]
        %v5140 = vld [vmem:[%s5087 + $0x1a0] sm:$0xff]
        %v5141 = vld [vmem:[%s5087 + $0x1a8] sm:$0xff]
        %v5142 = vld [vmem:[%s5087 + $0x1b0] sm:$0xff]
        %v5143 = vld [vmem:[%s5087 + $0x1b8] sm:$0xff]
        %v5144 = vld [vmem:[%s5087 + $0x1c0] sm:$0xff]
        %v5145 = vld [vmem:[%s5087 + $0x1c8] sm:$0xff]
        %v5146 = vld [vmem:[%s5087 + $0x1d0] sm:$0xff]
        %v5147 = vld [vmem:[%s5087 + $0x1d8] sm:$0xff]
        %v5148 = vld [vmem:[%s5087 + $0x1e0] sm:$0xff]
        %v5149 = vld [vmem:[%s5087 + $0x1e8] sm:$0xff]
        %v5150 = vld [vmem:[%s5087 + $0x1f0] sm:$0xff]
        %v5151 = vld [vmem:[%s5087 + $0x1f8] sm:$0xff]
        %v5152 = vld [vmem:[%s5087 + $0x200] sm:$0xff]
        %v5153 = vld [vmem:[%s5087 + $0x208] sm:$0xff]
        %v5154 = vld [vmem:[%s5087 + $0x210] sm:$0xff]
        %v5155 = vld [vmem:[%s5087 + $0x218] sm:$0xff]
        %v5156 = vld [vmem:[%s5087 + $0x220] sm:$0xff]
        %v5157 = vld [vmem:[%s5087 + $0x228] sm:$0xff]
        %v5158 = vld [vmem:[%s5087 + $0x230] sm:$0xff]
        %v5159 = vld [vmem:[%s5087 + $0x238] sm:$0xff]
        %v5160 = vld [vmem:[%s5087 + $0x240] sm:$0xff]
        %v5161 = vld [vmem:[%s5087 + $0x248] sm:$0xff]
        %v5162 = vld [vmem:[%s5087 + $0x250] sm:$0xff]
        %v5163 = vld [vmem:[%s5087 + $0x258] sm:$0xff]
        %v5164 = vld [vmem:[%s5087 + $0x260] sm:$0xff]
        %v5165 = vld [vmem:[%s5087 + $0x268] sm:$0xff]
        %v5166 = vld [vmem:[%s5087 + $0x270] sm:$0xff]
        %v5167 = vld [vmem:[%s5087 + $0x278] sm:$0xff]
        %v5168 = vld [vmem:[%s5087 + $0x280] sm:$0xff]
        %v5169 = vld [vmem:[%s5087 + $0x288] sm:$0xff]
        %v5170 = vld [vmem:[%s5087 + $0x290] sm:$0xff]
        %v5171 = vld [vmem:[%s5087 + $0x298] sm:$0xff]
        %v5172 = vld [vmem:[%s5087 + $0x2a0] sm:$0xff]
        %v5173 = vld [vmem:[%s5087 + $0x2a8] sm:$0xff]
        %v5174 = vld [vmem:[%s5087 + $0x2b0] sm:$0xff]
        %v5175 = vld [vmem:[%s5087 + $0x2b8] sm:$0xff]
        %v5176 = vld [vmem:[%s5087 + $0x2c0] sm:$0xff]
        %v5177 = vld [vmem:[%s5087 + $0x2c8] sm:$0xff]
        %v5178 = vld [vmem:[%s5087 + $0x2d0] sm:$0xff]
        %v5179 = vld [vmem:[%s5087 + $0x2d8] sm:$0xff]
        %v5180 = vld [vmem:[%s5087 + $0x2e0] sm:$0xff]
        %v5181 = vld [vmem:[%s5087 + $0x2e8] sm:$0xff]
        %v5182 = vld [vmem:[%s5087 + $0x2f0] sm:$0xff]
        %v5183 = vld [vmem:[%s5087 + $0x2f8] sm:$0xff]
        %v5184 = vld [vmem:[%s5087 + $0x300] sm:$0xff]
        %v5185 = vld [vmem:[%s5087 + $0x308] sm:$0xff]
        %v5186 = vld [vmem:[%s5087 + $0x310] sm:$0xff]
        %v5187 = vld [vmem:[%s5087 + $0x318] sm:$0xff]
        %v5188 = vld [vmem:[%s5087 + $0x320] sm:$0xff]
        %v5189 = vld [vmem:[%s5087 + $0x328] sm:$0xff]
        %v5190 = vld [vmem:[%s5087 + $0x330] sm:$0xff]
        %v5191 = vld [vmem:[%s5087 + $0x338] sm:$0xff]
        %v5192 = vld [vmem:[%s5087 + $0x340] sm:$0xff]
        %v5193 = vld [vmem:[%s5087 + $0x348] sm:$0xff]
        %v5194 = vld [vmem:[%s5087 + $0x350] sm:$0xff]
        %v5195 = vld [vmem:[%s5087 + $0x358] sm:$0xff]
        %v5196 = vld [vmem:[%s5087 + $0x360] sm:$0xff]
        %v5197 = vld [vmem:[%s5087 + $0x368] sm:$0xff]
        %v5198 = vld [vmem:[%s5087 + $0x370] sm:$0xff]
        %v5199 = vld [vmem:[%s5087 + $0x378] sm:$0xff]
        %v5200 = vld [vmem:[%s5087 + $0x380] sm:$0xff]
        %v5201 = vld [vmem:[%s5087 + $0x388] sm:$0xff]
        %v5202 = vld [vmem:[%s5087 + $0x390] sm:$0xff]
        %v5203 = vld [vmem:[%s5087 + $0x398] sm:$0xff]
        %v5204 = vld [vmem:[%s5087 + $0x3a0] sm:$0xff]
        %v5205 = vld [vmem:[%s5087 + $0x3a8] sm:$0xff]
        %v5206 = vld [vmem:[%s5087 + $0x3b0] sm:$0xff]
        %v5207 = vld [vmem:[%s5087 + $0x3b8] sm:$0xff]
        %v5208 = vld [vmem:[%s5087 + $0x3c0] sm:$0xff]
        %v5209 = vld [vmem:[%s5087 + $0x3c8] sm:$0xff]
        %v5210 = vld [vmem:[%s5087 + $0x3d0] sm:$0xff]
        %v5211 = vld [vmem:[%s5087 + $0x3d8] sm:$0xff]
        %v5212 = vld [vmem:[%s5087 + $0x3e0] sm:$0xff]
        %v5213 = vld [vmem:[%s5087 + $0x3e8] sm:$0xff]
        %v5214 = vld [vmem:[%s5087 + $0x3f0] sm:$0xff]
        %v5215 = vld [vmem:[%s5087 + $0x3f8] sm:$0xff]
        %v5216 = vld [vmem:[%s5087 + $0x400] sm:$0xff]
        %v5217 = vld [vmem:[%s5087 + $0x408] sm:$0xff]
        %v5218 = vld [vmem:[%s5087 + $0x410] sm:$0xff]
        %v5219 = vld [vmem:[%s5087 + $0x418] sm:$0xff]
        %v5220 = vld [vmem:[%s5087 + $0x420] sm:$0xff]
        %v5221 = vld [vmem:[%s5087 + $0x428] sm:$0xff]
        %v5222 = vld [vmem:[%s5087 + $0x430] sm:$0xff]
        %v5223 = vld [vmem:[%s5087 + $0x438] sm:$0xff]
        %v5224 = vld [vmem:[%s5087 + $0x440] sm:$0xff]
        %v5225 = vld [vmem:[%s5087 + $0x448] sm:$0xff]
        %v5226 = vld [vmem:[%s5087 + $0x450] sm:$0xff]
        %v5227 = vld [vmem:[%s5087 + $0x458] sm:$0xff]
        %v5228 = vld [vmem:[%s5087 + $0x460] sm:$0xff]
        %v5229 = vld [vmem:[%s5087 + $0x468] sm:$0xff]
        %v5230 = vld [vmem:[%s5087 + $0x470] sm:$0xff]
        %v5231 = vld [vmem:[%s5087 + $0x478] sm:$0xff]
        %v5232 = vld [vmem:[%s5087 + $0x480] sm:$0xff]
        %v5233 = vld [vmem:[%s5087 + $0x488] sm:$0xff]
        %v5234 = vld [vmem:[%s5087 + $0x490] sm:$0xff]
        %v5235 = vld [vmem:[%s5087 + $0x498] sm:$0xff]
        %v5236 = vld [vmem:[%s5087 + $0x4a0] sm:$0xff]
        %v5237 = vld [vmem:[%s5087 + $0x4a8] sm:$0xff]
        %v5238 = vld [vmem:[%s5087 + $0x4b0] sm:$0xff]
        %v5239 = vld [vmem:[%s5087 + $0x4b8] sm:$0xff]
        %v5240 = vld [vmem:[%s5087 + $0x4c0] sm:$0xff]
        %v5241 = vld [vmem:[%s5087 + $0x4c8] sm:$0xff]
        %v5242 = vld [vmem:[%s5087 + $0x4d0] sm:$0xff]
        %v5243 = vld [vmem:[%s5087 + $0x4d8] sm:$0xff]
        %v5244 = vld [vmem:[%s5087 + $0x4e0] sm:$0xff]
        %v5245 = vld [vmem:[%s5087 + $0x4e8] sm:$0xff]
        %v5246 = vld [vmem:[%s5087 + $0x4f0] sm:$0xff]
        %v5247 = vld [vmem:[%s5087 + $0x4f8] sm:$0xff]
        %v5248 = vld [vmem:[%s5087 + $0x500] sm:$0xff]
        %v5249 = vld [vmem:[%s5087 + $0x508] sm:$0xff]
        %v5250 = vld [vmem:[%s5087 + $0x510] sm:$0xff]
        %v5251 = vld [vmem:[%s5087 + $0x518] sm:$0xff]
        %v5252 = vld [vmem:[%s5087 + $0x520] sm:$0xff]
        %v5253 = vld [vmem:[%s5087 + $0x528] sm:$0xff]
        %v5254 = vld [vmem:[%s5087 + $0x530] sm:$0xff]
        %v5255 = vld [vmem:[%s5087 + $0x538] sm:$0xff]
        %v5256 = vld [vmem:[%s5087 + $0x540] sm:$0xff]
        %v5257 = vld [vmem:[%s5087 + $0x548] sm:$0xff]
        %v5258 = vld [vmem:[%s5087 + $0x550] sm:$0xff]
        %v5259 = vld [vmem:[%s5087 + $0x558] sm:$0xff]
        %v5260 = vld [vmem:[%s5087 + $0x560] sm:$0xff]
        %v5261 = vld [vmem:[%s5087 + $0x568] sm:$0xff]
        %v5262 = vld [vmem:[%s5087 + $0x570] sm:$0xff]
        %v5263 = vld [vmem:[%s5087 + $0x578] sm:$0xff]
        %v5264 = vld [vmem:[%s5087 + $0x580] sm:$0xff]
        %v5265 = vld [vmem:[%s5087 + $0x588] sm:$0xff]
        %v5266 = vld [vmem:[%s5087 + $0x590] sm:$0xff]
        %v5267 = vld [vmem:[%s5087 + $0x598] sm:$0xff]
        %v5268 = vld [vmem:[%s5087 + $0x5a0] sm:$0xff]
        %v5269 = vld [vmem:[%s5087 + $0x5a8] sm:$0xff]
        %v5270 = vld [vmem:[%s5087 + $0x5b0] sm:$0xff]
        %v5271 = vld [vmem:[%s5087 + $0x5b8] sm:$0xff]
        %v5272 = vld [vmem:[%s5087 + $0x5c0] sm:$0xff]
        %v5273 = vld [vmem:[%s5087 + $0x5c8] sm:$0xff]
        %v5274 = vld [vmem:[%s5087 + $0x5d0] sm:$0xff]
        %v5275 = vld [vmem:[%s5087 + $0x5d8] sm:$0xff]
        %v5276 = vld [vmem:[%s5087 + $0x5e0] sm:$0xff]
        %v5277 = vld [vmem:[%s5087 + $0x5e8] sm:$0xff]
        %v5278 = vld [vmem:[%s5087 + $0x5f0] sm:$0xff]
        %v5279 = vld [vmem:[%s5087 + $0x5f8] sm:$0xff]
        %v5280 = vld [vmem:[%s5087 + $0x600] sm:$0xff]
        %v5281 = vld [vmem:[%s5087 + $0x608] sm:$0xff]
        %v5282 = vld [vmem:[%s5087 + $0x610] sm:$0xff]
        %v5283 = vld [vmem:[%s5087 + $0x618] sm:$0xff]
        %v5284 = vld [vmem:[%s5087 + $0x620] sm:$0xff]
        %v5285 = vld [vmem:[%s5087 + $0x628] sm:$0xff]
        %v5286 = vld [vmem:[%s5087 + $0x630] sm:$0xff]
        %v5287 = vld [vmem:[%s5087 + $0x638] sm:$0xff]
        %v5288 = vld [vmem:[%s5087 + $0x640] sm:$0xff]
        %v5289 = vld [vmem:[%s5087 + $0x648] sm:$0xff]
        %v5290 = vld [vmem:[%s5087 + $0x650] sm:$0xff]
        %v5291 = vld [vmem:[%s5087 + $0x658] sm:$0xff]
        %v5292 = vld [vmem:[%s5087 + $0x660] sm:$0xff]
        %v5293 = vld [vmem:[%s5087 + $0x668] sm:$0xff]
        %v5294 = vld [vmem:[%s5087 + $0x670] sm:$0xff]
        %v5295 = vld [vmem:[%s5087 + $0x678] sm:$0xff]
        %v5296 = vld [vmem:[%s5087 + $0x680] sm:$0xff]
        %v5297 = vld [vmem:[%s5087 + $0x688] sm:$0xff]
        %v5298 = vld [vmem:[%s5087 + $0x690] sm:$0xff]
        %v5299 = vld [vmem:[%s5087 + $0x698] sm:$0xff]
        %v5300 = vld [vmem:[%s5087 + $0x6a0] sm:$0xff]
        %v5301 = vld [vmem:[%s5087 + $0x6a8] sm:$0xff]
        %v5302 = vld [vmem:[%s5087 + $0x6b0] sm:$0xff]
        %v5303 = vld [vmem:[%s5087 + $0x6b8] sm:$0xff]
        %v5304 = vld [vmem:[%s5087 + $0x6c0] sm:$0xff]
        %v5305 = vld [vmem:[%s5087 + $0x6c8] sm:$0xff]
        %v5306 = vld [vmem:[%s5087 + $0x6d0] sm:$0xff]
        %v5307 = vld [vmem:[%s5087 + $0x6d8] sm:$0xff]
        %v5308 = vld [vmem:[%s5087 + $0x6e0] sm:$0xff]
        %v5309 = vld [vmem:[%s5087 + $0x6e8] sm:$0xff]
        %v5310 = vld [vmem:[%s5087 + $0x6f0] sm:$0xff]
        %v5311 = vld [vmem:[%s5087 + $0x6f8] sm:$0xff]
        %v5312 = vld [vmem:[%s5087 + $0x700] sm:$0xff]
        %v5313 = vld [vmem:[%s5087 + $0x708] sm:$0xff]
        %v5314 = vld [vmem:[%s5087 + $0x710] sm:$0xff]
        %v5315 = vld [vmem:[%s5087 + $0x718] sm:$0xff]
        %v5316 = vld [vmem:[%s5087 + $0x720] sm:$0xff]
        %v5317 = vld [vmem:[%s5087 + $0x728] sm:$0xff]
        %v5318 = vld [vmem:[%s5087 + $0x730] sm:$0xff]
        %v5319 = vld [vmem:[%s5087 + $0x738] sm:$0xff]
        %v5320 = vld [vmem:[%s5087 + $0x740] sm:$0xff]
        %v5321 = vld [vmem:[%s5087 + $0x748] sm:$0xff]
        %v5322 = vld [vmem:[%s5087 + $0x750] sm:$0xff]
        %v5323 = vld [vmem:[%s5087 + $0x758] sm:$0xff]
        %v5324 = vld [vmem:[%s5087 + $0x760] sm:$0xff]
        %v5325 = vld [vmem:[%s5087 + $0x768] sm:$0xff]
        %v5326 = vld [vmem:[%s5087 + $0x770] sm:$0xff]
        %v5327 = vld [vmem:[%s5087 + $0x778] sm:$0xff]
        %v5328 = vld [vmem:[%s5087 + $0x780] sm:$0xff]
        %v5329 = vld [vmem:[%s5087 + $0x788] sm:$0xff]
        %v5330 = vld [vmem:[%s5087 + $0x790] sm:$0xff]
        %v5331 = vld [vmem:[%s5087 + $0x798] sm:$0xff]
        %v5332 = vld [vmem:[%s5087 + $0x7a0] sm:$0xff]
        %v5333 = vld [vmem:[%s5087 + $0x7a8] sm:$0xff]
        %v5334 = vld [vmem:[%s5087 + $0x7b0] sm:$0xff]
        %v5335 = vld [vmem:[%s5087 + $0x7b8] sm:$0xff]
        %v5336 = vld [vmem:[%s5087 + $0x7c0] sm:$0xff]
        %v5337 = vld [vmem:[%s5087 + $0x7c8] sm:$0xff]
        %v5338 = vld [vmem:[%s5087 + $0x7d0] sm:$0xff]
        %v5339 = vld [vmem:[%s5087 + $0x7d8] sm:$0xff]
        %v5340 = vld [vmem:[%s5087 + $0x7e0] sm:$0xff]
        %v5341 = vld [vmem:[%s5087 + $0x7e8] sm:$0xff]
        %v5342 = vld [vmem:[%s5087 + $0x7f0] sm:$0xff]
        %v5343 = vld [vmem:[%s5087 + $0x7f8] sm:$0xff]
        %s5344 = scalar_lea.vmem %s756, 1
        %v5345 = vld [vmem:[%s5344] sm:$0x1]
        %v5347 = vperm.slane %v5345, 0
        %5349 = vmatpush.msra.mxu0 %v5103
        %5350 = vmatpush.msra.mxu0 %v5102
        %5351 = vmatpush.msra.mxu0 %v5101
        %5352 = vmatpush.msra.mxu0 %v5100
        %5353 = vmatpush.msra.mxu0 %v5099
        %5354 = vmatpush.msra.mxu0 %v5098
        %5355 = vmatpush.msra.mxu0 %v5097
        %5356 = vmatpush.msra.mxu0 %v5096
        %5357 = vmatpush.msra.mxu0 %v5095
        %5358 = vmatpush.msra.mxu0 %v5094
        %5359 = vmatpush.msra.mxu0 %v5093
        %5360 = vmatpush.msra.mxu0 %v5092
        %5361 = vmatpush.msra.mxu0 %v5091
        %5362 = vmatpush.msra.mxu0 %v5090
        %5363 = vmatpush.msra.mxu0 %v5089
        %5364 = vmatpush.msra.mxu0 %v5088
        %5365 = vmatmul.f32.gmra.mxu0 %v5023
        %v5366 = vpop.f32.mrf.mxu0
        %v5367 = vadd.f32 %v5347, %v5366
        %5368 = vmatmul.f32.gmra.mxu0 %v5039
        %v5369 = vpop.f32.mrf.mxu0
        %v5370 = vadd.f32 %v5347, %v5369
        %5371 = vmatmul.f32.gmra.mxu0 %v5055
        %v5372 = vpop.f32.mrf.mxu0
        %v5373 = vadd.f32 %v5347, %v5372
        %5374 = vmatmul.f32.gmra.mxu0 %v5071
        %v5375 = vpop.f32.mrf.mxu0
        %v5376 = vadd.f32 %v5347, %v5375
        %5377 = vdwg.mxu0
        %5378 = vmatpush.msra.mxu0 %v5119
        %5379 = vmatpush.msra.mxu0 %v5118
        %5380 = vmatpush.msra.mxu0 %v5117
        %5381 = vmatpush.msra.mxu0 %v5116
        %5382 = vmatpush.msra.mxu0 %v5115
        %5383 = vmatpush.msra.mxu0 %v5114
        %5384 = vmatpush.msra.mxu0 %v5113
        %5385 = vmatpush.msra.mxu0 %v5112
        %5386 = vmatpush.msra.mxu0 %v5111
        %5387 = vmatpush.msra.mxu0 %v5110
        %5388 = vmatpush.msra.mxu0 %v5109
        %5389 = vmatpush.msra.mxu0 %v5108
        %5390 = vmatpush.msra.mxu0 %v5107
        %5391 = vmatpush.msra.mxu0 %v5106
        %5392 = vmatpush.msra.mxu0 %v5105
        %5393 = vmatpush.msra.mxu0 %v5104
        %5394 = vmatmul.f32.gmra.mxu0 %v5024
        %v5395 = vpop.f32.mrf.mxu0
        %v5396 = vadd.f32 %v5367, %v5395
        %5397 = vmatmul.f32.gmra.mxu0 %v5040
        %v5398 = vpop.f32.mrf.mxu0
        %v5399 = vadd.f32 %v5370, %v5398
        %5400 = vmatmul.f32.gmra.mxu0 %v5056
        %v5401 = vpop.f32.mrf.mxu0
        %v5402 = vadd.f32 %v5373, %v5401
        %5403 = vmatmul.f32.gmra.mxu0 %v5072
        %v5404 = vpop.f32.mrf.mxu0
        %v5405 = vadd.f32 %v5376, %v5404
        %5406 = vdwg.mxu0
        %5407 = vmatpush.msra.mxu0 %v5135
        %5408 = vmatpush.msra.mxu0 %v5134
        %5409 = vmatpush.msra.mxu0 %v5133
        %5410 = vmatpush.msra.mxu0 %v5132
        %5411 = vmatpush.msra.mxu0 %v5131
        %5412 = vmatpush.msra.mxu0 %v5130
        %5413 = vmatpush.msra.mxu0 %v5129
        %5414 = vmatpush.msra.mxu0 %v5128
        %5415 = vmatpush.msra.mxu0 %v5127
        %5416 = vmatpush.msra.mxu0 %v5126
        %5417 = vmatpush.msra.mxu0 %v5125
        %5418 = vmatpush.msra.mxu0 %v5124
        %5419 = vmatpush.msra.mxu0 %v5123
        %5420 = vmatpush.msra.mxu0 %v5122
        %5421 = vmatpush.msra.mxu0 %v5121
        %5422 = vmatpush.msra.mxu0 %v5120
        %5423 = vmatmul.f32.gmra.mxu0 %v5025
        %v5424 = vpop.f32.mrf.mxu0
        %v5425 = vadd.f32 %v5396, %v5424
        %5426 = vmatmul.f32.gmra.mxu0 %v5041
        %v5427 = vpop.f32.mrf.mxu0
        %v5428 = vadd.f32 %v5399, %v5427
        %5429 = vmatmul.f32.gmra.mxu0 %v5057
        %v5430 = vpop.f32.mrf.mxu0
        %v5431 = vadd.f32 %v5402, %v5430
        %5432 = vmatmul.f32.gmra.mxu0 %v5073
        %v5433 = vpop.f32.mrf.mxu0
        %v5434 = vadd.f32 %v5405, %v5433
        %5435 = vdwg.mxu0
        %5436 = vmatpush.msra.mxu0 %v5151
        %5437 = vmatpush.msra.mxu0 %v5150
        %5438 = vmatpush.msra.mxu0 %v5149
        %5439 = vmatpush.msra.mxu0 %v5148
        %5440 = vmatpush.msra.mxu0 %v5147
        %5441 = vmatpush.msra.mxu0 %v5146
        %5442 = vmatpush.msra.mxu0 %v5145
        %5443 = vmatpush.msra.mxu0 %v5144
        %5444 = vmatpush.msra.mxu0 %v5143
        %5445 = vmatpush.msra.mxu0 %v5142
        %5446 = vmatpush.msra.mxu0 %v5141
        %5447 = vmatpush.msra.mxu0 %v5140
        %5448 = vmatpush.msra.mxu0 %v5139
        %5449 = vmatpush.msra.mxu0 %v5138
        %5450 = vmatpush.msra.mxu0 %v5137
        %5451 = vmatpush.msra.mxu0 %v5136
        %5452 = vmatmul.f32.gmra.mxu0 %v5026
        %v5453 = vpop.f32.mrf.mxu0
        %v5454 = vadd.f32 %v5425, %v5453
        %5455 = vmatmul.f32.gmra.mxu0 %v5042
        %v5456 = vpop.f32.mrf.mxu0
        %v5457 = vadd.f32 %v5428, %v5456
        %5458 = vmatmul.f32.gmra.mxu0 %v5058
        %v5459 = vpop.f32.mrf.mxu0
        %v5460 = vadd.f32 %v5431, %v5459
        %5461 = vmatmul.f32.gmra.mxu0 %v5074
        %v5462 = vpop.f32.mrf.mxu0
        %v5463 = vadd.f32 %v5434, %v5462
        %5464 = vdwg.mxu0
        %5465 = vmatpush.msra.mxu0 %v5167
        %5466 = vmatpush.msra.mxu0 %v5166
        %5467 = vmatpush.msra.mxu0 %v5165
        %5468 = vmatpush.msra.mxu0 %v5164
        %5469 = vmatpush.msra.mxu0 %v5163
        %5470 = vmatpush.msra.mxu0 %v5162
        %5471 = vmatpush.msra.mxu0 %v5161
        %5472 = vmatpush.msra.mxu0 %v5160
        %5473 = vmatpush.msra.mxu0 %v5159
        %5474 = vmatpush.msra.mxu0 %v5158
        %5475 = vmatpush.msra.mxu0 %v5157
        %5476 = vmatpush.msra.mxu0 %v5156
        %5477 = vmatpush.msra.mxu0 %v5155
        %5478 = vmatpush.msra.mxu0 %v5154
        %5479 = vmatpush.msra.mxu0 %v5153
        %5480 = vmatpush.msra.mxu0 %v5152
        %5481 = vmatmul.f32.gmra.mxu0 %v5027
        %v5482 = vpop.f32.mrf.mxu0
        %v5483 = vadd.f32 %v5454, %v5482
        %5484 = vmatmul.f32.gmra.mxu0 %v5043
        %v5485 = vpop.f32.mrf.mxu0
        %v5486 = vadd.f32 %v5457, %v5485
        %5487 = vmatmul.f32.gmra.mxu0 %v5059
        %v5488 = vpop.f32.mrf.mxu0
        %v5489 = vadd.f32 %v5460, %v5488
        %5490 = vmatmul.f32.gmra.mxu0 %v5075
        %v5491 = vpop.f32.mrf.mxu0
        %v5492 = vadd.f32 %v5463, %v5491
        %5493 = vdwg.mxu0
        %5494 = vmatpush.msra.mxu0 %v5183
        %5495 = vmatpush.msra.mxu0 %v5182
        %5496 = vmatpush.msra.mxu0 %v5181
        %5497 = vmatpush.msra.mxu0 %v5180
        %5498 = vmatpush.msra.mxu0 %v5179
        %5499 = vmatpush.msra.mxu0 %v5178
        %5500 = vmatpush.msra.mxu0 %v5177
        %5501 = vmatpush.msra.mxu0 %v5176
        %5502 = vmatpush.msra.mxu0 %v5175
        %5503 = vmatpush.msra.mxu0 %v5174
        %5504 = vmatpush.msra.mxu0 %v5173
        %5505 = vmatpush.msra.mxu0 %v5172
        %5506 = vmatpush.msra.mxu0 %v5171
        %5507 = vmatpush.msra.mxu0 %v5170
        %5508 = vmatpush.msra.mxu0 %v5169
        %5509 = vmatpush.msra.mxu0 %v5168
        %5510 = vmatmul.f32.gmra.mxu0 %v5028
        %v5511 = vpop.f32.mrf.mxu0
        %v5512 = vadd.f32 %v5483, %v5511
        %5513 = vmatmul.f32.gmra.mxu0 %v5044
        %v5514 = vpop.f32.mrf.mxu0
        %v5515 = vadd.f32 %v5486, %v5514
        %5516 = vmatmul.f32.gmra.mxu0 %v5060
        %v5517 = vpop.f32.mrf.mxu0
        %v5518 = vadd.f32 %v5489, %v5517
        %5519 = vmatmul.f32.gmra.mxu0 %v5076
        %v5520 = vpop.f32.mrf.mxu0
        %v5521 = vadd.f32 %v5492, %v5520
        %5522 = vdwg.mxu0
        %5523 = vmatpush.msra.mxu0 %v5199
        %5524 = vmatpush.msra.mxu0 %v5198
        %5525 = vmatpush.msra.mxu0 %v5197
        %5526 = vmatpush.msra.mxu0 %v5196
        %5527 = vmatpush.msra.mxu0 %v5195
        %5528 = vmatpush.msra.mxu0 %v5194
        %5529 = vmatpush.msra.mxu0 %v5193
        %5530 = vmatpush.msra.mxu0 %v5192
        %5531 = vmatpush.msra.mxu0 %v5191
        %5532 = vmatpush.msra.mxu0 %v5190
        %5533 = vmatpush.msra.mxu0 %v5189
        %5534 = vmatpush.msra.mxu0 %v5188
        %5535 = vmatpush.msra.mxu0 %v5187
        %5536 = vmatpush.msra.mxu0 %v5186
        %5537 = vmatpush.msra.mxu0 %v5185
        %5538 = vmatpush.msra.mxu0 %v5184
        %5539 = vmatmul.f32.gmra.mxu0 %v5029
        %v5540 = vpop.f32.mrf.mxu0
        %v5541 = vadd.f32 %v5512, %v5540
        %5542 = vmatmul.f32.gmra.mxu0 %v5045
        %v5543 = vpop.f32.mrf.mxu0
        %v5544 = vadd.f32 %v5515, %v5543
        %5545 = vmatmul.f32.gmra.mxu0 %v5061
        %v5546 = vpop.f32.mrf.mxu0
        %v5547 = vadd.f32 %v5518, %v5546
        %5548 = vmatmul.f32.gmra.mxu0 %v5077
        %v5549 = vpop.f32.mrf.mxu0
        %v5550 = vadd.f32 %v5521, %v5549
        %5551 = vdwg.mxu0
        %5552 = vmatpush.msra.mxu0 %v5215
        %5553 = vmatpush.msra.mxu0 %v5214
        %5554 = vmatpush.msra.mxu0 %v5213
        %5555 = vmatpush.msra.mxu0 %v5212
        %5556 = vmatpush.msra.mxu0 %v5211
        %5557 = vmatpush.msra.mxu0 %v5210
        %5558 = vmatpush.msra.mxu0 %v5209
        %5559 = vmatpush.msra.mxu0 %v5208
        %5560 = vmatpush.msra.mxu0 %v5207
        %5561 = vmatpush.msra.mxu0 %v5206
        %5562 = vmatpush.msra.mxu0 %v5205
        %5563 = vmatpush.msra.mxu0 %v5204
        %5564 = vmatpush.msra.mxu0 %v5203
        %5565 = vmatpush.msra.mxu0 %v5202
        %5566 = vmatpush.msra.mxu0 %v5201
        %5567 = vmatpush.msra.mxu0 %v5200
        %5568 = vmatmul.f32.gmra.mxu0 %v5030
        %v5569 = vpop.f32.mrf.mxu0
        %v5570 = vadd.f32 %v5541, %v5569
        %5571 = vmatmul.f32.gmra.mxu0 %v5046
        %v5572 = vpop.f32.mrf.mxu0
        %v5573 = vadd.f32 %v5544, %v5572
        %5574 = vmatmul.f32.gmra.mxu0 %v5062
        %v5575 = vpop.f32.mrf.mxu0
        %v5576 = vadd.f32 %v5547, %v5575
        %5577 = vmatmul.f32.gmra.mxu0 %v5078
        %v5578 = vpop.f32.mrf.mxu0
        %v5579 = vadd.f32 %v5550, %v5578
        %5580 = vdwg.mxu0
        %5581 = vmatpush.msra.mxu0 %v5231
        %5582 = vmatpush.msra.mxu0 %v5230
        %5583 = vmatpush.msra.mxu0 %v5229
        %5584 = vmatpush.msra.mxu0 %v5228
        %5585 = vmatpush.msra.mxu0 %v5227
        %5586 = vmatpush.msra.mxu0 %v5226
        %5587 = vmatpush.msra.mxu0 %v5225
        %5588 = vmatpush.msra.mxu0 %v5224
        %5589 = vmatpush.msra.mxu0 %v5223
        %5590 = vmatpush.msra.mxu0 %v5222
        %5591 = vmatpush.msra.mxu0 %v5221
        %5592 = vmatpush.msra.mxu0 %v5220
        %5593 = vmatpush.msra.mxu0 %v5219
        %5594 = vmatpush.msra.mxu0 %v5218
        %5595 = vmatpush.msra.mxu0 %v5217
        %5596 = vmatpush.msra.mxu0 %v5216
        %5597 = vmatmul.f32.gmra.mxu0 %v5031
        %v5598 = vpop.f32.mrf.mxu0
        %v5599 = vadd.f32 %v5570, %v5598
        %5600 = vmatmul.f32.gmra.mxu0 %v5047
        %v5601 = vpop.f32.mrf.mxu0
        %v5602 = vadd.f32 %v5573, %v5601
        %5603 = vmatmul.f32.gmra.mxu0 %v5063
        %v5604 = vpop.f32.mrf.mxu0
        %v5605 = vadd.f32 %v5576, %v5604
        %5606 = vmatmul.f32.gmra.mxu0 %v5079
        %v5607 = vpop.f32.mrf.mxu0
        %v5608 = vadd.f32 %v5579, %v5607
        %5609 = vdwg.mxu0
        %5610 = vmatpush.msra.mxu0 %v5247
        %5611 = vmatpush.msra.mxu0 %v5246
        %5612 = vmatpush.msra.mxu0 %v5245
        %5613 = vmatpush.msra.mxu0 %v5244
        %5614 = vmatpush.msra.mxu0 %v5243
        %5615 = vmatpush.msra.mxu0 %v5242
        %5616 = vmatpush.msra.mxu0 %v5241
        %5617 = vmatpush.msra.mxu0 %v5240
        %5618 = vmatpush.msra.mxu0 %v5239
        %5619 = vmatpush.msra.mxu0 %v5238
        %5620 = vmatpush.msra.mxu0 %v5237
        %5621 = vmatpush.msra.mxu0 %v5236
        %5622 = vmatpush.msra.mxu0 %v5235
        %5623 = vmatpush.msra.mxu0 %v5234
        %5624 = vmatpush.msra.mxu0 %v5233
        %5625 = vmatpush.msra.mxu0 %v5232
        %5626 = vmatmul.f32.gmra.mxu0 %v5032
        %v5627 = vpop.f32.mrf.mxu0
        %v5628 = vadd.f32 %v5599, %v5627
        %5629 = vmatmul.f32.gmra.mxu0 %v5048
        %v5630 = vpop.f32.mrf.mxu0
        %v5631 = vadd.f32 %v5602, %v5630
        %5632 = vmatmul.f32.gmra.mxu0 %v5064
        %v5633 = vpop.f32.mrf.mxu0
        %v5634 = vadd.f32 %v5605, %v5633
        %5635 = vmatmul.f32.gmra.mxu0 %v5080
        %v5636 = vpop.f32.mrf.mxu0
        %v5637 = vadd.f32 %v5608, %v5636
        %5638 = vdwg.mxu0
        %5639 = vmatpush.msra.mxu0 %v5263
        %5640 = vmatpush.msra.mxu0 %v5262
        %5641 = vmatpush.msra.mxu0 %v5261
        %5642 = vmatpush.msra.mxu0 %v5260
        %5643 = vmatpush.msra.mxu0 %v5259
        %5644 = vmatpush.msra.mxu0 %v5258
        %5645 = vmatpush.msra.mxu0 %v5257
        %5646 = vmatpush.msra.mxu0 %v5256
        %5647 = vmatpush.msra.mxu0 %v5255
        %5648 = vmatpush.msra.mxu0 %v5254
        %5649 = vmatpush.msra.mxu0 %v5253
        %5650 = vmatpush.msra.mxu0 %v5252
        %5651 = vmatpush.msra.mxu0 %v5251
        %5652 = vmatpush.msra.mxu0 %v5250
        %5653 = vmatpush.msra.mxu0 %v5249
        %5654 = vmatpush.msra.mxu0 %v5248
        %5655 = vmatmul.f32.gmra.mxu0 %v5033
        %v5656 = vpop.f32.mrf.mxu0
        %v5657 = vadd.f32 %v5628, %v5656
        %5658 = vmatmul.f32.gmra.mxu0 %v5049
        %v5659 = vpop.f32.mrf.mxu0
        %v5660 = vadd.f32 %v5631, %v5659
        %5661 = vmatmul.f32.gmra.mxu0 %v5065
        %v5662 = vpop.f32.mrf.mxu0
        %v5663 = vadd.f32 %v5634, %v5662
        %5664 = vmatmul.f32.gmra.mxu0 %v5081
        %v5665 = vpop.f32.mrf.mxu0
        %v5666 = vadd.f32 %v5637, %v5665
        %5667 = vdwg.mxu0
        %5668 = vmatpush.msra.mxu0 %v5279
        %5669 = vmatpush.msra.mxu0 %v5278
        %5670 = vmatpush.msra.mxu0 %v5277
        %5671 = vmatpush.msra.mxu0 %v5276
        %5672 = vmatpush.msra.mxu0 %v5275
        %5673 = vmatpush.msra.mxu0 %v5274
        %5674 = vmatpush.msra.mxu0 %v5273
        %5675 = vmatpush.msra.mxu0 %v5272
        %5676 = vmatpush.msra.mxu0 %v5271
        %5677 = vmatpush.msra.mxu0 %v5270
        %5678 = vmatpush.msra.mxu0 %v5269
        %5679 = vmatpush.msra.mxu0 %v5268
        %5680 = vmatpush.msra.mxu0 %v5267
        %5681 = vmatpush.msra.mxu0 %v5266
        %5682 = vmatpush.msra.mxu0 %v5265
        %5683 = vmatpush.msra.mxu0 %v5264
        %5684 = vmatmul.f32.gmra.mxu0 %v5034
        %v5685 = vpop.f32.mrf.mxu0
        %v5686 = vadd.f32 %v5657, %v5685
        %5687 = vmatmul.f32.gmra.mxu0 %v5050
        %v5688 = vpop.f32.mrf.mxu0
        %v5689 = vadd.f32 %v5660, %v5688
        %5690 = vmatmul.f32.gmra.mxu0 %v5066
        %v5691 = vpop.f32.mrf.mxu0
        %v5692 = vadd.f32 %v5663, %v5691
        %5693 = vmatmul.f32.gmra.mxu0 %v5082
        %v5694 = vpop.f32.mrf.mxu0
        %v5695 = vadd.f32 %v5666, %v5694
        %5696 = vdwg.mxu0
        %5697 = vmatpush.msra.mxu0 %v5295
        %5698 = vmatpush.msra.mxu0 %v5294
        %5699 = vmatpush.msra.mxu0 %v5293
        %5700 = vmatpush.msra.mxu0 %v5292
        %5701 = vmatpush.msra.mxu0 %v5291
        %5702 = vmatpush.msra.mxu0 %v5290
        %5703 = vmatpush.msra.mxu0 %v5289
        %5704 = vmatpush.msra.mxu0 %v5288
        %5705 = vmatpush.msra.mxu0 %v5287
        %5706 = vmatpush.msra.mxu0 %v5286
        %5707 = vmatpush.msra.mxu0 %v5285
        %5708 = vmatpush.msra.mxu0 %v5284
        %5709 = vmatpush.msra.mxu0 %v5283
        %5710 = vmatpush.msra.mxu0 %v5282
        %5711 = vmatpush.msra.mxu0 %v5281
        %5712 = vmatpush.msra.mxu0 %v5280
        %5713 = vmatmul.f32.gmra.mxu0 %v5035
        %v5714 = vpop.f32.mrf.mxu0
        %v5715 = vadd.f32 %v5686, %v5714
        %5716 = vmatmul.f32.gmra.mxu0 %v5051
        %v5717 = vpop.f32.mrf.mxu0
        %v5718 = vadd.f32 %v5689, %v5717
        %5719 = vmatmul.f32.gmra.mxu0 %v5067
        %v5720 = vpop.f32.mrf.mxu0
        %v5721 = vadd.f32 %v5692, %v5720
        %5722 = vmatmul.f32.gmra.mxu0 %v5083
        %v5723 = vpop.f32.mrf.mxu0
        %v5724 = vadd.f32 %v5695, %v5723
        %5725 = vdwg.mxu0
        %5726 = vmatpush.msra.mxu0 %v5311
        %5727 = vmatpush.msra.mxu0 %v5310
        %5728 = vmatpush.msra.mxu0 %v5309
        %5729 = vmatpush.msra.mxu0 %v5308
        %5730 = vmatpush.msra.mxu0 %v5307
        %5731 = vmatpush.msra.mxu0 %v5306
        %5732 = vmatpush.msra.mxu0 %v5305
        %5733 = vmatpush.msra.mxu0 %v5304
        %5734 = vmatpush.msra.mxu0 %v5303
        %5735 = vmatpush.msra.mxu0 %v5302
        %5736 = vmatpush.msra.mxu0 %v5301
        %5737 = vmatpush.msra.mxu0 %v5300
        %5738 = vmatpush.msra.mxu0 %v5299
        %5739 = vmatpush.msra.mxu0 %v5298
        %5740 = vmatpush.msra.mxu0 %v5297
        %5741 = vmatpush.msra.mxu0 %v5296
        %5742 = vmatmul.f32.gmra.mxu0 %v5036
        %v5743 = vpop.f32.mrf.mxu0
        %v5744 = vadd.f32 %v5715, %v5743
        %5745 = vmatmul.f32.gmra.mxu0 %v5052
        %v5746 = vpop.f32.mrf.mxu0
        %v5747 = vadd.f32 %v5718, %v5746
        %5748 = vmatmul.f32.gmra.mxu0 %v5068
        %v5749 = vpop.f32.mrf.mxu0
        %v5750 = vadd.f32 %v5721, %v5749
        %5751 = vmatmul.f32.gmra.mxu0 %v5084
        %v5752 = vpop.f32.mrf.mxu0
        %v5753 = vadd.f32 %v5724, %v5752
        %5754 = vdwg.mxu0
        %5755 = vmatpush.msra.mxu0 %v5327
        %5756 = vmatpush.msra.mxu0 %v5326
        %5757 = vmatpush.msra.mxu0 %v5325
        %5758 = vmatpush.msra.mxu0 %v5324
        %5759 = vmatpush.msra.mxu0 %v5323
        %5760 = vmatpush.msra.mxu0 %v5322
        %5761 = vmatpush.msra.mxu0 %v5321
        %5762 = vmatpush.msra.mxu0 %v5320
        %5763 = vmatpush.msra.mxu0 %v5319
        %5764 = vmatpush.msra.mxu0 %v5318
        %5765 = vmatpush.msra.mxu0 %v5317
        %5766 = vmatpush.msra.mxu0 %v5316
        %5767 = vmatpush.msra.mxu0 %v5315
        %5768 = vmatpush.msra.mxu0 %v5314
        %5769 = vmatpush.msra.mxu0 %v5313
        %5770 = vmatpush.msra.mxu0 %v5312
        %5771 = vmatmul.f32.gmra.mxu0 %v5037
        %v5772 = vpop.f32.mrf.mxu0
        %v5773 = vadd.f32 %v5744, %v5772
        %5774 = vmatmul.f32.gmra.mxu0 %v5053
        %v5775 = vpop.f32.mrf.mxu0
        %v5776 = vadd.f32 %v5747, %v5775
        %5777 = vmatmul.f32.gmra.mxu0 %v5069
        %v5778 = vpop.f32.mrf.mxu0
        %v5779 = vadd.f32 %v5750, %v5778
        %5780 = vmatmul.f32.gmra.mxu0 %v5085
        %v5781 = vpop.f32.mrf.mxu0
        %v5782 = vadd.f32 %v5753, %v5781
        %5783 = vdwg.mxu0
        %5784 = vmatpush.msra.mxu0 %v5343
        %5785 = vmatpush.msra.mxu0 %v5342
        %5786 = vmatpush.msra.mxu0 %v5341
        %5787 = vmatpush.msra.mxu0 %v5340
        %5788 = vmatpush.msra.mxu0 %v5339
        %5789 = vmatpush.msra.mxu0 %v5338
        %5790 = vmatpush.msra.mxu0 %v5337
        %5791 = vmatpush.msra.mxu0 %v5336
        %5792 = vmatpush.msra.mxu0 %v5335
        %5793 = vmatpush.msra.mxu0 %v5334
        %5794 = vmatpush.msra.mxu0 %v5333
        %5795 = vmatpush.msra.mxu0 %v5332
        %5796 = vmatpush.msra.mxu0 %v5331
        %5797 = vmatpush.msra.mxu0 %v5330
        %5798 = vmatpush.msra.mxu0 %v5329
        %5799 = vmatpush.msra.mxu0 %v5328
        %5800 = vmatmul.f32.gmra.mxu0 %v5038
        %v5801 = vpop.f32.mrf.mxu0
        %v5802 = vadd.f32 %v5773, %v5801
        %5803 = vmatmul.f32.gmra.mxu0 %v5054
        %v5804 = vpop.f32.mrf.mxu0
        %v5805 = vadd.f32 %v5776, %v5804
        %5806 = vmatmul.f32.gmra.mxu0 %v5070
        %v5807 = vpop.f32.mrf.mxu0
        %v5808 = vadd.f32 %v5779, %v5807
        %5809 = vmatmul.f32.gmra.mxu0 %v5086
        %v5810 = vpop.f32.mrf.mxu0
        %v5811 = vadd.f32 %v5782, %v5810
        %5812 = vdwg.mxu0
        %v5813 = vadd.f32 %v4441, %v5802
        %v5814 = vadd.f32 %v4442, %v5805
        %v5815 = vadd.f32 %v4443, %v5808
        %v5816 = vadd.f32 %v4444, %v5811
        %s5817 = scalar_lea.vmem %s760, 1
        %v5818 = vld [vmem:[%s5817] sm:$0x1]
        %s5819 = scalar_lea.vmem %s764, 1
        %v5820 = vld [vmem:[%s5819] sm:$0x1]
        %v5821 = vsel %vm840, %v5813, 0.0
        %5822 = vadd.xlane.f32.xlu0 %v5821
        %v5823 = vpop.xlane.xlu0 %5822
        %v5824 = vsel %vm840, %v5814, 0.0
        %5825 = vadd.xlane.f32.xlu0 %v5824
        %v5826 = vpop.xlane.xlu0 %5825
        %v5827 = vsel %vm840, %v5815, 0.0
        %5828 = vadd.xlane.f32.xlu0 %v5827
        %v5829 = vpop.xlane.xlu0 %5828
        %v5830 = vsel %vm840, %v5816, 0.0
        %5831 = vadd.xlane.f32.xlu0 %v5830
        %v5832 = vpop.xlane.xlu0 %5831
        %v5833 = vmul.f32 %v5823, %v1814
        %v5834 = vmul.f32 %v5826, %v1814
        %v5835 = vmul.f32 %v5829, %v1814
        %v5836 = vmul.f32 %v5832, %v1814
        %v5837 = vsub.f32 %v5813, %v5833
        %v5838 = vsub.f32 %v5814, %v5834
        %v5839 = vsub.f32 %v5815, %v5835
        %v5840 = vsub.f32 %v5816, %v5836
        %v5841 = vmul.f32 %v5837, %v5837
        %v5842 = vmul.f32 %v5838, %v5838
        %v5843 = vmul.f32 %v5839, %v5839
        %v5844 = vmul.f32 %v5840, %v5840
        %v5845 = vsel %vm840, %v5841, 0.0
        %5846 = vadd.xlane.f32.xlu0 %v5845
        %v5847 = vpop.xlane.xlu0 %5846
        %v5848 = vsel %vm840, %v5842, 0.0
        %5849 = vadd.xlane.f32.xlu0 %v5848
        %v5850 = vpop.xlane.xlu0 %5849
        %v5851 = vsel %vm840, %v5843, 0.0
        %5852 = vadd.xlane.f32.xlu0 %v5851
        %v5853 = vpop.xlane.xlu0 %5852
        %v5854 = vsel %vm840, %v5844, 0.0
        %5855 = vadd.xlane.f32.xlu0 %v5854
        %v5856 = vpop.xlane.xlu0 %5855
        %v5857 = vmul.f32 %v5847, %v1814
        %v5858 = vmul.f32 %v5850, %v1814
        %v5859 = vmul.f32 %v5853, %v1814
        %v5860 = vmul.f32 %v5856, %v1814
        %v5861 = vadd.f32 %v5857, 1e-05
        %v5862 = vadd.f32 %v5858, 1e-05
        %v5863 = vadd.f32 %v5859, 1e-05
        %v5864 = vadd.f32 %v5860, 1e-05
        %v5865 = vrsqrt.pop %v5861
        %v5866 = vmul.f32 %v5865, %v5861
        %v5867 = vmul.f32 %v5866, %v5865
        %v5868 = vmul.f32 0.5, %v5867
        %v5869 = vsub.f32 1.5, %v5868
        %v5870 = vmul.f32 %v5865, %v5869
        %vm5871 = vweird.f32 %v5861
        %vm5872 = vweird.f32 %v5865
        %vm5873 = vmor %vm5871, %vm5872
        %v5874 = vsel %vm5873, %v5865, %v5870
        %v5875 = vrsqrt.pop %v5862
        %v5876 = vmul.f32 %v5875, %v5862
        %v5877 = vmul.f32 %v5876, %v5875
        %v5878 = vmul.f32 0.5, %v5877
        %v5879 = vsub.f32 1.5, %v5878
        %v5880 = vmul.f32 %v5875, %v5879
        %vm5881 = vweird.f32 %v5862
        %vm5882 = vweird.f32 %v5875
        %vm5883 = vmor %vm5881, %vm5882
        %v5884 = vsel %vm5883, %v5875, %v5880
        %v5885 = vrsqrt.pop %v5863
        %v5886 = vmul.f32 %v5885, %v5863
        %v5887 = vmul.f32 %v5886, %v5885
        %v5888 = vmul.f32 0.5, %v5887
        %v5889 = vsub.f32 1.5, %v5888
        %v5890 = vmul.f32 %v5885, %v5889
        %vm5891 = vweird.f32 %v5863
        %vm5892 = vweird.f32 %v5885
        %vm5893 = vmor %vm5891, %vm5892
        %v5894 = vsel %vm5893, %v5885, %v5890
        %v5895 = vrsqrt.pop %v5864
        %v5896 = vmul.f32 %v5895, %v5864
        %v5897 = vmul.f32 %v5896, %v5895
        %v5898 = vmul.f32 0.5, %v5897
        %v5899 = vsub.f32 1.5, %v5898
        %v5900 = vmul.f32 %v5895, %v5899
        %vm5901 = vweird.f32 %v5864
        %vm5902 = vweird.f32 %v5895
        %vm5903 = vmor %vm5901, %vm5902
        %v5904 = vsel %vm5903, %v5895, %v5900
        %v5905 = vmul.f32 %v5837, %v5874
        %v5906 = vmul.f32 %v5838, %v5884
        %v5907 = vmul.f32 %v5839, %v5894
        %v5908 = vmul.f32 %v5840, %v5904
        %v5910 = vperm.slane %v5818, 0
        %v5912 = vmul.f32 %v5905, %v5910
        %v5913 = vmul.f32 %v5906, %v5910
        %v5914 = vmul.f32 %v5907, %v5910
        %v5915 = vmul.f32 %v5908, %v5910
        %v5917 = vperm.slane %v5820, 0
        %v5919 = vadd.f32 %v5912, %v5917
        %v5920 = vadd.f32 %v5913, %v5917
        %v5921 = vadd.f32 %v5914, %v5917
        %v5922 = vadd.f32 %v5915, %v5917
        %v5923 = vlaneseq
        %v5924 = vshrl.u32 %v5923, 7
        %v5925 = vadd.s32 %v5924, 8
        %vm5926 = vcmp.lt.s32.totalorder %v5924, %v829
        %vm5927 = vcmp.lt.s32.totalorder %v5925, %v829
        %v5928 = vsel %vm5926, 1, 0
        %v5929 = vsel %vm5927, 1, 0
        %v5930 = vcvt.s32.f32 %v5928
        %v5931 = vcvt.s32.f32 %v5929
        %v5932 = vmul.f32 %v5919, %v5930
        %v5933 = vmul.f32 %v5920, %v5931
        %v5934 = vmul.f32 %v5921, %v5930
        %v5935 = vmul.f32 %v5922, %v5931
        %v5936 = vsel %vm840, %v5932, 0.0
        %v5937 = vsel %vm840, %v5933, 0.0
        %v5938 = vadd.f32 %v5936, %v5937
        %v5939 = vrot.slane %v5938, 4
        %v5940 = vadd.f32 %v5938, %v5939
        %v5941 = vrot.slane %v5940, 2
        %v5942 = vadd.f32 %v5940, %v5941
        %v5943 = vrot.slane %v5942, 1
        %v5944 = vadd.f32 %v5942, %v5943
        %v5945 = vsel %vm840, %v5934, 0.0
        %v5946 = vsel %vm840, %v5935, 0.0
        %v5947 = vadd.f32 %v5945, %v5946
        %v5948 = vrot.slane %v5947, 4
        %v5949 = vadd.f32 %v5947, %v5948
        %v5950 = vrot.slane %v5949, 2
        %v5951 = vadd.f32 %v5949, %v5950
        %v5952 = vrot.slane %v5951, 1
        %v5953 = vadd.f32 %v5951, %v5952
        %s5954 = scvt.s32.f32 %s765
        %v5955 = vstv %s5954
        %v5956 = vrcp.pop %v5955
        %v5957 = vmul.f32 %v5955, %v5956
        %v5958 = vsub.f32 1.0, %v5957
        %v5959 = vmul.f32 %v5956, %v5958
        %v5960 = vadd.f32 %v5956, %v5959
        %vm5961 = vweird.f32 %v5955
        %vm5962 = vweird.f32 %v5956
        %vm5963 = vmor %vm5961, %vm5962
        %v5964 = vsel %vm5963, %v5956, %v5960
        %v5965 = vand.u32 2147483647, %v5955
        %vm5966 = vcmp.eq.f32.partialorder %v5965, 8.507059e+37
        %v5967 = vand.u32 %v5955, 2147483648
        %v5968 = vor.u32 1.1754944e-38, %v5967
        %v5969 = vsel %vm5966, %v5968, %v5964
        %v5970 = vmul.f32 %v5944, %v5969
        %v5971 = vmul.f32 %v5953, %v5969
        %vm5974 = vcmask 1041409
        %v5975 = vsel %vm5974, %v5971, %v5970
        %vm5977 = vcmask 254976
        %5978 = vst.msk [vmem:[%s702] sm:$0x3] %vm5977, %v5975
        %s5979 = sand.u32 %s453, 1
        %s5980 = scalar_lea.sflag [#allocation5], %s5979
        %s5981 = sand.u32 %s453, 1
        %s5982 = smul.addr %s5981, 2
        %s5983 = scalar_lea.vmem [#allocation4], %s5982
        // Predicated region
        $region85: #{tpu_custom_call.1} parent=83 // pred_check
          %p5984 = pneg %p463
        $region86: #{tpu_custom_call.1} parent=83 // pred_check_branch
          %5986 = sbr.rel (%p5984) target = $region88
        $region87: #{tpu_custom_call.1} parent=83 // pred_region
          %5988 = vsyncadd %s5980, 0
          %s5989 = smul.addr %s39, 2
          %s5990 = scalar_lea.hbm %s17, %s5989
          %s5992 = sshll.u32 %s5983, 4
          %s5993 = int_to_ptr.vmem [resolvable:$true] %s5992
          %s5994 = sshll.u32 %s5990, 4
          %s5995 = int_to_ptr.hbm [resolvable:$true] %s5994
          %5997 = dma.vmem_to_hbm [thread:$0]  %s5993, 32, %s5995, %s5980
        $region88: #{tpu_custom_call.1} parent=83 // pred_fallthru
          _
      $region84: #{tpu_custom_call.1} parent=5 // pred_fallthru
        _
      %p5998 = scmp.le.s32.totalorder 2, %s34
      // Predicated region
      $region89: #{tpu_custom_call.1} parent=5 // pred_check
        %p5999 = pneg %p5998
      $region90: #{tpu_custom_call.1} parent=5 // pred_check_branch
        %6001 = sbr.rel (%p5999) target = $region92
      $region91: #{tpu_custom_call.1} parent=5 // pred_region
        %s6002 = ssub.s32 %s34, 2
        // Predicated region
        $region93: #{tpu_custom_call.1} parent=91 // pred_check
          %p6003 = pneg %p469
        $region94: #{tpu_custom_call.1} parent=91 // pred_check_branch
          %6005 = sbr.rel (%p6003) target = $region96
        $region95: #{tpu_custom_call.1} parent=91 // pred_region
          %s6006 = sand.u32 %s454, 1
          %s6007 = scalar_lea.sflag [#allocation5], %s6006
          %s6008 = sand.u32 %s454, 1
          %s6009 = smul.addr %s6008, 2
          %s6010 = scalar_lea.vmem [#allocation4], %s6009
          %6012 = dma.done %s6007, 32
        $region96: #{tpu_custom_call.1} parent=91 // pred_fallthru
          _
      $region92: #{tpu_custom_call.1} parent=5 // pred_fallthru
        _
    $region6: #{tpu_custom_call.1} parent=1 // loop_footer
      %s38 = sadd.s32 1, %s34
    $region7: #{tpu_custom_call.1} parent=1 // loop_footer_branch
      %33 = sbr.rel target = $region3
    $region8: #{tpu_custom_call.1} parent=1 // loop_exit
      _
    %6013 = vsyncpa [#allocation5], 1
    %s6014 = scalar_lea.sflag [#allocation5], 1
    %6015 = vsyncpa %s6014, 1

</llo_original>
